<compile_context>
chip_gen: v7x
topology: tpu7x:2x2x1
jax: 0.10.0
libtpu: 0.0.40
codegen_flags: <defaults>
</compile_context>

<pallas_src>
import jax
import jax.numpy as jnp
from jax.experimental import pallas as pl
from jax.experimental.pallas import tpu as pltpu


# ---------------------------------------------------------------------------
# Fused kernel: stacked LSTM over time (wavefront over layers) + final Linear.
# ---------------------------------------------------------------------------
def make_fused_kernel(T, B, layer_sizes, out_size):
    """layer_sizes: list of (in_size, hidden_size) per LSTM layer.

    Kernel refs, in order:
      xT   (T, I0, B)      bf16   time-major, per-step transposed input blocks
      per layer l: wx (4H, in) bf16, wh (4H, H) bf16, b (4H, 1) f32  [b = b_ih + b_hh]
      wo   (O, H_last)     bf16
      bo   (O, 1)          f32
      outT (O, B)          f32    (output, transposed; wrapper transposes back)
    """
    L = len(layer_sizes)

    def kernel(*refs):
        xT_ref = refs[0]
        p = 1
        layers = []
        for _ in range(L):
            layers.append((refs[p], refs[p + 1], refs[p + 2]))
            p += 3
        wo_ref, bo_ref, out_ref = refs[p], refs[p + 1], refs[p + 2]

        # Transposed-state recurrence: h_l, c_l are (H, B) f32.
        hs = [jnp.zeros((layer_sizes[l][1], B), jnp.float32) for l in range(L)]
        cs = [jnp.zeros((layer_sizes[l][1], B), jnp.float32) for l in range(L)]

        # Static trace-time unroll: T*L is small here; gives the LLO scheduler full
        # visibility to overlap layer l+1 / step t with layer l / step t+1 (wavefront).
        for t in range(T):
            for l in range(L):
                wx_ref, wh_ref, b_ref = layers[l]
                H = layer_sizes[l][1]

                if l == 0:
                    inp = xT_ref[t]                            # (I0, B) bf16
                else:
                    # Wavefront: consume layer l-1's hidden state of the SAME step t.
                    inp = hs[l - 1].astype(jnp.bfloat16)       # (H_prev, B)

                # Input projection: off the serial h->h chain of this layer.
                pre = jnp.dot(wx_ref[...], inp,
                              preferred_element_type=jnp.float32) + b_ref[...]
                # Recurrent matmul on the critical chain: M = 4H rows on the MXU.
                gates = pre + jnp.dot(wh_ref[...], hs[l].astype(jnp.bfloat16),
                                      preferred_element_type=jnp.float32)   # (4H, B) f32

                # Sublane-blocked gate slices (PyTorch order i, f, g, o); offsets are
                # multiples of H (H % 8 == 0 here) so no relayout is needed, and every
                # elementwise op below is tile-aligned with c/h.
                i_g = jax.nn.sigmoid(gates[0 * H:1 * H, :])
                f_g = jax.nn.sigmoid(gates[1 * H:2 * H, :])
                g_g = jnp.tanh(gates[2 * H:3 * H, :])
                o_g = jax.nn.sigmoid(gates[3 * H:4 * H, :])

                c = f_g * cs[l] + i_g * g_g
                hs[l] = o_g * jnp.tanh(c)
                cs[l] = c

        # Final Linear on the last hidden state of the last layer (kept transposed).
        out_ref[...] = (jnp.dot(wo_ref[...], hs[-1].astype(jnp.bfloat16),
                                preferred_element_type=jnp.float32) + bo_ref[...])

    return kernel


# ---------------------------------------------------------------------------
# One-time parameter preparation (PyTorch layout -> kernel layout)
# ---------------------------------------------------------------------------
def prepare_params(lstm_params, linear_params):
    """Called once at init: combine biases and cast MXU operands to bf16."""
    kernel_lstm = []
    for (w_ih, w_hh, b_ih, b_hh) in lstm_params:
        kernel_lstm.append((
            w_ih.astype(jnp.bfloat16),                        # (4H, in)
            w_hh.astype(jnp.bfloat16),                        # (4H, H)
            (b_ih + b_hh).astype(jnp.float32)[:, None],       # (4H, 1)
        ))
    w_out, b_out = linear_params
    kernel_linear = (w_out.astype(jnp.bfloat16),              # (O, H_last)
                     b_out.astype(jnp.float32)[:, None])      # (O, 1)
    return kernel_lstm, kernel_linear


# ---------------------------------------------------------------------------
# ModeloLSTM forward (Pallas) — matches the PyTorch module semantics
# ---------------------------------------------------------------------------
def modelo_lstm_forward(x, kernel_lstm, kernel_linear):
    """x: (B, T, I) batch_first. Returns (B, O)."""
    B, T, I = x.shape
    # batch_first (B,T,I) -> per-step transposed blocks (T, I, B); only x-dependent prep
    # remains in the forward path (weights were prepared once at init).
    xT = jnp.transpose(x, (1, 2, 0)).astype(jnp.bfloat16)

    inputs = [xT]
    layer_sizes = []
    in_size = I
    for (wx, wh, b) in kernel_lstm:
        H = wh.shape[1]
        layer_sizes.append((in_size, H))
        inputs += [wx, wh, b]
        in_size = H
    wo, bo = kernel_linear
    O = wo.shape[0]
    inputs += [wo, bo]

    kernel = make_fused_kernel(T, B, layer_sizes, O)
    vmem = pl.BlockSpec(memory_space=pltpu.MemorySpace.VMEM)
    outT = pl.pallas_call(
        kernel,
        out_shape=jax.ShapeDtypeStruct((O, B), jnp.float32),
        in_specs=[vmem] * len(inputs),
        out_specs=vmem,
    )(*inputs)
    return outT.T                                             # (B, O)


# ---------------------------------------------------------------------------
# Parameter init (matches nn.LSTM / nn.Linear default uniform(-1/sqrt(H), 1/sqrt(H)))
# ---------------------------------------------------------------------------
def init_params(key, input_size, hidden_sizes, output_size):
    lstm_params = []
    in_size = input_size
    for h in hidden_sizes:
        bound = 1.0 / float(h) ** 0.5
        key, k1, k2, k3, k4 = jax.random.split(key, 5)
        w_ih = jax.random.uniform(k1, (4 * h, in_size), jnp.float32, -bound, bound)
        w_hh = jax.random.uniform(k2, (4 * h, h), jnp.float32, -bound, bound)
        b_ih = jax.random.uniform(k3, (4 * h,), jnp.float32, -bound, bound)
        b_hh = jax.random.uniform(k4, (4 * h,), jnp.float32, -bound, bound)
        lstm_params.append((w_ih, w_hh, b_ih, b_hh))
        in_size = h
    bound = 1.0 / float(hidden_sizes[-1]) ** 0.5
    key, k1, k2 = jax.random.split(key, 3)
    w_out = jax.random.uniform(k1, (output_size, hidden_sizes[-1]), jnp.float32, -bound, bound)
    b_out = jax.random.uniform(k2, (output_size,), jnp.float32, -bound, bound)
    return lstm_params, (w_out, b_out)


# ---------------------------------------------------------------------------
# Pure-JAX (f32) reference for correctness check
# ---------------------------------------------------------------------------
def modelo_lstm_ref(x, lstm_params, linear_params):
    out = x.astype(jnp.float32)                  # (B, T, I)
    for (w_ih, w_hh, b_ih, b_hh) in lstm_params:
        B = out.shape[0]
        H = w_hh.shape[1]

        def step(carry, x_t, w_ih=w_ih, w_hh=w_hh, b_ih=b_ih, b_hh=b_hh, H=H):
            h, c = carry
            gates = x_t @ w_ih.T + h @ w_hh.T + b_ih + b_hh
            i = jax.nn.sigmoid(gates[:, 0:H])
            f = jax.nn.sigmoid(gates[:, H:2 * H])
            g = jnp.tanh(gates[:, 2 * H:3 * H])
            o = jax.nn.sigmoid(gates[:, 3 * H:4 * H])
            c = f * c + i * g
            h = o * jnp.tanh(c)
            return (h, c), h

        init = (jnp.zeros((B, H), jnp.float32), jnp.zeros((B, H), jnp.float32))
        _, hseq = jax.lax.scan(step, init, jnp.transpose(out, (1, 0, 2)))
        out = jnp.transpose(hseq, (1, 0, 2))
    w_out, b_out = linear_params
    return out[:, -1, :] @ w_out.T + b_out


if __name__ == "__main__":
    B, T, I = 8, 8, 4
    hidden_sizes = [32, 32]          # multiples of 8 keep gate sublane slices tile-aligned
    O = 1

    key = jax.random.PRNGKey(0)
    key, kx, kp = jax.random.split(key, 3)
    x = jax.random.normal(kx, (B, T, I), jnp.float32)
    lstm_params, linear_params = init_params(kp, I, hidden_sizes, O)
    kernel_lstm, kernel_linear = prepare_params(lstm_params, linear_params)

    fwd = jax.jit(modelo_lstm_forward)
    out = jax.block_until_ready(fwd(x, kernel_lstm, kernel_linear))

    ref = modelo_lstm_ref(x, lstm_params, linear_params)
    assert out.shape == (B, O), out.shape
    max_err = float(jnp.max(jnp.abs(out - ref)))
    # bf16 MXU operands vs. pure-f32 reference -> loosened tolerance.
    assert jnp.allclose(out, ref, atol=5e-2, rtol=5e-2), (max_err, out, ref)

    print("KERNEL_OK")
</pallas_src>

<mosaic_0001>
module attributes {stable_mosaic.version = 11 : i64} {
  func.func @kernel(%arg0: memref<8x4x8xbf16, #tpu.memory_space<vmem>>, %arg1: memref<128x4xbf16, #tpu.memory_space<vmem>>, %arg2: memref<128x32xbf16, #tpu.memory_space<vmem>>, %arg3: memref<128x1xf32, #tpu.memory_space<vmem>>, %arg4: memref<128x32xbf16, #tpu.memory_space<vmem>>, %arg5: memref<128x32xbf16, #tpu.memory_space<vmem>>, %arg6: memref<128x1xf32, #tpu.memory_space<vmem>>, %arg7: memref<1x32xbf16, #tpu.memory_space<vmem>>, %arg8: memref<1x1xf32, #tpu.memory_space<vmem>>, %arg9: memref<1x8xf32, #tpu.memory_space<vmem>>) attributes {dimension_semantics = [], scalar_prefetch = 0 : i64, scratch_operands = 0 : i64, tpu.core_type = #tpu.core_type<tc>} {
    %cst = arith.constant 0.000000e+00 : f32
    %0 = vector.broadcast %cst : f32 to vector<32x8xf32>
    %cst_0 = arith.constant 0.000000e+00 : f32
    %1 = vector.broadcast %cst_0 : f32 to vector<32x8xf32>
    %cst_1 = arith.constant 0.000000e+00 : f32
    %2 = vector.broadcast %cst_1 : f32 to vector<32x8xf32>
    %cst_2 = arith.constant 0.000000e+00 : f32
    %3 = vector.broadcast %cst_2 : f32 to vector<32x8xf32>
    %c0 = arith.constant 0 : index
    %c0_3 = arith.constant 0 : index
    %c0_4 = arith.constant 0 : index
    %4 = vector.load %arg0[%c0, %c0_3, %c0_4] : memref<8x4x8xbf16, #tpu.memory_space<vmem>>, vector<1x4x8xbf16>
    %5 = vector.shape_cast %4 : vector<1x4x8xbf16> to vector<4x8xbf16>
    %c0_5 = arith.constant 0 : index
    %c0_6 = arith.constant 0 : index
    %6 = vector.load %arg1[%c0_5, %c0_6] : memref<128x4xbf16, #tpu.memory_space<vmem>>, vector<128x4xbf16>
    %cst_7 = arith.constant dense<0.000000e+00> : vector<128x8xf32>
    %7 = tpu.matmul %6, %5, %cst_7 {dimension_numbers = #tpu.dot_dimension_numbers<[1], [0], [0], [1], [0, 0, 1, 1], [], []>} : vector<128x4xbf16>, vector<4x8xbf16>, vector<128x8xf32> -> vector<128x8xf32>
    %c0_8 = arith.constant 0 : index
    %c0_9 = arith.constant 0 : index
    %8 = vector.load %arg3[%c0_8, %c0_9] : memref<128x1xf32, #tpu.memory_space<vmem>>, vector<128x1xf32>
    %9 = vector.broadcast %8 : vector<128x1xf32> to vector<128x8xf32>
    %10 = arith.addf %7, %9 : vector<128x8xf32>
    %c0_10 = arith.constant 0 : index
    %c0_11 = arith.constant 0 : index
    %11 = vector.load %arg2[%c0_10, %c0_11] : memref<128x32xbf16, #tpu.memory_space<vmem>>, vector<128x32xbf16>
    %12 = arith.truncf %0 : vector<32x8xf32> to vector<32x8xbf16>
    %cst_12 = arith.constant dense<0.000000e+00> : vector<128x8xf32>
    %13 = tpu.matmul %11, %12, %cst_12 {dimension_numbers = #tpu.dot_dimension_numbers<[1], [0], [0], [1], [0, 0, 1, 1], [], []>} : vector<128x32xbf16>, vector<32x8xbf16>, vector<128x8xf32> -> vector<128x8xf32>
    %14 = arith.addf %10, %13 : vector<128x8xf32>
    %15 = vector.extract_strided_slice %14 {offsets = [0, 0], sizes = [32, 8], strides = [1, 1]} : vector<128x8xf32> to vector<32x8xf32>
    %16 = arith.negf %15 : vector<32x8xf32>
    %17 = math.exp %16 : vector<32x8xf32>
    %cst_13 = arith.constant 1.000000e+00 : f32
    %18 = vector.broadcast %cst_13 : f32 to vector<32x8xf32>
    %19 = arith.addf %18, %17 : vector<32x8xf32>
    %20 = arith.divf %18, %19 : vector<32x8xf32>
    %21 = vector.extract_strided_slice %14 {offsets = [32, 0], sizes = [32, 8], strides = [1, 1]} : vector<128x8xf32> to vector<32x8xf32>
    %22 = arith.negf %21 : vector<32x8xf32>
    %23 = math.exp %22 : vector<32x8xf32>
    %cst_14 = arith.constant 1.000000e+00 : f32
    %24 = vector.broadcast %cst_14 : f32 to vector<32x8xf32>
    %25 = arith.addf %24, %23 : vector<32x8xf32>
    %26 = arith.divf %24, %25 : vector<32x8xf32>
    %27 = vector.extract_strided_slice %14 {offsets = [64, 0], sizes = [32, 8], strides = [1, 1]} : vector<128x8xf32> to vector<32x8xf32>
    %28 = math.tanh %27 : vector<32x8xf32>
    %29 = vector.extract_strided_slice %14 {offsets = [96, 0], sizes = [32, 8], strides = [1, 1]} : vector<128x8xf32> to vector<32x8xf32>
    %30 = arith.negf %29 : vector<32x8xf32>
    %31 = math.exp %30 : vector<32x8xf32>
    %cst_15 = arith.constant 1.000000e+00 : f32
    %32 = vector.broadcast %cst_15 : f32 to vector<32x8xf32>
    %33 = arith.addf %32, %31 : vector<32x8xf32>
    %34 = arith.divf %32, %33 : vector<32x8xf32>
    %35 = arith.mulf %26, %2 : vector<32x8xf32>
    %36 = arith.mulf %20, %28 : vector<32x8xf32>
    %37 = arith.addf %35, %36 : vector<32x8xf32>
    %38 = math.tanh %37 : vector<32x8xf32>
    %39 = arith.mulf %34, %38 : vector<32x8xf32>
    %40 = arith.truncf %39 : vector<32x8xf32> to vector<32x8xbf16>
    %c0_16 = arith.constant 0 : index
    %c0_17 = arith.constant 0 : index
    %41 = vector.load %arg4[%c0_16, %c0_17] : memref<128x32xbf16, #tpu.memory_space<vmem>>, vector<128x32xbf16>
    %cst_18 = arith.constant dense<0.000000e+00> : vector<128x8xf32>
    %42 = tpu.matmul %41, %40, %cst_18 {dimension_numbers = #tpu.dot_dimension_numbers<[1], [0], [0], [1], [0, 0, 1, 1], [], []>} : vector<128x32xbf16>, vector<32x8xbf16>, vector<128x8xf32> -> vector<128x8xf32>
    %c0_19 = arith.constant 0 : index
    %c0_20 = arith.constant 0 : index
    %43 = vector.load %arg6[%c0_19, %c0_20] : memref<128x1xf32, #tpu.memory_space<vmem>>, vector<128x1xf32>
    %44 = vector.broadcast %43 : vector<128x1xf32> to vector<128x8xf32>
    %45 = arith.addf %42, %44 : vector<128x8xf32>
    %c0_21 = arith.constant 0 : index
    %c0_22 = arith.constant 0 : index
    %46 = vector.load %arg5[%c0_21, %c0_22] : memref<128x32xbf16, #tpu.memory_space<vmem>>, vector<128x32xbf16>
    %47 = arith.truncf %1 : vector<32x8xf32> to vector<32x8xbf16>
    %cst_23 = arith.constant dense<0.000000e+00> : vector<128x8xf32>
    %48 = tpu.matmul %46, %47, %cst_23 {dimension_numbers = #tpu.dot_dimension_numbers<[1], [0], [0], [1], [0, 0, 1, 1], [], []>} : vector<128x32xbf16>, vector<32x8xbf16>, vector<128x8xf32> -> vector<128x8xf32>
    %49 = arith.addf %45, %48 : vector<128x8xf32>
    %50 = vector.extract_strided_slice %49 {offsets = [0, 0], sizes = [32, 8], strides = [1, 1]} : vector<128x8xf32> to vector<32x8xf32>
    %51 = arith.negf %50 : vector<32x8xf32>
    %52 = math.exp %51 : vector<32x8xf32>
    %cst_24 = arith.constant 1.000000e+00 : f32
    %53 = vector.broadcast %cst_24 : f32 to vector<32x8xf32>
    %54 = arith.addf %53, %52 : vector<32x8xf32>
    %55 = arith.divf %53, %54 : vector<32x8xf32>
    %56 = vector.extract_strided_slice %49 {offsets = [32, 0], sizes = [32, 8], strides = [1, 1]} : vector<128x8xf32> to vector<32x8xf32>
    %57 = arith.negf %56 : vector<32x8xf32>
    %58 = math.exp %57 : vector<32x8xf32>
    %cst_25 = arith.constant 1.000000e+00 : f32
    %59 = vector.broadcast %cst_25 : f32 to vector<32x8xf32>
    %60 = arith.addf %59, %58 : vector<32x8xf32>
    %61 = arith.divf %59, %60 : vector<32x8xf32>
    %62 = vector.extract_strided_slice %49 {offsets = [64, 0], sizes = [32, 8], strides = [1, 1]} : vector<128x8xf32> to vector<32x8xf32>
    %63 = math.tanh %62 : vector<32x8xf32>
    %64 = vector.extract_strided_slice %49 {offsets = [96, 0], sizes = [32, 8], strides = [1, 1]} : vector<128x8xf32> to vector<32x8xf32>
    %65 = arith.negf %64 : vector<32x8xf32>
    %66 = math.exp %65 : vector<32x8xf32>
    %cst_26 = arith.constant 1.000000e+00 : f32
    %67 = vector.broadcast %cst_26 : f32 to vector<32x8xf32>
    %68 = arith.addf %67, %66 : vector<32x8xf32>
    %69 = arith.divf %67, %68 : vector<32x8xf32>
    %70 = arith.mulf %61, %3 : vector<32x8xf32>
    %71 = arith.mulf %55, %63 : vector<32x8xf32>
    %72 = arith.addf %70, %71 : vector<32x8xf32>
    %73 = math.tanh %72 : vector<32x8xf32>
    %74 = arith.mulf %69, %73 : vector<32x8xf32>
    %c1 = arith.constant 1 : index
    %c0_27 = arith.constant 0 : index
    %c0_28 = arith.constant 0 : index
    %75 = vector.load %arg0[%c1, %c0_27, %c0_28] : memref<8x4x8xbf16, #tpu.memory_space<vmem>>, vector<1x4x8xbf16>
    %76 = vector.shape_cast %75 : vector<1x4x8xbf16> to vector<4x8xbf16>
    %c0_29 = arith.constant 0 : index
    %c0_30 = arith.constant 0 : index
    %77 = vector.load %arg1[%c0_29, %c0_30] : memref<128x4xbf16, #tpu.memory_space<vmem>>, vector<128x4xbf16>
    %cst_31 = arith.constant dense<0.000000e+00> : vector<128x8xf32>
    %78 = tpu.matmul %77, %76, %cst_31 {dimension_numbers = #tpu.dot_dimension_numbers<[1], [0], [0], [1], [0, 0, 1, 1], [], []>} : vector<128x4xbf16>, vector<4x8xbf16>, vector<128x8xf32> -> vector<128x8xf32>
    %c0_32 = arith.constant 0 : index
    %c0_33 = arith.constant 0 : index
    %79 = vector.load %arg3[%c0_32, %c0_33] : memref<128x1xf32, #tpu.memory_space<vmem>>, vector<128x1xf32>
    %80 = vector.broadcast %79 : vector<128x1xf32> to vector<128x8xf32>
    %81 = arith.addf %78, %80 : vector<128x8xf32>
    %c0_34 = arith.constant 0 : index
    %c0_35 = arith.constant 0 : index
    %82 = vector.load %arg2[%c0_34, %c0_35] : memref<128x32xbf16, #tpu.memory_space<vmem>>, vector<128x32xbf16>
    %83 = arith.truncf %39 : vector<32x8xf32> to vector<32x8xbf16>
    %cst_36 = arith.constant dense<0.000000e+00> : vector<128x8xf32>
    %84 = tpu.matmul %82, %83, %cst_36 {dimension_numbers = #tpu.dot_dimension_numbers<[1], [0], [0], [1], [0, 0, 1, 1], [], []>} : vector<128x32xbf16>, vector<32x8xbf16>, vector<128x8xf32> -> vector<128x8xf32>
    %85 = arith.addf %81, %84 : vector<128x8xf32>
    %86 = vector.extract_strided_slice %85 {offsets = [0, 0], sizes = [32, 8], strides = [1, 1]} : vector<128x8xf32> to vector<32x8xf32>
    %87 = arith.negf %86 : vector<32x8xf32>
    %88 = math.exp %87 : vector<32x8xf32>
    %cst_37 = arith.constant 1.000000e+00 : f32
    %89 = vector.broadcast %cst_37 : f32 to vector<32x8xf32>
    %90 = arith.addf %89, %88 : vector<32x8xf32>
    %91 = arith.divf %89, %90 : vector<32x8xf32>
    %92 = vector.extract_strided_slice %85 {offsets = [32, 0], sizes = [32, 8], strides = [1, 1]} : vector<128x8xf32> to vector<32x8xf32>
    %93 = arith.negf %92 : vector<32x8xf32>
    %94 = math.exp %93 : vector<32x8xf32>
    %cst_38 = arith.constant 1.000000e+00 : f32
    %95 = vector.broadcast %cst_38 : f32 to vector<32x8xf32>
    %96 = arith.addf %95, %94 : vector<32x8xf32>
    %97 = arith.divf %95, %96 : vector<32x8xf32>
    %98 = vector.extract_strided_slice %85 {offsets = [64, 0], sizes = [32, 8], strides = [1, 1]} : vector<128x8xf32> to vector<32x8xf32>
    %99 = math.tanh %98 : vector<32x8xf32>
    %100 = vector.extract_strided_slice %85 {offsets = [96, 0], sizes = [32, 8], strides = [1, 1]} : vector<128x8xf32> to vector<32x8xf32>
    %101 = arith.negf %100 : vector<32x8xf32>
    %102 = math.exp %101 : vector<32x8xf32>
    %cst_39 = arith.constant 1.000000e+00 : f32
    %103 = vector.broadcast %cst_39 : f32 to vector<32x8xf32>
    %104 = arith.addf %103, %102 : vector<32x8xf32>
    %105 = arith.divf %103, %104 : vector<32x8xf32>
    %106 = arith.mulf %97, %37 : vector<32x8xf32>
    %107 = arith.mulf %91, %99 : vector<32x8xf32>
    %108 = arith.addf %106, %107 : vector<32x8xf32>
    %109 = math.tanh %108 : vector<32x8xf32>
    %110 = arith.mulf %105, %109 : vector<32x8xf32>
    %111 = arith.truncf %110 : vector<32x8xf32> to vector<32x8xbf16>
    %c0_40 = arith.constant 0 : index
    %c0_41 = arith.constant 0 : index
    %112 = vector.load %arg4[%c0_40, %c0_41] : memref<128x32xbf16, #tpu.memory_space<vmem>>, vector<128x32xbf16>
    %cst_42 = arith.constant dense<0.000000e+00> : vector<128x8xf32>
    %113 = tpu.matmul %112, %111, %cst_42 {dimension_numbers = #tpu.dot_dimension_numbers<[1], [0], [0], [1], [0, 0, 1, 1], [], []>} : vector<128x32xbf16>, vector<32x8xbf16>, vector<128x8xf32> -> vector<128x8xf32>
    %c0_43 = arith.constant 0 : index
    %c0_44 = arith.constant 0 : index
    %114 = vector.load %arg6[%c0_43, %c0_44] : memref<128x1xf32, #tpu.memory_space<vmem>>, vector<128x1xf32>
    %115 = vector.broadcast %114 : vector<128x1xf32> to vector<128x8xf32>
    %116 = arith.addf %113, %115 : vector<128x8xf32>
    %c0_45 = arith.constant 0 : index
    %c0_46 = arith.constant 0 : index
    %117 = vector.load %arg5[%c0_45, %c0_46] : memref<128x32xbf16, #tpu.memory_space<vmem>>, vector<128x32xbf16>
    %118 = arith.truncf %74 : vector<32x8xf32> to vector<32x8xbf16>
    %cst_47 = arith.constant dense<0.000000e+00> : vector<128x8xf32>
    %119 = tpu.matmul %117, %118, %cst_47 {dimension_numbers = #tpu.dot_dimension_numbers<[1], [0], [0], [1], [0, 0, 1, 1], [], []>} : vector<128x32xbf16>, vector<32x8xbf16>, vector<128x8xf32> -> vector<128x8xf32>
    %120 = arith.addf %116, %119 : vector<128x8xf32>
    %121 = vector.extract_strided_slice %120 {offsets = [0, 0], sizes = [32, 8], strides = [1, 1]} : vector<128x8xf32> to vector<32x8xf32>
    %122 = arith.negf %121 : vector<32x8xf32>
    %123 = math.exp %122 : vector<32x8xf32>
    %cst_48 = arith.constant 1.000000e+00 : f32
    %124 = vector.broadcast %cst_48 : f32 to vector<32x8xf32>
    %125 = arith.addf %124, %123 : vector<32x8xf32>
    %126 = arith.divf %124, %125 : vector<32x8xf32>
    %127 = vector.extract_strided_slice %120 {offsets = [32, 0], sizes = [32, 8], strides = [1, 1]} : vector<128x8xf32> to vector<32x8xf32>
    %128 = arith.negf %127 : vector<32x8xf32>
    %129 = math.exp %128 : vector<32x8xf32>
    %cst_49 = arith.constant 1.000000e+00 : f32
    %130 = vector.broadcast %cst_49 : f32 to vector<32x8xf32>
    %131 = arith.addf %130, %129 : vector<32x8xf32>
    %132 = arith.divf %130, %131 : vector<32x8xf32>
    %133 = vector.extract_strided_slice %120 {offsets = [64, 0], sizes = [32, 8], strides = [1, 1]} : vector<128x8xf32> to vector<32x8xf32>
    %134 = math.tanh %133 : vector<32x8xf32>
    %135 = vector.extract_strided_slice %120 {offsets = [96, 0], sizes = [32, 8], strides = [1, 1]} : vector<128x8xf32> to vector<32x8xf32>
    %136 = arith.negf %135 : vector<32x8xf32>
    %137 = math.exp %136 : vector<32x8xf32>
    %cst_50 = arith.constant 1.000000e+00 : f32
    %138 = vector.broadcast %cst_50 : f32 to vector<32x8xf32>
    %139 = arith.addf %138, %137 : vector<32x8xf32>
    %140 = arith.divf %138, %139 : vector<32x8xf32>
    %141 = arith.mulf %132, %72 : vector<32x8xf32>
    %142 = arith.mulf %126, %134 : vector<32x8xf32>
    %143 = arith.addf %141, %142 : vector<32x8xf32>
    %144 = math.tanh %143 : vector<32x8xf32>
    %145 = arith.mulf %140, %144 : vector<32x8xf32>
    %c2 = arith.constant 2 : index
    %c0_51 = arith.constant 0 : index
    %c0_52 = arith.constant 0 : index
    %146 = vector.load %arg0[%c2, %c0_51, %c0_52] : memref<8x4x8xbf16, #tpu.memory_space<vmem>>, vector<1x4x8xbf16>
    %147 = vector.shape_cast %146 : vector<1x4x8xbf16> to vector<4x8xbf16>
    %c0_53 = arith.constant 0 : index
    %c0_54 = arith.constant 0 : index
    %148 = vector.load %arg1[%c0_53, %c0_54] : memref<128x4xbf16, #tpu.memory_space<vmem>>, vector<128x4xbf16>
    %cst_55 = arith.constant dense<0.000000e+00> : vector<128x8xf32>
    %149 = tpu.matmul %148, %147, %cst_55 {dimension_numbers = #tpu.dot_dimension_numbers<[1], [0], [0], [1], [0, 0, 1, 1], [], []>} : vector<128x4xbf16>, vector<4x8xbf16>, vector<128x8xf32> -> vector<128x8xf32>
    %c0_56 = arith.constant 0 : index
    %c0_57 = arith.constant 0 : index
    %150 = vector.load %arg3[%c0_56, %c0_57] : memref<128x1xf32, #tpu.memory_space<vmem>>, vector<128x1xf32>
    %151 = vector.broadcast %150 : vector<128x1xf32> to vector<128x8xf32>
    %152 = arith.addf %149, %151 : vector<128x8xf32>
    %c0_58 = arith.constant 0 : index
    %c0_59 = arith.constant 0 : index
    %153 = vector.load %arg2[%c0_58, %c0_59] : memref<128x32xbf16, #tpu.memory_space<vmem>>, vector<128x32xbf16>
    %154 = arith.truncf %110 : vector<32x8xf32> to vector<32x8xbf16>
    %cst_60 = arith.constant dense<0.000000e+00> : vector<128x8xf32>
    %155 = tpu.matmul %153, %154, %cst_60 {dimension_numbers = #tpu.dot_dimension_numbers<[1], [0], [0], [1], [0, 0, 1, 1], [], []>} : vector<128x32xbf16>, vector<32x8xbf16>, vector<128x8xf32> -> vector<128x8xf32>
    %156 = arith.addf %152, %155 : vector<128x8xf32>
    %157 = vector.extract_strided_slice %156 {offsets = [0, 0], sizes = [32, 8], strides = [1, 1]} : vector<128x8xf32> to vector<32x8xf32>
    %158 = arith.negf %157 : vector<32x8xf32>
    %159 = math.exp %158 : vector<32x8xf32>
    %cst_61 = arith.constant 1.000000e+00 : f32
    %160 = vector.broadcast %cst_61 : f32 to vector<32x8xf32>
    %161 = arith.addf %160, %159 : vector<32x8xf32>
    %162 = arith.divf %160, %161 : vector<32x8xf32>
    %163 = vector.extract_strided_slice %156 {offsets = [32, 0], sizes = [32, 8], strides = [1, 1]} : vector<128x8xf32> to vector<32x8xf32>
    %164 = arith.negf %163 : vector<32x8xf32>
    %165 = math.exp %164 : vector<32x8xf32>
    %cst_62 = arith.constant 1.000000e+00 : f32
    %166 = vector.broadcast %cst_62 : f32 to vector<32x8xf32>
    %167 = arith.addf %166, %165 : vector<32x8xf32>
    %168 = arith.divf %166, %167 : vector<32x8xf32>
    %169 = vector.extract_strided_slice %156 {offsets = [64, 0], sizes = [32, 8], strides = [1, 1]} : vector<128x8xf32> to vector<32x8xf32>
    %170 = math.tanh %169 : vector<32x8xf32>
    %171 = vector.extract_strided_slice %156 {offsets = [96, 0], sizes = [32, 8], strides = [1, 1]} : vector<128x8xf32> to vector<32x8xf32>
    %172 = arith.negf %171 : vector<32x8xf32>
    %173 = math.exp %172 : vector<32x8xf32>
    %cst_63 = arith.constant 1.000000e+00 : f32
    %174 = vector.broadcast %cst_63 : f32 to vector<32x8xf32>
    %175 = arith.addf %174, %173 : vector<32x8xf32>
    %176 = arith.divf %174, %175 : vector<32x8xf32>
    %177 = arith.mulf %168, %108 : vector<32x8xf32>
    %178 = arith.mulf %162, %170 : vector<32x8xf32>
    %179 = arith.addf %177, %178 : vector<32x8xf32>
    %180 = math.tanh %179 : vector<32x8xf32>
    %181 = arith.mulf %176, %180 : vector<32x8xf32>
    %182 = arith.truncf %181 : vector<32x8xf32> to vector<32x8xbf16>
    %c0_64 = arith.constant 0 : index
    %c0_65 = arith.constant 0 : index
    %183 = vector.load %arg4[%c0_64, %c0_65] : memref<128x32xbf16, #tpu.memory_space<vmem>>, vector<128x32xbf16>
    %cst_66 = arith.constant dense<0.000000e+00> : vector<128x8xf32>
    %184 = tpu.matmul %183, %182, %cst_66 {dimension_numbers = #tpu.dot_dimension_numbers<[1], [0], [0], [1], [0, 0, 1, 1], [], []>} : vector<128x32xbf16>, vector<32x8xbf16>, vector<128x8xf32> -> vector<128x8xf32>
    %c0_67 = arith.constant 0 : index
    %c0_68 = arith.constant 0 : index
    %185 = vector.load %arg6[%c0_67, %c0_68] : memref<128x1xf32, #tpu.memory_space<vmem>>, vector<128x1xf32>
    %186 = vector.broadcast %185 : vector<128x1xf32> to vector<128x8xf32>
    %187 = arith.addf %184, %186 : vector<128x8xf32>
    %c0_69 = arith.constant 0 : index
    %c0_70 = arith.constant 0 : index
    %188 = vector.load %arg5[%c0_69, %c0_70] : memref<128x32xbf16, #tpu.memory_space<vmem>>, vector<128x32xbf16>
    %189 = arith.truncf %145 : vector<32x8xf32> to vector<32x8xbf16>
    %cst_71 = arith.constant dense<0.000000e+00> : vector<128x8xf32>
    %190 = tpu.matmul %188, %189, %cst_71 {dimension_numbers = #tpu.dot_dimension_numbers<[1], [0], [0], [1], [0, 0, 1, 1], [], []>} : vector<128x32xbf16>, vector<32x8xbf16>, vector<128x8xf32> -> vector<128x8xf32>
    %191 = arith.addf %187, %190 : vector<128x8xf32>
    %192 = vector.extract_strided_slice %191 {offsets = [0, 0], sizes = [32, 8], strides = [1, 1]} : vector<128x8xf32> to vector<32x8xf32>
    %193 = arith.negf %192 : vector<32x8xf32>
    %194 = math.exp %193 : vector<32x8xf32>
    %cst_72 = arith.constant 1.000000e+00 : f32
    %195 = vector.broadcast %cst_72 : f32 to vector<32x8xf32>
    %196 = arith.addf %195, %194 : vector<32x8xf32>
    %197 = arith.divf %195, %196 : vector<32x8xf32>
    %198 = vector.extract_strided_slice %191 {offsets = [32, 0], sizes = [32, 8], strides = [1, 1]} : vector<128x8xf32> to vector<32x8xf32>
    %199 = arith.negf %198 : vector<32x8xf32>
    %200 = math.exp %199 : vector<32x8xf32>
    %cst_73 = arith.constant 1.000000e+00 : f32
    %201 = vector.broadcast %cst_73 : f32 to vector<32x8xf32>
    %202 = arith.addf %201, %200 : vector<32x8xf32>
    %203 = arith.divf %201, %202 : vector<32x8xf32>
    %204 = vector.extract_strided_slice %191 {offsets = [64, 0], sizes = [32, 8], strides = [1, 1]} : vector<128x8xf32> to vector<32x8xf32>
    %205 = math.tanh %204 : vector<32x8xf32>
    %206 = vector.extract_strided_slice %191 {offsets = [96, 0], sizes = [32, 8], strides = [1, 1]} : vector<128x8xf32> to vector<32x8xf32>
    %207 = arith.negf %206 : vector<32x8xf32>
    %208 = math.exp %207 : vector<32x8xf32>
    %cst_74 = arith.constant 1.000000e+00 : f32
    %209 = vector.broadcast %cst_74 : f32 to vector<32x8xf32>
    %210 = arith.addf %209, %208 : vector<32x8xf32>
    %211 = arith.divf %209, %210 : vector<32x8xf32>
    %212 = arith.mulf %203, %143 : vector<32x8xf32>
    %213 = arith.mulf %197, %205 : vector<32x8xf32>
    %214 = arith.addf %212, %213 : vector<32x8xf32>
    %215 = math.tanh %214 : vector<32x8xf32>
    %216 = arith.mulf %211, %215 : vector<32x8xf32>
    %c3 = arith.constant 3 : index
    %c0_75 = arith.constant 0 : index
    %c0_76 = arith.constant 0 : index
    %217 = vector.load %arg0[%c3, %c0_75, %c0_76] : memref<8x4x8xbf16, #tpu.memory_space<vmem>>, vector<1x4x8xbf16>
    %218 = vector.shape_cast %217 : vector<1x4x8xbf16> to vector<4x8xbf16>
    %c0_77 = arith.constant 0 : index
    %c0_78 = arith.constant 0 : index
    %219 = vector.load %arg1[%c0_77, %c0_78] : memref<128x4xbf16, #tpu.memory_space<vmem>>, vector<128x4xbf16>
    %cst_79 = arith.constant dense<0.000000e+00> : vector<128x8xf32>
    %220 = tpu.matmul %219, %218, %cst_79 {dimension_numbers = #tpu.dot_dimension_numbers<[1], [0], [0], [1], [0, 0, 1, 1], [], []>} : vector<128x4xbf16>, vector<4x8xbf16>, vector<128x8xf32> -> vector<128x8xf32>
    %c0_80 = arith.constant 0 : index
    %c0_81 = arith.constant 0 : index
    %221 = vector.load %arg3[%c0_80, %c0_81] : memref<128x1xf32, #tpu.memory_space<vmem>>, vector<128x1xf32>
    %222 = vector.broadcast %221 : vector<128x1xf32> to vector<128x8xf32>
    %223 = arith.addf %220, %222 : vector<128x8xf32>
    %c0_82 = arith.constant 0 : index
    %c0_83 = arith.constant 0 : index
    %224 = vector.load %arg2[%c0_82, %c0_83] : memref<128x32xbf16, #tpu.memory_space<vmem>>, vector<128x32xbf16>
    %225 = arith.truncf %181 : vector<32x8xf32> to vector<32x8xbf16>
    %cst_84 = arith.constant dense<0.000000e+00> : vector<128x8xf32>
    %226 = tpu.matmul %224, %225, %cst_84 {dimension_numbers = #tpu.dot_dimension_numbers<[1], [0], [0], [1], [0, 0, 1, 1], [], []>} : vector<128x32xbf16>, vector<32x8xbf16>, vector<128x8xf32> -> vector<128x8xf32>
    %227 = arith.addf %223, %226 : vector<128x8xf32>
    %228 = vector.extract_strided_slice %227 {offsets = [0, 0], sizes = [32, 8], strides = [1, 1]} : vector<128x8xf32> to vector<32x8xf32>
    %229 = arith.negf %228 : vector<32x8xf32>
    %230 = math.exp %229 : vector<32x8xf32>
    %cst_85 = arith.constant 1.000000e+00 : f32
    %231 = vector.broadcast %cst_85 : f32 to vector<32x8xf32>
    %232 = arith.addf %231, %230 : vector<32x8xf32>
    %233 = arith.divf %231, %232 : vector<32x8xf32>
    %234 = vector.extract_strided_slice %227 {offsets = [32, 0], sizes = [32, 8], strides = [1, 1]} : vector<128x8xf32> to vector<32x8xf32>
    %235 = arith.negf %234 : vector<32x8xf32>
    %236 = math.exp %235 : vector<32x8xf32>
    %cst_86 = arith.constant 1.000000e+00 : f32
    %237 = vector.broadcast %cst_86 : f32 to vector<32x8xf32>
    %238 = arith.addf %237, %236 : vector<32x8xf32>
    %239 = arith.divf %237, %238 : vector<32x8xf32>
    %240 = vector.extract_strided_slice %227 {offsets = [64, 0], sizes = [32, 8], strides = [1, 1]} : vector<128x8xf32> to vector<32x8xf32>
    %241 = math.tanh %240 : vector<32x8xf32>
    %242 = vector.extract_strided_slice %227 {offsets = [96, 0], sizes = [32, 8], strides = [1, 1]} : vector<128x8xf32> to vector<32x8xf32>
    %243 = arith.negf %242 : vector<32x8xf32>
    %244 = math.exp %243 : vector<32x8xf32>
    %cst_87 = arith.constant 1.000000e+00 : f32
    %245 = vector.broadcast %cst_87 : f32 to vector<32x8xf32>
    %246 = arith.addf %245, %244 : vector<32x8xf32>
    %247 = arith.divf %245, %246 : vector<32x8xf32>
    %248 = arith.mulf %239, %179 : vector<32x8xf32>
    %249 = arith.mulf %233, %241 : vector<32x8xf32>
    %250 = arith.addf %248, %249 : vector<32x8xf32>
    %251 = math.tanh %250 : vector<32x8xf32>
    %252 = arith.mulf %247, %251 : vector<32x8xf32>
    %253 = arith.truncf %252 : vector<32x8xf32> to vector<32x8xbf16>
    %c0_88 = arith.constant 0 : index
    %c0_89 = arith.constant 0 : index
    %254 = vector.load %arg4[%c0_88, %c0_89] : memref<128x32xbf16, #tpu.memory_space<vmem>>, vector<128x32xbf16>
    %cst_90 = arith.constant dense<0.000000e+00> : vector<128x8xf32>
    %255 = tpu.matmul %254, %253, %cst_90 {dimension_numbers = #tpu.dot_dimension_numbers<[1], [0], [0], [1], [0, 0, 1, 1], [], []>} : vector<128x32xbf16>, vector<32x8xbf16>, vector<128x8xf32> -> vector<128x8xf32>
    %c0_91 = arith.constant 0 : index
    %c0_92 = arith.constant 0 : index
    %256 = vector.load %arg6[%c0_91, %c0_92] : memref<128x1xf32, #tpu.memory_space<vmem>>, vector<128x1xf32>
    %257 = vector.broadcast %256 : vector<128x1xf32> to vector<128x8xf32>
    %258 = arith.addf %255, %257 : vector<128x8xf32>
    %c0_93 = arith.constant 0 : index
    %c0_94 = arith.constant 0 : index
    %259 = vector.load %arg5[%c0_93, %c0_94] : memref<128x32xbf16, #tpu.memory_space<vmem>>, vector<128x32xbf16>
    %260 = arith.truncf %216 : vector<32x8xf32> to vector<32x8xbf16>
    %cst_95 = arith.constant dense<0.000000e+00> : vector<128x8xf32>
    %261 = tpu.matmul %259, %260, %cst_95 {dimension_numbers = #tpu.dot_dimension_numbers<[1], [0], [0], [1], [0, 0, 1, 1], [], []>} : vector<128x32xbf16>, vector<32x8xbf16>, vector<128x8xf32> -> vector<128x8xf32>
    %262 = arith.addf %258, %261 : vector<128x8xf32>
    %263 = vector.extract_strided_slice %262 {offsets = [0, 0], sizes = [32, 8], strides = [1, 1]} : vector<128x8xf32> to vector<32x8xf32>
    %264 = arith.negf %263 : vector<32x8xf32>
    %265 = math.exp %264 : vector<32x8xf32>
    %cst_96 = arith.constant 1.000000e+00 : f32
    %266 = vector.broadcast %cst_96 : f32 to vector<32x8xf32>
    %267 = arith.addf %266, %265 : vector<32x8xf32>
    %268 = arith.divf %266, %267 : vector<32x8xf32>
    %269 = vector.extract_strided_slice %262 {offsets = [32, 0], sizes = [32, 8], strides = [1, 1]} : vector<128x8xf32> to vector<32x8xf32>
    %270 = arith.negf %269 : vector<32x8xf32>
    %271 = math.exp %270 : vector<32x8xf32>
    %cst_97 = arith.constant 1.000000e+00 : f32
    %272 = vector.broadcast %cst_97 : f32 to vector<32x8xf32>
    %273 = arith.addf %272, %271 : vector<32x8xf32>
    %274 = arith.divf %272, %273 : vector<32x8xf32>
    %275 = vector.extract_strided_slice %262 {offsets = [64, 0], sizes = [32, 8], strides = [1, 1]} : vector<128x8xf32> to vector<32x8xf32>
    %276 = math.tanh %275 : vector<32x8xf32>
    %277 = vector.extract_strided_slice %262 {offsets = [96, 0], sizes = [32, 8], strides = [1, 1]} : vector<128x8xf32> to vector<32x8xf32>
    %278 = arith.negf %277 : vector<32x8xf32>
    %279 = math.exp %278 : vector<32x8xf32>
    %cst_98 = arith.constant 1.000000e+00 : f32
    %280 = vector.broadcast %cst_98 : f32 to vector<32x8xf32>
    %281 = arith.addf %280, %279 : vector<32x8xf32>
    %282 = arith.divf %280, %281 : vector<32x8xf32>
    %283 = arith.mulf %274, %214 : vector<32x8xf32>
    %284 = arith.mulf %268, %276 : vector<32x8xf32>
    %285 = arith.addf %283, %284 : vector<32x8xf32>
    %286 = math.tanh %285 : vector<32x8xf32>
    %287 = arith.mulf %282, %286 : vector<32x8xf32>
    %c4 = arith.constant 4 : index
    %c0_99 = arith.constant 0 : index
    %c0_100 = arith.constant 0 : index
    %288 = vector.load %arg0[%c4, %c0_99, %c0_100] : memref<8x4x8xbf16, #tpu.memory_space<vmem>>, vector<1x4x8xbf16>
    %289 = vector.shape_cast %288 : vector<1x4x8xbf16> to vector<4x8xbf16>
    %c0_101 = arith.constant 0 : index
    %c0_102 = arith.constant 0 : index
    %290 = vector.load %arg1[%c0_101, %c0_102] : memref<128x4xbf16, #tpu.memory_space<vmem>>, vector<128x4xbf16>
    %cst_103 = arith.constant dense<0.000000e+00> : vector<128x8xf32>
    %291 = tpu.matmul %290, %289, %cst_103 {dimension_numbers = #tpu.dot_dimension_numbers<[1], [0], [0], [1], [0, 0, 1, 1], [], []>} : vector<128x4xbf16>, vector<4x8xbf16>, vector<128x8xf32> -> vector<128x8xf32>
    %c0_104 = arith.constant 0 : index
    %c0_105 = arith.constant 0 : index
    %292 = vector.load %arg3[%c0_104, %c0_105] : memref<128x1xf32, #tpu.memory_space<vmem>>, vector<128x1xf32>
    %293 = vector.broadcast %292 : vector<128x1xf32> to vector<128x8xf32>
    %294 = arith.addf %291, %293 : vector<128x8xf32>
    %c0_106 = arith.constant 0 : index
    %c0_107 = arith.constant 0 : index
    %295 = vector.load %arg2[%c0_106, %c0_107] : memref<128x32xbf16, #tpu.memory_space<vmem>>, vector<128x32xbf16>
    %296 = arith.truncf %252 : vector<32x8xf32> to vector<32x8xbf16>
    %cst_108 = arith.constant dense<0.000000e+00> : vector<128x8xf32>
    %297 = tpu.matmul %295, %296, %cst_108 {dimension_numbers = #tpu.dot_dimension_numbers<[1], [0], [0], [1], [0, 0, 1, 1], [], []>} : vector<128x32xbf16>, vector<32x8xbf16>, vector<128x8xf32> -> vector<128x8xf32>
    %298 = arith.addf %294, %297 : vector<128x8xf32>
    %299 = vector.extract_strided_slice %298 {offsets = [0, 0], sizes = [32, 8], strides = [1, 1]} : vector<128x8xf32> to vector<32x8xf32>
    %300 = arith.negf %299 : vector<32x8xf32>
    %301 = math.exp %300 : vector<32x8xf32>
    %cst_109 = arith.constant 1.000000e+00 : f32
    %302 = vector.broadcast %cst_109 : f32 to vector<32x8xf32>
    %303 = arith.addf %302, %301 : vector<32x8xf32>
    %304 = arith.divf %302, %303 : vector<32x8xf32>
    %305 = vector.extract_strided_slice %298 {offsets = [32, 0], sizes = [32, 8], strides = [1, 1]} : vector<128x8xf32> to vector<32x8xf32>
    %306 = arith.negf %305 : vector<32x8xf32>
    %307 = math.exp %306 : vector<32x8xf32>
    %cst_110 = arith.constant 1.000000e+00 : f32
    %308 = vector.broadcast %cst_110 : f32 to vector<32x8xf32>
    %309 = arith.addf %308, %307 : vector<32x8xf32>
    %310 = arith.divf %308, %309 : vector<32x8xf32>
    %311 = vector.extract_strided_slice %298 {offsets = [64, 0], sizes = [32, 8], strides = [1, 1]} : vector<128x8xf32> to vector<32x8xf32>
    %312 = math.tanh %311 : vector<32x8xf32>
    %313 = vector.extract_strided_slice %298 {offsets = [96, 0], sizes = [32, 8], strides = [1, 1]} : vector<128x8xf32> to vector<32x8xf32>
    %314 = arith.negf %313 : vector<32x8xf32>
    %315 = math.exp %314 : vector<32x8xf32>
    %cst_111 = arith.constant 1.000000e+00 : f32
    %316 = vector.broadcast %cst_111 : f32 to vector<32x8xf32>
    %317 = arith.addf %316, %315 : vector<32x8xf32>
    %318 = arith.divf %316, %317 : vector<32x8xf32>
    %319 = arith.mulf %310, %250 : vector<32x8xf32>
    %320 = arith.mulf %304, %312 : vector<32x8xf32>
    %321 = arith.addf %319, %320 : vector<32x8xf32>
    %322 = math.tanh %321 : vector<32x8xf32>
    %323 = arith.mulf %318, %322 : vector<32x8xf32>
    %324 = arith.truncf %323 : vector<32x8xf32> to vector<32x8xbf16>
    %c0_112 = arith.constant 0 : index
    %c0_113 = arith.constant 0 : index
    %325 = vector.load %arg4[%c0_112, %c0_113] : memref<128x32xbf16, #tpu.memory_space<vmem>>, vector<128x32xbf16>
    %cst_114 = arith.constant dense<0.000000e+00> : vector<128x8xf32>
    %326 = tpu.matmul %325, %324, %cst_114 {dimension_numbers = #tpu.dot_dimension_numbers<[1], [0], [0], [1], [0, 0, 1, 1], [], []>} : vector<128x32xbf16>, vector<32x8xbf16>, vector<128x8xf32> -> vector<128x8xf32>
    %c0_115 = arith.constant 0 : index
    %c0_116 = arith.constant 0 : index
    %327 = vector.load %arg6[%c0_115, %c0_116] : memref<128x1xf32, #tpu.memory_space<vmem>>, vector<128x1xf32>
    %328 = vector.broadcast %327 : vector<128x1xf32> to vector<128x8xf32>
    %329 = arith.addf %326, %328 : vector<128x8xf32>
    %c0_117 = arith.constant 0 : index
    %c0_118 = arith.constant 0 : index
    %330 = vector.load %arg5[%c0_117, %c0_118] : memref<128x32xbf16, #tpu.memory_space<vmem>>, vector<128x32xbf16>
    %331 = arith.truncf %287 : vector<32x8xf32> to vector<32x8xbf16>
    %cst_119 = arith.constant dense<0.000000e+00> : vector<128x8xf32>
    %332 = tpu.matmul %330, %331, %cst_119 {dimension_numbers = #tpu.dot_dimension_numbers<[1], [0], [0], [1], [0, 0, 1, 1], [], []>} : vector<128x32xbf16>, vector<32x8xbf16>, vector<128x8xf32> -> vector<128x8xf32>
    %333 = arith.addf %329, %332 : vector<128x8xf32>
    %334 = vector.extract_strided_slice %333 {offsets = [0, 0], sizes = [32, 8], strides = [1, 1]} : vector<128x8xf32> to vector<32x8xf32>
    %335 = arith.negf %334 : vector<32x8xf32>
    %336 = math.exp %335 : vector<32x8xf32>
    %cst_120 = arith.constant 1.000000e+00 : f32
    %337 = vector.broadcast %cst_120 : f32 to vector<32x8xf32>
    %338 = arith.addf %337, %336 : vector<32x8xf32>
    %339 = arith.divf %337, %338 : vector<32x8xf32>
    %340 = vector.extract_strided_slice %333 {offsets = [32, 0], sizes = [32, 8], strides = [1, 1]} : vector<128x8xf32> to vector<32x8xf32>
    %341 = arith.negf %340 : vector<32x8xf32>
    %342 = math.exp %341 : vector<32x8xf32>
    %cst_121 = arith.constant 1.000000e+00 : f32
    %343 = vector.broadcast %cst_121 : f32 to vector<32x8xf32>
    %344 = arith.addf %343, %342 : vector<32x8xf32>
    %345 = arith.divf %343, %344 : vector<32x8xf32>
    %346 = vector.extract_strided_slice %333 {offsets = [64, 0], sizes = [32, 8], strides = [1, 1]} : vector<128x8xf32> to vector<32x8xf32>
    %347 = math.tanh %346 : vector<32x8xf32>
    %348 = vector.extract_strided_slice %333 {offsets = [96, 0], sizes = [32, 8], strides = [1, 1]} : vector<128x8xf32> to vector<32x8xf32>
    %349 = arith.negf %348 : vector<32x8xf32>
    %350 = math.exp %349 : vector<32x8xf32>
    %cst_122 = arith.constant 1.000000e+00 : f32
    %351 = vector.broadcast %cst_122 : f32 to vector<32x8xf32>
    %352 = arith.addf %351, %350 : vector<32x8xf32>
    %353 = arith.divf %351, %352 : vector<32x8xf32>
    %354 = arith.mulf %345, %285 : vector<32x8xf32>
    %355 = arith.mulf %339, %347 : vector<32x8xf32>
    %356 = arith.addf %354, %355 : vector<32x8xf32>
    %357 = math.tanh %356 : vector<32x8xf32>
    %358 = arith.mulf %353, %357 : vector<32x8xf32>
    %c5 = arith.constant 5 : index
    %c0_123 = arith.constant 0 : index
    %c0_124 = arith.constant 0 : index
    %359 = vector.load %arg0[%c5, %c0_123, %c0_124] : memref<8x4x8xbf16, #tpu.memory_space<vmem>>, vector<1x4x8xbf16>
    %360 = vector.shape_cast %359 : vector<1x4x8xbf16> to vector<4x8xbf16>
    %c0_125 = arith.constant 0 : index
    %c0_126 = arith.constant 0 : index
    %361 = vector.load %arg1[%c0_125, %c0_126] : memref<128x4xbf16, #tpu.memory_space<vmem>>, vector<128x4xbf16>
    %cst_127 = arith.constant dense<0.000000e+00> : vector<128x8xf32>
    %362 = tpu.matmul %361, %360, %cst_127 {dimension_numbers = #tpu.dot_dimension_numbers<[1], [0], [0], [1], [0, 0, 1, 1], [], []>} : vector<128x4xbf16>, vector<4x8xbf16>, vector<128x8xf32> -> vector<128x8xf32>
    %c0_128 = arith.constant 0 : index
    %c0_129 = arith.constant 0 : index
    %363 = vector.load %arg3[%c0_128, %c0_129] : memref<128x1xf32, #tpu.memory_space<vmem>>, vector<128x1xf32>
    %364 = vector.broadcast %363 : vector<128x1xf32> to vector<128x8xf32>
    %365 = arith.addf %362, %364 : vector<128x8xf32>
    %c0_130 = arith.constant 0 : index
    %c0_131 = arith.constant 0 : index
    %366 = vector.load %arg2[%c0_130, %c0_131] : memref<128x32xbf16, #tpu.memory_space<vmem>>, vector<128x32xbf16>
    %367 = arith.truncf %323 : vector<32x8xf32> to vector<32x8xbf16>
    %cst_132 = arith.constant dense<0.000000e+00> : vector<128x8xf32>
    %368 = tpu.matmul %366, %367, %cst_132 {dimension_numbers = #tpu.dot_dimension_numbers<[1], [0], [0], [1], [0, 0, 1, 1], [], []>} : vector<128x32xbf16>, vector<32x8xbf16>, vector<128x8xf32> -> vector<128x8xf32>
    %369 = arith.addf %365, %368 : vector<128x8xf32>
    %370 = vector.extract_strided_slice %369 {offsets = [0, 0], sizes = [32, 8], strides = [1, 1]} : vector<128x8xf32> to vector<32x8xf32>
    %371 = arith.negf %370 : vector<32x8xf32>
    %372 = math.exp %371 : vector<32x8xf32>
    %cst_133 = arith.constant 1.000000e+00 : f32
    %373 = vector.broadcast %cst_133 : f32 to vector<32x8xf32>
    %374 = arith.addf %373, %372 : vector<32x8xf32>
    %375 = arith.divf %373, %374 : vector<32x8xf32>
    %376 = vector.extract_strided_slice %369 {offsets = [32, 0], sizes = [32, 8], strides = [1, 1]} : vector<128x8xf32> to vector<32x8xf32>
    %377 = arith.negf %376 : vector<32x8xf32>
    %378 = math.exp %377 : vector<32x8xf32>
    %cst_134 = arith.constant 1.000000e+00 : f32
    %379 = vector.broadcast %cst_134 : f32 to vector<32x8xf32>
    %380 = arith.addf %379, %378 : vector<32x8xf32>
    %381 = arith.divf %379, %380 : vector<32x8xf32>
    %382 = vector.extract_strided_slice %369 {offsets = [64, 0], sizes = [32, 8], strides = [1, 1]} : vector<128x8xf32> to vector<32x8xf32>
    %383 = math.tanh %382 : vector<32x8xf32>
    %384 = vector.extract_strided_slice %369 {offsets = [96, 0], sizes = [32, 8], strides = [1, 1]} : vector<128x8xf32> to vector<32x8xf32>
    %385 = arith.negf %384 : vector<32x8xf32>
    %386 = math.exp %385 : vector<32x8xf32>
    %cst_135 = arith.constant 1.000000e+00 : f32
    %387 = vector.broadcast %cst_135 : f32 to vector<32x8xf32>
    %388 = arith.addf %387, %386 : vector<32x8xf32>
    %389 = arith.divf %387, %388 : vector<32x8xf32>
    %390 = arith.mulf %381, %321 : vector<32x8xf32>
    %391 = arith.mulf %375, %383 : vector<32x8xf32>
    %392 = arith.addf %390, %391 : vector<32x8xf32>
    %393 = math.tanh %392 : vector<32x8xf32>
    %394 = arith.mulf %389, %393 : vector<32x8xf32>
    %395 = arith.truncf %394 : vector<32x8xf32> to vector<32x8xbf16>
    %c0_136 = arith.constant 0 : index
    %c0_137 = arith.constant 0 : index
    %396 = vector.load %arg4[%c0_136, %c0_137] : memref<128x32xbf16, #tpu.memory_space<vmem>>, vector<128x32xbf16>
    %cst_138 = arith.constant dense<0.000000e+00> : vector<128x8xf32>
    %397 = tpu.matmul %396, %395, %cst_138 {dimension_numbers = #tpu.dot_dimension_numbers<[1], [0], [0], [1], [0, 0, 1, 1], [], []>} : vector<128x32xbf16>, vector<32x8xbf16>, vector<128x8xf32> -> vector<128x8xf32>
    %c0_139 = arith.constant 0 : index
    %c0_140 = arith.constant 0 : index
    %398 = vector.load %arg6[%c0_139, %c0_140] : memref<128x1xf32, #tpu.memory_space<vmem>>, vector<128x1xf32>
    %399 = vector.broadcast %398 : vector<128x1xf32> to vector<128x8xf32>
    %400 = arith.addf %397, %399 : vector<128x8xf32>
    %c0_141 = arith.constant 0 : index
    %c0_142 = arith.constant 0 : index
    %401 = vector.load %arg5[%c0_141, %c0_142] : memref<128x32xbf16, #tpu.memory_space<vmem>>, vector<128x32xbf16>
    %402 = arith.truncf %358 : vector<32x8xf32> to vector<32x8xbf16>
    %cst_143 = arith.constant dense<0.000000e+00> : vector<128x8xf32>
    %403 = tpu.matmul %401, %402, %cst_143 {dimension_numbers = #tpu.dot_dimension_numbers<[1], [0], [0], [1], [0, 0, 1, 1], [], []>} : vector<128x32xbf16>, vector<32x8xbf16>, vector<128x8xf32> -> vector<128x8xf32>
    %404 = arith.addf %400, %403 : vector<128x8xf32>
    %405 = vector.extract_strided_slice %404 {offsets = [0, 0], sizes = [32, 8], strides = [1, 1]} : vector<128x8xf32> to vector<32x8xf32>
    %406 = arith.negf %405 : vector<32x8xf32>
    %407 = math.exp %406 : vector<32x8xf32>
    %cst_144 = arith.constant 1.000000e+00 : f32
    %408 = vector.broadcast %cst_144 : f32 to vector<32x8xf32>
    %409 = arith.addf %408, %407 : vector<32x8xf32>
    %410 = arith.divf %408, %409 : vector<32x8xf32>
    %411 = vector.extract_strided_slice %404 {offsets = [32, 0], sizes = [32, 8], strides = [1, 1]} : vector<128x8xf32> to vector<32x8xf32>
    %412 = arith.negf %411 : vector<32x8xf32>
    %413 = math.exp %412 : vector<32x8xf32>
    %cst_145 = arith.constant 1.000000e+00 : f32
    %414 = vector.broadcast %cst_145 : f32 to vector<32x8xf32>
    %415 = arith.addf %414, %413 : vector<32x8xf32>
    %416 = arith.divf %414, %415 : vector<32x8xf32>
    %417 = vector.extract_strided_slice %404 {offsets = [64, 0], sizes = [32, 8], strides = [1, 1]} : vector<128x8xf32> to vector<32x8xf32>
    %418 = math.tanh %417 : vector<32x8xf32>
    %419 = vector.extract_strided_slice %404 {offsets = [96, 0], sizes = [32, 8], strides = [1, 1]} : vector<128x8xf32> to vector<32x8xf32>
    %420 = arith.negf %419 : vector<32x8xf32>
    %421 = math.exp %420 : vector<32x8xf32>
    %cst_146 = arith.constant 1.000000e+00 : f32
    %422 = vector.broadcast %cst_146 : f32 to vector<32x8xf32>
    %423 = arith.addf %422, %421 : vector<32x8xf32>
    %424 = arith.divf %422, %423 : vector<32x8xf32>
    %425 = arith.mulf %416, %356 : vector<32x8xf32>
    %426 = arith.mulf %410, %418 : vector<32x8xf32>
    %427 = arith.addf %425, %426 : vector<32x8xf32>
    %428 = math.tanh %427 : vector<32x8xf32>
    %429 = arith.mulf %424, %428 : vector<32x8xf32>
    %c6 = arith.constant 6 : index
    %c0_147 = arith.constant 0 : index
    %c0_148 = arith.constant 0 : index
    %430 = vector.load %arg0[%c6, %c0_147, %c0_148] : memref<8x4x8xbf16, #tpu.memory_space<vmem>>, vector<1x4x8xbf16>
    %431 = vector.shape_cast %430 : vector<1x4x8xbf16> to vector<4x8xbf16>
    %c0_149 = arith.constant 0 : index
    %c0_150 = arith.constant 0 : index
    %432 = vector.load %arg1[%c0_149, %c0_150] : memref<128x4xbf16, #tpu.memory_space<vmem>>, vector<128x4xbf16>
    %cst_151 = arith.constant dense<0.000000e+00> : vector<128x8xf32>
    %433 = tpu.matmul %432, %431, %cst_151 {dimension_numbers = #tpu.dot_dimension_numbers<[1], [0], [0], [1], [0, 0, 1, 1], [], []>} : vector<128x4xbf16>, vector<4x8xbf16>, vector<128x8xf32> -> vector<128x8xf32>
    %c0_152 = arith.constant 0 : index
    %c0_153 = arith.constant 0 : index
    %434 = vector.load %arg3[%c0_152, %c0_153] : memref<128x1xf32, #tpu.memory_space<vmem>>, vector<128x1xf32>
    %435 = vector.broadcast %434 : vector<128x1xf32> to vector<128x8xf32>
    %436 = arith.addf %433, %435 : vector<128x8xf32>
    %c0_154 = arith.constant 0 : index
    %c0_155 = arith.constant 0 : index
    %437 = vector.load %arg2[%c0_154, %c0_155] : memref<128x32xbf16, #tpu.memory_space<vmem>>, vector<128x32xbf16>
    %438 = arith.truncf %394 : vector<32x8xf32> to vector<32x8xbf16>
    %cst_156 = arith.constant dense<0.000000e+00> : vector<128x8xf32>
    %439 = tpu.matmul %437, %438, %cst_156 {dimension_numbers = #tpu.dot_dimension_numbers<[1], [0], [0], [1], [0, 0, 1, 1], [], []>} : vector<128x32xbf16>, vector<32x8xbf16>, vector<128x8xf32> -> vector<128x8xf32>
    %440 = arith.addf %436, %439 : vector<128x8xf32>
    %441 = vector.extract_strided_slice %440 {offsets = [0, 0], sizes = [32, 8], strides = [1, 1]} : vector<128x8xf32> to vector<32x8xf32>
    %442 = arith.negf %441 : vector<32x8xf32>
    %443 = math.exp %442 : vector<32x8xf32>
    %cst_157 = arith.constant 1.000000e+00 : f32
    %444 = vector.broadcast %cst_157 : f32 to vector<32x8xf32>
    %445 = arith.addf %444, %443 : vector<32x8xf32>
    %446 = arith.divf %444, %445 : vector<32x8xf32>
    %447 = vector.extract_strided_slice %440 {offsets = [32, 0], sizes = [32, 8], strides = [1, 1]} : vector<128x8xf32> to vector<32x8xf32>
    %448 = arith.negf %447 : vector<32x8xf32>
    %449 = math.exp %448 : vector<32x8xf32>
    %cst_158 = arith.constant 1.000000e+00 : f32
    %450 = vector.broadcast %cst_158 : f32 to vector<32x8xf32>
    %451 = arith.addf %450, %449 : vector<32x8xf32>
    %452 = arith.divf %450, %451 : vector<32x8xf32>
    %453 = vector.extract_strided_slice %440 {offsets = [64, 0], sizes = [32, 8], strides = [1, 1]} : vector<128x8xf32> to vector<32x8xf32>
    %454 = math.tanh %453 : vector<32x8xf32>
    %455 = vector.extract_strided_slice %440 {offsets = [96, 0], sizes = [32, 8], strides = [1, 1]} : vector<128x8xf32> to vector<32x8xf32>
    %456 = arith.negf %455 : vector<32x8xf32>
    %457 = math.exp %456 : vector<32x8xf32>
    %cst_159 = arith.constant 1.000000e+00 : f32
    %458 = vector.broadcast %cst_159 : f32 to vector<32x8xf32>
    %459 = arith.addf %458, %457 : vector<32x8xf32>
    %460 = arith.divf %458, %459 : vector<32x8xf32>
    %461 = arith.mulf %452, %392 : vector<32x8xf32>
    %462 = arith.mulf %446, %454 : vector<32x8xf32>
    %463 = arith.addf %461, %462 : vector<32x8xf32>
    %464 = math.tanh %463 : vector<32x8xf32>
    %465 = arith.mulf %460, %464 : vector<32x8xf32>
    %466 = arith.truncf %465 : vector<32x8xf32> to vector<32x8xbf16>
    %c0_160 = arith.constant 0 : index
    %c0_161 = arith.constant 0 : index
    %467 = vector.load %arg4[%c0_160, %c0_161] : memref<128x32xbf16, #tpu.memory_space<vmem>>, vector<128x32xbf16>
    %cst_162 = arith.constant dense<0.000000e+00> : vector<128x8xf32>
    %468 = tpu.matmul %467, %466, %cst_162 {dimension_numbers = #tpu.dot_dimension_numbers<[1], [0], [0], [1], [0, 0, 1, 1], [], []>} : vector<128x32xbf16>, vector<32x8xbf16>, vector<128x8xf32> -> vector<128x8xf32>
    %c0_163 = arith.constant 0 : index
    %c0_164 = arith.constant 0 : index
    %469 = vector.load %arg6[%c0_163, %c0_164] : memref<128x1xf32, #tpu.memory_space<vmem>>, vector<128x1xf32>
    %470 = vector.broadcast %469 : vector<128x1xf32> to vector<128x8xf32>
    %471 = arith.addf %468, %470 : vector<128x8xf32>
    %c0_165 = arith.constant 0 : index
    %c0_166 = arith.constant 0 : index
    %472 = vector.load %arg5[%c0_165, %c0_166] : memref<128x32xbf16, #tpu.memory_space<vmem>>, vector<128x32xbf16>
    %473 = arith.truncf %429 : vector<32x8xf32> to vector<32x8xbf16>
    %cst_167 = arith.constant dense<0.000000e+00> : vector<128x8xf32>
    %474 = tpu.matmul %472, %473, %cst_167 {dimension_numbers = #tpu.dot_dimension_numbers<[1], [0], [0], [1], [0, 0, 1, 1], [], []>} : vector<128x32xbf16>, vector<32x8xbf16>, vector<128x8xf32> -> vector<128x8xf32>
    %475 = arith.addf %471, %474 : vector<128x8xf32>
    %476 = vector.extract_strided_slice %475 {offsets = [0, 0], sizes = [32, 8], strides = [1, 1]} : vector<128x8xf32> to vector<32x8xf32>
    %477 = arith.negf %476 : vector<32x8xf32>
    %478 = math.exp %477 : vector<32x8xf32>
    %cst_168 = arith.constant 1.000000e+00 : f32
    %479 = vector.broadcast %cst_168 : f32 to vector<32x8xf32>
    %480 = arith.addf %479, %478 : vector<32x8xf32>
    %481 = arith.divf %479, %480 : vector<32x8xf32>
    %482 = vector.extract_strided_slice %475 {offsets = [32, 0], sizes = [32, 8], strides = [1, 1]} : vector<128x8xf32> to vector<32x8xf32>
    %483 = arith.negf %482 : vector<32x8xf32>
    %484 = math.exp %483 : vector<32x8xf32>
    %cst_169 = arith.constant 1.000000e+00 : f32
    %485 = vector.broadcast %cst_169 : f32 to vector<32x8xf32>
    %486 = arith.addf %485, %484 : vector<32x8xf32>
    %487 = arith.divf %485, %486 : vector<32x8xf32>
    %488 = vector.extract_strided_slice %475 {offsets = [64, 0], sizes = [32, 8], strides = [1, 1]} : vector<128x8xf32> to vector<32x8xf32>
    %489 = math.tanh %488 : vector<32x8xf32>
    %490 = vector.extract_strided_slice %475 {offsets = [96, 0], sizes = [32, 8], strides = [1, 1]} : vector<128x8xf32> to vector<32x8xf32>
    %491 = arith.negf %490 : vector<32x8xf32>
    %492 = math.exp %491 : vector<32x8xf32>
    %cst_170 = arith.constant 1.000000e+00 : f32
    %493 = vector.broadcast %cst_170 : f32 to vector<32x8xf32>
    %494 = arith.addf %493, %492 : vector<32x8xf32>
    %495 = arith.divf %493, %494 : vector<32x8xf32>
    %496 = arith.mulf %487, %427 : vector<32x8xf32>
    %497 = arith.mulf %481, %489 : vector<32x8xf32>
    %498 = arith.addf %496, %497 : vector<32x8xf32>
    %499 = math.tanh %498 : vector<32x8xf32>
    %500 = arith.mulf %495, %499 : vector<32x8xf32>
    %c7 = arith.constant 7 : index
    %c0_171 = arith.constant 0 : index
    %c0_172 = arith.constant 0 : index
    %501 = vector.load %arg0[%c7, %c0_171, %c0_172] : memref<8x4x8xbf16, #tpu.memory_space<vmem>>, vector<1x4x8xbf16>
    %502 = vector.shape_cast %501 : vector<1x4x8xbf16> to vector<4x8xbf16>
    %c0_173 = arith.constant 0 : index
    %c0_174 = arith.constant 0 : index
    %503 = vector.load %arg1[%c0_173, %c0_174] : memref<128x4xbf16, #tpu.memory_space<vmem>>, vector<128x4xbf16>
    %cst_175 = arith.constant dense<0.000000e+00> : vector<128x8xf32>
    %504 = tpu.matmul %503, %502, %cst_175 {dimension_numbers = #tpu.dot_dimension_numbers<[1], [0], [0], [1], [0, 0, 1, 1], [], []>} : vector<128x4xbf16>, vector<4x8xbf16>, vector<128x8xf32> -> vector<128x8xf32>
    %c0_176 = arith.constant 0 : index
    %c0_177 = arith.constant 0 : index
    %505 = vector.load %arg3[%c0_176, %c0_177] : memref<128x1xf32, #tpu.memory_space<vmem>>, vector<128x1xf32>
    %506 = vector.broadcast %505 : vector<128x1xf32> to vector<128x8xf32>
    %507 = arith.addf %504, %506 : vector<128x8xf32>
    %c0_178 = arith.constant 0 : index
    %c0_179 = arith.constant 0 : index
    %508 = vector.load %arg2[%c0_178, %c0_179] : memref<128x32xbf16, #tpu.memory_space<vmem>>, vector<128x32xbf16>
    %509 = arith.truncf %465 : vector<32x8xf32> to vector<32x8xbf16>
    %cst_180 = arith.constant dense<0.000000e+00> : vector<128x8xf32>
    %510 = tpu.matmul %508, %509, %cst_180 {dimension_numbers = #tpu.dot_dimension_numbers<[1], [0], [0], [1], [0, 0, 1, 1], [], []>} : vector<128x32xbf16>, vector<32x8xbf16>, vector<128x8xf32> -> vector<128x8xf32>
    %511 = arith.addf %507, %510 : vector<128x8xf32>
    %512 = vector.extract_strided_slice %511 {offsets = [0, 0], sizes = [32, 8], strides = [1, 1]} : vector<128x8xf32> to vector<32x8xf32>
    %513 = arith.negf %512 : vector<32x8xf32>
    %514 = math.exp %513 : vector<32x8xf32>
    %cst_181 = arith.constant 1.000000e+00 : f32
    %515 = vector.broadcast %cst_181 : f32 to vector<32x8xf32>
    %516 = arith.addf %515, %514 : vector<32x8xf32>
    %517 = arith.divf %515, %516 : vector<32x8xf32>
    %518 = vector.extract_strided_slice %511 {offsets = [32, 0], sizes = [32, 8], strides = [1, 1]} : vector<128x8xf32> to vector<32x8xf32>
    %519 = arith.negf %518 : vector<32x8xf32>
    %520 = math.exp %519 : vector<32x8xf32>
    %cst_182 = arith.constant 1.000000e+00 : f32
    %521 = vector.broadcast %cst_182 : f32 to vector<32x8xf32>
    %522 = arith.addf %521, %520 : vector<32x8xf32>
    %523 = arith.divf %521, %522 : vector<32x8xf32>
    %524 = vector.extract_strided_slice %511 {offsets = [64, 0], sizes = [32, 8], strides = [1, 1]} : vector<128x8xf32> to vector<32x8xf32>
    %525 = math.tanh %524 : vector<32x8xf32>
    %526 = vector.extract_strided_slice %511 {offsets = [96, 0], sizes = [32, 8], strides = [1, 1]} : vector<128x8xf32> to vector<32x8xf32>
    %527 = arith.negf %526 : vector<32x8xf32>
    %528 = math.exp %527 : vector<32x8xf32>
    %cst_183 = arith.constant 1.000000e+00 : f32
    %529 = vector.broadcast %cst_183 : f32 to vector<32x8xf32>
    %530 = arith.addf %529, %528 : vector<32x8xf32>
    %531 = arith.divf %529, %530 : vector<32x8xf32>
    %532 = arith.mulf %523, %463 : vector<32x8xf32>
    %533 = arith.mulf %517, %525 : vector<32x8xf32>
    %534 = arith.addf %532, %533 : vector<32x8xf32>
    %535 = math.tanh %534 : vector<32x8xf32>
    %536 = arith.mulf %531, %535 : vector<32x8xf32>
    %537 = arith.truncf %536 : vector<32x8xf32> to vector<32x8xbf16>
    %c0_184 = arith.constant 0 : index
    %c0_185 = arith.constant 0 : index
    %538 = vector.load %arg4[%c0_184, %c0_185] : memref<128x32xbf16, #tpu.memory_space<vmem>>, vector<128x32xbf16>
    %cst_186 = arith.constant dense<0.000000e+00> : vector<128x8xf32>
    %539 = tpu.matmul %538, %537, %cst_186 {dimension_numbers = #tpu.dot_dimension_numbers<[1], [0], [0], [1], [0, 0, 1, 1], [], []>} : vector<128x32xbf16>, vector<32x8xbf16>, vector<128x8xf32> -> vector<128x8xf32>
    %c0_187 = arith.constant 0 : index
    %c0_188 = arith.constant 0 : index
    %540 = vector.load %arg6[%c0_187, %c0_188] : memref<128x1xf32, #tpu.memory_space<vmem>>, vector<128x1xf32>
    %541 = vector.broadcast %540 : vector<128x1xf32> to vector<128x8xf32>
    %542 = arith.addf %539, %541 : vector<128x8xf32>
    %c0_189 = arith.constant 0 : index
    %c0_190 = arith.constant 0 : index
    %543 = vector.load %arg5[%c0_189, %c0_190] : memref<128x32xbf16, #tpu.memory_space<vmem>>, vector<128x32xbf16>
    %544 = arith.truncf %500 : vector<32x8xf32> to vector<32x8xbf16>
    %cst_191 = arith.constant dense<0.000000e+00> : vector<128x8xf32>
    %545 = tpu.matmul %543, %544, %cst_191 {dimension_numbers = #tpu.dot_dimension_numbers<[1], [0], [0], [1], [0, 0, 1, 1], [], []>} : vector<128x32xbf16>, vector<32x8xbf16>, vector<128x8xf32> -> vector<128x8xf32>
    %546 = arith.addf %542, %545 : vector<128x8xf32>
    %547 = vector.extract_strided_slice %546 {offsets = [0, 0], sizes = [32, 8], strides = [1, 1]} : vector<128x8xf32> to vector<32x8xf32>
    %548 = arith.negf %547 : vector<32x8xf32>
    %549 = math.exp %548 : vector<32x8xf32>
    %cst_192 = arith.constant 1.000000e+00 : f32
    %550 = vector.broadcast %cst_192 : f32 to vector<32x8xf32>
    %551 = arith.addf %550, %549 : vector<32x8xf32>
    %552 = arith.divf %550, %551 : vector<32x8xf32>
    %553 = vector.extract_strided_slice %546 {offsets = [32, 0], sizes = [32, 8], strides = [1, 1]} : vector<128x8xf32> to vector<32x8xf32>
    %554 = arith.negf %553 : vector<32x8xf32>
    %555 = math.exp %554 : vector<32x8xf32>
    %cst_193 = arith.constant 1.000000e+00 : f32
    %556 = vector.broadcast %cst_193 : f32 to vector<32x8xf32>
    %557 = arith.addf %556, %555 : vector<32x8xf32>
    %558 = arith.divf %556, %557 : vector<32x8xf32>
    %559 = vector.extract_strided_slice %546 {offsets = [64, 0], sizes = [32, 8], strides = [1, 1]} : vector<128x8xf32> to vector<32x8xf32>
    %560 = math.tanh %559 : vector<32x8xf32>
    %561 = vector.extract_strided_slice %546 {offsets = [96, 0], sizes = [32, 8], strides = [1, 1]} : vector<128x8xf32> to vector<32x8xf32>
    %562 = arith.negf %561 : vector<32x8xf32>
    %563 = math.exp %562 : vector<32x8xf32>
    %cst_194 = arith.constant 1.000000e+00 : f32
    %564 = vector.broadcast %cst_194 : f32 to vector<32x8xf32>
    %565 = arith.addf %564, %563 : vector<32x8xf32>
    %566 = arith.divf %564, %565 : vector<32x8xf32>
    %567 = arith.mulf %558, %498 : vector<32x8xf32>
    %568 = arith.mulf %552, %560 : vector<32x8xf32>
    %569 = arith.addf %567, %568 : vector<32x8xf32>
    %570 = math.tanh %569 : vector<32x8xf32>
    %571 = arith.mulf %566, %570 : vector<32x8xf32>
    %c0_195 = arith.constant 0 : index
    %c0_196 = arith.constant 0 : index
    %572 = vector.load %arg7[%c0_195, %c0_196] : memref<1x32xbf16, #tpu.memory_space<vmem>>, vector<1x32xbf16>
    %573 = arith.truncf %571 : vector<32x8xf32> to vector<32x8xbf16>
    %cst_197 = arith.constant dense<0.000000e+00> : vector<1x8xf32>
    %574 = tpu.matmul %572, %573, %cst_197 {dimension_numbers = #tpu.dot_dimension_numbers<[1], [0], [0], [1], [0, 0, 1, 1], [], []>} : vector<1x32xbf16>, vector<32x8xbf16>, vector<1x8xf32> -> vector<1x8xf32>
    %c0_198 = arith.constant 0 : index
    %c0_199 = arith.constant 0 : index
    %575 = vector.load %arg8[%c0_198, %c0_199] : memref<1x1xf32, #tpu.memory_space<vmem>>, vector<1x1xf32>
    %576 = vector.broadcast %575 : vector<1x1xf32> to vector<1x8xf32>
    %577 = arith.addf %574, %576 : vector<1x8xf32>
    %c0_200 = arith.constant 0 : index
    %c0_201 = arith.constant 0 : index
    %578 = vector.load %arg9[%c0_200, %c0_201] : memref<1x8xf32, #tpu.memory_space<vmem>>, vector<1x8xf32>
    tpu.vector_store %arg9[%c0_200, %c0_201], %577 {strides = array<i32>} : memref<1x8xf32, #tpu.memory_space<vmem>>, vector<1x8xf32>,
    return
  }
}

</mosaic_0001>

<llo_original>
// kernel: modelo_lstm_forward.1
$region0: #{modelo_lstm_forward.1}
  #allocation0 [shape = 'u32[]', space=smem, size = 0x4, offset = 0x4, fixed_abs, tag = 'smem constant byte address 0x4 - core index']
  #allocation1 [shape = 'u32[144,128]{1,0:T(1,128)}', space=vmem, size = 0x12000, scoped, tag = 'internal scratch']
  #allocation2 [shape = 'f32[1,1]{1,0:T(1,128)S(1)}', space=vmem, size = 0x200, scoped, tag = 'scoped memory for modelo_lstm_forward.1']
  %s0 = inlined_call_operand.vmem [shape: bf16[8,4,8], index: 0, kind: input, shape index: {}]
  %s1 = inlined_call_operand.vmem [shape: bf16[128,4], index: 1, kind: input, shape index: {}]
  %s2 = inlined_call_operand.vmem [shape: bf16[128,32], index: 2, kind: input, shape index: {}]
  %s3 = inlined_call_operand.vmem [shape: f32[128,1], index: 3, kind: input, shape index: {}]
  %s4 = inlined_call_operand.vmem [shape: bf16[128,32], index: 4, kind: input, shape index: {}]
  %s5 = inlined_call_operand.vmem [shape: bf16[128,32], index: 5, kind: input, shape index: {}]
  %s6 = inlined_call_operand.vmem [shape: f32[128,1], index: 6, kind: input, shape index: {}]
  %s7 = inlined_call_operand.vmem [shape: bf16[1,32], index: 7, kind: input, shape index: {}]
  %s8 = inlined_call_operand.<no memory space> [shape: f32[1,1], index: 8, kind: input, shape index: {}]
  %s9 = inlined_call_operand.hbm [shape: f32[1,8], index: 9, kind: output, shape index: {}]
  %s10 = sld [smem:[#allocation0]]
  $region46: #{modelo_lstm_forward.1} parent=0
    _
  %s12 = ssub.s32 1, %s10
  %s13 = scalar_select 0, %s12, %s10
  %v14 = vstv %s8
  %15 = vst [vmem:[#allocation2] sm:$0x1] %v14
  $region1: #{modelo_lstm_forward.1} parent=0
    #allocation3 [shape = 'u8[512]{0}', space=vmem, size = 0x400, scoped, tag = 'output window, operand 0, single buffered']
    #allocation4 [shape = 's32[1]{0}', space=sflag, size = 0x4, scoped, tag = 'scoped memory for modelo_lstm_forward.1']
    %16 = vsyncpa [#allocation4], 0
    // Predicated region
    $region2: #{modelo_lstm_forward.1} parent=1 // pred_check
      _
    $region3: #{modelo_lstm_forward.1} parent=1 // pred_check_branch
      %18 = sbr.rel (0) target = $region5
    $region4: #{modelo_lstm_forward.1} parent=1 // pred_region
      _
    $region5: #{modelo_lstm_forward.1} parent=1 // pred_fallthru
      _
    // Predicated region
    $region6: #{modelo_lstm_forward.1} parent=1 // pred_check
      _
    $region7: #{modelo_lstm_forward.1} parent=1 // pred_check_branch
      %20 = sbr.rel (0) target = $region9
    $region8: #{modelo_lstm_forward.1} parent=1 // pred_region
      _
    $region9: #{modelo_lstm_forward.1} parent=1 // pred_fallthru
      _
    // Predicated region
    $region10: #{modelo_lstm_forward.1} parent=1 // pred_check
      _
    $region11: #{modelo_lstm_forward.1} parent=1 // pred_check_branch
      %22 = sbr.rel (0) target = $region13
    $region12: #{modelo_lstm_forward.1} parent=1 // pred_region
      _
    $region13: #{modelo_lstm_forward.1} parent=1 // pred_fallthru
      _
    // Predicated region
    $region14: #{modelo_lstm_forward.1} parent=1 // pred_check
      _
    $region15: #{modelo_lstm_forward.1} parent=1 // pred_check_branch
      %24 = sbr.rel (0) target = $region17
    $region16: #{modelo_lstm_forward.1} parent=1 // pred_region
      _
    $region17: #{modelo_lstm_forward.1} parent=1 // pred_fallthru
      _
    // Predicated region
    $region18: #{modelo_lstm_forward.1} parent=1 // pred_check
      _
    $region19: #{modelo_lstm_forward.1} parent=1 // pred_check_branch
      %26 = sbr.rel (0) target = $region21
    $region20: #{modelo_lstm_forward.1} parent=1 // pred_region
      _
    $region21: #{modelo_lstm_forward.1} parent=1 // pred_fallthru
      _
    // Predicated region
    $region22: #{modelo_lstm_forward.1} parent=1 // pred_check
      _
    $region23: #{modelo_lstm_forward.1} parent=1 // pred_check_branch
      %28 = sbr.rel (0) target = $region25
    $region24: #{modelo_lstm_forward.1} parent=1 // pred_region
      _
    $region25: #{modelo_lstm_forward.1} parent=1 // pred_fallthru
      _
    // Predicated region
    $region26: #{modelo_lstm_forward.1} parent=1 // pred_check
      _
    $region27: #{modelo_lstm_forward.1} parent=1 // pred_check_branch
      %30 = sbr.rel (0) target = $region29
    $region28: #{modelo_lstm_forward.1} parent=1 // pred_region
      _
    $region29: #{modelo_lstm_forward.1} parent=1 // pred_fallthru
      _
    // Predicated region
    $region30: #{modelo_lstm_forward.1} parent=1 // pred_check
      _
    $region31: #{modelo_lstm_forward.1} parent=1 // pred_check_branch
      %32 = sbr.rel (0) target = $region33
    $region32: #{modelo_lstm_forward.1} parent=1 // pred_region
      _
    $region33: #{modelo_lstm_forward.1} parent=1 // pred_fallthru
      _
    // Predicated region
    $region34: #{modelo_lstm_forward.1} parent=1 // pred_check
      _
    $region35: #{modelo_lstm_forward.1} parent=1 // pred_check_branch
      %34 = sbr.rel (0) target = $region37
    $region36: #{modelo_lstm_forward.1} parent=1 // pred_region
      _
    $region37: #{modelo_lstm_forward.1} parent=1 // pred_fallthru
      _
    %v36 = vld [vmem:[%s0] sm:$0x3]
    %v37 = vld [vmem:[%s1] sm:$0xf]
    %v38 = vld [vmem:[%s1 + $0x4] sm:$0xf]
    %v39 = vld [vmem:[%s1 + $0x8] sm:$0xf]
    %v40 = vld [vmem:[%s1 + $0xc] sm:$0xf]
    %v41 = vld [vmem:[%s1 + $0x10] sm:$0xf]
    %v42 = vld [vmem:[%s1 + $0x14] sm:$0xf]
    %v43 = vld [vmem:[%s1 + $0x18] sm:$0xf]
    %v44 = vld [vmem:[%s1 + $0x1c] sm:$0xf]
    %v45 = vld [vmem:[%s1 + $0x20] sm:$0xf]
    %v46 = vld [vmem:[%s1 + $0x24] sm:$0xf]
    %v47 = vld [vmem:[%s1 + $0x28] sm:$0xf]
    %v48 = vld [vmem:[%s1 + $0x2c] sm:$0xf]
    %v49 = vld [vmem:[%s1 + $0x30] sm:$0xf]
    %v50 = vld [vmem:[%s1 + $0x34] sm:$0xf]
    %v51 = vld [vmem:[%s1 + $0x38] sm:$0xf]
    %v52 = vld [vmem:[%s1 + $0x3c] sm:$0xf]
    %v53 = vld [vmem:[%s3] sm:$0xff]
    %v54 = vld [vmem:[%s3 + $0x8] sm:$0xff]
    %v55 = vld [vmem:[%s3 + $0x10] sm:$0xff]
    %v56 = vld [vmem:[%s3 + $0x18] sm:$0xff]
    %v57 = vld [vmem:[%s3 + $0x20] sm:$0xff]
    %v58 = vld [vmem:[%s3 + $0x28] sm:$0xff]
    %v59 = vld [vmem:[%s3 + $0x30] sm:$0xff]
    %v60 = vld [vmem:[%s3 + $0x38] sm:$0xff]
    %v61 = vld [vmem:[%s3 + $0x40] sm:$0xff]
    %v62 = vld [vmem:[%s3 + $0x48] sm:$0xff]
    %v63 = vld [vmem:[%s3 + $0x50] sm:$0xff]
    %v64 = vld [vmem:[%s3 + $0x58] sm:$0xff]
    %v65 = vld [vmem:[%s3 + $0x60] sm:$0xff]
    %v66 = vld [vmem:[%s3 + $0x68] sm:$0xff]
    %v67 = vld [vmem:[%s3 + $0x70] sm:$0xff]
    %v68 = vld [vmem:[%s3 + $0x78] sm:$0xff]
    %70 = vset.pattern.permute.xlu0 0
    %71 = vperm.xlu0 %70, %v53
    %v72 = vpop.permute.xlu0 %71
    %75 = vset.pattern.permute.xlu0 0
    %76 = vperm.xlu0 %75, %v54
    %v77 = vpop.permute.xlu0 %76
    %80 = vset.pattern.permute.xlu0 0
    %81 = vperm.xlu0 %80, %v55
    %v82 = vpop.permute.xlu0 %81
    %85 = vset.pattern.permute.xlu0 0
    %86 = vperm.xlu0 %85, %v56
    %v87 = vpop.permute.xlu0 %86
    %90 = vset.pattern.permute.xlu0 0
    %91 = vperm.xlu0 %90, %v57
    %v92 = vpop.permute.xlu0 %91
    %95 = vset.pattern.permute.xlu0 0
    %96 = vperm.xlu0 %95, %v58
    %v97 = vpop.permute.xlu0 %96
    %100 = vset.pattern.permute.xlu0 0
    %101 = vperm.xlu0 %100, %v59
    %v102 = vpop.permute.xlu0 %101
    %105 = vset.pattern.permute.xlu0 0
    %106 = vperm.xlu0 %105, %v60
    %v107 = vpop.permute.xlu0 %106
    %110 = vset.pattern.permute.xlu0 0
    %111 = vperm.xlu0 %110, %v61
    %v112 = vpop.permute.xlu0 %111
    %115 = vset.pattern.permute.xlu0 0
    %116 = vperm.xlu0 %115, %v62
    %v117 = vpop.permute.xlu0 %116
    %120 = vset.pattern.permute.xlu0 0
    %121 = vperm.xlu0 %120, %v63
    %v122 = vpop.permute.xlu0 %121
    %125 = vset.pattern.permute.xlu0 0
    %126 = vperm.xlu0 %125, %v64
    %v127 = vpop.permute.xlu0 %126
    %130 = vset.pattern.permute.xlu0 0
    %131 = vperm.xlu0 %130, %v65
    %v132 = vpop.permute.xlu0 %131
    %135 = vset.pattern.permute.xlu0 0
    %136 = vperm.xlu0 %135, %v66
    %v137 = vpop.permute.xlu0 %136
    %140 = vset.pattern.permute.xlu0 0
    %141 = vperm.xlu0 %140, %v67
    %v142 = vpop.permute.xlu0 %141
    %145 = vset.pattern.permute.xlu0 0
    %146 = vperm.xlu0 %145, %v68
    %v147 = vpop.permute.xlu0 %146
    %v165 = vunpack.c.l.b16 %v37
    %v166 = vunpack.c.l.b16 %v38
    %v167 = vunpack.c.l.b16 %v39
    %v168 = vunpack.c.l.b16 %v40
    %v169 = vunpack.c.l.b16 %v41
    %v170 = vunpack.c.l.b16 %v42
    %v171 = vunpack.c.l.b16 %v43
    %v172 = vunpack.c.l.b16 %v44
    %v173 = vunpack.c.l.b16 %v45
    %v174 = vunpack.c.l.b16 %v46
    %v175 = vunpack.c.l.b16 %v47
    %v176 = vunpack.c.l.b16 %v48
    %v177 = vunpack.c.l.b16 %v49
    %v178 = vunpack.c.l.b16 %v50
    %v179 = vunpack.c.l.b16 %v51
    %v180 = vunpack.c.l.b16 %v52
    %v181 = vpack.c.b16 %v166, %v165
    %v182 = vpack.c.b16 %v168, %v167
    %v183 = vpack.c.b16 %v170, %v169
    %v184 = vpack.c.b16 %v172, %v171
    %v185 = vpack.c.b16 %v174, %v173
    %v186 = vpack.c.b16 %v176, %v175
    %v187 = vpack.c.b16 %v178, %v177
    %v188 = vpack.c.b16 %v180, %v179
    %vm189 = vcmask 31744
    %v191 = vsel %vm189, %v181, 0
    %v194 = vsel %vm189, %v182, 0
    %v197 = vsel %vm189, %v183, 0
    %v200 = vsel %vm189, %v184, 0
    %v203 = vsel %vm189, %v185, 0
    %v206 = vsel %vm189, %v186, 0
    %v209 = vsel %vm189, %v187, 0
    %v212 = vsel %vm189, %v188, 0
    %vm214 = vcmask 1041408
    %v216 = vsel %vm214, %v36, 0
    %218 = vmatprep.subr.bf16.mxu0 0
    %219 = vmatpush1.bf16.msra.mxu0 %v216
    %220 = vmatprep.subr.bf16.mxu0 0
    %221 = vmatpush1.bf16.msra.mxu0 0
    %222 = vmatprep.subr.bf16.mxu0 0
    %223 = vmatpush1.bf16.msra.mxu0 0
    %224 = vmatprep.subr.bf16.mxu0 0
    %225 = vmatpush1.bf16.msra.mxu0 0
    %226 = vmatprep.subr.bf16.mxu0 0
    %227 = vmatpush1.bf16.msra.mxu0 0
    %228 = vmatprep.subr.bf16.mxu0 0
    %229 = vmatpush1.bf16.msra.mxu0 0
    %230 = vmatprep.subr.bf16.mxu0 0
    %231 = vmatpush1.bf16.msra.mxu0 0
    %232 = vmatprep.subr.bf16.mxu0 0
    %233 = vmatpush1.bf16.msra.mxu0 0
    %234 = vmatprep.subr.bf16.mxu0 0
    %235 = vmatpush1.bf16.msra.mxu0 0
    %236 = vmatprep.subr.bf16.mxu0 0
    %237 = vmatpush1.bf16.msra.mxu0 0
    %238 = vmatprep.subr.bf16.mxu0 0
    %239 = vmatpush1.bf16.msra.mxu0 0
    %240 = vmatprep.subr.bf16.mxu0 0
    %241 = vmatpush1.bf16.msra.mxu0 0
    %242 = vmatprep.subr.bf16.mxu0 0
    %243 = vmatpush1.bf16.msra.mxu0 0
    %244 = vmatprep.subr.bf16.mxu0 0
    %245 = vmatpush1.bf16.msra.mxu0 0
    %246 = vmatprep.subr.bf16.mxu0 0
    %247 = vmatpush1.bf16.msra.mxu0 0
    %248 = vmatprep.subr.bf16.mxu0 0
    %249 = vmatpush1.bf16.msra.mxu0 0
    %250 = vmatprep.mubr.bf16.mxu0 0
    %251 = vmatmul.mubr.bf16.gmra.mrb[0].mxu0 %v191
    %v252 = vpop.f32.mrb[0].mxu0
    %v253 = vadd.f32 %v72, %v252
    %v254 = vpop.f32.mrb[0].mxu0
    %v255 = vpop.f32.mrb[0].mxu0
    %v256 = vadd.f32 %v77, %v255
    %v257 = vpop.f32.mrb[0].mxu0
    %258 = vmatprep.mubr.bf16.mxu0 0
    %259 = vmatmul.mubr.bf16.gmra.mrb[0].mxu0 %v194
    %v260 = vpop.f32.mrb[0].mxu0
    %v261 = vadd.f32 %v82, %v260
    %v262 = vpop.f32.mrb[0].mxu0
    %v263 = vpop.f32.mrb[0].mxu0
    %v264 = vadd.f32 %v87, %v263
    %v265 = vpop.f32.mrb[0].mxu0
    %266 = vmatprep.mubr.bf16.mxu0 0
    %267 = vmatmul.mubr.bf16.gmra.mrb[0].mxu0 %v197
    %v268 = vpop.f32.mrb[0].mxu0
    %v269 = vadd.f32 %v92, %v268
    %v270 = vpop.f32.mrb[0].mxu0
    %v271 = vpop.f32.mrb[0].mxu0
    %v272 = vadd.f32 %v97, %v271
    %v273 = vpop.f32.mrb[0].mxu0
    %274 = vmatprep.mubr.bf16.mxu0 0
    %275 = vmatmul.mubr.bf16.gmra.mrb[0].mxu0 %v200
    %v276 = vpop.f32.mrb[0].mxu0
    %v277 = vadd.f32 %v102, %v276
    %v278 = vpop.f32.mrb[0].mxu0
    %v279 = vpop.f32.mrb[0].mxu0
    %v280 = vadd.f32 %v107, %v279
    %v281 = vpop.f32.mrb[0].mxu0
    %282 = vmatprep.mubr.bf16.mxu0 0
    %283 = vmatmul.mubr.bf16.gmra.mrb[0].mxu0 %v203
    %v284 = vpop.f32.mrb[0].mxu0
    %v285 = vadd.f32 %v112, %v284
    %v286 = vpop.f32.mrb[0].mxu0
    %v287 = vpop.f32.mrb[0].mxu0
    %v288 = vadd.f32 %v117, %v287
    %v289 = vpop.f32.mrb[0].mxu0
    %290 = vmatprep.mubr.bf16.mxu0 0
    %291 = vmatmul.mubr.bf16.gmra.mrb[0].mxu0 %v206
    %v292 = vpop.f32.mrb[0].mxu0
    %v293 = vadd.f32 %v122, %v292
    %v294 = vpop.f32.mrb[0].mxu0
    %v295 = vpop.f32.mrb[0].mxu0
    %v296 = vadd.f32 %v127, %v295
    %v297 = vpop.f32.mrb[0].mxu0
    %298 = vmatprep.mubr.bf16.mxu0 0
    %299 = vmatmul.mubr.bf16.gmra.mrb[0].mxu0 %v209
    %v300 = vpop.f32.mrb[0].mxu0
    %v301 = vadd.f32 %v132, %v300
    %v302 = vpop.f32.mrb[0].mxu0
    %v303 = vpop.f32.mrb[0].mxu0
    %v304 = vadd.f32 %v137, %v303
    %v305 = vpop.f32.mrb[0].mxu0
    %306 = vmatprep.mubr.bf16.mxu0 0
    %307 = vmatmul.mubr.bf16.gmra.mrb[0].mxu0 %v212
    %v308 = vpop.f32.mrb[0].mxu0
    %v309 = vadd.f32 %v142, %v308
    %v310 = vpop.f32.mrb[0].mxu0
    %v311 = vpop.f32.mrb[0].mxu0
    %v312 = vadd.f32 %v147, %v311
    %v313 = vpop.f32.mrb[0].mxu0
    %314 = vdwg.mxu0
    %v315 = vld [vmem:[%s2] sm:$0xf]
    %v316 = vld [vmem:[%s2 + $0x4] sm:$0xf]
    %v317 = vld [vmem:[%s2 + $0x8] sm:$0xf]
    %v318 = vld [vmem:[%s2 + $0xc] sm:$0xf]
    %v319 = vld [vmem:[%s2 + $0x10] sm:$0xf]
    %v320 = vld [vmem:[%s2 + $0x14] sm:$0xf]
    %v321 = vld [vmem:[%s2 + $0x18] sm:$0xf]
    %v322 = vld [vmem:[%s2 + $0x1c] sm:$0xf]
    %v323 = vld [vmem:[%s2 + $0x20] sm:$0xf]
    %v324 = vld [vmem:[%s2 + $0x24] sm:$0xf]
    %v325 = vld [vmem:[%s2 + $0x28] sm:$0xf]
    %v326 = vld [vmem:[%s2 + $0x2c] sm:$0xf]
    %v327 = vld [vmem:[%s2 + $0x30] sm:$0xf]
    %v328 = vld [vmem:[%s2 + $0x34] sm:$0xf]
    %v329 = vld [vmem:[%s2 + $0x38] sm:$0xf]
    %v330 = vld [vmem:[%s2 + $0x3c] sm:$0xf]
    %v347 = vunpack.c.l.b16 %v315
    %v348 = vunpack.c.l.b16 %v316
    %v349 = vunpack.c.l.b16 %v317
    %v350 = vunpack.c.l.b16 %v318
    %v351 = vunpack.c.l.b16 %v319
    %v352 = vunpack.c.l.b16 %v320
    %v353 = vunpack.c.l.b16 %v321
    %v354 = vunpack.c.l.b16 %v322
    %v355 = vunpack.c.l.b16 %v323
    %v356 = vunpack.c.l.b16 %v324
    %v357 = vunpack.c.l.b16 %v325
    %v358 = vunpack.c.l.b16 %v326
    %v359 = vunpack.c.l.b16 %v327
    %v360 = vunpack.c.l.b16 %v328
    %v361 = vunpack.c.l.b16 %v329
    %v362 = vunpack.c.l.b16 %v330
    %v363 = vpack.c.b16 %v348, %v347
    %v364 = vpack.c.b16 %v350, %v349
    %v365 = vpack.c.b16 %v352, %v351
    %v366 = vpack.c.b16 %v354, %v353
    %v367 = vpack.c.b16 %v356, %v355
    %v368 = vpack.c.b16 %v358, %v357
    %v369 = vpack.c.b16 %v360, %v359
    %v370 = vpack.c.b16 %v362, %v361
    %vm371 = vcmask 261120
    %v373 = vsel %vm371, %v363, 0
    %v376 = vsel %vm371, %v364, 0
    %v379 = vsel %vm371, %v365, 0
    %v382 = vsel %vm371, %v366, 0
    %v385 = vsel %vm371, %v367, 0
    %v388 = vsel %vm371, %v368, 0
    %v391 = vsel %vm371, %v369, 0
    %v394 = vsel %vm371, %v370, 0
    %396 = vmatprep.subr.bf16.mxu0 0
    %397 = vmatpush1.bf16.msra.mxu0 0
    %398 = vmatprep.subr.bf16.mxu0 0
    %399 = vmatpush1.bf16.msra.mxu0 0
    %400 = vmatprep.subr.bf16.mxu0 0
    %401 = vmatpush1.bf16.msra.mxu0 0
    %402 = vmatprep.subr.bf16.mxu0 0
    %403 = vmatpush1.bf16.msra.mxu0 0
    %404 = vmatprep.subr.bf16.mxu0 0
    %405 = vmatpush1.bf16.msra.mxu0 0
    %406 = vmatprep.subr.bf16.mxu0 0
    %407 = vmatpush1.bf16.msra.mxu0 0
    %408 = vmatprep.subr.bf16.mxu0 0
    %409 = vmatpush1.bf16.msra.mxu0 0
    %410 = vmatprep.subr.bf16.mxu0 0
    %411 = vmatpush1.bf16.msra.mxu0 0
    %412 = vmatprep.subr.bf16.mxu0 0
    %413 = vmatpush1.bf16.msra.mxu0 0
    %414 = vmatprep.subr.bf16.mxu0 0
    %415 = vmatpush1.bf16.msra.mxu0 0
    %416 = vmatprep.subr.bf16.mxu0 0
    %417 = vmatpush1.bf16.msra.mxu0 0
    %418 = vmatprep.subr.bf16.mxu0 0
    %419 = vmatpush1.bf16.msra.mxu0 0
    %420 = vmatprep.subr.bf16.mxu0 0
    %421 = vmatpush1.bf16.msra.mxu0 0
    %422 = vmatprep.subr.bf16.mxu0 0
    %423 = vmatpush1.bf16.msra.mxu0 0
    %424 = vmatprep.subr.bf16.mxu0 0
    %425 = vmatpush1.bf16.msra.mxu0 0
    %426 = vmatprep.subr.bf16.mxu0 0
    %427 = vmatpush1.bf16.msra.mxu0 0
    %428 = vmatprep.mubr.bf16.mxu0 0
    %429 = vmatmul.mubr.bf16.gmra.mrb[0].mxu0 %v373
    %v430 = vpop.f32.mrb[0].mxu0
    %v431 = vadd.f32 0.0, %v430
    %v432 = vpop.f32.mrb[0].mxu0
    %v433 = vpop.f32.mrb[0].mxu0
    %v434 = vadd.f32 0.0, %v433
    %v435 = vpop.f32.mrb[0].mxu0
    %436 = vmatprep.mubr.bf16.mxu0 0
    %437 = vmatmul.mubr.bf16.gmra.mrb[0].mxu0 %v376
    %v438 = vpop.f32.mrb[0].mxu0
    %v439 = vadd.f32 0.0, %v438
    %v440 = vpop.f32.mrb[0].mxu0
    %v441 = vpop.f32.mrb[0].mxu0
    %v442 = vadd.f32 0.0, %v441
    %v443 = vpop.f32.mrb[0].mxu0
    %444 = vmatprep.mubr.bf16.mxu0 0
    %445 = vmatmul.mubr.bf16.gmra.mrb[0].mxu0 %v379
    %v446 = vpop.f32.mrb[0].mxu0
    %v447 = vadd.f32 0.0, %v446
    %v448 = vpop.f32.mrb[0].mxu0
    %v449 = vpop.f32.mrb[0].mxu0
    %v450 = vadd.f32 0.0, %v449
    %v451 = vpop.f32.mrb[0].mxu0
    %452 = vmatprep.mubr.bf16.mxu0 0
    %453 = vmatmul.mubr.bf16.gmra.mrb[0].mxu0 %v382
    %v454 = vpop.f32.mrb[0].mxu0
    %v455 = vadd.f32 0.0, %v454
    %v456 = vpop.f32.mrb[0].mxu0
    %v457 = vpop.f32.mrb[0].mxu0
    %v458 = vadd.f32 0.0, %v457
    %v459 = vpop.f32.mrb[0].mxu0
    %460 = vmatprep.mubr.bf16.mxu0 0
    %461 = vmatmul.mubr.bf16.gmra.mrb[0].mxu0 %v385
    %v462 = vpop.f32.mrb[0].mxu0
    %v463 = vadd.f32 0.0, %v462
    %v464 = vpop.f32.mrb[0].mxu0
    %v465 = vpop.f32.mrb[0].mxu0
    %v466 = vadd.f32 0.0, %v465
    %v467 = vpop.f32.mrb[0].mxu0
    %468 = vmatprep.mubr.bf16.mxu0 0
    %469 = vmatmul.mubr.bf16.gmra.mrb[0].mxu0 %v388
    %v470 = vpop.f32.mrb[0].mxu0
    %v471 = vadd.f32 0.0, %v470
    %v472 = vpop.f32.mrb[0].mxu0
    %v473 = vpop.f32.mrb[0].mxu0
    %v474 = vadd.f32 0.0, %v473
    %v475 = vpop.f32.mrb[0].mxu0
    %476 = vmatprep.mubr.bf16.mxu0 0
    %477 = vmatmul.mubr.bf16.gmra.mrb[0].mxu0 %v391
    %v478 = vpop.f32.mrb[0].mxu0
    %v479 = vadd.f32 0.0, %v478
    %v480 = vpop.f32.mrb[0].mxu0
    %v481 = vpop.f32.mrb[0].mxu0
    %v482 = vadd.f32 0.0, %v481
    %v483 = vpop.f32.mrb[0].mxu0
    %484 = vmatprep.mubr.bf16.mxu0 0
    %485 = vmatmul.mubr.bf16.gmra.mrb[0].mxu0 %v394
    %v486 = vpop.f32.mrb[0].mxu0
    %v487 = vadd.f32 0.0, %v486
    %v488 = vpop.f32.mrb[0].mxu0
    %v489 = vpop.f32.mrb[0].mxu0
    %v490 = vadd.f32 0.0, %v489
    %v491 = vpop.f32.mrb[0].mxu0
    %492 = vdwg.mxu0
    %v493 = vadd.f32 %v253, %v431
    %v494 = vadd.f32 %v256, %v434
    %v495 = vadd.f32 %v261, %v439
    %v496 = vadd.f32 %v264, %v442
    %v497 = vadd.f32 %v269, %v447
    %v498 = vadd.f32 %v272, %v450
    %v499 = vadd.f32 %v277, %v455
    %v500 = vadd.f32 %v280, %v458
    %v501 = vadd.f32 %v285, %v463
    %v502 = vadd.f32 %v288, %v466
    %v503 = vadd.f32 %v293, %v471
    %v504 = vadd.f32 %v296, %v474
    %v505 = vadd.f32 %v301, %v479
    %v506 = vadd.f32 %v304, %v482
    %v507 = vadd.f32 %v309, %v487
    %v508 = vadd.f32 %v312, %v490
    %v509 = vxor.u32 %v493, 2147483648
    %v510 = vxor.u32 %v494, 2147483648
    %v511 = vxor.u32 %v495, 2147483648
    %v512 = vxor.u32 %v496, 2147483648
    %v513 = vmul.f32 %v509, 1.442695
    %v514 = vpow.pop %v513
    %v515 = vmul.f32 %v510, 1.442695
    %v516 = vpow.pop %v515
    %v517 = vmul.f32 %v511, 1.442695
    %v518 = vpow.pop %v517
    %v519 = vmul.f32 %v512, 1.442695
    %v520 = vpow.pop %v519
    %v521 = vadd.f32 %v514, 1.0
    %v522 = vadd.f32 %v516, 1.0
    %v523 = vadd.f32 %v518, 1.0
    %v524 = vadd.f32 %v520, 1.0
    %v525 = vrcp.pop %v521
    %v526 = vmul.f32 1.0, %v525
    %v527 = vrcp.pop %v522
    %v528 = vmul.f32 1.0, %v527
    %v529 = vrcp.pop %v523
    %v530 = vmul.f32 1.0, %v529
    %v531 = vrcp.pop %v524
    %v532 = vmul.f32 1.0, %v531
    %v533 = vxor.u32 %v497, 2147483648
    %v534 = vxor.u32 %v498, 2147483648
    %v535 = vxor.u32 %v499, 2147483648
    %v536 = vxor.u32 %v500, 2147483648
    %v537 = vmul.f32 %v533, 1.442695
    %v538 = vpow.pop %v537
    %v539 = vmul.f32 %v534, 1.442695
    %v540 = vpow.pop %v539
    %v541 = vmul.f32 %v535, 1.442695
    %v542 = vpow.pop %v541
    %v543 = vmul.f32 %v536, 1.442695
    %v544 = vpow.pop %v543
    %v545 = vadd.f32 %v538, 1.0
    %v546 = vadd.f32 %v540, 1.0
    %v547 = vadd.f32 %v542, 1.0
    %v548 = vadd.f32 %v544, 1.0
    %v549 = vrcp.pop %v545
    %v550 = vmul.f32 1.0, %v549
    %v551 = vrcp.pop %v546
    %v552 = vmul.f32 1.0, %v551
    %v553 = vrcp.pop %v547
    %v554 = vmul.f32 1.0, %v553
    %v555 = vrcp.pop %v548
    %v556 = vmul.f32 1.0, %v555
    %v557 = vtanh.pop %v501
    %v558 = vtanh.pop %v502
    %v559 = vtanh.pop %v503
    %v560 = vtanh.pop %v504
    %v561 = vxor.u32 %v505, 2147483648
    %v562 = vxor.u32 %v506, 2147483648
    %v563 = vxor.u32 %v507, 2147483648
    %v564 = vxor.u32 %v508, 2147483648
    %v565 = vmul.f32 %v561, 1.442695
    %v566 = vpow.pop %v565
    %v567 = vmul.f32 %v562, 1.442695
    %v568 = vpow.pop %v567
    %v569 = vmul.f32 %v563, 1.442695
    %v570 = vpow.pop %v569
    %v571 = vmul.f32 %v564, 1.442695
    %v572 = vpow.pop %v571
    %v573 = vadd.f32 %v566, 1.0
    %v574 = vadd.f32 %v568, 1.0
    %v575 = vadd.f32 %v570, 1.0
    %v576 = vadd.f32 %v572, 1.0
    %v577 = vrcp.pop %v573
    %v578 = vmul.f32 1.0, %v577
    %v579 = vrcp.pop %v574
    %v580 = vmul.f32 1.0, %v579
    %v581 = vrcp.pop %v575
    %v582 = vmul.f32 1.0, %v581
    %v583 = vrcp.pop %v576
    %v584 = vmul.f32 1.0, %v583
    %v585 = vmul.f32 %v550, 0.0
    %v586 = vmul.f32 %v552, 0.0
    %v587 = vmul.f32 %v554, 0.0
    %v588 = vmul.f32 %v556, 0.0
    %v589 = vmul.f32 %v526, %v557
    %v590 = vmul.f32 %v528, %v558
    %v591 = vmul.f32 %v530, %v559
    %v592 = vmul.f32 %v532, %v560
    %v593 = vadd.f32 %v585, %v589
    %v594 = vadd.f32 %v586, %v590
    %v595 = vadd.f32 %v587, %v591
    %v596 = vadd.f32 %v588, %v592
    %v597 = vtanh.pop %v593
    %v598 = vtanh.pop %v594
    %v599 = vtanh.pop %v595
    %v600 = vtanh.pop %v596
    %v601 = vmul.f32 %v578, %v597
    %v602 = vmul.f32 %v580, %v598
    %v603 = vmul.f32 %v582, %v599
    %v604 = vmul.f32 %v584, %v600
    %v605 = vpack.c.bf16 %v602, %v601
    %v606 = vpack.c.bf16 %v604, %v603
    %v607 = vld [vmem:[%s4] sm:$0xf]
    %v608 = vld [vmem:[%s4 + $0x4] sm:$0xf]
    %v609 = vld [vmem:[%s4 + $0x8] sm:$0xf]
    %v610 = vld [vmem:[%s4 + $0xc] sm:$0xf]
    %v611 = vld [vmem:[%s4 + $0x10] sm:$0xf]
    %v612 = vld [vmem:[%s4 + $0x14] sm:$0xf]
    %v613 = vld [vmem:[%s4 + $0x18] sm:$0xf]
    %v614 = vld [vmem:[%s4 + $0x1c] sm:$0xf]
    %v615 = vld [vmem:[%s4 + $0x20] sm:$0xf]
    %v616 = vld [vmem:[%s4 + $0x24] sm:$0xf]
    %v617 = vld [vmem:[%s4 + $0x28] sm:$0xf]
    %v618 = vld [vmem:[%s4 + $0x2c] sm:$0xf]
    %v619 = vld [vmem:[%s4 + $0x30] sm:$0xf]
    %v620 = vld [vmem:[%s4 + $0x34] sm:$0xf]
    %v621 = vld [vmem:[%s4 + $0x38] sm:$0xf]
    %v622 = vld [vmem:[%s4 + $0x3c] sm:$0xf]
    %v623 = vld [vmem:[%s6] sm:$0xff]
    %v624 = vld [vmem:[%s6 + $0x8] sm:$0xff]
    %v625 = vld [vmem:[%s6 + $0x10] sm:$0xff]
    %v626 = vld [vmem:[%s6 + $0x18] sm:$0xff]
    %v627 = vld [vmem:[%s6 + $0x20] sm:$0xff]
    %v628 = vld [vmem:[%s6 + $0x28] sm:$0xff]
    %v629 = vld [vmem:[%s6 + $0x30] sm:$0xff]
    %v630 = vld [vmem:[%s6 + $0x38] sm:$0xff]
    %v631 = vld [vmem:[%s6 + $0x40] sm:$0xff]
    %v632 = vld [vmem:[%s6 + $0x48] sm:$0xff]
    %v633 = vld [vmem:[%s6 + $0x50] sm:$0xff]
    %v634 = vld [vmem:[%s6 + $0x58] sm:$0xff]
    %v635 = vld [vmem:[%s6 + $0x60] sm:$0xff]
    %v636 = vld [vmem:[%s6 + $0x68] sm:$0xff]
    %v637 = vld [vmem:[%s6 + $0x70] sm:$0xff]
    %v638 = vld [vmem:[%s6 + $0x78] sm:$0xff]
    %640 = vset.pattern.permute.xlu0 0
    %641 = vperm.xlu0 %640, %v623
    %v642 = vpop.permute.xlu0 %641
    %645 = vset.pattern.permute.xlu0 0
    %646 = vperm.xlu0 %645, %v624
    %v647 = vpop.permute.xlu0 %646
    %650 = vset.pattern.permute.xlu0 0
    %651 = vperm.xlu0 %650, %v625
    %v652 = vpop.permute.xlu0 %651
    %655 = vset.pattern.permute.xlu0 0
    %656 = vperm.xlu0 %655, %v626
    %v657 = vpop.permute.xlu0 %656
    %660 = vset.pattern.permute.xlu0 0
    %661 = vperm.xlu0 %660, %v627
    %v662 = vpop.permute.xlu0 %661
    %665 = vset.pattern.permute.xlu0 0
    %666 = vperm.xlu0 %665, %v628
    %v667 = vpop.permute.xlu0 %666
    %670 = vset.pattern.permute.xlu0 0
    %671 = vperm.xlu0 %670, %v629
    %v672 = vpop.permute.xlu0 %671
    %675 = vset.pattern.permute.xlu0 0
    %676 = vperm.xlu0 %675, %v630
    %v677 = vpop.permute.xlu0 %676
    %680 = vset.pattern.permute.xlu0 0
    %681 = vperm.xlu0 %680, %v631
    %v682 = vpop.permute.xlu0 %681
    %685 = vset.pattern.permute.xlu0 0
    %686 = vperm.xlu0 %685, %v632
    %v687 = vpop.permute.xlu0 %686
    %690 = vset.pattern.permute.xlu0 0
    %691 = vperm.xlu0 %690, %v633
    %v692 = vpop.permute.xlu0 %691
    %695 = vset.pattern.permute.xlu0 0
    %696 = vperm.xlu0 %695, %v634
    %v697 = vpop.permute.xlu0 %696
    %700 = vset.pattern.permute.xlu0 0
    %701 = vperm.xlu0 %700, %v635
    %v702 = vpop.permute.xlu0 %701
    %705 = vset.pattern.permute.xlu0 0
    %706 = vperm.xlu0 %705, %v636
    %v707 = vpop.permute.xlu0 %706
    %710 = vset.pattern.permute.xlu0 0
    %711 = vperm.xlu0 %710, %v637
    %v712 = vpop.permute.xlu0 %711
    %715 = vset.pattern.permute.xlu0 0
    %716 = vperm.xlu0 %715, %v638
    %v717 = vpop.permute.xlu0 %716
    %v735 = vunpack.c.l.b16 %v607
    %v736 = vunpack.c.l.b16 %v608
    %v737 = vunpack.c.l.b16 %v609
    %v738 = vunpack.c.l.b16 %v610
    %v739 = vunpack.c.l.b16 %v611
    %v740 = vunpack.c.l.b16 %v612
    %v741 = vunpack.c.l.b16 %v613
    %v742 = vunpack.c.l.b16 %v614
    %v743 = vunpack.c.l.b16 %v615
    %v744 = vunpack.c.l.b16 %v616
    %v745 = vunpack.c.l.b16 %v617
    %v746 = vunpack.c.l.b16 %v618
    %v747 = vunpack.c.l.b16 %v619
    %v748 = vunpack.c.l.b16 %v620
    %v749 = vunpack.c.l.b16 %v621
    %v750 = vunpack.c.l.b16 %v622
    %v751 = vpack.c.b16 %v736, %v735
    %v752 = vpack.c.b16 %v738, %v737
    %v753 = vpack.c.b16 %v740, %v739
    %v754 = vpack.c.b16 %v742, %v741
    %v755 = vpack.c.b16 %v744, %v743
    %v756 = vpack.c.b16 %v746, %v745
    %v757 = vpack.c.b16 %v748, %v747
    %v758 = vpack.c.b16 %v750, %v749
    %v760 = vsel %vm371, %v751, 0
    %v763 = vsel %vm371, %v752, 0
    %v766 = vsel %vm371, %v753, 0
    %v769 = vsel %vm371, %v754, 0
    %v772 = vsel %vm371, %v755, 0
    %v775 = vsel %vm371, %v756, 0
    %v778 = vsel %vm371, %v757, 0
    %v781 = vsel %vm371, %v758, 0
    %783 = vmatprep.subr.bf16.mxu0 0
    %784 = vmatpush1.bf16.msra.mxu0 %v605
    %785 = vmatprep.subr.bf16.mxu0 0
    %786 = vmatpush1.bf16.msra.mxu0 %v606
    %787 = vmatprep.subr.bf16.mxu0 0
    %788 = vmatpush1.bf16.msra.mxu0 0
    %789 = vmatprep.subr.bf16.mxu0 0
    %790 = vmatpush1.bf16.msra.mxu0 0
    %791 = vmatprep.subr.bf16.mxu0 0
    %792 = vmatpush1.bf16.msra.mxu0 0
    %793 = vmatprep.subr.bf16.mxu0 0
    %794 = vmatpush1.bf16.msra.mxu0 0
    %795 = vmatprep.subr.bf16.mxu0 0
    %796 = vmatpush1.bf16.msra.mxu0 0
    %797 = vmatprep.subr.bf16.mxu0 0
    %798 = vmatpush1.bf16.msra.mxu0 0
    %799 = vmatprep.subr.bf16.mxu0 0
    %800 = vmatpush1.bf16.msra.mxu0 0
    %801 = vmatprep.subr.bf16.mxu0 0
    %802 = vmatpush1.bf16.msra.mxu0 0
    %803 = vmatprep.subr.bf16.mxu0 0
    %804 = vmatpush1.bf16.msra.mxu0 0
    %805 = vmatprep.subr.bf16.mxu0 0
    %806 = vmatpush1.bf16.msra.mxu0 0
    %807 = vmatprep.subr.bf16.mxu0 0
    %808 = vmatpush1.bf16.msra.mxu0 0
    %809 = vmatprep.subr.bf16.mxu0 0
    %810 = vmatpush1.bf16.msra.mxu0 0
    %811 = vmatprep.subr.bf16.mxu0 0
    %812 = vmatpush1.bf16.msra.mxu0 0
    %813 = vmatprep.subr.bf16.mxu0 0
    %814 = vmatpush1.bf16.msra.mxu0 0
    %815 = vmatprep.mubr.bf16.mxu0 0
    %816 = vmatmul.mubr.bf16.gmra.mrb[0].mxu0 %v760
    %v817 = vpop.f32.mrb[0].mxu0
    %v818 = vadd.f32 %v642, %v817
    %v819 = vpop.f32.mrb[0].mxu0
    %v820 = vpop.f32.mrb[0].mxu0
    %v821 = vadd.f32 %v647, %v820
    %v822 = vpop.f32.mrb[0].mxu0
    %823 = vmatprep.mubr.bf16.mxu0 0
    %824 = vmatmul.mubr.bf16.gmra.mrb[0].mxu0 %v763
    %v825 = vpop.f32.mrb[0].mxu0
    %v826 = vadd.f32 %v652, %v825
    %v827 = vpop.f32.mrb[0].mxu0
    %v828 = vpop.f32.mrb[0].mxu0
    %v829 = vadd.f32 %v657, %v828
    %v830 = vpop.f32.mrb[0].mxu0
    %831 = vmatprep.mubr.bf16.mxu0 0
    %832 = vmatmul.mubr.bf16.gmra.mrb[0].mxu0 %v766
    %v833 = vpop.f32.mrb[0].mxu0
    %v834 = vadd.f32 %v662, %v833
    %v835 = vpop.f32.mrb[0].mxu0
    %v836 = vpop.f32.mrb[0].mxu0
    %v837 = vadd.f32 %v667, %v836
    %v838 = vpop.f32.mrb[0].mxu0
    %839 = vmatprep.mubr.bf16.mxu0 0
    %840 = vmatmul.mubr.bf16.gmra.mrb[0].mxu0 %v769
    %v841 = vpop.f32.mrb[0].mxu0
    %v842 = vadd.f32 %v672, %v841
    %v843 = vpop.f32.mrb[0].mxu0
    %v844 = vpop.f32.mrb[0].mxu0
    %v845 = vadd.f32 %v677, %v844
    %v846 = vpop.f32.mrb[0].mxu0
    %847 = vmatprep.mubr.bf16.mxu0 0
    %848 = vmatmul.mubr.bf16.gmra.mrb[0].mxu0 %v772
    %v849 = vpop.f32.mrb[0].mxu0
    %v850 = vadd.f32 %v682, %v849
    %v851 = vpop.f32.mrb[0].mxu0
    %v852 = vpop.f32.mrb[0].mxu0
    %v853 = vadd.f32 %v687, %v852
    %v854 = vpop.f32.mrb[0].mxu0
    %855 = vmatprep.mubr.bf16.mxu0 0
    %856 = vmatmul.mubr.bf16.gmra.mrb[0].mxu0 %v775
    %v857 = vpop.f32.mrb[0].mxu0
    %v858 = vadd.f32 %v692, %v857
    %v859 = vpop.f32.mrb[0].mxu0
    %v860 = vpop.f32.mrb[0].mxu0
    %v861 = vadd.f32 %v697, %v860
    %v862 = vpop.f32.mrb[0].mxu0
    %863 = vmatprep.mubr.bf16.mxu0 0
    %864 = vmatmul.mubr.bf16.gmra.mrb[0].mxu0 %v778
    %v865 = vpop.f32.mrb[0].mxu0
    %v866 = vadd.f32 %v702, %v865
    %v867 = vpop.f32.mrb[0].mxu0
    %v868 = vpop.f32.mrb[0].mxu0
    %v869 = vadd.f32 %v707, %v868
    %v870 = vpop.f32.mrb[0].mxu0
    %871 = vmatprep.mubr.bf16.mxu0 0
    %872 = vmatmul.mubr.bf16.gmra.mrb[0].mxu0 %v781
    %v873 = vpop.f32.mrb[0].mxu0
    %v874 = vadd.f32 %v712, %v873
    %v875 = vpop.f32.mrb[0].mxu0
    %v876 = vpop.f32.mrb[0].mxu0
    %v877 = vadd.f32 %v717, %v876
    %v878 = vpop.f32.mrb[0].mxu0
    %879 = vdwg.mxu0
    %v880 = vld [vmem:[%s5] sm:$0xf]
    %v881 = vld [vmem:[%s5 + $0x4] sm:$0xf]
    %v882 = vld [vmem:[%s5 + $0x8] sm:$0xf]
    %v883 = vld [vmem:[%s5 + $0xc] sm:$0xf]
    %v884 = vld [vmem:[%s5 + $0x10] sm:$0xf]
    %v885 = vld [vmem:[%s5 + $0x14] sm:$0xf]
    %v886 = vld [vmem:[%s5 + $0x18] sm:$0xf]
    %v887 = vld [vmem:[%s5 + $0x1c] sm:$0xf]
    %v888 = vld [vmem:[%s5 + $0x20] sm:$0xf]
    %v889 = vld [vmem:[%s5 + $0x24] sm:$0xf]
    %v890 = vld [vmem:[%s5 + $0x28] sm:$0xf]
    %v891 = vld [vmem:[%s5 + $0x2c] sm:$0xf]
    %v892 = vld [vmem:[%s5 + $0x30] sm:$0xf]
    %v893 = vld [vmem:[%s5 + $0x34] sm:$0xf]
    %v894 = vld [vmem:[%s5 + $0x38] sm:$0xf]
    %v895 = vld [vmem:[%s5 + $0x3c] sm:$0xf]
    %v912 = vunpack.c.l.b16 %v880
    %v913 = vunpack.c.l.b16 %v881
    %v914 = vunpack.c.l.b16 %v882
    %v915 = vunpack.c.l.b16 %v883
    %v916 = vunpack.c.l.b16 %v884
    %v917 = vunpack.c.l.b16 %v885
    %v918 = vunpack.c.l.b16 %v886
    %v919 = vunpack.c.l.b16 %v887
    %v920 = vunpack.c.l.b16 %v888
    %v921 = vunpack.c.l.b16 %v889
    %v922 = vunpack.c.l.b16 %v890
    %v923 = vunpack.c.l.b16 %v891
    %v924 = vunpack.c.l.b16 %v892
    %v925 = vunpack.c.l.b16 %v893
    %v926 = vunpack.c.l.b16 %v894
    %v927 = vunpack.c.l.b16 %v895
    %v928 = vpack.c.b16 %v913, %v912
    %v929 = vpack.c.b16 %v915, %v914
    %v930 = vpack.c.b16 %v917, %v916
    %v931 = vpack.c.b16 %v919, %v918
    %v932 = vpack.c.b16 %v921, %v920
    %v933 = vpack.c.b16 %v923, %v922
    %v934 = vpack.c.b16 %v925, %v924
    %v935 = vpack.c.b16 %v927, %v926
    %v937 = vsel %vm371, %v928, 0
    %v940 = vsel %vm371, %v929, 0
    %v943 = vsel %vm371, %v930, 0
    %v946 = vsel %vm371, %v931, 0
    %v949 = vsel %vm371, %v932, 0
    %v952 = vsel %vm371, %v933, 0
    %v955 = vsel %vm371, %v934, 0
    %v958 = vsel %vm371, %v935, 0
    %960 = vmatprep.subr.bf16.mxu0 0
    %961 = vmatpush1.bf16.msra.mxu0 0
    %962 = vmatprep.subr.bf16.mxu0 0
    %963 = vmatpush1.bf16.msra.mxu0 0
    %964 = vmatprep.subr.bf16.mxu0 0
    %965 = vmatpush1.bf16.msra.mxu0 0
    %966 = vmatprep.subr.bf16.mxu0 0
    %967 = vmatpush1.bf16.msra.mxu0 0
    %968 = vmatprep.subr.bf16.mxu0 0
    %969 = vmatpush1.bf16.msra.mxu0 0
    %970 = vmatprep.subr.bf16.mxu0 0
    %971 = vmatpush1.bf16.msra.mxu0 0
    %972 = vmatprep.subr.bf16.mxu0 0
    %973 = vmatpush1.bf16.msra.mxu0 0
    %974 = vmatprep.subr.bf16.mxu0 0
    %975 = vmatpush1.bf16.msra.mxu0 0
    %976 = vmatprep.subr.bf16.mxu0 0
    %977 = vmatpush1.bf16.msra.mxu0 0
    %978 = vmatprep.subr.bf16.mxu0 0
    %979 = vmatpush1.bf16.msra.mxu0 0
    %980 = vmatprep.subr.bf16.mxu0 0
    %981 = vmatpush1.bf16.msra.mxu0 0
    %982 = vmatprep.subr.bf16.mxu0 0
    %983 = vmatpush1.bf16.msra.mxu0 0
    %984 = vmatprep.subr.bf16.mxu0 0
    %985 = vmatpush1.bf16.msra.mxu0 0
    %986 = vmatprep.subr.bf16.mxu0 0
    %987 = vmatpush1.bf16.msra.mxu0 0
    %988 = vmatprep.subr.bf16.mxu0 0
    %989 = vmatpush1.bf16.msra.mxu0 0
    %990 = vmatprep.subr.bf16.mxu0 0
    %991 = vmatpush1.bf16.msra.mxu0 0
    %992 = vmatprep.mubr.bf16.mxu0 0
    %993 = vmatmul.mubr.bf16.gmra.mrb[0].mxu0 %v937
    %v994 = vpop.f32.mrb[0].mxu0
    %v995 = vadd.f32 0.0, %v994
    %v996 = vpop.f32.mrb[0].mxu0
    %v997 = vpop.f32.mrb[0].mxu0
    %v998 = vadd.f32 0.0, %v997
    %v999 = vpop.f32.mrb[0].mxu0
    %1000 = vmatprep.mubr.bf16.mxu0 0
    %1001 = vmatmul.mubr.bf16.gmra.mrb[0].mxu0 %v940
    %v1002 = vpop.f32.mrb[0].mxu0
    %v1003 = vadd.f32 0.0, %v1002
    %v1004 = vpop.f32.mrb[0].mxu0
    %v1005 = vpop.f32.mrb[0].mxu0
    %v1006 = vadd.f32 0.0, %v1005
    %v1007 = vpop.f32.mrb[0].mxu0
    %1008 = vmatprep.mubr.bf16.mxu0 0
    %1009 = vmatmul.mubr.bf16.gmra.mrb[0].mxu0 %v943
    %v1010 = vpop.f32.mrb[0].mxu0
    %v1011 = vadd.f32 0.0, %v1010
    %v1012 = vpop.f32.mrb[0].mxu0
    %v1013 = vpop.f32.mrb[0].mxu0
    %v1014 = vadd.f32 0.0, %v1013
    %v1015 = vpop.f32.mrb[0].mxu0
    %1016 = vmatprep.mubr.bf16.mxu0 0
    %1017 = vmatmul.mubr.bf16.gmra.mrb[0].mxu0 %v946
    %v1018 = vpop.f32.mrb[0].mxu0
    %v1019 = vadd.f32 0.0, %v1018
    %v1020 = vpop.f32.mrb[0].mxu0
    %v1021 = vpop.f32.mrb[0].mxu0
    %v1022 = vadd.f32 0.0, %v1021
    %v1023 = vpop.f32.mrb[0].mxu0
    %1024 = vmatprep.mubr.bf16.mxu0 0
    %1025 = vmatmul.mubr.bf16.gmra.mrb[0].mxu0 %v949
    %v1026 = vpop.f32.mrb[0].mxu0
    %v1027 = vadd.f32 0.0, %v1026
    %v1028 = vpop.f32.mrb[0].mxu0
    %v1029 = vpop.f32.mrb[0].mxu0
    %v1030 = vadd.f32 0.0, %v1029
    %v1031 = vpop.f32.mrb[0].mxu0
    %1032 = vmatprep.mubr.bf16.mxu0 0
    %1033 = vmatmul.mubr.bf16.gmra.mrb[0].mxu0 %v952
    %v1034 = vpop.f32.mrb[0].mxu0
    %v1035 = vadd.f32 0.0, %v1034
    %v1036 = vpop.f32.mrb[0].mxu0
    %v1037 = vpop.f32.mrb[0].mxu0
    %v1038 = vadd.f32 0.0, %v1037
    %v1039 = vpop.f32.mrb[0].mxu0
    %1040 = vmatprep.mubr.bf16.mxu0 0
    %1041 = vmatmul.mubr.bf16.gmra.mrb[0].mxu0 %v955
    %v1042 = vpop.f32.mrb[0].mxu0
    %v1043 = vadd.f32 0.0, %v1042
    %v1044 = vpop.f32.mrb[0].mxu0
    %v1045 = vpop.f32.mrb[0].mxu0
    %v1046 = vadd.f32 0.0, %v1045
    %v1047 = vpop.f32.mrb[0].mxu0
    %1048 = vmatprep.mubr.bf16.mxu0 0
    %1049 = vmatmul.mubr.bf16.gmra.mrb[0].mxu0 %v958
    %v1050 = vpop.f32.mrb[0].mxu0
    %v1051 = vadd.f32 0.0, %v1050
    %v1052 = vpop.f32.mrb[0].mxu0
    %v1053 = vpop.f32.mrb[0].mxu0
    %v1054 = vadd.f32 0.0, %v1053
    %v1055 = vpop.f32.mrb[0].mxu0
    %1056 = vdwg.mxu0
    %v1057 = vadd.f32 %v818, %v995
    %v1058 = vadd.f32 %v821, %v998
    %v1059 = vadd.f32 %v826, %v1003
    %v1060 = vadd.f32 %v829, %v1006
    %v1061 = vadd.f32 %v834, %v1011
    %v1062 = vadd.f32 %v837, %v1014
    %v1063 = vadd.f32 %v842, %v1019
    %v1064 = vadd.f32 %v845, %v1022
    %v1065 = vadd.f32 %v850, %v1027
    %v1066 = vadd.f32 %v853, %v1030
    %v1067 = vadd.f32 %v858, %v1035
    %v1068 = vadd.f32 %v861, %v1038
    %v1069 = vadd.f32 %v866, %v1043
    %v1070 = vadd.f32 %v869, %v1046
    %v1071 = vadd.f32 %v874, %v1051
    %v1072 = vadd.f32 %v877, %v1054
    %v1073 = vxor.u32 %v1057, 2147483648
    %v1074 = vxor.u32 %v1058, 2147483648
    %v1075 = vxor.u32 %v1059, 2147483648
    %v1076 = vxor.u32 %v1060, 2147483648
    %v1077 = vmul.f32 %v1073, 1.442695
    %v1078 = vpow.pop %v1077
    %v1079 = vmul.f32 %v1074, 1.442695
    %v1080 = vpow.pop %v1079
    %v1081 = vmul.f32 %v1075, 1.442695
    %v1082 = vpow.pop %v1081
    %v1083 = vmul.f32 %v1076, 1.442695
    %v1084 = vpow.pop %v1083
    %v1085 = vadd.f32 %v1078, 1.0
    %v1086 = vadd.f32 %v1080, 1.0
    %v1087 = vadd.f32 %v1082, 1.0
    %v1088 = vadd.f32 %v1084, 1.0
    %v1089 = vrcp.pop %v1085
    %v1090 = vmul.f32 1.0, %v1089
    %v1091 = vrcp.pop %v1086
    %v1092 = vmul.f32 1.0, %v1091
    %v1093 = vrcp.pop %v1087
    %v1094 = vmul.f32 1.0, %v1093
    %v1095 = vrcp.pop %v1088
    %v1096 = vmul.f32 1.0, %v1095
    %v1097 = vxor.u32 %v1061, 2147483648
    %v1098 = vxor.u32 %v1062, 2147483648
    %v1099 = vxor.u32 %v1063, 2147483648
    %v1100 = vxor.u32 %v1064, 2147483648
    %v1101 = vmul.f32 %v1097, 1.442695
    %v1102 = vpow.pop %v1101
    %v1103 = vmul.f32 %v1098, 1.442695
    %v1104 = vpow.pop %v1103
    %v1105 = vmul.f32 %v1099, 1.442695
    %v1106 = vpow.pop %v1105
    %v1107 = vmul.f32 %v1100, 1.442695
    %v1108 = vpow.pop %v1107
    %v1109 = vadd.f32 %v1102, 1.0
    %v1110 = vadd.f32 %v1104, 1.0
    %v1111 = vadd.f32 %v1106, 1.0
    %v1112 = vadd.f32 %v1108, 1.0
    %v1113 = vrcp.pop %v1109
    %v1114 = vmul.f32 1.0, %v1113
    %v1115 = vrcp.pop %v1110
    %v1116 = vmul.f32 1.0, %v1115
    %v1117 = vrcp.pop %v1111
    %v1118 = vmul.f32 1.0, %v1117
    %v1119 = vrcp.pop %v1112
    %v1120 = vmul.f32 1.0, %v1119
    %v1121 = vtanh.pop %v1065
    %v1122 = vtanh.pop %v1066
    %v1123 = vtanh.pop %v1067
    %v1124 = vtanh.pop %v1068
    %v1125 = vxor.u32 %v1069, 2147483648
    %v1126 = vxor.u32 %v1070, 2147483648
    %v1127 = vxor.u32 %v1071, 2147483648
    %v1128 = vxor.u32 %v1072, 2147483648
    %v1129 = vmul.f32 %v1125, 1.442695
    %v1130 = vpow.pop %v1129
    %v1131 = vmul.f32 %v1126, 1.442695
    %v1132 = vpow.pop %v1131
    %v1133 = vmul.f32 %v1127, 1.442695
    %v1134 = vpow.pop %v1133
    %v1135 = vmul.f32 %v1128, 1.442695
    %v1136 = vpow.pop %v1135
    %v1137 = vadd.f32 %v1130, 1.0
    %v1138 = vadd.f32 %v1132, 1.0
    %v1139 = vadd.f32 %v1134, 1.0
    %v1140 = vadd.f32 %v1136, 1.0
    %v1141 = vrcp.pop %v1137
    %v1142 = vmul.f32 1.0, %v1141
    %v1143 = vrcp.pop %v1138
    %v1144 = vmul.f32 1.0, %v1143
    %v1145 = vrcp.pop %v1139
    %v1146 = vmul.f32 1.0, %v1145
    %v1147 = vrcp.pop %v1140
    %v1148 = vmul.f32 1.0, %v1147
    %v1149 = vmul.f32 %v1114, 0.0
    %v1150 = vmul.f32 %v1116, 0.0
    %v1151 = vmul.f32 %v1118, 0.0
    %v1152 = vmul.f32 %v1120, 0.0
    %v1153 = vmul.f32 %v1090, %v1121
    %v1154 = vmul.f32 %v1092, %v1122
    %v1155 = vmul.f32 %v1094, %v1123
    %v1156 = vmul.f32 %v1096, %v1124
    %v1157 = vadd.f32 %v1149, %v1153
    %v1158 = vadd.f32 %v1150, %v1154
    %v1159 = vadd.f32 %v1151, %v1155
    %v1160 = vadd.f32 %v1152, %v1156
    %v1161 = vtanh.pop %v1157
    %v1162 = vtanh.pop %v1158
    %v1163 = vtanh.pop %v1159
    %v1164 = vtanh.pop %v1160
    %v1165 = vmul.f32 %v1142, %v1161
    %v1166 = vmul.f32 %v1144, %v1162
    %v1167 = vmul.f32 %v1146, %v1163
    %v1168 = vmul.f32 %v1148, %v1164
    %s1169 = scalar_lea.vmem %s0, 2
    %v1170 = vld [vmem:[%s1169] sm:$0x3]
    %v1172 = vsel %vm214, %v1170, 0
    %1174 = vmatprep.subr.bf16.mxu0 0
    %1175 = vmatpush1.bf16.msra.mxu0 %v1172
    %1176 = vmatprep.subr.bf16.mxu0 0
    %1177 = vmatpush1.bf16.msra.mxu0 0
    %1178 = vmatprep.subr.bf16.mxu0 0
    %1179 = vmatpush1.bf16.msra.mxu0 0
    %1180 = vmatprep.subr.bf16.mxu0 0
    %1181 = vmatpush1.bf16.msra.mxu0 0
    %1182 = vmatprep.subr.bf16.mxu0 0
    %1183 = vmatpush1.bf16.msra.mxu0 0
    %1184 = vmatprep.subr.bf16.mxu0 0
    %1185 = vmatpush1.bf16.msra.mxu0 0
    %1186 = vmatprep.subr.bf16.mxu0 0
    %1187 = vmatpush1.bf16.msra.mxu0 0
    %1188 = vmatprep.subr.bf16.mxu0 0
    %1189 = vmatpush1.bf16.msra.mxu0 0
    %1190 = vmatprep.subr.bf16.mxu0 0
    %1191 = vmatpush1.bf16.msra.mxu0 0
    %1192 = vmatprep.subr.bf16.mxu0 0
    %1193 = vmatpush1.bf16.msra.mxu0 0
    %1194 = vmatprep.subr.bf16.mxu0 0
    %1195 = vmatpush1.bf16.msra.mxu0 0
    %1196 = vmatprep.subr.bf16.mxu0 0
    %1197 = vmatpush1.bf16.msra.mxu0 0
    %1198 = vmatprep.subr.bf16.mxu0 0
    %1199 = vmatpush1.bf16.msra.mxu0 0
    %1200 = vmatprep.subr.bf16.mxu0 0
    %1201 = vmatpush1.bf16.msra.mxu0 0
    %1202 = vmatprep.subr.bf16.mxu0 0
    %1203 = vmatpush1.bf16.msra.mxu0 0
    %1204 = vmatprep.subr.bf16.mxu0 0
    %1205 = vmatpush1.bf16.msra.mxu0 0
    %1206 = vmatprep.mubr.bf16.mxu0 0
    %1207 = vmatmul.mubr.bf16.gmra.mrb[0].mxu0 %v191
    %v1208 = vpop.f32.mrb[0].mxu0
    %v1209 = vadd.f32 %v72, %v1208
    %v1210 = vpop.f32.mrb[0].mxu0
    %v1211 = vpop.f32.mrb[0].mxu0
    %v1212 = vadd.f32 %v77, %v1211
    %v1213 = vpop.f32.mrb[0].mxu0
    %1214 = vmatprep.mubr.bf16.mxu0 0
    %1215 = vmatmul.mubr.bf16.gmra.mrb[0].mxu0 %v194
    %v1216 = vpop.f32.mrb[0].mxu0
    %v1217 = vadd.f32 %v82, %v1216
    %v1218 = vpop.f32.mrb[0].mxu0
    %v1219 = vpop.f32.mrb[0].mxu0
    %v1220 = vadd.f32 %v87, %v1219
    %v1221 = vpop.f32.mrb[0].mxu0
    %1222 = vmatprep.mubr.bf16.mxu0 0
    %1223 = vmatmul.mubr.bf16.gmra.mrb[0].mxu0 %v197
    %v1224 = vpop.f32.mrb[0].mxu0
    %v1225 = vadd.f32 %v92, %v1224
    %v1226 = vpop.f32.mrb[0].mxu0
    %v1227 = vpop.f32.mrb[0].mxu0
    %v1228 = vadd.f32 %v97, %v1227
    %v1229 = vpop.f32.mrb[0].mxu0
    %1230 = vmatprep.mubr.bf16.mxu0 0
    %1231 = vmatmul.mubr.bf16.gmra.mrb[0].mxu0 %v200
    %v1232 = vpop.f32.mrb[0].mxu0
    %v1233 = vadd.f32 %v102, %v1232
    %v1234 = vpop.f32.mrb[0].mxu0
    %v1235 = vpop.f32.mrb[0].mxu0
    %v1236 = vadd.f32 %v107, %v1235
    %v1237 = vpop.f32.mrb[0].mxu0
    %1238 = vmatprep.mubr.bf16.mxu0 0
    %1239 = vmatmul.mubr.bf16.gmra.mrb[0].mxu0 %v203
    %v1240 = vpop.f32.mrb[0].mxu0
    %v1241 = vadd.f32 %v112, %v1240
    %v1242 = vpop.f32.mrb[0].mxu0
    %v1243 = vpop.f32.mrb[0].mxu0
    %v1244 = vadd.f32 %v117, %v1243
    %v1245 = vpop.f32.mrb[0].mxu0
    %1246 = vmatprep.mubr.bf16.mxu0 0
    %1247 = vmatmul.mubr.bf16.gmra.mrb[0].mxu0 %v206
    %v1248 = vpop.f32.mrb[0].mxu0
    %v1249 = vadd.f32 %v122, %v1248
    %v1250 = vpop.f32.mrb[0].mxu0
    %v1251 = vpop.f32.mrb[0].mxu0
    %v1252 = vadd.f32 %v127, %v1251
    %v1253 = vpop.f32.mrb[0].mxu0
    %1254 = vmatprep.mubr.bf16.mxu0 0
    %1255 = vmatmul.mubr.bf16.gmra.mrb[0].mxu0 %v209
    %v1256 = vpop.f32.mrb[0].mxu0
    %v1257 = vadd.f32 %v132, %v1256
    %v1258 = vpop.f32.mrb[0].mxu0
    %v1259 = vpop.f32.mrb[0].mxu0
    %v1260 = vadd.f32 %v137, %v1259
    %v1261 = vpop.f32.mrb[0].mxu0
    %1262 = vmatprep.mubr.bf16.mxu0 0
    %1263 = vmatmul.mubr.bf16.gmra.mrb[0].mxu0 %v212
    %v1264 = vpop.f32.mrb[0].mxu0
    %v1265 = vadd.f32 %v142, %v1264
    %v1266 = vpop.f32.mrb[0].mxu0
    %v1267 = vpop.f32.mrb[0].mxu0
    %v1268 = vadd.f32 %v147, %v1267
    %v1269 = vpop.f32.mrb[0].mxu0
    %1270 = vdwg.mxu0
    %1271 = vmatprep.subr.bf16.mxu0 0
    %1272 = vmatpush1.bf16.msra.mxu0 %v605
    %1273 = vmatprep.subr.bf16.mxu0 0
    %1274 = vmatpush1.bf16.msra.mxu0 %v606
    %1275 = vmatprep.subr.bf16.mxu0 0
    %1276 = vmatpush1.bf16.msra.mxu0 0
    %1277 = vmatprep.subr.bf16.mxu0 0
    %1278 = vmatpush1.bf16.msra.mxu0 0
    %1279 = vmatprep.subr.bf16.mxu0 0
    %1280 = vmatpush1.bf16.msra.mxu0 0
    %1281 = vmatprep.subr.bf16.mxu0 0
    %1282 = vmatpush1.bf16.msra.mxu0 0
    %1283 = vmatprep.subr.bf16.mxu0 0
    %1284 = vmatpush1.bf16.msra.mxu0 0
    %1285 = vmatprep.subr.bf16.mxu0 0
    %1286 = vmatpush1.bf16.msra.mxu0 0
    %1287 = vmatprep.subr.bf16.mxu0 0
    %1288 = vmatpush1.bf16.msra.mxu0 0
    %1289 = vmatprep.subr.bf16.mxu0 0
    %1290 = vmatpush1.bf16.msra.mxu0 0
    %1291 = vmatprep.subr.bf16.mxu0 0
    %1292 = vmatpush1.bf16.msra.mxu0 0
    %1293 = vmatprep.subr.bf16.mxu0 0
    %1294 = vmatpush1.bf16.msra.mxu0 0
    %1295 = vmatprep.subr.bf16.mxu0 0
    %1296 = vmatpush1.bf16.msra.mxu0 0
    %1297 = vmatprep.subr.bf16.mxu0 0
    %1298 = vmatpush1.bf16.msra.mxu0 0
    %1299 = vmatprep.subr.bf16.mxu0 0
    %1300 = vmatpush1.bf16.msra.mxu0 0
    %1301 = vmatprep.subr.bf16.mxu0 0
    %1302 = vmatpush1.bf16.msra.mxu0 0
    %1303 = vmatprep.mubr.bf16.mxu0 0
    %1304 = vmatmul.mubr.bf16.gmra.mrb[0].mxu0 %v373
    %v1305 = vpop.f32.mrb[0].mxu0
    %v1306 = vadd.f32 0.0, %v1305
    %v1307 = vpop.f32.mrb[0].mxu0
    %v1308 = vpop.f32.mrb[0].mxu0
    %v1309 = vadd.f32 0.0, %v1308
    %v1310 = vpop.f32.mrb[0].mxu0
    %1311 = vmatprep.mubr.bf16.mxu0 0
    %1312 = vmatmul.mubr.bf16.gmra.mrb[0].mxu0 %v376
    %v1313 = vpop.f32.mrb[0].mxu0
    %v1314 = vadd.f32 0.0, %v1313
    %v1315 = vpop.f32.mrb[0].mxu0
    %v1316 = vpop.f32.mrb[0].mxu0
    %v1317 = vadd.f32 0.0, %v1316
    %v1318 = vpop.f32.mrb[0].mxu0
    %1319 = vmatprep.mubr.bf16.mxu0 0
    %1320 = vmatmul.mubr.bf16.gmra.mrb[0].mxu0 %v379
    %v1321 = vpop.f32.mrb[0].mxu0
    %v1322 = vadd.f32 0.0, %v1321
    %v1323 = vpop.f32.mrb[0].mxu0
    %v1324 = vpop.f32.mrb[0].mxu0
    %v1325 = vadd.f32 0.0, %v1324
    %v1326 = vpop.f32.mrb[0].mxu0
    %1327 = vmatprep.mubr.bf16.mxu0 0
    %1328 = vmatmul.mubr.bf16.gmra.mrb[0].mxu0 %v382
    %v1329 = vpop.f32.mrb[0].mxu0
    %v1330 = vadd.f32 0.0, %v1329
    %v1331 = vpop.f32.mrb[0].mxu0
    %v1332 = vpop.f32.mrb[0].mxu0
    %v1333 = vadd.f32 0.0, %v1332
    %v1334 = vpop.f32.mrb[0].mxu0
    %1335 = vmatprep.mubr.bf16.mxu0 0
    %1336 = vmatmul.mubr.bf16.gmra.mrb[0].mxu0 %v385
    %v1337 = vpop.f32.mrb[0].mxu0
    %v1338 = vadd.f32 0.0, %v1337
    %v1339 = vpop.f32.mrb[0].mxu0
    %v1340 = vpop.f32.mrb[0].mxu0
    %v1341 = vadd.f32 0.0, %v1340
    %v1342 = vpop.f32.mrb[0].mxu0
    %1343 = vmatprep.mubr.bf16.mxu0 0
    %1344 = vmatmul.mubr.bf16.gmra.mrb[0].mxu0 %v388
    %v1345 = vpop.f32.mrb[0].mxu0
    %v1346 = vadd.f32 0.0, %v1345
    %v1347 = vpop.f32.mrb[0].mxu0
    %v1348 = vpop.f32.mrb[0].mxu0
    %v1349 = vadd.f32 0.0, %v1348
    %v1350 = vpop.f32.mrb[0].mxu0
    %1351 = vmatprep.mubr.bf16.mxu0 0
    %1352 = vmatmul.mubr.bf16.gmra.mrb[0].mxu0 %v391
    %v1353 = vpop.f32.mrb[0].mxu0
    %v1354 = vadd.f32 0.0, %v1353
    %v1355 = vpop.f32.mrb[0].mxu0
    %v1356 = vpop.f32.mrb[0].mxu0
    %v1357 = vadd.f32 0.0, %v1356
    %v1358 = vpop.f32.mrb[0].mxu0
    %1359 = vmatprep.mubr.bf16.mxu0 0
    %1360 = vmatmul.mubr.bf16.gmra.mrb[0].mxu0 %v394
    %v1361 = vpop.f32.mrb[0].mxu0
    %v1362 = vadd.f32 0.0, %v1361
    %v1363 = vpop.f32.mrb[0].mxu0
    %v1364 = vpop.f32.mrb[0].mxu0
    %v1365 = vadd.f32 0.0, %v1364
    %v1366 = vpop.f32.mrb[0].mxu0
    %1367 = vdwg.mxu0
    %v1368 = vadd.f32 %v1209, %v1306
    %v1369 = vadd.f32 %v1212, %v1309
    %v1370 = vadd.f32 %v1217, %v1314
    %v1371 = vadd.f32 %v1220, %v1317
    %v1372 = vadd.f32 %v1225, %v1322
    %v1373 = vadd.f32 %v1228, %v1325
    %v1374 = vadd.f32 %v1233, %v1330
    %v1375 = vadd.f32 %v1236, %v1333
    %v1376 = vadd.f32 %v1241, %v1338
    %v1377 = vadd.f32 %v1244, %v1341
    %v1378 = vadd.f32 %v1249, %v1346
    %v1379 = vadd.f32 %v1252, %v1349
    %v1380 = vadd.f32 %v1257, %v1354
    %v1381 = vadd.f32 %v1260, %v1357
    %v1382 = vadd.f32 %v1265, %v1362
    %v1383 = vadd.f32 %v1268, %v1365
    %v1384 = vxor.u32 %v1368, 2147483648
    %v1385 = vxor.u32 %v1369, 2147483648
    %v1386 = vxor.u32 %v1370, 2147483648
    %v1387 = vxor.u32 %v1371, 2147483648
    %v1388 = vmul.f32 %v1384, 1.442695
    %v1389 = vpow.pop %v1388
    %v1390 = vmul.f32 %v1385, 1.442695
    %v1391 = vpow.pop %v1390
    %v1392 = vmul.f32 %v1386, 1.442695
    %v1393 = vpow.pop %v1392
    %v1394 = vmul.f32 %v1387, 1.442695
    %v1395 = vpow.pop %v1394
    %v1396 = vadd.f32 %v1389, 1.0
    %v1397 = vadd.f32 %v1391, 1.0
    %v1398 = vadd.f32 %v1393, 1.0
    %v1399 = vadd.f32 %v1395, 1.0
    %v1400 = vrcp.pop %v1396
    %v1401 = vmul.f32 1.0, %v1400
    %v1402 = vrcp.pop %v1397
    %v1403 = vmul.f32 1.0, %v1402
    %v1404 = vrcp.pop %v1398
    %v1405 = vmul.f32 1.0, %v1404
    %v1406 = vrcp.pop %v1399
    %v1407 = vmul.f32 1.0, %v1406
    %v1408 = vxor.u32 %v1372, 2147483648
    %v1409 = vxor.u32 %v1373, 2147483648
    %v1410 = vxor.u32 %v1374, 2147483648
    %v1411 = vxor.u32 %v1375, 2147483648
    %v1412 = vmul.f32 %v1408, 1.442695
    %v1413 = vpow.pop %v1412
    %v1414 = vmul.f32 %v1409, 1.442695
    %v1415 = vpow.pop %v1414
    %v1416 = vmul.f32 %v1410, 1.442695
    %v1417 = vpow.pop %v1416
    %v1418 = vmul.f32 %v1411, 1.442695
    %v1419 = vpow.pop %v1418
    %v1420 = vadd.f32 %v1413, 1.0
    %v1421 = vadd.f32 %v1415, 1.0
    %v1422 = vadd.f32 %v1417, 1.0
    %v1423 = vadd.f32 %v1419, 1.0
    %v1424 = vrcp.pop %v1420
    %v1425 = vmul.f32 1.0, %v1424
    %v1426 = vrcp.pop %v1421
    %v1427 = vmul.f32 1.0, %v1426
    %v1428 = vrcp.pop %v1422
    %v1429 = vmul.f32 1.0, %v1428
    %v1430 = vrcp.pop %v1423
    %v1431 = vmul.f32 1.0, %v1430
    %v1432 = vtanh.pop %v1376
    %v1433 = vtanh.pop %v1377
    %v1434 = vtanh.pop %v1378
    %v1435 = vtanh.pop %v1379
    %v1436 = vxor.u32 %v1380, 2147483648
    %v1437 = vxor.u32 %v1381, 2147483648
    %v1438 = vxor.u32 %v1382, 2147483648
    %v1439 = vxor.u32 %v1383, 2147483648
    %v1440 = vmul.f32 %v1436, 1.442695
    %v1441 = vpow.pop %v1440
    %v1442 = vmul.f32 %v1437, 1.442695
    %v1443 = vpow.pop %v1442
    %v1444 = vmul.f32 %v1438, 1.442695
    %v1445 = vpow.pop %v1444
    %v1446 = vmul.f32 %v1439, 1.442695
    %v1447 = vpow.pop %v1446
    %v1448 = vadd.f32 %v1441, 1.0
    %v1449 = vadd.f32 %v1443, 1.0
    %v1450 = vadd.f32 %v1445, 1.0
    %v1451 = vadd.f32 %v1447, 1.0
    %v1452 = vrcp.pop %v1448
    %v1453 = vmul.f32 1.0, %v1452
    %v1454 = vrcp.pop %v1449
    %v1455 = vmul.f32 1.0, %v1454
    %v1456 = vrcp.pop %v1450
    %v1457 = vmul.f32 1.0, %v1456
    %v1458 = vrcp.pop %v1451
    %v1459 = vmul.f32 1.0, %v1458
    %v1460 = vmul.f32 %v1425, %v593
    %v1461 = vmul.f32 %v1427, %v594
    %v1462 = vmul.f32 %v1429, %v595
    %v1463 = vmul.f32 %v1431, %v596
    %v1464 = vmul.f32 %v1401, %v1432
    %v1465 = vmul.f32 %v1403, %v1433
    %v1466 = vmul.f32 %v1405, %v1434
    %v1467 = vmul.f32 %v1407, %v1435
    %v1468 = vadd.f32 %v1460, %v1464
    %v1469 = vadd.f32 %v1461, %v1465
    %v1470 = vadd.f32 %v1462, %v1466
    %v1471 = vadd.f32 %v1463, %v1467
    %v1472 = vtanh.pop %v1468
    %v1473 = vtanh.pop %v1469
    %v1474 = vtanh.pop %v1470
    %v1475 = vtanh.pop %v1471
    %v1476 = vmul.f32 %v1453, %v1472
    %v1477 = vmul.f32 %v1455, %v1473
    %v1478 = vmul.f32 %v1457, %v1474
    %v1479 = vmul.f32 %v1459, %v1475
    %v1480 = vpack.c.bf16 %v1477, %v1476
    %v1481 = vpack.c.bf16 %v1479, %v1478
    %1482 = vmatprep.subr.bf16.mxu0 0
    %1483 = vmatpush1.bf16.msra.mxu0 %v1480
    %1484 = vmatprep.subr.bf16.mxu0 0
    %1485 = vmatpush1.bf16.msra.mxu0 %v1481
    %1486 = vmatprep.subr.bf16.mxu0 0
    %1487 = vmatpush1.bf16.msra.mxu0 0
    %1488 = vmatprep.subr.bf16.mxu0 0
    %1489 = vmatpush1.bf16.msra.mxu0 0
    %1490 = vmatprep.subr.bf16.mxu0 0
    %1491 = vmatpush1.bf16.msra.mxu0 0
    %1492 = vmatprep.subr.bf16.mxu0 0
    %1493 = vmatpush1.bf16.msra.mxu0 0
    %1494 = vmatprep.subr.bf16.mxu0 0
    %1495 = vmatpush1.bf16.msra.mxu0 0
    %1496 = vmatprep.subr.bf16.mxu0 0
    %1497 = vmatpush1.bf16.msra.mxu0 0
    %1498 = vmatprep.subr.bf16.mxu0 0
    %1499 = vmatpush1.bf16.msra.mxu0 0
    %1500 = vmatprep.subr.bf16.mxu0 0
    %1501 = vmatpush1.bf16.msra.mxu0 0
    %1502 = vmatprep.subr.bf16.mxu0 0
    %1503 = vmatpush1.bf16.msra.mxu0 0
    %1504 = vmatprep.subr.bf16.mxu0 0
    %1505 = vmatpush1.bf16.msra.mxu0 0
    %1506 = vmatprep.subr.bf16.mxu0 0
    %1507 = vmatpush1.bf16.msra.mxu0 0
    %1508 = vmatprep.subr.bf16.mxu0 0
    %1509 = vmatpush1.bf16.msra.mxu0 0
    %1510 = vmatprep.subr.bf16.mxu0 0
    %1511 = vmatpush1.bf16.msra.mxu0 0
    %1512 = vmatprep.subr.bf16.mxu0 0
    %1513 = vmatpush1.bf16.msra.mxu0 0
    %1514 = vmatprep.mubr.bf16.mxu0 0
    %1515 = vmatmul.mubr.bf16.gmra.mrb[0].mxu0 %v760
    %v1516 = vpop.f32.mrb[0].mxu0
    %v1517 = vadd.f32 %v642, %v1516
    %v1518 = vpop.f32.mrb[0].mxu0
    %v1519 = vpop.f32.mrb[0].mxu0
    %v1520 = vadd.f32 %v647, %v1519
    %v1521 = vpop.f32.mrb[0].mxu0
    %1522 = vmatprep.mubr.bf16.mxu0 0
    %1523 = vmatmul.mubr.bf16.gmra.mrb[0].mxu0 %v763
    %v1524 = vpop.f32.mrb[0].mxu0
    %v1525 = vadd.f32 %v652, %v1524
    %v1526 = vpop.f32.mrb[0].mxu0
    %v1527 = vpop.f32.mrb[0].mxu0
    %v1528 = vadd.f32 %v657, %v1527
    %v1529 = vpop.f32.mrb[0].mxu0
    %1530 = vmatprep.mubr.bf16.mxu0 0
    %1531 = vmatmul.mubr.bf16.gmra.mrb[0].mxu0 %v766
    %v1532 = vpop.f32.mrb[0].mxu0
    %v1533 = vadd.f32 %v662, %v1532
    %v1534 = vpop.f32.mrb[0].mxu0
    %v1535 = vpop.f32.mrb[0].mxu0
    %v1536 = vadd.f32 %v667, %v1535
    %v1537 = vpop.f32.mrb[0].mxu0
    %1538 = vmatprep.mubr.bf16.mxu0 0
    %1539 = vmatmul.mubr.bf16.gmra.mrb[0].mxu0 %v769
    %v1540 = vpop.f32.mrb[0].mxu0
    %v1541 = vadd.f32 %v672, %v1540
    %v1542 = vpop.f32.mrb[0].mxu0
    %v1543 = vpop.f32.mrb[0].mxu0
    %v1544 = vadd.f32 %v677, %v1543
    %v1545 = vpop.f32.mrb[0].mxu0
    %1546 = vmatprep.mubr.bf16.mxu0 0
    %1547 = vmatmul.mubr.bf16.gmra.mrb[0].mxu0 %v772
    %v1548 = vpop.f32.mrb[0].mxu0
    %v1549 = vadd.f32 %v682, %v1548
    %v1550 = vpop.f32.mrb[0].mxu0
    %v1551 = vpop.f32.mrb[0].mxu0
    %v1552 = vadd.f32 %v687, %v1551
    %v1553 = vpop.f32.mrb[0].mxu0
    %1554 = vmatprep.mubr.bf16.mxu0 0
    %1555 = vmatmul.mubr.bf16.gmra.mrb[0].mxu0 %v775
    %v1556 = vpop.f32.mrb[0].mxu0
    %v1557 = vadd.f32 %v692, %v1556
    %v1558 = vpop.f32.mrb[0].mxu0
    %v1559 = vpop.f32.mrb[0].mxu0
    %v1560 = vadd.f32 %v697, %v1559
    %v1561 = vpop.f32.mrb[0].mxu0
    %1562 = vmatprep.mubr.bf16.mxu0 0
    %1563 = vmatmul.mubr.bf16.gmra.mrb[0].mxu0 %v778
    %v1564 = vpop.f32.mrb[0].mxu0
    %v1565 = vadd.f32 %v702, %v1564
    %v1566 = vpop.f32.mrb[0].mxu0
    %v1567 = vpop.f32.mrb[0].mxu0
    %v1568 = vadd.f32 %v707, %v1567
    %v1569 = vpop.f32.mrb[0].mxu0
    %1570 = vmatprep.mubr.bf16.mxu0 0
    %1571 = vmatmul.mubr.bf16.gmra.mrb[0].mxu0 %v781
    %v1572 = vpop.f32.mrb[0].mxu0
    %v1573 = vadd.f32 %v712, %v1572
    %v1574 = vpop.f32.mrb[0].mxu0
    %v1575 = vpop.f32.mrb[0].mxu0
    %v1576 = vadd.f32 %v717, %v1575
    %v1577 = vpop.f32.mrb[0].mxu0
    %1578 = vdwg.mxu0
    %v1579 = vpack.c.bf16 %v1166, %v1165
    %v1580 = vpack.c.bf16 %v1168, %v1167
    %1581 = vmatprep.subr.bf16.mxu0 0
    %1582 = vmatpush1.bf16.msra.mxu0 %v1579
    %1583 = vmatprep.subr.bf16.mxu0 0
    %1584 = vmatpush1.bf16.msra.mxu0 %v1580
    %1585 = vmatprep.subr.bf16.mxu0 0
    %1586 = vmatpush1.bf16.msra.mxu0 0
    %1587 = vmatprep.subr.bf16.mxu0 0
    %1588 = vmatpush1.bf16.msra.mxu0 0
    %1589 = vmatprep.subr.bf16.mxu0 0
    %1590 = vmatpush1.bf16.msra.mxu0 0
    %1591 = vmatprep.subr.bf16.mxu0 0
    %1592 = vmatpush1.bf16.msra.mxu0 0
    %1593 = vmatprep.subr.bf16.mxu0 0
    %1594 = vmatpush1.bf16.msra.mxu0 0
    %1595 = vmatprep.subr.bf16.mxu0 0
    %1596 = vmatpush1.bf16.msra.mxu0 0
    %1597 = vmatprep.subr.bf16.mxu0 0
    %1598 = vmatpush1.bf16.msra.mxu0 0
    %1599 = vmatprep.subr.bf16.mxu0 0
    %1600 = vmatpush1.bf16.msra.mxu0 0
    %1601 = vmatprep.subr.bf16.mxu0 0
    %1602 = vmatpush1.bf16.msra.mxu0 0
    %1603 = vmatprep.subr.bf16.mxu0 0
    %1604 = vmatpush1.bf16.msra.mxu0 0
    %1605 = vmatprep.subr.bf16.mxu0 0
    %1606 = vmatpush1.bf16.msra.mxu0 0
    %1607 = vmatprep.subr.bf16.mxu0 0
    %1608 = vmatpush1.bf16.msra.mxu0 0
    %1609 = vmatprep.subr.bf16.mxu0 0
    %1610 = vmatpush1.bf16.msra.mxu0 0
    %1611 = vmatprep.subr.bf16.mxu0 0
    %1612 = vmatpush1.bf16.msra.mxu0 0
    %1613 = vmatprep.mubr.bf16.mxu0 0
    %1614 = vmatmul.mubr.bf16.gmra.mrb[0].mxu0 %v937
    %v1615 = vpop.f32.mrb[0].mxu0
    %v1616 = vadd.f32 0.0, %v1615
    %v1617 = vpop.f32.mrb[0].mxu0
    %v1618 = vpop.f32.mrb[0].mxu0
    %v1619 = vadd.f32 0.0, %v1618
    %v1620 = vpop.f32.mrb[0].mxu0
    %1621 = vmatprep.mubr.bf16.mxu0 0
    %1622 = vmatmul.mubr.bf16.gmra.mrb[0].mxu0 %v940
    %v1623 = vpop.f32.mrb[0].mxu0
    %v1624 = vadd.f32 0.0, %v1623
    %v1625 = vpop.f32.mrb[0].mxu0
    %v1626 = vpop.f32.mrb[0].mxu0
    %v1627 = vadd.f32 0.0, %v1626
    %v1628 = vpop.f32.mrb[0].mxu0
    %1629 = vmatprep.mubr.bf16.mxu0 0
    %1630 = vmatmul.mubr.bf16.gmra.mrb[0].mxu0 %v943
    %v1631 = vpop.f32.mrb[0].mxu0
    %v1632 = vadd.f32 0.0, %v1631
    %v1633 = vpop.f32.mrb[0].mxu0
    %v1634 = vpop.f32.mrb[0].mxu0
    %v1635 = vadd.f32 0.0, %v1634
    %v1636 = vpop.f32.mrb[0].mxu0
    %1637 = vmatprep.mubr.bf16.mxu0 0
    %1638 = vmatmul.mubr.bf16.gmra.mrb[0].mxu0 %v946
    %v1639 = vpop.f32.mrb[0].mxu0
    %v1640 = vadd.f32 0.0, %v1639
    %v1641 = vpop.f32.mrb[0].mxu0
    %v1642 = vpop.f32.mrb[0].mxu0
    %v1643 = vadd.f32 0.0, %v1642
    %v1644 = vpop.f32.mrb[0].mxu0
    %1645 = vmatprep.mubr.bf16.mxu0 0
    %1646 = vmatmul.mubr.bf16.gmra.mrb[0].mxu0 %v949
    %v1647 = vpop.f32.mrb[0].mxu0
    %v1648 = vadd.f32 0.0, %v1647
    %v1649 = vpop.f32.mrb[0].mxu0
    %v1650 = vpop.f32.mrb[0].mxu0
    %v1651 = vadd.f32 0.0, %v1650
    %v1652 = vpop.f32.mrb[0].mxu0
    %1653 = vmatprep.mubr.bf16.mxu0 0
    %1654 = vmatmul.mubr.bf16.gmra.mrb[0].mxu0 %v952
    %v1655 = vpop.f32.mrb[0].mxu0
    %v1656 = vadd.f32 0.0, %v1655
    %v1657 = vpop.f32.mrb[0].mxu0
    %v1658 = vpop.f32.mrb[0].mxu0
    %v1659 = vadd.f32 0.0, %v1658
    %v1660 = vpop.f32.mrb[0].mxu0
    %1661 = vmatprep.mubr.bf16.mxu0 0
    %1662 = vmatmul.mubr.bf16.gmra.mrb[0].mxu0 %v955
    %v1663 = vpop.f32.mrb[0].mxu0
    %v1664 = vadd.f32 0.0, %v1663
    %v1665 = vpop.f32.mrb[0].mxu0
    %v1666 = vpop.f32.mrb[0].mxu0
    %v1667 = vadd.f32 0.0, %v1666
    %v1668 = vpop.f32.mrb[0].mxu0
    %1669 = vmatprep.mubr.bf16.mxu0 0
    %1670 = vmatmul.mubr.bf16.gmra.mrb[0].mxu0 %v958
    %v1671 = vpop.f32.mrb[0].mxu0
    %v1672 = vadd.f32 0.0, %v1671
    %v1673 = vpop.f32.mrb[0].mxu0
    %v1674 = vpop.f32.mrb[0].mxu0
    %v1675 = vadd.f32 0.0, %v1674
    %v1676 = vpop.f32.mrb[0].mxu0
    %1677 = vdwg.mxu0
    %v1678 = vadd.f32 %v1517, %v1616
    %v1679 = vadd.f32 %v1520, %v1619
    %v1680 = vadd.f32 %v1525, %v1624
    %v1681 = vadd.f32 %v1528, %v1627
    %v1682 = vadd.f32 %v1533, %v1632
    %v1683 = vadd.f32 %v1536, %v1635
    %v1684 = vadd.f32 %v1541, %v1640
    %v1685 = vadd.f32 %v1544, %v1643
    %v1686 = vadd.f32 %v1549, %v1648
    %v1687 = vadd.f32 %v1552, %v1651
    %v1688 = vadd.f32 %v1557, %v1656
    %v1689 = vadd.f32 %v1560, %v1659
    %v1690 = vadd.f32 %v1565, %v1664
    %v1691 = vadd.f32 %v1568, %v1667
    %v1692 = vadd.f32 %v1573, %v1672
    %v1693 = vadd.f32 %v1576, %v1675
    %v1694 = vxor.u32 %v1678, 2147483648
    %v1695 = vxor.u32 %v1679, 2147483648
    %v1696 = vxor.u32 %v1680, 2147483648
    %v1697 = vxor.u32 %v1681, 2147483648
    %v1698 = vmul.f32 %v1694, 1.442695
    %v1699 = vpow.pop %v1698
    %v1700 = vmul.f32 %v1695, 1.442695
    %v1701 = vpow.pop %v1700
    %v1702 = vmul.f32 %v1696, 1.442695
    %v1703 = vpow.pop %v1702
    %v1704 = vmul.f32 %v1697, 1.442695
    %v1705 = vpow.pop %v1704
    %v1706 = vadd.f32 %v1699, 1.0
    %v1707 = vadd.f32 %v1701, 1.0
    %v1708 = vadd.f32 %v1703, 1.0
    %v1709 = vadd.f32 %v1705, 1.0
    %v1710 = vrcp.pop %v1706
    %v1711 = vmul.f32 1.0, %v1710
    %v1712 = vrcp.pop %v1707
    %v1713 = vmul.f32 1.0, %v1712
    %v1714 = vrcp.pop %v1708
    %v1715 = vmul.f32 1.0, %v1714
    %v1716 = vrcp.pop %v1709
    %v1717 = vmul.f32 1.0, %v1716
    %v1718 = vxor.u32 %v1682, 2147483648
    %v1719 = vxor.u32 %v1683, 2147483648
    %v1720 = vxor.u32 %v1684, 2147483648
    %v1721 = vxor.u32 %v1685, 2147483648
    %v1722 = vmul.f32 %v1718, 1.442695
    %v1723 = vpow.pop %v1722
    %v1724 = vmul.f32 %v1719, 1.442695
    %v1725 = vpow.pop %v1724
    %v1726 = vmul.f32 %v1720, 1.442695
    %v1727 = vpow.pop %v1726
    %v1728 = vmul.f32 %v1721, 1.442695
    %v1729 = vpow.pop %v1728
    %v1730 = vadd.f32 %v1723, 1.0
    %v1731 = vadd.f32 %v1725, 1.0
    %v1732 = vadd.f32 %v1727, 1.0
    %v1733 = vadd.f32 %v1729, 1.0
    %v1734 = vrcp.pop %v1730
    %v1735 = vmul.f32 1.0, %v1734
    %v1736 = vrcp.pop %v1731
    %v1737 = vmul.f32 1.0, %v1736
    %v1738 = vrcp.pop %v1732
    %v1739 = vmul.f32 1.0, %v1738
    %v1740 = vrcp.pop %v1733
    %v1741 = vmul.f32 1.0, %v1740
    %v1742 = vtanh.pop %v1686
    %v1743 = vtanh.pop %v1687
    %v1744 = vtanh.pop %v1688
    %v1745 = vtanh.pop %v1689
    %v1746 = vxor.u32 %v1690, 2147483648
    %v1747 = vxor.u32 %v1691, 2147483648
    %v1748 = vxor.u32 %v1692, 2147483648
    %v1749 = vxor.u32 %v1693, 2147483648
    %v1750 = vmul.f32 %v1746, 1.442695
    %v1751 = vpow.pop %v1750
    %v1752 = vmul.f32 %v1747, 1.442695
    %v1753 = vpow.pop %v1752
    %v1754 = vmul.f32 %v1748, 1.442695
    %v1755 = vpow.pop %v1754
    %v1756 = vmul.f32 %v1749, 1.442695
    %v1757 = vpow.pop %v1756
    %v1758 = vadd.f32 %v1751, 1.0
    %v1759 = vadd.f32 %v1753, 1.0
    %v1760 = vadd.f32 %v1755, 1.0
    %v1761 = vadd.f32 %v1757, 1.0
    %v1762 = vrcp.pop %v1758
    %v1763 = vmul.f32 1.0, %v1762
    %v1764 = vrcp.pop %v1759
    %v1765 = vmul.f32 1.0, %v1764
    %v1766 = vrcp.pop %v1760
    %v1767 = vmul.f32 1.0, %v1766
    %v1768 = vrcp.pop %v1761
    %v1769 = vmul.f32 1.0, %v1768
    %v1770 = vmul.f32 %v1735, %v1157
    %v1771 = vmul.f32 %v1737, %v1158
    %v1772 = vmul.f32 %v1739, %v1159
    %v1773 = vmul.f32 %v1741, %v1160
    %v1774 = vmul.f32 %v1711, %v1742
    %v1775 = vmul.f32 %v1713, %v1743
    %v1776 = vmul.f32 %v1715, %v1744
    %v1777 = vmul.f32 %v1717, %v1745
    %v1778 = vadd.f32 %v1770, %v1774
    %v1779 = vadd.f32 %v1771, %v1775
    %v1780 = vadd.f32 %v1772, %v1776
    %v1781 = vadd.f32 %v1773, %v1777
    %v1782 = vtanh.pop %v1778
    %v1783 = vtanh.pop %v1779
    %v1784 = vtanh.pop %v1780
    %v1785 = vtanh.pop %v1781
    %v1786 = vmul.f32 %v1763, %v1782
    %v1787 = vmul.f32 %v1765, %v1783
    %v1788 = vmul.f32 %v1767, %v1784
    %v1789 = vmul.f32 %v1769, %v1785
    %s1790 = scalar_lea.vmem %s0, 4
    %v1791 = vld [vmem:[%s1790] sm:$0x3]
    %v1793 = vsel %vm214, %v1791, 0
    %1795 = vmatprep.subr.bf16.mxu0 0
    %1796 = vmatpush1.bf16.msra.mxu0 %v1793
    %1797 = vmatprep.subr.bf16.mxu0 0
    %1798 = vmatpush1.bf16.msra.mxu0 0
    %1799 = vmatprep.subr.bf16.mxu0 0
    %1800 = vmatpush1.bf16.msra.mxu0 0
    %1801 = vmatprep.subr.bf16.mxu0 0
    %1802 = vmatpush1.bf16.msra.mxu0 0
    %1803 = vmatprep.subr.bf16.mxu0 0
    %1804 = vmatpush1.bf16.msra.mxu0 0
    %1805 = vmatprep.subr.bf16.mxu0 0
    %1806 = vmatpush1.bf16.msra.mxu0 0
    %1807 = vmatprep.subr.bf16.mxu0 0
    %1808 = vmatpush1.bf16.msra.mxu0 0
    %1809 = vmatprep.subr.bf16.mxu0 0
    %1810 = vmatpush1.bf16.msra.mxu0 0
    %1811 = vmatprep.subr.bf16.mxu0 0
    %1812 = vmatpush1.bf16.msra.mxu0 0
    %1813 = vmatprep.subr.bf16.mxu0 0
    %1814 = vmatpush1.bf16.msra.mxu0 0
    %1815 = vmatprep.subr.bf16.mxu0 0
    %1816 = vmatpush1.bf16.msra.mxu0 0
    %1817 = vmatprep.subr.bf16.mxu0 0
    %1818 = vmatpush1.bf16.msra.mxu0 0
    %1819 = vmatprep.subr.bf16.mxu0 0
    %1820 = vmatpush1.bf16.msra.mxu0 0
    %1821 = vmatprep.subr.bf16.mxu0 0
    %1822 = vmatpush1.bf16.msra.mxu0 0
    %1823 = vmatprep.subr.bf16.mxu0 0
    %1824 = vmatpush1.bf16.msra.mxu0 0
    %1825 = vmatprep.subr.bf16.mxu0 0
    %1826 = vmatpush1.bf16.msra.mxu0 0
    %1827 = vmatprep.mubr.bf16.mxu0 0
    %1828 = vmatmul.mubr.bf16.gmra.mrb[0].mxu0 %v191
    %v1829 = vpop.f32.mrb[0].mxu0
    %v1830 = vadd.f32 %v72, %v1829
    %v1831 = vpop.f32.mrb[0].mxu0
    %v1832 = vpop.f32.mrb[0].mxu0
    %v1833 = vadd.f32 %v77, %v1832
    %v1834 = vpop.f32.mrb[0].mxu0
    %1835 = vmatprep.mubr.bf16.mxu0 0
    %1836 = vmatmul.mubr.bf16.gmra.mrb[0].mxu0 %v194
    %v1837 = vpop.f32.mrb[0].mxu0
    %v1838 = vadd.f32 %v82, %v1837
    %v1839 = vpop.f32.mrb[0].mxu0
    %v1840 = vpop.f32.mrb[0].mxu0
    %v1841 = vadd.f32 %v87, %v1840
    %v1842 = vpop.f32.mrb[0].mxu0
    %1843 = vmatprep.mubr.bf16.mxu0 0
    %1844 = vmatmul.mubr.bf16.gmra.mrb[0].mxu0 %v197
    %v1845 = vpop.f32.mrb[0].mxu0
    %v1846 = vadd.f32 %v92, %v1845
    %v1847 = vpop.f32.mrb[0].mxu0
    %v1848 = vpop.f32.mrb[0].mxu0
    %v1849 = vadd.f32 %v97, %v1848
    %v1850 = vpop.f32.mrb[0].mxu0
    %1851 = vmatprep.mubr.bf16.mxu0 0
    %1852 = vmatmul.mubr.bf16.gmra.mrb[0].mxu0 %v200
    %v1853 = vpop.f32.mrb[0].mxu0
    %v1854 = vadd.f32 %v102, %v1853
    %v1855 = vpop.f32.mrb[0].mxu0
    %v1856 = vpop.f32.mrb[0].mxu0
    %v1857 = vadd.f32 %v107, %v1856
    %v1858 = vpop.f32.mrb[0].mxu0
    %1859 = vmatprep.mubr.bf16.mxu0 0
    %1860 = vmatmul.mubr.bf16.gmra.mrb[0].mxu0 %v203
    %v1861 = vpop.f32.mrb[0].mxu0
    %v1862 = vadd.f32 %v112, %v1861
    %v1863 = vpop.f32.mrb[0].mxu0
    %v1864 = vpop.f32.mrb[0].mxu0
    %v1865 = vadd.f32 %v117, %v1864
    %v1866 = vpop.f32.mrb[0].mxu0
    %1867 = vmatprep.mubr.bf16.mxu0 0
    %1868 = vmatmul.mubr.bf16.gmra.mrb[0].mxu0 %v206
    %v1869 = vpop.f32.mrb[0].mxu0
    %v1870 = vadd.f32 %v122, %v1869
    %v1871 = vpop.f32.mrb[0].mxu0
    %v1872 = vpop.f32.mrb[0].mxu0
    %v1873 = vadd.f32 %v127, %v1872
    %v1874 = vpop.f32.mrb[0].mxu0
    %1875 = vmatprep.mubr.bf16.mxu0 0
    %1876 = vmatmul.mubr.bf16.gmra.mrb[0].mxu0 %v209
    %v1877 = vpop.f32.mrb[0].mxu0
    %v1878 = vadd.f32 %v132, %v1877
    %v1879 = vpop.f32.mrb[0].mxu0
    %v1880 = vpop.f32.mrb[0].mxu0
    %v1881 = vadd.f32 %v137, %v1880
    %v1882 = vpop.f32.mrb[0].mxu0
    %1883 = vmatprep.mubr.bf16.mxu0 0
    %1884 = vmatmul.mubr.bf16.gmra.mrb[0].mxu0 %v212
    %v1885 = vpop.f32.mrb[0].mxu0
    %v1886 = vadd.f32 %v142, %v1885
    %v1887 = vpop.f32.mrb[0].mxu0
    %v1888 = vpop.f32.mrb[0].mxu0
    %v1889 = vadd.f32 %v147, %v1888
    %v1890 = vpop.f32.mrb[0].mxu0
    %1891 = vdwg.mxu0
    %1892 = vmatprep.subr.bf16.mxu0 0
    %1893 = vmatpush1.bf16.msra.mxu0 %v1480
    %1894 = vmatprep.subr.bf16.mxu0 0
    %1895 = vmatpush1.bf16.msra.mxu0 %v1481
    %1896 = vmatprep.subr.bf16.mxu0 0
    %1897 = vmatpush1.bf16.msra.mxu0 0
    %1898 = vmatprep.subr.bf16.mxu0 0
    %1899 = vmatpush1.bf16.msra.mxu0 0
    %1900 = vmatprep.subr.bf16.mxu0 0
    %1901 = vmatpush1.bf16.msra.mxu0 0
    %1902 = vmatprep.subr.bf16.mxu0 0
    %1903 = vmatpush1.bf16.msra.mxu0 0
    %1904 = vmatprep.subr.bf16.mxu0 0
    %1905 = vmatpush1.bf16.msra.mxu0 0
    %1906 = vmatprep.subr.bf16.mxu0 0
    %1907 = vmatpush1.bf16.msra.mxu0 0
    %1908 = vmatprep.subr.bf16.mxu0 0
    %1909 = vmatpush1.bf16.msra.mxu0 0
    %1910 = vmatprep.subr.bf16.mxu0 0
    %1911 = vmatpush1.bf16.msra.mxu0 0
    %1912 = vmatprep.subr.bf16.mxu0 0
    %1913 = vmatpush1.bf16.msra.mxu0 0
    %1914 = vmatprep.subr.bf16.mxu0 0
    %1915 = vmatpush1.bf16.msra.mxu0 0
    %1916 = vmatprep.subr.bf16.mxu0 0
    %1917 = vmatpush1.bf16.msra.mxu0 0
    %1918 = vmatprep.subr.bf16.mxu0 0
    %1919 = vmatpush1.bf16.msra.mxu0 0
    %1920 = vmatprep.subr.bf16.mxu0 0
    %1921 = vmatpush1.bf16.msra.mxu0 0
    %1922 = vmatprep.subr.bf16.mxu0 0
    %1923 = vmatpush1.bf16.msra.mxu0 0
    %1924 = vmatprep.mubr.bf16.mxu0 0
    %1925 = vmatmul.mubr.bf16.gmra.mrb[0].mxu0 %v373
    %v1926 = vpop.f32.mrb[0].mxu0
    %v1927 = vadd.f32 0.0, %v1926
    %v1928 = vpop.f32.mrb[0].mxu0
    %v1929 = vpop.f32.mrb[0].mxu0
    %v1930 = vadd.f32 0.0, %v1929
    %v1931 = vpop.f32.mrb[0].mxu0
    %1932 = vmatprep.mubr.bf16.mxu0 0
    %1933 = vmatmul.mubr.bf16.gmra.mrb[0].mxu0 %v376
    %v1934 = vpop.f32.mrb[0].mxu0
    %v1935 = vadd.f32 0.0, %v1934
    %v1936 = vpop.f32.mrb[0].mxu0
    %v1937 = vpop.f32.mrb[0].mxu0
    %v1938 = vadd.f32 0.0, %v1937
    %v1939 = vpop.f32.mrb[0].mxu0
    %1940 = vmatprep.mubr.bf16.mxu0 0
    %1941 = vmatmul.mubr.bf16.gmra.mrb[0].mxu0 %v379
    %v1942 = vpop.f32.mrb[0].mxu0
    %v1943 = vadd.f32 0.0, %v1942
    %v1944 = vpop.f32.mrb[0].mxu0
    %v1945 = vpop.f32.mrb[0].mxu0
    %v1946 = vadd.f32 0.0, %v1945
    %v1947 = vpop.f32.mrb[0].mxu0
    %1948 = vmatprep.mubr.bf16.mxu0 0
    %1949 = vmatmul.mubr.bf16.gmra.mrb[0].mxu0 %v382
    %v1950 = vpop.f32.mrb[0].mxu0
    %v1951 = vadd.f32 0.0, %v1950
    %v1952 = vpop.f32.mrb[0].mxu0
    %v1953 = vpop.f32.mrb[0].mxu0
    %v1954 = vadd.f32 0.0, %v1953
    %v1955 = vpop.f32.mrb[0].mxu0
    %1956 = vmatprep.mubr.bf16.mxu0 0
    %1957 = vmatmul.mubr.bf16.gmra.mrb[0].mxu0 %v385
    %v1958 = vpop.f32.mrb[0].mxu0
    %v1959 = vadd.f32 0.0, %v1958
    %v1960 = vpop.f32.mrb[0].mxu0
    %v1961 = vpop.f32.mrb[0].mxu0
    %v1962 = vadd.f32 0.0, %v1961
    %v1963 = vpop.f32.mrb[0].mxu0
    %1964 = vmatprep.mubr.bf16.mxu0 0
    %1965 = vmatmul.mubr.bf16.gmra.mrb[0].mxu0 %v388
    %v1966 = vpop.f32.mrb[0].mxu0
    %v1967 = vadd.f32 0.0, %v1966
    %v1968 = vpop.f32.mrb[0].mxu0
    %v1969 = vpop.f32.mrb[0].mxu0
    %v1970 = vadd.f32 0.0, %v1969
    %v1971 = vpop.f32.mrb[0].mxu0
    %1972 = vmatprep.mubr.bf16.mxu0 0
    %1973 = vmatmul.mubr.bf16.gmra.mrb[0].mxu0 %v391
    %v1974 = vpop.f32.mrb[0].mxu0
    %v1975 = vadd.f32 0.0, %v1974
    %v1976 = vpop.f32.mrb[0].mxu0
    %v1977 = vpop.f32.mrb[0].mxu0
    %v1978 = vadd.f32 0.0, %v1977
    %v1979 = vpop.f32.mrb[0].mxu0
    %1980 = vmatprep.mubr.bf16.mxu0 0
    %1981 = vmatmul.mubr.bf16.gmra.mrb[0].mxu0 %v394
    %v1982 = vpop.f32.mrb[0].mxu0
    %v1983 = vadd.f32 0.0, %v1982
    %v1984 = vpop.f32.mrb[0].mxu0
    %v1985 = vpop.f32.mrb[0].mxu0
    %v1986 = vadd.f32 0.0, %v1985
    %v1987 = vpop.f32.mrb[0].mxu0
    %1988 = vdwg.mxu0
    %v1989 = vadd.f32 %v1830, %v1927
    %v1990 = vadd.f32 %v1833, %v1930
    %v1991 = vadd.f32 %v1838, %v1935
    %v1992 = vadd.f32 %v1841, %v1938
    %v1993 = vadd.f32 %v1846, %v1943
    %v1994 = vadd.f32 %v1849, %v1946
    %v1995 = vadd.f32 %v1854, %v1951
    %v1996 = vadd.f32 %v1857, %v1954
    %v1997 = vadd.f32 %v1862, %v1959
    %v1998 = vadd.f32 %v1865, %v1962
    %v1999 = vadd.f32 %v1870, %v1967
    %v2000 = vadd.f32 %v1873, %v1970
    %v2001 = vadd.f32 %v1878, %v1975
    %v2002 = vadd.f32 %v1881, %v1978
    %v2003 = vadd.f32 %v1886, %v1983
    %v2004 = vadd.f32 %v1889, %v1986
    %v2005 = vxor.u32 %v1989, 2147483648
    %v2006 = vxor.u32 %v1990, 2147483648
    %v2007 = vxor.u32 %v1991, 2147483648
    %v2008 = vxor.u32 %v1992, 2147483648
    %v2009 = vmul.f32 %v2005, 1.442695
    %v2010 = vpow.pop %v2009
    %v2011 = vmul.f32 %v2006, 1.442695
    %v2012 = vpow.pop %v2011
    %v2013 = vmul.f32 %v2007, 1.442695
    %v2014 = vpow.pop %v2013
    %v2015 = vmul.f32 %v2008, 1.442695
    %v2016 = vpow.pop %v2015
    %v2017 = vadd.f32 %v2010, 1.0
    %v2018 = vadd.f32 %v2012, 1.0
    %v2019 = vadd.f32 %v2014, 1.0
    %v2020 = vadd.f32 %v2016, 1.0
    %v2021 = vrcp.pop %v2017
    %v2022 = vmul.f32 1.0, %v2021
    %v2023 = vrcp.pop %v2018
    %v2024 = vmul.f32 1.0, %v2023
    %v2025 = vrcp.pop %v2019
    %v2026 = vmul.f32 1.0, %v2025
    %v2027 = vrcp.pop %v2020
    %v2028 = vmul.f32 1.0, %v2027
    %v2029 = vxor.u32 %v1993, 2147483648
    %v2030 = vxor.u32 %v1994, 2147483648
    %v2031 = vxor.u32 %v1995, 2147483648
    %v2032 = vxor.u32 %v1996, 2147483648
    %v2033 = vmul.f32 %v2029, 1.442695
    %v2034 = vpow.pop %v2033
    %v2035 = vmul.f32 %v2030, 1.442695
    %v2036 = vpow.pop %v2035
    %v2037 = vmul.f32 %v2031, 1.442695
    %v2038 = vpow.pop %v2037
    %v2039 = vmul.f32 %v2032, 1.442695
    %v2040 = vpow.pop %v2039
    %v2041 = vadd.f32 %v2034, 1.0
    %v2042 = vadd.f32 %v2036, 1.0
    %v2043 = vadd.f32 %v2038, 1.0
    %v2044 = vadd.f32 %v2040, 1.0
    %v2045 = vrcp.pop %v2041
    %v2046 = vmul.f32 1.0, %v2045
    %v2047 = vrcp.pop %v2042
    %v2048 = vmul.f32 1.0, %v2047
    %v2049 = vrcp.pop %v2043
    %v2050 = vmul.f32 1.0, %v2049
    %v2051 = vrcp.pop %v2044
    %v2052 = vmul.f32 1.0, %v2051
    %v2053 = vtanh.pop %v1997
    %v2054 = vtanh.pop %v1998
    %v2055 = vtanh.pop %v1999
    %v2056 = vtanh.pop %v2000
    %v2057 = vxor.u32 %v2001, 2147483648
    %v2058 = vxor.u32 %v2002, 2147483648
    %v2059 = vxor.u32 %v2003, 2147483648
    %v2060 = vxor.u32 %v2004, 2147483648
    %v2061 = vmul.f32 %v2057, 1.442695
    %v2062 = vpow.pop %v2061
    %v2063 = vmul.f32 %v2058, 1.442695
    %v2064 = vpow.pop %v2063
    %v2065 = vmul.f32 %v2059, 1.442695
    %v2066 = vpow.pop %v2065
    %v2067 = vmul.f32 %v2060, 1.442695
    %v2068 = vpow.pop %v2067
    %v2069 = vadd.f32 %v2062, 1.0
    %v2070 = vadd.f32 %v2064, 1.0
    %v2071 = vadd.f32 %v2066, 1.0
    %v2072 = vadd.f32 %v2068, 1.0
    %v2073 = vrcp.pop %v2069
    %v2074 = vmul.f32 1.0, %v2073
    %v2075 = vrcp.pop %v2070
    %v2076 = vmul.f32 1.0, %v2075
    %v2077 = vrcp.pop %v2071
    %v2078 = vmul.f32 1.0, %v2077
    %v2079 = vrcp.pop %v2072
    %v2080 = vmul.f32 1.0, %v2079
    %v2081 = vmul.f32 %v2046, %v1468
    %v2082 = vmul.f32 %v2048, %v1469
    %v2083 = vmul.f32 %v2050, %v1470
    %v2084 = vmul.f32 %v2052, %v1471
    %v2085 = vmul.f32 %v2022, %v2053
    %v2086 = vmul.f32 %v2024, %v2054
    %v2087 = vmul.f32 %v2026, %v2055
    %v2088 = vmul.f32 %v2028, %v2056
    %v2089 = vadd.f32 %v2081, %v2085
    %v2090 = vadd.f32 %v2082, %v2086
    %v2091 = vadd.f32 %v2083, %v2087
    %v2092 = vadd.f32 %v2084, %v2088
    %v2093 = vtanh.pop %v2089
    %v2094 = vtanh.pop %v2090
    %v2095 = vtanh.pop %v2091
    %v2096 = vtanh.pop %v2092
    %v2097 = vmul.f32 %v2074, %v2093
    %v2098 = vmul.f32 %v2076, %v2094
    %v2099 = vmul.f32 %v2078, %v2095
    %v2100 = vmul.f32 %v2080, %v2096
    %v2101 = vpack.c.bf16 %v2098, %v2097
    %v2102 = vpack.c.bf16 %v2100, %v2099
    %2103 = vmatprep.subr.bf16.mxu0 0
    %2104 = vmatpush1.bf16.msra.mxu0 %v2101
    %2105 = vmatprep.subr.bf16.mxu0 0
    %2106 = vmatpush1.bf16.msra.mxu0 %v2102
    %2107 = vmatprep.subr.bf16.mxu0 0
    %2108 = vmatpush1.bf16.msra.mxu0 0
    %2109 = vmatprep.subr.bf16.mxu0 0
    %2110 = vmatpush1.bf16.msra.mxu0 0
    %2111 = vmatprep.subr.bf16.mxu0 0
    %2112 = vmatpush1.bf16.msra.mxu0 0
    %2113 = vmatprep.subr.bf16.mxu0 0
    %2114 = vmatpush1.bf16.msra.mxu0 0
    %2115 = vmatprep.subr.bf16.mxu0 0
    %2116 = vmatpush1.bf16.msra.mxu0 0
    %2117 = vmatprep.subr.bf16.mxu0 0
    %2118 = vmatpush1.bf16.msra.mxu0 0
    %2119 = vmatprep.subr.bf16.mxu0 0
    %2120 = vmatpush1.bf16.msra.mxu0 0
    %2121 = vmatprep.subr.bf16.mxu0 0
    %2122 = vmatpush1.bf16.msra.mxu0 0
    %2123 = vmatprep.subr.bf16.mxu0 0
    %2124 = vmatpush1.bf16.msra.mxu0 0
    %2125 = vmatprep.subr.bf16.mxu0 0
    %2126 = vmatpush1.bf16.msra.mxu0 0
    %2127 = vmatprep.subr.bf16.mxu0 0
    %2128 = vmatpush1.bf16.msra.mxu0 0
    %2129 = vmatprep.subr.bf16.mxu0 0
    %2130 = vmatpush1.bf16.msra.mxu0 0
    %2131 = vmatprep.subr.bf16.mxu0 0
    %2132 = vmatpush1.bf16.msra.mxu0 0
    %2133 = vmatprep.subr.bf16.mxu0 0
    %2134 = vmatpush1.bf16.msra.mxu0 0
    %2135 = vmatprep.mubr.bf16.mxu0 0
    %2136 = vmatmul.mubr.bf16.gmra.mrb[0].mxu0 %v760
    %v2137 = vpop.f32.mrb[0].mxu0
    %v2138 = vadd.f32 %v642, %v2137
    %v2139 = vpop.f32.mrb[0].mxu0
    %v2140 = vpop.f32.mrb[0].mxu0
    %v2141 = vadd.f32 %v647, %v2140
    %v2142 = vpop.f32.mrb[0].mxu0
    %2143 = vmatprep.mubr.bf16.mxu0 0
    %2144 = vmatmul.mubr.bf16.gmra.mrb[0].mxu0 %v763
    %v2145 = vpop.f32.mrb[0].mxu0
    %v2146 = vadd.f32 %v652, %v2145
    %v2147 = vpop.f32.mrb[0].mxu0
    %v2148 = vpop.f32.mrb[0].mxu0
    %v2149 = vadd.f32 %v657, %v2148
    %v2150 = vpop.f32.mrb[0].mxu0
    %2151 = vmatprep.mubr.bf16.mxu0 0
    %2152 = vmatmul.mubr.bf16.gmra.mrb[0].mxu0 %v766
    %v2153 = vpop.f32.mrb[0].mxu0
    %v2154 = vadd.f32 %v662, %v2153
    %v2155 = vpop.f32.mrb[0].mxu0
    %v2156 = vpop.f32.mrb[0].mxu0
    %v2157 = vadd.f32 %v667, %v2156
    %v2158 = vpop.f32.mrb[0].mxu0
    %2159 = vmatprep.mubr.bf16.mxu0 0
    %2160 = vmatmul.mubr.bf16.gmra.mrb[0].mxu0 %v769
    %v2161 = vpop.f32.mrb[0].mxu0
    %v2162 = vadd.f32 %v672, %v2161
    %v2163 = vpop.f32.mrb[0].mxu0
    %v2164 = vpop.f32.mrb[0].mxu0
    %v2165 = vadd.f32 %v677, %v2164
    %v2166 = vpop.f32.mrb[0].mxu0
    %2167 = vmatprep.mubr.bf16.mxu0 0
    %2168 = vmatmul.mubr.bf16.gmra.mrb[0].mxu0 %v772
    %v2169 = vpop.f32.mrb[0].mxu0
    %v2170 = vadd.f32 %v682, %v2169
    %v2171 = vpop.f32.mrb[0].mxu0
    %v2172 = vpop.f32.mrb[0].mxu0
    %v2173 = vadd.f32 %v687, %v2172
    %v2174 = vpop.f32.mrb[0].mxu0
    %2175 = vmatprep.mubr.bf16.mxu0 0
    %2176 = vmatmul.mubr.bf16.gmra.mrb[0].mxu0 %v775
    %v2177 = vpop.f32.mrb[0].mxu0
    %v2178 = vadd.f32 %v692, %v2177
    %v2179 = vpop.f32.mrb[0].mxu0
    %v2180 = vpop.f32.mrb[0].mxu0
    %v2181 = vadd.f32 %v697, %v2180
    %v2182 = vpop.f32.mrb[0].mxu0
    %2183 = vmatprep.mubr.bf16.mxu0 0
    %2184 = vmatmul.mubr.bf16.gmra.mrb[0].mxu0 %v778
    %v2185 = vpop.f32.mrb[0].mxu0
    %v2186 = vadd.f32 %v702, %v2185
    %v2187 = vpop.f32.mrb[0].mxu0
    %v2188 = vpop.f32.mrb[0].mxu0
    %v2189 = vadd.f32 %v707, %v2188
    %v2190 = vpop.f32.mrb[0].mxu0
    %2191 = vmatprep.mubr.bf16.mxu0 0
    %2192 = vmatmul.mubr.bf16.gmra.mrb[0].mxu0 %v781
    %v2193 = vpop.f32.mrb[0].mxu0
    %v2194 = vadd.f32 %v712, %v2193
    %v2195 = vpop.f32.mrb[0].mxu0
    %v2196 = vpop.f32.mrb[0].mxu0
    %v2197 = vadd.f32 %v717, %v2196
    %v2198 = vpop.f32.mrb[0].mxu0
    %2199 = vdwg.mxu0
    %v2200 = vpack.c.bf16 %v1787, %v1786
    %v2201 = vpack.c.bf16 %v1789, %v1788
    %2202 = vmatprep.subr.bf16.mxu0 0
    %2203 = vmatpush1.bf16.msra.mxu0 %v2200
    %2204 = vmatprep.subr.bf16.mxu0 0
    %2205 = vmatpush1.bf16.msra.mxu0 %v2201
    %2206 = vmatprep.subr.bf16.mxu0 0
    %2207 = vmatpush1.bf16.msra.mxu0 0
    %2208 = vmatprep.subr.bf16.mxu0 0
    %2209 = vmatpush1.bf16.msra.mxu0 0
    %2210 = vmatprep.subr.bf16.mxu0 0
    %2211 = vmatpush1.bf16.msra.mxu0 0
    %2212 = vmatprep.subr.bf16.mxu0 0
    %2213 = vmatpush1.bf16.msra.mxu0 0
    %2214 = vmatprep.subr.bf16.mxu0 0
    %2215 = vmatpush1.bf16.msra.mxu0 0
    %2216 = vmatprep.subr.bf16.mxu0 0
    %2217 = vmatpush1.bf16.msra.mxu0 0
    %2218 = vmatprep.subr.bf16.mxu0 0
    %2219 = vmatpush1.bf16.msra.mxu0 0
    %2220 = vmatprep.subr.bf16.mxu0 0
    %2221 = vmatpush1.bf16.msra.mxu0 0
    %2222 = vmatprep.subr.bf16.mxu0 0
    %2223 = vmatpush1.bf16.msra.mxu0 0
    %2224 = vmatprep.subr.bf16.mxu0 0
    %2225 = vmatpush1.bf16.msra.mxu0 0
    %2226 = vmatprep.subr.bf16.mxu0 0
    %2227 = vmatpush1.bf16.msra.mxu0 0
    %2228 = vmatprep.subr.bf16.mxu0 0
    %2229 = vmatpush1.bf16.msra.mxu0 0
    %2230 = vmatprep.subr.bf16.mxu0 0
    %2231 = vmatpush1.bf16.msra.mxu0 0
    %2232 = vmatprep.subr.bf16.mxu0 0
    %2233 = vmatpush1.bf16.msra.mxu0 0
    %2234 = vmatprep.mubr.bf16.mxu0 0
    %2235 = vmatmul.mubr.bf16.gmra.mrb[0].mxu0 %v937
    %v2236 = vpop.f32.mrb[0].mxu0
    %v2237 = vadd.f32 0.0, %v2236
    %v2238 = vpop.f32.mrb[0].mxu0
    %v2239 = vpop.f32.mrb[0].mxu0
    %v2240 = vadd.f32 0.0, %v2239
    %v2241 = vpop.f32.mrb[0].mxu0
    %2242 = vmatprep.mubr.bf16.mxu0 0
    %2243 = vmatmul.mubr.bf16.gmra.mrb[0].mxu0 %v940
    %v2244 = vpop.f32.mrb[0].mxu0
    %v2245 = vadd.f32 0.0, %v2244
    %v2246 = vpop.f32.mrb[0].mxu0
    %v2247 = vpop.f32.mrb[0].mxu0
    %v2248 = vadd.f32 0.0, %v2247
    %v2249 = vpop.f32.mrb[0].mxu0
    %2250 = vmatprep.mubr.bf16.mxu0 0
    %2251 = vmatmul.mubr.bf16.gmra.mrb[0].mxu0 %v943
    %v2252 = vpop.f32.mrb[0].mxu0
    %v2253 = vadd.f32 0.0, %v2252
    %v2254 = vpop.f32.mrb[0].mxu0
    %v2255 = vpop.f32.mrb[0].mxu0
    %v2256 = vadd.f32 0.0, %v2255
    %v2257 = vpop.f32.mrb[0].mxu0
    %2258 = vmatprep.mubr.bf16.mxu0 0
    %2259 = vmatmul.mubr.bf16.gmra.mrb[0].mxu0 %v946
    %v2260 = vpop.f32.mrb[0].mxu0
    %v2261 = vadd.f32 0.0, %v2260
    %v2262 = vpop.f32.mrb[0].mxu0
    %v2263 = vpop.f32.mrb[0].mxu0
    %v2264 = vadd.f32 0.0, %v2263
    %v2265 = vpop.f32.mrb[0].mxu0
    %2266 = vmatprep.mubr.bf16.mxu0 0
    %2267 = vmatmul.mubr.bf16.gmra.mrb[0].mxu0 %v949
    %v2268 = vpop.f32.mrb[0].mxu0
    %v2269 = vadd.f32 0.0, %v2268
    %v2270 = vpop.f32.mrb[0].mxu0
    %v2271 = vpop.f32.mrb[0].mxu0
    %v2272 = vadd.f32 0.0, %v2271
    %v2273 = vpop.f32.mrb[0].mxu0
    %2274 = vmatprep.mubr.bf16.mxu0 0
    %2275 = vmatmul.mubr.bf16.gmra.mrb[0].mxu0 %v952
    %v2276 = vpop.f32.mrb[0].mxu0
    %v2277 = vadd.f32 0.0, %v2276
    %v2278 = vpop.f32.mrb[0].mxu0
    %v2279 = vpop.f32.mrb[0].mxu0
    %v2280 = vadd.f32 0.0, %v2279
    %v2281 = vpop.f32.mrb[0].mxu0
    %2282 = vmatprep.mubr.bf16.mxu0 0
    %2283 = vmatmul.mubr.bf16.gmra.mrb[0].mxu0 %v955
    %v2284 = vpop.f32.mrb[0].mxu0
    %v2285 = vadd.f32 0.0, %v2284
    %v2286 = vpop.f32.mrb[0].mxu0
    %v2287 = vpop.f32.mrb[0].mxu0
    %v2288 = vadd.f32 0.0, %v2287
    %v2289 = vpop.f32.mrb[0].mxu0
    %2290 = vmatprep.mubr.bf16.mxu0 0
    %2291 = vmatmul.mubr.bf16.gmra.mrb[0].mxu0 %v958
    %v2292 = vpop.f32.mrb[0].mxu0
    %v2293 = vadd.f32 0.0, %v2292
    %v2294 = vpop.f32.mrb[0].mxu0
    %v2295 = vpop.f32.mrb[0].mxu0
    %v2296 = vadd.f32 0.0, %v2295
    %v2297 = vpop.f32.mrb[0].mxu0
    %2298 = vdwg.mxu0
    %v2299 = vadd.f32 %v2138, %v2237
    %v2300 = vadd.f32 %v2141, %v2240
    %v2301 = vadd.f32 %v2146, %v2245
    %v2302 = vadd.f32 %v2149, %v2248
    %v2303 = vadd.f32 %v2154, %v2253
    %v2304 = vadd.f32 %v2157, %v2256
    %v2305 = vadd.f32 %v2162, %v2261
    %v2306 = vadd.f32 %v2165, %v2264
    %v2307 = vadd.f32 %v2170, %v2269
    %v2308 = vadd.f32 %v2173, %v2272
    %v2309 = vadd.f32 %v2178, %v2277
    %v2310 = vadd.f32 %v2181, %v2280
    %v2311 = vadd.f32 %v2186, %v2285
    %v2312 = vadd.f32 %v2189, %v2288
    %v2313 = vadd.f32 %v2194, %v2293
    %v2314 = vadd.f32 %v2197, %v2296
    %v2315 = vxor.u32 %v2299, 2147483648
    %v2316 = vxor.u32 %v2300, 2147483648
    %v2317 = vxor.u32 %v2301, 2147483648
    %v2318 = vxor.u32 %v2302, 2147483648
    %v2319 = vmul.f32 %v2315, 1.442695
    %v2320 = vpow.pop %v2319
    %v2321 = vmul.f32 %v2316, 1.442695
    %v2322 = vpow.pop %v2321
    %v2323 = vmul.f32 %v2317, 1.442695
    %v2324 = vpow.pop %v2323
    %v2325 = vmul.f32 %v2318, 1.442695
    %v2326 = vpow.pop %v2325
    %v2327 = vadd.f32 %v2320, 1.0
    %v2328 = vadd.f32 %v2322, 1.0
    %v2329 = vadd.f32 %v2324, 1.0
    %v2330 = vadd.f32 %v2326, 1.0
    %v2331 = vrcp.pop %v2327
    %v2332 = vmul.f32 1.0, %v2331
    %v2333 = vrcp.pop %v2328
    %v2334 = vmul.f32 1.0, %v2333
    %v2335 = vrcp.pop %v2329
    %v2336 = vmul.f32 1.0, %v2335
    %v2337 = vrcp.pop %v2330
    %v2338 = vmul.f32 1.0, %v2337
    %v2339 = vxor.u32 %v2303, 2147483648
    %v2340 = vxor.u32 %v2304, 2147483648
    %v2341 = vxor.u32 %v2305, 2147483648
    %v2342 = vxor.u32 %v2306, 2147483648
    %v2343 = vmul.f32 %v2339, 1.442695
    %v2344 = vpow.pop %v2343
    %v2345 = vmul.f32 %v2340, 1.442695
    %v2346 = vpow.pop %v2345
    %v2347 = vmul.f32 %v2341, 1.442695
    %v2348 = vpow.pop %v2347
    %v2349 = vmul.f32 %v2342, 1.442695
    %v2350 = vpow.pop %v2349
    %v2351 = vadd.f32 %v2344, 1.0
    %v2352 = vadd.f32 %v2346, 1.0
    %v2353 = vadd.f32 %v2348, 1.0
    %v2354 = vadd.f32 %v2350, 1.0
    %v2355 = vrcp.pop %v2351
    %v2356 = vmul.f32 1.0, %v2355
    %v2357 = vrcp.pop %v2352
    %v2358 = vmul.f32 1.0, %v2357
    %v2359 = vrcp.pop %v2353
    %v2360 = vmul.f32 1.0, %v2359
    %v2361 = vrcp.pop %v2354
    %v2362 = vmul.f32 1.0, %v2361
    %v2363 = vtanh.pop %v2307
    %v2364 = vtanh.pop %v2308
    %v2365 = vtanh.pop %v2309
    %v2366 = vtanh.pop %v2310
    %v2367 = vxor.u32 %v2311, 2147483648
    %v2368 = vxor.u32 %v2312, 2147483648
    %v2369 = vxor.u32 %v2313, 2147483648
    %v2370 = vxor.u32 %v2314, 2147483648
    %v2371 = vmul.f32 %v2367, 1.442695
    %v2372 = vpow.pop %v2371
    %v2373 = vmul.f32 %v2368, 1.442695
    %v2374 = vpow.pop %v2373
    %v2375 = vmul.f32 %v2369, 1.442695
    %v2376 = vpow.pop %v2375
    %v2377 = vmul.f32 %v2370, 1.442695
    %v2378 = vpow.pop %v2377
    %v2379 = vadd.f32 %v2372, 1.0
    %v2380 = vadd.f32 %v2374, 1.0
    %v2381 = vadd.f32 %v2376, 1.0
    %v2382 = vadd.f32 %v2378, 1.0
    %v2383 = vrcp.pop %v2379
    %v2384 = vmul.f32 1.0, %v2383
    %v2385 = vrcp.pop %v2380
    %v2386 = vmul.f32 1.0, %v2385
    %v2387 = vrcp.pop %v2381
    %v2388 = vmul.f32 1.0, %v2387
    %v2389 = vrcp.pop %v2382
    %v2390 = vmul.f32 1.0, %v2389
    %v2391 = vmul.f32 %v2356, %v1778
    %v2392 = vmul.f32 %v2358, %v1779
    %v2393 = vmul.f32 %v2360, %v1780
    %v2394 = vmul.f32 %v2362, %v1781
    %v2395 = vmul.f32 %v2332, %v2363
    %v2396 = vmul.f32 %v2334, %v2364
    %v2397 = vmul.f32 %v2336, %v2365
    %v2398 = vmul.f32 %v2338, %v2366
    %v2399 = vadd.f32 %v2391, %v2395
    %v2400 = vadd.f32 %v2392, %v2396
    %v2401 = vadd.f32 %v2393, %v2397
    %v2402 = vadd.f32 %v2394, %v2398
    %v2403 = vtanh.pop %v2399
    %v2404 = vtanh.pop %v2400
    %v2405 = vtanh.pop %v2401
    %v2406 = vtanh.pop %v2402
    %v2407 = vmul.f32 %v2384, %v2403
    %v2408 = vmul.f32 %v2386, %v2404
    %v2409 = vmul.f32 %v2388, %v2405
    %v2410 = vmul.f32 %v2390, %v2406
    %s2411 = scalar_lea.vmem %s0, 6
    %v2412 = vld [vmem:[%s2411] sm:$0x3]
    %v2414 = vsel %vm214, %v2412, 0
    %2416 = vmatprep.subr.bf16.mxu0 0
    %2417 = vmatpush1.bf16.msra.mxu0 %v2414
    %2418 = vmatprep.subr.bf16.mxu0 0
    %2419 = vmatpush1.bf16.msra.mxu0 0
    %2420 = vmatprep.subr.bf16.mxu0 0
    %2421 = vmatpush1.bf16.msra.mxu0 0
    %2422 = vmatprep.subr.bf16.mxu0 0
    %2423 = vmatpush1.bf16.msra.mxu0 0
    %2424 = vmatprep.subr.bf16.mxu0 0
    %2425 = vmatpush1.bf16.msra.mxu0 0
    %2426 = vmatprep.subr.bf16.mxu0 0
    %2427 = vmatpush1.bf16.msra.mxu0 0
    %2428 = vmatprep.subr.bf16.mxu0 0
    %2429 = vmatpush1.bf16.msra.mxu0 0
    %2430 = vmatprep.subr.bf16.mxu0 0
    %2431 = vmatpush1.bf16.msra.mxu0 0
    %2432 = vmatprep.subr.bf16.mxu0 0
    %2433 = vmatpush1.bf16.msra.mxu0 0
    %2434 = vmatprep.subr.bf16.mxu0 0
    %2435 = vmatpush1.bf16.msra.mxu0 0
    %2436 = vmatprep.subr.bf16.mxu0 0
    %2437 = vmatpush1.bf16.msra.mxu0 0
    %2438 = vmatprep.subr.bf16.mxu0 0
    %2439 = vmatpush1.bf16.msra.mxu0 0
    %2440 = vmatprep.subr.bf16.mxu0 0
    %2441 = vmatpush1.bf16.msra.mxu0 0
    %2442 = vmatprep.subr.bf16.mxu0 0
    %2443 = vmatpush1.bf16.msra.mxu0 0
    %2444 = vmatprep.subr.bf16.mxu0 0
    %2445 = vmatpush1.bf16.msra.mxu0 0
    %2446 = vmatprep.subr.bf16.mxu0 0
    %2447 = vmatpush1.bf16.msra.mxu0 0
    %2448 = vmatprep.mubr.bf16.mxu0 0
    %2449 = vmatmul.mubr.bf16.gmra.mrb[0].mxu0 %v191
    %v2450 = vpop.f32.mrb[0].mxu0
    %v2451 = vadd.f32 %v72, %v2450
    %v2452 = vpop.f32.mrb[0].mxu0
    %v2453 = vpop.f32.mrb[0].mxu0
    %v2454 = vadd.f32 %v77, %v2453
    %v2455 = vpop.f32.mrb[0].mxu0
    %2456 = vmatprep.mubr.bf16.mxu0 0
    %2457 = vmatmul.mubr.bf16.gmra.mrb[0].mxu0 %v194
    %v2458 = vpop.f32.mrb[0].mxu0
    %v2459 = vadd.f32 %v82, %v2458
    %v2460 = vpop.f32.mrb[0].mxu0
    %v2461 = vpop.f32.mrb[0].mxu0
    %v2462 = vadd.f32 %v87, %v2461
    %v2463 = vpop.f32.mrb[0].mxu0
    %2464 = vmatprep.mubr.bf16.mxu0 0
    %2465 = vmatmul.mubr.bf16.gmra.mrb[0].mxu0 %v197
    %v2466 = vpop.f32.mrb[0].mxu0
    %v2467 = vadd.f32 %v92, %v2466
    %v2468 = vpop.f32.mrb[0].mxu0
    %v2469 = vpop.f32.mrb[0].mxu0
    %v2470 = vadd.f32 %v97, %v2469
    %v2471 = vpop.f32.mrb[0].mxu0
    %2472 = vmatprep.mubr.bf16.mxu0 0
    %2473 = vmatmul.mubr.bf16.gmra.mrb[0].mxu0 %v200
    %v2474 = vpop.f32.mrb[0].mxu0
    %v2475 = vadd.f32 %v102, %v2474
    %v2476 = vpop.f32.mrb[0].mxu0
    %v2477 = vpop.f32.mrb[0].mxu0
    %v2478 = vadd.f32 %v107, %v2477
    %v2479 = vpop.f32.mrb[0].mxu0
    %2480 = vmatprep.mubr.bf16.mxu0 0
    %2481 = vmatmul.mubr.bf16.gmra.mrb[0].mxu0 %v203
    %v2482 = vpop.f32.mrb[0].mxu0
    %v2483 = vadd.f32 %v112, %v2482
    %v2484 = vpop.f32.mrb[0].mxu0
    %v2485 = vpop.f32.mrb[0].mxu0
    %v2486 = vadd.f32 %v117, %v2485
    %v2487 = vpop.f32.mrb[0].mxu0
    %2488 = vmatprep.mubr.bf16.mxu0 0
    %2489 = vmatmul.mubr.bf16.gmra.mrb[0].mxu0 %v206
    %v2490 = vpop.f32.mrb[0].mxu0
    %v2491 = vadd.f32 %v122, %v2490
    %v2492 = vpop.f32.mrb[0].mxu0
    %v2493 = vpop.f32.mrb[0].mxu0
    %v2494 = vadd.f32 %v127, %v2493
    %v2495 = vpop.f32.mrb[0].mxu0
    %2496 = vmatprep.mubr.bf16.mxu0 0
    %2497 = vmatmul.mubr.bf16.gmra.mrb[0].mxu0 %v209
    %v2498 = vpop.f32.mrb[0].mxu0
    %v2499 = vadd.f32 %v132, %v2498
    %v2500 = vpop.f32.mrb[0].mxu0
    %v2501 = vpop.f32.mrb[0].mxu0
    %v2502 = vadd.f32 %v137, %v2501
    %v2503 = vpop.f32.mrb[0].mxu0
    %2504 = vmatprep.mubr.bf16.mxu0 0
    %2505 = vmatmul.mubr.bf16.gmra.mrb[0].mxu0 %v212
    %v2506 = vpop.f32.mrb[0].mxu0
    %v2507 = vadd.f32 %v142, %v2506
    %v2508 = vpop.f32.mrb[0].mxu0
    %v2509 = vpop.f32.mrb[0].mxu0
    %v2510 = vadd.f32 %v147, %v2509
    %v2511 = vpop.f32.mrb[0].mxu0
    %2512 = vdwg.mxu0
    %2513 = vmatprep.subr.bf16.mxu0 0
    %2514 = vmatpush1.bf16.msra.mxu0 %v2101
    %2515 = vmatprep.subr.bf16.mxu0 0
    %2516 = vmatpush1.bf16.msra.mxu0 %v2102
    %2517 = vmatprep.subr.bf16.mxu0 0
    %2518 = vmatpush1.bf16.msra.mxu0 0
    %2519 = vmatprep.subr.bf16.mxu0 0
    %2520 = vmatpush1.bf16.msra.mxu0 0
    %2521 = vmatprep.subr.bf16.mxu0 0
    %2522 = vmatpush1.bf16.msra.mxu0 0
    %2523 = vmatprep.subr.bf16.mxu0 0
    %2524 = vmatpush1.bf16.msra.mxu0 0
    %2525 = vmatprep.subr.bf16.mxu0 0
    %2526 = vmatpush1.bf16.msra.mxu0 0
    %2527 = vmatprep.subr.bf16.mxu0 0
    %2528 = vmatpush1.bf16.msra.mxu0 0
    %2529 = vmatprep.subr.bf16.mxu0 0
    %2530 = vmatpush1.bf16.msra.mxu0 0
    %2531 = vmatprep.subr.bf16.mxu0 0
    %2532 = vmatpush1.bf16.msra.mxu0 0
    %2533 = vmatprep.subr.bf16.mxu0 0
    %2534 = vmatpush1.bf16.msra.mxu0 0
    %2535 = vmatprep.subr.bf16.mxu0 0
    %2536 = vmatpush1.bf16.msra.mxu0 0
    %2537 = vmatprep.subr.bf16.mxu0 0
    %2538 = vmatpush1.bf16.msra.mxu0 0
    %2539 = vmatprep.subr.bf16.mxu0 0
    %2540 = vmatpush1.bf16.msra.mxu0 0
    %2541 = vmatprep.subr.bf16.mxu0 0
    %2542 = vmatpush1.bf16.msra.mxu0 0
    %2543 = vmatprep.subr.bf16.mxu0 0
    %2544 = vmatpush1.bf16.msra.mxu0 0
    %2545 = vmatprep.mubr.bf16.mxu0 0
    %2546 = vmatmul.mubr.bf16.gmra.mrb[0].mxu0 %v373
    %v2547 = vpop.f32.mrb[0].mxu0
    %v2548 = vadd.f32 0.0, %v2547
    %v2549 = vpop.f32.mrb[0].mxu0
    %v2550 = vpop.f32.mrb[0].mxu0
    %v2551 = vadd.f32 0.0, %v2550
    %v2552 = vpop.f32.mrb[0].mxu0
    %2553 = vmatprep.mubr.bf16.mxu0 0
    %2554 = vmatmul.mubr.bf16.gmra.mrb[0].mxu0 %v376
    %v2555 = vpop.f32.mrb[0].mxu0
    %v2556 = vadd.f32 0.0, %v2555
    %v2557 = vpop.f32.mrb[0].mxu0
    %v2558 = vpop.f32.mrb[0].mxu0
    %v2559 = vadd.f32 0.0, %v2558
    %v2560 = vpop.f32.mrb[0].mxu0
    %2561 = vmatprep.mubr.bf16.mxu0 0
    %2562 = vmatmul.mubr.bf16.gmra.mrb[0].mxu0 %v379
    %v2563 = vpop.f32.mrb[0].mxu0
    %v2564 = vadd.f32 0.0, %v2563
    %v2565 = vpop.f32.mrb[0].mxu0
    %v2566 = vpop.f32.mrb[0].mxu0
    %v2567 = vadd.f32 0.0, %v2566
    %v2568 = vpop.f32.mrb[0].mxu0
    %2569 = vmatprep.mubr.bf16.mxu0 0
    %2570 = vmatmul.mubr.bf16.gmra.mrb[0].mxu0 %v382
    %v2571 = vpop.f32.mrb[0].mxu0
    %v2572 = vadd.f32 0.0, %v2571
    %v2573 = vpop.f32.mrb[0].mxu0
    %v2574 = vpop.f32.mrb[0].mxu0
    %v2575 = vadd.f32 0.0, %v2574
    %v2576 = vpop.f32.mrb[0].mxu0
    %2577 = vmatprep.mubr.bf16.mxu0 0
    %2578 = vmatmul.mubr.bf16.gmra.mrb[0].mxu0 %v385
    %v2579 = vpop.f32.mrb[0].mxu0
    %v2580 = vadd.f32 0.0, %v2579
    %v2581 = vpop.f32.mrb[0].mxu0
    %v2582 = vpop.f32.mrb[0].mxu0
    %v2583 = vadd.f32 0.0, %v2582
    %v2584 = vpop.f32.mrb[0].mxu0
    %2585 = vmatprep.mubr.bf16.mxu0 0
    %2586 = vmatmul.mubr.bf16.gmra.mrb[0].mxu0 %v388
    %v2587 = vpop.f32.mrb[0].mxu0
    %v2588 = vadd.f32 0.0, %v2587
    %v2589 = vpop.f32.mrb[0].mxu0
    %v2590 = vpop.f32.mrb[0].mxu0
    %v2591 = vadd.f32 0.0, %v2590
    %v2592 = vpop.f32.mrb[0].mxu0
    %2593 = vmatprep.mubr.bf16.mxu0 0
    %2594 = vmatmul.mubr.bf16.gmra.mrb[0].mxu0 %v391
    %v2595 = vpop.f32.mrb[0].mxu0
    %v2596 = vadd.f32 0.0, %v2595
    %v2597 = vpop.f32.mrb[0].mxu0
    %v2598 = vpop.f32.mrb[0].mxu0
    %v2599 = vadd.f32 0.0, %v2598
    %v2600 = vpop.f32.mrb[0].mxu0
    %2601 = vmatprep.mubr.bf16.mxu0 0
    %2602 = vmatmul.mubr.bf16.gmra.mrb[0].mxu0 %v394
    %v2603 = vpop.f32.mrb[0].mxu0
    %v2604 = vadd.f32 0.0, %v2603
    %v2605 = vpop.f32.mrb[0].mxu0
    %v2606 = vpop.f32.mrb[0].mxu0
    %v2607 = vadd.f32 0.0, %v2606
    %v2608 = vpop.f32.mrb[0].mxu0
    %2609 = vdwg.mxu0
    %v2610 = vadd.f32 %v2451, %v2548
    %v2611 = vadd.f32 %v2454, %v2551
    %v2612 = vadd.f32 %v2459, %v2556
    %v2613 = vadd.f32 %v2462, %v2559
    %v2614 = vadd.f32 %v2467, %v2564
    %v2615 = vadd.f32 %v2470, %v2567
    %v2616 = vadd.f32 %v2475, %v2572
    %v2617 = vadd.f32 %v2478, %v2575
    %v2618 = vadd.f32 %v2483, %v2580
    %v2619 = vadd.f32 %v2486, %v2583
    %v2620 = vadd.f32 %v2491, %v2588
    %v2621 = vadd.f32 %v2494, %v2591
    %v2622 = vadd.f32 %v2499, %v2596
    %v2623 = vadd.f32 %v2502, %v2599
    %v2624 = vadd.f32 %v2507, %v2604
    %v2625 = vadd.f32 %v2510, %v2607
    %v2626 = vxor.u32 %v2610, 2147483648
    %v2627 = vxor.u32 %v2611, 2147483648
    %v2628 = vxor.u32 %v2612, 2147483648
    %v2629 = vxor.u32 %v2613, 2147483648
    %v2630 = vmul.f32 %v2626, 1.442695
    %v2631 = vpow.pop %v2630
    %v2632 = vmul.f32 %v2627, 1.442695
    %v2633 = vpow.pop %v2632
    %v2634 = vmul.f32 %v2628, 1.442695
    %v2635 = vpow.pop %v2634
    %v2636 = vmul.f32 %v2629, 1.442695
    %v2637 = vpow.pop %v2636
    %v2638 = vadd.f32 %v2631, 1.0
    %v2639 = vadd.f32 %v2633, 1.0
    %v2640 = vadd.f32 %v2635, 1.0
    %v2641 = vadd.f32 %v2637, 1.0
    %v2642 = vrcp.pop %v2638
    %v2643 = vmul.f32 1.0, %v2642
    %v2644 = vrcp.pop %v2639
    %v2645 = vmul.f32 1.0, %v2644
    %v2646 = vrcp.pop %v2640
    %v2647 = vmul.f32 1.0, %v2646
    %v2648 = vrcp.pop %v2641
    %v2649 = vmul.f32 1.0, %v2648
    %v2650 = vxor.u32 %v2614, 2147483648
    %v2651 = vxor.u32 %v2615, 2147483648
    %v2652 = vxor.u32 %v2616, 2147483648
    %v2653 = vxor.u32 %v2617, 2147483648
    %v2654 = vmul.f32 %v2650, 1.442695
    %v2655 = vpow.pop %v2654
    %v2656 = vmul.f32 %v2651, 1.442695
    %v2657 = vpow.pop %v2656
    %v2658 = vmul.f32 %v2652, 1.442695
    %v2659 = vpow.pop %v2658
    %v2660 = vmul.f32 %v2653, 1.442695
    %v2661 = vpow.pop %v2660
    %v2662 = vadd.f32 %v2655, 1.0
    %v2663 = vadd.f32 %v2657, 1.0
    %v2664 = vadd.f32 %v2659, 1.0
    %v2665 = vadd.f32 %v2661, 1.0
    %v2666 = vrcp.pop %v2662
    %v2667 = vmul.f32 1.0, %v2666
    %v2668 = vrcp.pop %v2663
    %v2669 = vmul.f32 1.0, %v2668
    %v2670 = vrcp.pop %v2664
    %v2671 = vmul.f32 1.0, %v2670
    %v2672 = vrcp.pop %v2665
    %v2673 = vmul.f32 1.0, %v2672
    %v2674 = vtanh.pop %v2618
    %v2675 = vtanh.pop %v2619
    %v2676 = vtanh.pop %v2620
    %v2677 = vtanh.pop %v2621
    %v2678 = vxor.u32 %v2622, 2147483648
    %v2679 = vxor.u32 %v2623, 2147483648
    %v2680 = vxor.u32 %v2624, 2147483648
    %v2681 = vxor.u32 %v2625, 2147483648
    %v2682 = vmul.f32 %v2678, 1.442695
    %v2683 = vpow.pop %v2682
    %v2684 = vmul.f32 %v2679, 1.442695
    %v2685 = vpow.pop %v2684
    %v2686 = vmul.f32 %v2680, 1.442695
    %v2687 = vpow.pop %v2686
    %v2688 = vmul.f32 %v2681, 1.442695
    %v2689 = vpow.pop %v2688
    %v2690 = vadd.f32 %v2683, 1.0
    %v2691 = vadd.f32 %v2685, 1.0
    %v2692 = vadd.f32 %v2687, 1.0
    %v2693 = vadd.f32 %v2689, 1.0
    %v2694 = vrcp.pop %v2690
    %v2695 = vmul.f32 1.0, %v2694
    %v2696 = vrcp.pop %v2691
    %v2697 = vmul.f32 1.0, %v2696
    %v2698 = vrcp.pop %v2692
    %v2699 = vmul.f32 1.0, %v2698
    %v2700 = vrcp.pop %v2693
    %v2701 = vmul.f32 1.0, %v2700
    %v2702 = vmul.f32 %v2667, %v2089
    %v2703 = vmul.f32 %v2669, %v2090
    %v2704 = vmul.f32 %v2671, %v2091
    %v2705 = vmul.f32 %v2673, %v2092
    %v2706 = vmul.f32 %v2643, %v2674
    %v2707 = vmul.f32 %v2645, %v2675
    %v2708 = vmul.f32 %v2647, %v2676
    %v2709 = vmul.f32 %v2649, %v2677
    %v2710 = vadd.f32 %v2702, %v2706
    %v2711 = vadd.f32 %v2703, %v2707
    %v2712 = vadd.f32 %v2704, %v2708
    %v2713 = vadd.f32 %v2705, %v2709
    %v2714 = vtanh.pop %v2710
    %v2715 = vtanh.pop %v2711
    %v2716 = vtanh.pop %v2712
    %v2717 = vtanh.pop %v2713
    %v2718 = vmul.f32 %v2695, %v2714
    %v2719 = vmul.f32 %v2697, %v2715
    %v2720 = vmul.f32 %v2699, %v2716
    %v2721 = vmul.f32 %v2701, %v2717
    %v2722 = vpack.c.bf16 %v2719, %v2718
    %v2723 = vpack.c.bf16 %v2721, %v2720
    %2724 = vmatprep.subr.bf16.mxu0 0
    %2725 = vmatpush1.bf16.msra.mxu0 %v2722
    %2726 = vmatprep.subr.bf16.mxu0 0
    %2727 = vmatpush1.bf16.msra.mxu0 %v2723
    %2728 = vmatprep.subr.bf16.mxu0 0
    %2729 = vmatpush1.bf16.msra.mxu0 0
    %2730 = vmatprep.subr.bf16.mxu0 0
    %2731 = vmatpush1.bf16.msra.mxu0 0
    %2732 = vmatprep.subr.bf16.mxu0 0
    %2733 = vmatpush1.bf16.msra.mxu0 0
    %2734 = vmatprep.subr.bf16.mxu0 0
    %2735 = vmatpush1.bf16.msra.mxu0 0
    %2736 = vmatprep.subr.bf16.mxu0 0
    %2737 = vmatpush1.bf16.msra.mxu0 0
    %2738 = vmatprep.subr.bf16.mxu0 0
    %2739 = vmatpush1.bf16.msra.mxu0 0
    %2740 = vmatprep.subr.bf16.mxu0 0
    %2741 = vmatpush1.bf16.msra.mxu0 0
    %2742 = vmatprep.subr.bf16.mxu0 0
    %2743 = vmatpush1.bf16.msra.mxu0 0
    %2744 = vmatprep.subr.bf16.mxu0 0
    %2745 = vmatpush1.bf16.msra.mxu0 0
    %2746 = vmatprep.subr.bf16.mxu0 0
    %2747 = vmatpush1.bf16.msra.mxu0 0
    %2748 = vmatprep.subr.bf16.mxu0 0
    %2749 = vmatpush1.bf16.msra.mxu0 0
    %2750 = vmatprep.subr.bf16.mxu0 0
    %2751 = vmatpush1.bf16.msra.mxu0 0
    %2752 = vmatprep.subr.bf16.mxu0 0
    %2753 = vmatpush1.bf16.msra.mxu0 0
    %2754 = vmatprep.subr.bf16.mxu0 0
    %2755 = vmatpush1.bf16.msra.mxu0 0
    %2756 = vmatprep.mubr.bf16.mxu0 0
    %2757 = vmatmul.mubr.bf16.gmra.mrb[0].mxu0 %v760
    %v2758 = vpop.f32.mrb[0].mxu0
    %v2759 = vadd.f32 %v642, %v2758
    %v2760 = vpop.f32.mrb[0].mxu0
    %v2761 = vpop.f32.mrb[0].mxu0
    %v2762 = vadd.f32 %v647, %v2761
    %v2763 = vpop.f32.mrb[0].mxu0
    %2764 = vmatprep.mubr.bf16.mxu0 0
    %2765 = vmatmul.mubr.bf16.gmra.mrb[0].mxu0 %v763
    %v2766 = vpop.f32.mrb[0].mxu0
    %v2767 = vadd.f32 %v652, %v2766
    %v2768 = vpop.f32.mrb[0].mxu0
    %v2769 = vpop.f32.mrb[0].mxu0
    %v2770 = vadd.f32 %v657, %v2769
    %v2771 = vpop.f32.mrb[0].mxu0
    %2772 = vmatprep.mubr.bf16.mxu0 0
    %2773 = vmatmul.mubr.bf16.gmra.mrb[0].mxu0 %v766
    %v2774 = vpop.f32.mrb[0].mxu0
    %v2775 = vadd.f32 %v662, %v2774
    %v2776 = vpop.f32.mrb[0].mxu0
    %v2777 = vpop.f32.mrb[0].mxu0
    %v2778 = vadd.f32 %v667, %v2777
    %v2779 = vpop.f32.mrb[0].mxu0
    %2780 = vmatprep.mubr.bf16.mxu0 0
    %2781 = vmatmul.mubr.bf16.gmra.mrb[0].mxu0 %v769
    %v2782 = vpop.f32.mrb[0].mxu0
    %v2783 = vadd.f32 %v672, %v2782
    %v2784 = vpop.f32.mrb[0].mxu0
    %v2785 = vpop.f32.mrb[0].mxu0
    %v2786 = vadd.f32 %v677, %v2785
    %v2787 = vpop.f32.mrb[0].mxu0
    %2788 = vmatprep.mubr.bf16.mxu0 0
    %2789 = vmatmul.mubr.bf16.gmra.mrb[0].mxu0 %v772
    %v2790 = vpop.f32.mrb[0].mxu0
    %v2791 = vadd.f32 %v682, %v2790
    %v2792 = vpop.f32.mrb[0].mxu0
    %v2793 = vpop.f32.mrb[0].mxu0
    %v2794 = vadd.f32 %v687, %v2793
    %v2795 = vpop.f32.mrb[0].mxu0
    %2796 = vmatprep.mubr.bf16.mxu0 0
    %2797 = vmatmul.mubr.bf16.gmra.mrb[0].mxu0 %v775
    %v2798 = vpop.f32.mrb[0].mxu0
    %v2799 = vadd.f32 %v692, %v2798
    %v2800 = vpop.f32.mrb[0].mxu0
    %v2801 = vpop.f32.mrb[0].mxu0
    %v2802 = vadd.f32 %v697, %v2801
    %v2803 = vpop.f32.mrb[0].mxu0
    %2804 = vmatprep.mubr.bf16.mxu0 0
    %2805 = vmatmul.mubr.bf16.gmra.mrb[0].mxu0 %v778
    %v2806 = vpop.f32.mrb[0].mxu0
    %v2807 = vadd.f32 %v702, %v2806
    %v2808 = vpop.f32.mrb[0].mxu0
    %v2809 = vpop.f32.mrb[0].mxu0
    %v2810 = vadd.f32 %v707, %v2809
    %v2811 = vpop.f32.mrb[0].mxu0
    %2812 = vmatprep.mubr.bf16.mxu0 0
    %2813 = vmatmul.mubr.bf16.gmra.mrb[0].mxu0 %v781
    %v2814 = vpop.f32.mrb[0].mxu0
    %v2815 = vadd.f32 %v712, %v2814
    %v2816 = vpop.f32.mrb[0].mxu0
    %v2817 = vpop.f32.mrb[0].mxu0
    %v2818 = vadd.f32 %v717, %v2817
    %v2819 = vpop.f32.mrb[0].mxu0
    %2820 = vdwg.mxu0
    %v2821 = vpack.c.bf16 %v2408, %v2407
    %v2822 = vpack.c.bf16 %v2410, %v2409
    %2823 = vmatprep.subr.bf16.mxu0 0
    %2824 = vmatpush1.bf16.msra.mxu0 %v2821
    %2825 = vmatprep.subr.bf16.mxu0 0
    %2826 = vmatpush1.bf16.msra.mxu0 %v2822
    %2827 = vmatprep.subr.bf16.mxu0 0
    %2828 = vmatpush1.bf16.msra.mxu0 0
    %2829 = vmatprep.subr.bf16.mxu0 0
    %2830 = vmatpush1.bf16.msra.mxu0 0
    %2831 = vmatprep.subr.bf16.mxu0 0
    %2832 = vmatpush1.bf16.msra.mxu0 0
    %2833 = vmatprep.subr.bf16.mxu0 0
    %2834 = vmatpush1.bf16.msra.mxu0 0
    %2835 = vmatprep.subr.bf16.mxu0 0
    %2836 = vmatpush1.bf16.msra.mxu0 0
    %2837 = vmatprep.subr.bf16.mxu0 0
    %2838 = vmatpush1.bf16.msra.mxu0 0
    %2839 = vmatprep.subr.bf16.mxu0 0
    %2840 = vmatpush1.bf16.msra.mxu0 0
    %2841 = vmatprep.subr.bf16.mxu0 0
    %2842 = vmatpush1.bf16.msra.mxu0 0
    %2843 = vmatprep.subr.bf16.mxu0 0
    %2844 = vmatpush1.bf16.msra.mxu0 0
    %2845 = vmatprep.subr.bf16.mxu0 0
    %2846 = vmatpush1.bf16.msra.mxu0 0
    %2847 = vmatprep.subr.bf16.mxu0 0
    %2848 = vmatpush1.bf16.msra.mxu0 0
    %2849 = vmatprep.subr.bf16.mxu0 0
    %2850 = vmatpush1.bf16.msra.mxu0 0
    %2851 = vmatprep.subr.bf16.mxu0 0
    %2852 = vmatpush1.bf16.msra.mxu0 0
    %2853 = vmatprep.subr.bf16.mxu0 0
    %2854 = vmatpush1.bf16.msra.mxu0 0
    %2855 = vmatprep.mubr.bf16.mxu0 0
    %2856 = vmatmul.mubr.bf16.gmra.mrb[0].mxu0 %v937
    %v2857 = vpop.f32.mrb[0].mxu0
    %v2858 = vadd.f32 0.0, %v2857
    %v2859 = vpop.f32.mrb[0].mxu0
    %v2860 = vpop.f32.mrb[0].mxu0
    %v2861 = vadd.f32 0.0, %v2860
    %v2862 = vpop.f32.mrb[0].mxu0
    %2863 = vmatprep.mubr.bf16.mxu0 0
    %2864 = vmatmul.mubr.bf16.gmra.mrb[0].mxu0 %v940
    %v2865 = vpop.f32.mrb[0].mxu0
    %v2866 = vadd.f32 0.0, %v2865
    %v2867 = vpop.f32.mrb[0].mxu0
    %v2868 = vpop.f32.mrb[0].mxu0
    %v2869 = vadd.f32 0.0, %v2868
    %v2870 = vpop.f32.mrb[0].mxu0
    %2871 = vmatprep.mubr.bf16.mxu0 0
    %2872 = vmatmul.mubr.bf16.gmra.mrb[0].mxu0 %v943
    %v2873 = vpop.f32.mrb[0].mxu0
    %v2874 = vadd.f32 0.0, %v2873
    %v2875 = vpop.f32.mrb[0].mxu0
    %v2876 = vpop.f32.mrb[0].mxu0
    %v2877 = vadd.f32 0.0, %v2876
    %v2878 = vpop.f32.mrb[0].mxu0
    %2879 = vmatprep.mubr.bf16.mxu0 0
    %2880 = vmatmul.mubr.bf16.gmra.mrb[0].mxu0 %v946
    %v2881 = vpop.f32.mrb[0].mxu0
    %v2882 = vadd.f32 0.0, %v2881
    %v2883 = vpop.f32.mrb[0].mxu0
    %v2884 = vpop.f32.mrb[0].mxu0
    %v2885 = vadd.f32 0.0, %v2884
    %v2886 = vpop.f32.mrb[0].mxu0
    %2887 = vmatprep.mubr.bf16.mxu0 0
    %2888 = vmatmul.mubr.bf16.gmra.mrb[0].mxu0 %v949
    %v2889 = vpop.f32.mrb[0].mxu0
    %v2890 = vadd.f32 0.0, %v2889
    %v2891 = vpop.f32.mrb[0].mxu0
    %v2892 = vpop.f32.mrb[0].mxu0
    %v2893 = vadd.f32 0.0, %v2892
    %v2894 = vpop.f32.mrb[0].mxu0
    %2895 = vmatprep.mubr.bf16.mxu0 0
    %2896 = vmatmul.mubr.bf16.gmra.mrb[0].mxu0 %v952
    %v2897 = vpop.f32.mrb[0].mxu0
    %v2898 = vadd.f32 0.0, %v2897
    %v2899 = vpop.f32.mrb[0].mxu0
    %v2900 = vpop.f32.mrb[0].mxu0
    %v2901 = vadd.f32 0.0, %v2900
    %v2902 = vpop.f32.mrb[0].mxu0
    %2903 = vmatprep.mubr.bf16.mxu0 0
    %2904 = vmatmul.mubr.bf16.gmra.mrb[0].mxu0 %v955
    %v2905 = vpop.f32.mrb[0].mxu0
    %v2906 = vadd.f32 0.0, %v2905
    %v2907 = vpop.f32.mrb[0].mxu0
    %v2908 = vpop.f32.mrb[0].mxu0
    %v2909 = vadd.f32 0.0, %v2908
    %v2910 = vpop.f32.mrb[0].mxu0
    %2911 = vmatprep.mubr.bf16.mxu0 0
    %2912 = vmatmul.mubr.bf16.gmra.mrb[0].mxu0 %v958
    %v2913 = vpop.f32.mrb[0].mxu0
    %v2914 = vadd.f32 0.0, %v2913
    %v2915 = vpop.f32.mrb[0].mxu0
    %v2916 = vpop.f32.mrb[0].mxu0
    %v2917 = vadd.f32 0.0, %v2916
    %v2918 = vpop.f32.mrb[0].mxu0
    %2919 = vdwg.mxu0
    %v2920 = vadd.f32 %v2759, %v2858
    %v2921 = vadd.f32 %v2762, %v2861
    %v2922 = vadd.f32 %v2767, %v2866
    %v2923 = vadd.f32 %v2770, %v2869
    %v2924 = vadd.f32 %v2775, %v2874
    %v2925 = vadd.f32 %v2778, %v2877
    %v2926 = vadd.f32 %v2783, %v2882
    %v2927 = vadd.f32 %v2786, %v2885
    %v2928 = vadd.f32 %v2791, %v2890
    %v2929 = vadd.f32 %v2794, %v2893
    %v2930 = vadd.f32 %v2799, %v2898
    %v2931 = vadd.f32 %v2802, %v2901
    %v2932 = vadd.f32 %v2807, %v2906
    %v2933 = vadd.f32 %v2810, %v2909
    %v2934 = vadd.f32 %v2815, %v2914
    %v2935 = vadd.f32 %v2818, %v2917
    %v2936 = vxor.u32 %v2920, 2147483648
    %v2937 = vxor.u32 %v2921, 2147483648
    %v2938 = vxor.u32 %v2922, 2147483648
    %v2939 = vxor.u32 %v2923, 2147483648
    %v2940 = vmul.f32 %v2936, 1.442695
    %v2941 = vpow.pop %v2940
    %v2942 = vmul.f32 %v2937, 1.442695
    %v2943 = vpow.pop %v2942
    %v2944 = vmul.f32 %v2938, 1.442695
    %v2945 = vpow.pop %v2944
    %v2946 = vmul.f32 %v2939, 1.442695
    %v2947 = vpow.pop %v2946
    %v2948 = vadd.f32 %v2941, 1.0
    %v2949 = vadd.f32 %v2943, 1.0
    %v2950 = vadd.f32 %v2945, 1.0
    %v2951 = vadd.f32 %v2947, 1.0
    %v2952 = vrcp.pop %v2948
    %v2953 = vmul.f32 1.0, %v2952
    %v2954 = vrcp.pop %v2949
    %v2955 = vmul.f32 1.0, %v2954
    %v2956 = vrcp.pop %v2950
    %v2957 = vmul.f32 1.0, %v2956
    %v2958 = vrcp.pop %v2951
    %v2959 = vmul.f32 1.0, %v2958
    %v2960 = vxor.u32 %v2924, 2147483648
    %v2961 = vxor.u32 %v2925, 2147483648
    %v2962 = vxor.u32 %v2926, 2147483648
    %v2963 = vxor.u32 %v2927, 2147483648
    %v2964 = vmul.f32 %v2960, 1.442695
    %v2965 = vpow.pop %v2964
    %v2966 = vmul.f32 %v2961, 1.442695
    %v2967 = vpow.pop %v2966
    %v2968 = vmul.f32 %v2962, 1.442695
    %v2969 = vpow.pop %v2968
    %v2970 = vmul.f32 %v2963, 1.442695
    %v2971 = vpow.pop %v2970
    %v2972 = vadd.f32 %v2965, 1.0
    %v2973 = vadd.f32 %v2967, 1.0
    %v2974 = vadd.f32 %v2969, 1.0
    %v2975 = vadd.f32 %v2971, 1.0
    %v2976 = vrcp.pop %v2972
    %v2977 = vmul.f32 1.0, %v2976
    %v2978 = vrcp.pop %v2973
    %v2979 = vmul.f32 1.0, %v2978
    %v2980 = vrcp.pop %v2974
    %v2981 = vmul.f32 1.0, %v2980
    %v2982 = vrcp.pop %v2975
    %v2983 = vmul.f32 1.0, %v2982
    %v2984 = vtanh.pop %v2928
    %v2985 = vtanh.pop %v2929
    %v2986 = vtanh.pop %v2930
    %v2987 = vtanh.pop %v2931
    %v2988 = vxor.u32 %v2932, 2147483648
    %v2989 = vxor.u32 %v2933, 2147483648
    %v2990 = vxor.u32 %v2934, 2147483648
    %v2991 = vxor.u32 %v2935, 2147483648
    %v2992 = vmul.f32 %v2988, 1.442695
    %v2993 = vpow.pop %v2992
    %v2994 = vmul.f32 %v2989, 1.442695
    %v2995 = vpow.pop %v2994
    %v2996 = vmul.f32 %v2990, 1.442695
    %v2997 = vpow.pop %v2996
    %v2998 = vmul.f32 %v2991, 1.442695
    %v2999 = vpow.pop %v2998
    %v3000 = vadd.f32 %v2993, 1.0
    %v3001 = vadd.f32 %v2995, 1.0
    %v3002 = vadd.f32 %v2997, 1.0
    %v3003 = vadd.f32 %v2999, 1.0
    %v3004 = vrcp.pop %v3000
    %v3005 = vmul.f32 1.0, %v3004
    %v3006 = vrcp.pop %v3001
    %v3007 = vmul.f32 1.0, %v3006
    %v3008 = vrcp.pop %v3002
    %v3009 = vmul.f32 1.0, %v3008
    %v3010 = vrcp.pop %v3003
    %v3011 = vmul.f32 1.0, %v3010
    %v3012 = vmul.f32 %v2977, %v2399
    %v3013 = vmul.f32 %v2979, %v2400
    %v3014 = vmul.f32 %v2981, %v2401
    %v3015 = vmul.f32 %v2983, %v2402
    %v3016 = vmul.f32 %v2953, %v2984
    %v3017 = vmul.f32 %v2955, %v2985
    %v3018 = vmul.f32 %v2957, %v2986
    %v3019 = vmul.f32 %v2959, %v2987
    %v3020 = vadd.f32 %v3012, %v3016
    %v3021 = vadd.f32 %v3013, %v3017
    %v3022 = vadd.f32 %v3014, %v3018
    %v3023 = vadd.f32 %v3015, %v3019
    %v3024 = vtanh.pop %v3020
    %v3025 = vtanh.pop %v3021
    %v3026 = vtanh.pop %v3022
    %v3027 = vtanh.pop %v3023
    %v3028 = vmul.f32 %v3005, %v3024
    %v3029 = vmul.f32 %v3007, %v3025
    %v3030 = vmul.f32 %v3009, %v3026
    %v3031 = vmul.f32 %v3011, %v3027
    %s3032 = scalar_lea.vmem %s0, 8
    %v3033 = vld [vmem:[%s3032] sm:$0x3]
    %v3035 = vsel %vm214, %v3033, 0
    %3037 = vmatprep.subr.bf16.mxu0 0
    %3038 = vmatpush1.bf16.msra.mxu0 %v3035
    %3039 = vmatprep.subr.bf16.mxu0 0
    %3040 = vmatpush1.bf16.msra.mxu0 0
    %3041 = vmatprep.subr.bf16.mxu0 0
    %3042 = vmatpush1.bf16.msra.mxu0 0
    %3043 = vmatprep.subr.bf16.mxu0 0
    %3044 = vmatpush1.bf16.msra.mxu0 0
    %3045 = vmatprep.subr.bf16.mxu0 0
    %3046 = vmatpush1.bf16.msra.mxu0 0
    %3047 = vmatprep.subr.bf16.mxu0 0
    %3048 = vmatpush1.bf16.msra.mxu0 0
    %3049 = vmatprep.subr.bf16.mxu0 0
    %3050 = vmatpush1.bf16.msra.mxu0 0
    %3051 = vmatprep.subr.bf16.mxu0 0
    %3052 = vmatpush1.bf16.msra.mxu0 0
    %3053 = vmatprep.subr.bf16.mxu0 0
    %3054 = vmatpush1.bf16.msra.mxu0 0
    %3055 = vmatprep.subr.bf16.mxu0 0
    %3056 = vmatpush1.bf16.msra.mxu0 0
    %3057 = vmatprep.subr.bf16.mxu0 0
    %3058 = vmatpush1.bf16.msra.mxu0 0
    %3059 = vmatprep.subr.bf16.mxu0 0
    %3060 = vmatpush1.bf16.msra.mxu0 0
    %3061 = vmatprep.subr.bf16.mxu0 0
    %3062 = vmatpush1.bf16.msra.mxu0 0
    %3063 = vmatprep.subr.bf16.mxu0 0
    %3064 = vmatpush1.bf16.msra.mxu0 0
    %3065 = vmatprep.subr.bf16.mxu0 0
    %3066 = vmatpush1.bf16.msra.mxu0 0
    %3067 = vmatprep.subr.bf16.mxu0 0
    %3068 = vmatpush1.bf16.msra.mxu0 0
    %3069 = vmatprep.mubr.bf16.mxu0 0
    %3070 = vmatmul.mubr.bf16.gmra.mrb[0].mxu0 %v191
    %v3071 = vpop.f32.mrb[0].mxu0
    %v3072 = vadd.f32 %v72, %v3071
    %v3073 = vpop.f32.mrb[0].mxu0
    %v3074 = vpop.f32.mrb[0].mxu0
    %v3075 = vadd.f32 %v77, %v3074
    %v3076 = vpop.f32.mrb[0].mxu0
    %3077 = vmatprep.mubr.bf16.mxu0 0
    %3078 = vmatmul.mubr.bf16.gmra.mrb[0].mxu0 %v194
    %v3079 = vpop.f32.mrb[0].mxu0
    %v3080 = vadd.f32 %v82, %v3079
    %v3081 = vpop.f32.mrb[0].mxu0
    %v3082 = vpop.f32.mrb[0].mxu0
    %v3083 = vadd.f32 %v87, %v3082
    %v3084 = vpop.f32.mrb[0].mxu0
    %3085 = vmatprep.mubr.bf16.mxu0 0
    %3086 = vmatmul.mubr.bf16.gmra.mrb[0].mxu0 %v197
    %v3087 = vpop.f32.mrb[0].mxu0
    %v3088 = vadd.f32 %v92, %v3087
    %v3089 = vpop.f32.mrb[0].mxu0
    %v3090 = vpop.f32.mrb[0].mxu0
    %v3091 = vadd.f32 %v97, %v3090
    %v3092 = vpop.f32.mrb[0].mxu0
    %3093 = vmatprep.mubr.bf16.mxu0 0
    %3094 = vmatmul.mubr.bf16.gmra.mrb[0].mxu0 %v200
    %v3095 = vpop.f32.mrb[0].mxu0
    %v3096 = vadd.f32 %v102, %v3095
    %v3097 = vpop.f32.mrb[0].mxu0
    %v3098 = vpop.f32.mrb[0].mxu0
    %v3099 = vadd.f32 %v107, %v3098
    %v3100 = vpop.f32.mrb[0].mxu0
    %3101 = vmatprep.mubr.bf16.mxu0 0
    %3102 = vmatmul.mubr.bf16.gmra.mrb[0].mxu0 %v203
    %v3103 = vpop.f32.mrb[0].mxu0
    %v3104 = vadd.f32 %v112, %v3103
    %v3105 = vpop.f32.mrb[0].mxu0
    %v3106 = vpop.f32.mrb[0].mxu0
    %v3107 = vadd.f32 %v117, %v3106
    %v3108 = vpop.f32.mrb[0].mxu0
    %3109 = vmatprep.mubr.bf16.mxu0 0
    %3110 = vmatmul.mubr.bf16.gmra.mrb[0].mxu0 %v206
    %v3111 = vpop.f32.mrb[0].mxu0
    %v3112 = vadd.f32 %v122, %v3111
    %v3113 = vpop.f32.mrb[0].mxu0
    %v3114 = vpop.f32.mrb[0].mxu0
    %v3115 = vadd.f32 %v127, %v3114
    %v3116 = vpop.f32.mrb[0].mxu0
    %3117 = vmatprep.mubr.bf16.mxu0 0
    %3118 = vmatmul.mubr.bf16.gmra.mrb[0].mxu0 %v209
    %v3119 = vpop.f32.mrb[0].mxu0
    %v3120 = vadd.f32 %v132, %v3119
    %v3121 = vpop.f32.mrb[0].mxu0
    %v3122 = vpop.f32.mrb[0].mxu0
    %v3123 = vadd.f32 %v137, %v3122
    %v3124 = vpop.f32.mrb[0].mxu0
    %3125 = vmatprep.mubr.bf16.mxu0 0
    %3126 = vmatmul.mubr.bf16.gmra.mrb[0].mxu0 %v212
    %v3127 = vpop.f32.mrb[0].mxu0
    %v3128 = vadd.f32 %v142, %v3127
    %v3129 = vpop.f32.mrb[0].mxu0
    %v3130 = vpop.f32.mrb[0].mxu0
    %v3131 = vadd.f32 %v147, %v3130
    %v3132 = vpop.f32.mrb[0].mxu0
    %3133 = vdwg.mxu0
    %3134 = vmatprep.subr.bf16.mxu0 0
    %3135 = vmatpush1.bf16.msra.mxu0 %v2722
    %3136 = vmatprep.subr.bf16.mxu0 0
    %3137 = vmatpush1.bf16.msra.mxu0 %v2723
    %3138 = vmatprep.subr.bf16.mxu0 0
    %3139 = vmatpush1.bf16.msra.mxu0 0
    %3140 = vmatprep.subr.bf16.mxu0 0
    %3141 = vmatpush1.bf16.msra.mxu0 0
    %3142 = vmatprep.subr.bf16.mxu0 0
    %3143 = vmatpush1.bf16.msra.mxu0 0
    %3144 = vmatprep.subr.bf16.mxu0 0
    %3145 = vmatpush1.bf16.msra.mxu0 0
    %3146 = vmatprep.subr.bf16.mxu0 0
    %3147 = vmatpush1.bf16.msra.mxu0 0
    %3148 = vmatprep.subr.bf16.mxu0 0
    %3149 = vmatpush1.bf16.msra.mxu0 0
    %3150 = vmatprep.subr.bf16.mxu0 0
    %3151 = vmatpush1.bf16.msra.mxu0 0
    %3152 = vmatprep.subr.bf16.mxu0 0
    %3153 = vmatpush1.bf16.msra.mxu0 0
    %3154 = vmatprep.subr.bf16.mxu0 0
    %3155 = vmatpush1.bf16.msra.mxu0 0
    %3156 = vmatprep.subr.bf16.mxu0 0
    %3157 = vmatpush1.bf16.msra.mxu0 0
    %3158 = vmatprep.subr.bf16.mxu0 0
    %3159 = vmatpush1.bf16.msra.mxu0 0
    %3160 = vmatprep.subr.bf16.mxu0 0
    %3161 = vmatpush1.bf16.msra.mxu0 0
    %3162 = vmatprep.subr.bf16.mxu0 0
    %3163 = vmatpush1.bf16.msra.mxu0 0
    %3164 = vmatprep.subr.bf16.mxu0 0
    %3165 = vmatpush1.bf16.msra.mxu0 0
    %3166 = vmatprep.mubr.bf16.mxu0 0
    %3167 = vmatmul.mubr.bf16.gmra.mrb[0].mxu0 %v373
    %v3168 = vpop.f32.mrb[0].mxu0
    %v3169 = vadd.f32 0.0, %v3168
    %v3170 = vpop.f32.mrb[0].mxu0
    %v3171 = vpop.f32.mrb[0].mxu0
    %v3172 = vadd.f32 0.0, %v3171
    %v3173 = vpop.f32.mrb[0].mxu0
    %3174 = vmatprep.mubr.bf16.mxu0 0
    %3175 = vmatmul.mubr.bf16.gmra.mrb[0].mxu0 %v376
    %v3176 = vpop.f32.mrb[0].mxu0
    %v3177 = vadd.f32 0.0, %v3176
    %v3178 = vpop.f32.mrb[0].mxu0
    %v3179 = vpop.f32.mrb[0].mxu0
    %v3180 = vadd.f32 0.0, %v3179
    %v3181 = vpop.f32.mrb[0].mxu0
    %3182 = vmatprep.mubr.bf16.mxu0 0
    %3183 = vmatmul.mubr.bf16.gmra.mrb[0].mxu0 %v379
    %v3184 = vpop.f32.mrb[0].mxu0
    %v3185 = vadd.f32 0.0, %v3184
    %v3186 = vpop.f32.mrb[0].mxu0
    %v3187 = vpop.f32.mrb[0].mxu0
    %v3188 = vadd.f32 0.0, %v3187
    %v3189 = vpop.f32.mrb[0].mxu0
    %3190 = vmatprep.mubr.bf16.mxu0 0
    %3191 = vmatmul.mubr.bf16.gmra.mrb[0].mxu0 %v382
    %v3192 = vpop.f32.mrb[0].mxu0
    %v3193 = vadd.f32 0.0, %v3192
    %v3194 = vpop.f32.mrb[0].mxu0
    %v3195 = vpop.f32.mrb[0].mxu0
    %v3196 = vadd.f32 0.0, %v3195
    %v3197 = vpop.f32.mrb[0].mxu0
    %3198 = vmatprep.mubr.bf16.mxu0 0
    %3199 = vmatmul.mubr.bf16.gmra.mrb[0].mxu0 %v385
    %v3200 = vpop.f32.mrb[0].mxu0
    %v3201 = vadd.f32 0.0, %v3200
    %v3202 = vpop.f32.mrb[0].mxu0
    %v3203 = vpop.f32.mrb[0].mxu0
    %v3204 = vadd.f32 0.0, %v3203
    %v3205 = vpop.f32.mrb[0].mxu0
    %3206 = vmatprep.mubr.bf16.mxu0 0
    %3207 = vmatmul.mubr.bf16.gmra.mrb[0].mxu0 %v388
    %v3208 = vpop.f32.mrb[0].mxu0
    %v3209 = vadd.f32 0.0, %v3208
    %v3210 = vpop.f32.mrb[0].mxu0
    %v3211 = vpop.f32.mrb[0].mxu0
    %v3212 = vadd.f32 0.0, %v3211
    %v3213 = vpop.f32.mrb[0].mxu0
    %3214 = vmatprep.mubr.bf16.mxu0 0
    %3215 = vmatmul.mubr.bf16.gmra.mrb[0].mxu0 %v391
    %v3216 = vpop.f32.mrb[0].mxu0
    %v3217 = vadd.f32 0.0, %v3216
    %v3218 = vpop.f32.mrb[0].mxu0
    %v3219 = vpop.f32.mrb[0].mxu0
    %v3220 = vadd.f32 0.0, %v3219
    %v3221 = vpop.f32.mrb[0].mxu0
    %3222 = vmatprep.mubr.bf16.mxu0 0
    %3223 = vmatmul.mubr.bf16.gmra.mrb[0].mxu0 %v394
    %v3224 = vpop.f32.mrb[0].mxu0
    %v3225 = vadd.f32 0.0, %v3224
    %v3226 = vpop.f32.mrb[0].mxu0
    %v3227 = vpop.f32.mrb[0].mxu0
    %v3228 = vadd.f32 0.0, %v3227
    %v3229 = vpop.f32.mrb[0].mxu0
    %3230 = vdwg.mxu0
    %v3231 = vadd.f32 %v3072, %v3169
    %v3232 = vadd.f32 %v3075, %v3172
    %v3233 = vadd.f32 %v3080, %v3177
    %v3234 = vadd.f32 %v3083, %v3180
    %v3235 = vadd.f32 %v3088, %v3185
    %v3236 = vadd.f32 %v3091, %v3188
    %v3237 = vadd.f32 %v3096, %v3193
    %v3238 = vadd.f32 %v3099, %v3196
    %v3239 = vadd.f32 %v3104, %v3201
    %v3240 = vadd.f32 %v3107, %v3204
    %v3241 = vadd.f32 %v3112, %v3209
    %v3242 = vadd.f32 %v3115, %v3212
    %v3243 = vadd.f32 %v3120, %v3217
    %v3244 = vadd.f32 %v3123, %v3220
    %v3245 = vadd.f32 %v3128, %v3225
    %v3246 = vadd.f32 %v3131, %v3228
    %v3247 = vxor.u32 %v3231, 2147483648
    %v3248 = vxor.u32 %v3232, 2147483648
    %v3249 = vxor.u32 %v3233, 2147483648
    %v3250 = vxor.u32 %v3234, 2147483648
    %v3251 = vmul.f32 %v3247, 1.442695
    %v3252 = vpow.pop %v3251
    %v3253 = vmul.f32 %v3248, 1.442695
    %v3254 = vpow.pop %v3253
    %v3255 = vmul.f32 %v3249, 1.442695
    %v3256 = vpow.pop %v3255
    %v3257 = vmul.f32 %v3250, 1.442695
    %v3258 = vpow.pop %v3257
    %v3259 = vadd.f32 %v3252, 1.0
    %v3260 = vadd.f32 %v3254, 1.0
    %v3261 = vadd.f32 %v3256, 1.0
    %v3262 = vadd.f32 %v3258, 1.0
    %v3263 = vrcp.pop %v3259
    %v3264 = vmul.f32 1.0, %v3263
    %v3265 = vrcp.pop %v3260
    %v3266 = vmul.f32 1.0, %v3265
    %v3267 = vrcp.pop %v3261
    %v3268 = vmul.f32 1.0, %v3267
    %v3269 = vrcp.pop %v3262
    %v3270 = vmul.f32 1.0, %v3269
    %v3271 = vxor.u32 %v3235, 2147483648
    %v3272 = vxor.u32 %v3236, 2147483648
    %v3273 = vxor.u32 %v3237, 2147483648
    %v3274 = vxor.u32 %v3238, 2147483648
    %v3275 = vmul.f32 %v3271, 1.442695
    %v3276 = vpow.pop %v3275
    %v3277 = vmul.f32 %v3272, 1.442695
    %v3278 = vpow.pop %v3277
    %v3279 = vmul.f32 %v3273, 1.442695
    %v3280 = vpow.pop %v3279
    %v3281 = vmul.f32 %v3274, 1.442695
    %v3282 = vpow.pop %v3281
    %v3283 = vadd.f32 %v3276, 1.0
    %v3284 = vadd.f32 %v3278, 1.0
    %v3285 = vadd.f32 %v3280, 1.0
    %v3286 = vadd.f32 %v3282, 1.0
    %v3287 = vrcp.pop %v3283
    %v3288 = vmul.f32 1.0, %v3287
    %v3289 = vrcp.pop %v3284
    %v3290 = vmul.f32 1.0, %v3289
    %v3291 = vrcp.pop %v3285
    %v3292 = vmul.f32 1.0, %v3291
    %v3293 = vrcp.pop %v3286
    %v3294 = vmul.f32 1.0, %v3293
    %v3295 = vtanh.pop %v3239
    %v3296 = vtanh.pop %v3240
    %v3297 = vtanh.pop %v3241
    %v3298 = vtanh.pop %v3242
    %v3299 = vxor.u32 %v3243, 2147483648
    %v3300 = vxor.u32 %v3244, 2147483648
    %v3301 = vxor.u32 %v3245, 2147483648
    %v3302 = vxor.u32 %v3246, 2147483648
    %v3303 = vmul.f32 %v3299, 1.442695
    %v3304 = vpow.pop %v3303
    %v3305 = vmul.f32 %v3300, 1.442695
    %v3306 = vpow.pop %v3305
    %v3307 = vmul.f32 %v3301, 1.442695
    %v3308 = vpow.pop %v3307
    %v3309 = vmul.f32 %v3302, 1.442695
    %v3310 = vpow.pop %v3309
    %v3311 = vadd.f32 %v3304, 1.0
    %v3312 = vadd.f32 %v3306, 1.0
    %v3313 = vadd.f32 %v3308, 1.0
    %v3314 = vadd.f32 %v3310, 1.0
    %v3315 = vrcp.pop %v3311
    %v3316 = vmul.f32 1.0, %v3315
    %v3317 = vrcp.pop %v3312
    %v3318 = vmul.f32 1.0, %v3317
    %v3319 = vrcp.pop %v3313
    %v3320 = vmul.f32 1.0, %v3319
    %v3321 = vrcp.pop %v3314
    %v3322 = vmul.f32 1.0, %v3321
    %v3323 = vmul.f32 %v3288, %v2710
    %v3324 = vmul.f32 %v3290, %v2711
    %v3325 = vmul.f32 %v3292, %v2712
    %v3326 = vmul.f32 %v3294, %v2713
    %v3327 = vmul.f32 %v3264, %v3295
    %v3328 = vmul.f32 %v3266, %v3296
    %v3329 = vmul.f32 %v3268, %v3297
    %v3330 = vmul.f32 %v3270, %v3298
    %v3331 = vadd.f32 %v3323, %v3327
    %v3332 = vadd.f32 %v3324, %v3328
    %v3333 = vadd.f32 %v3325, %v3329
    %v3334 = vadd.f32 %v3326, %v3330
    %v3335 = vtanh.pop %v3331
    %v3336 = vtanh.pop %v3332
    %v3337 = vtanh.pop %v3333
    %v3338 = vtanh.pop %v3334
    %v3339 = vmul.f32 %v3316, %v3335
    %v3340 = vmul.f32 %v3318, %v3336
    %v3341 = vmul.f32 %v3320, %v3337
    %v3342 = vmul.f32 %v3322, %v3338
    %v3343 = vpack.c.bf16 %v3340, %v3339
    %v3344 = vpack.c.bf16 %v3342, %v3341
    %3345 = vmatprep.subr.bf16.mxu0 0
    %3346 = vmatpush1.bf16.msra.mxu0 %v3343
    %3347 = vmatprep.subr.bf16.mxu0 0
    %3348 = vmatpush1.bf16.msra.mxu0 %v3344
    %3349 = vmatprep.subr.bf16.mxu0 0
    %3350 = vmatpush1.bf16.msra.mxu0 0
    %3351 = vmatprep.subr.bf16.mxu0 0
    %3352 = vmatpush1.bf16.msra.mxu0 0
    %3353 = vmatprep.subr.bf16.mxu0 0
    %3354 = vmatpush1.bf16.msra.mxu0 0
    %3355 = vmatprep.subr.bf16.mxu0 0
    %3356 = vmatpush1.bf16.msra.mxu0 0
    %3357 = vmatprep.subr.bf16.mxu0 0
    %3358 = vmatpush1.bf16.msra.mxu0 0
    %3359 = vmatprep.subr.bf16.mxu0 0
    %3360 = vmatpush1.bf16.msra.mxu0 0
    %3361 = vmatprep.subr.bf16.mxu0 0
    %3362 = vmatpush1.bf16.msra.mxu0 0
    %3363 = vmatprep.subr.bf16.mxu0 0
    %3364 = vmatpush1.bf16.msra.mxu0 0
    %3365 = vmatprep.subr.bf16.mxu0 0
    %3366 = vmatpush1.bf16.msra.mxu0 0
    %3367 = vmatprep.subr.bf16.mxu0 0
    %3368 = vmatpush1.bf16.msra.mxu0 0
    %3369 = vmatprep.subr.bf16.mxu0 0
    %3370 = vmatpush1.bf16.msra.mxu0 0
    %3371 = vmatprep.subr.bf16.mxu0 0
    %3372 = vmatpush1.bf16.msra.mxu0 0
    %3373 = vmatprep.subr.bf16.mxu0 0
    %3374 = vmatpush1.bf16.msra.mxu0 0
    %3375 = vmatprep.subr.bf16.mxu0 0
    %3376 = vmatpush1.bf16.msra.mxu0 0
    %3377 = vmatprep.mubr.bf16.mxu0 0
    %3378 = vmatmul.mubr.bf16.gmra.mrb[0].mxu0 %v760
    %v3379 = vpop.f32.mrb[0].mxu0
    %v3380 = vadd.f32 %v642, %v3379
    %v3381 = vpop.f32.mrb[0].mxu0
    %v3382 = vpop.f32.mrb[0].mxu0
    %v3383 = vadd.f32 %v647, %v3382
    %v3384 = vpop.f32.mrb[0].mxu0
    %3385 = vmatprep.mubr.bf16.mxu0 0
    %3386 = vmatmul.mubr.bf16.gmra.mrb[0].mxu0 %v763
    %v3387 = vpop.f32.mrb[0].mxu0
    %v3388 = vadd.f32 %v652, %v3387
    %v3389 = vpop.f32.mrb[0].mxu0
    %v3390 = vpop.f32.mrb[0].mxu0
    %v3391 = vadd.f32 %v657, %v3390
    %v3392 = vpop.f32.mrb[0].mxu0
    %3393 = vmatprep.mubr.bf16.mxu0 0
    %3394 = vmatmul.mubr.bf16.gmra.mrb[0].mxu0 %v766
    %v3395 = vpop.f32.mrb[0].mxu0
    %v3396 = vadd.f32 %v662, %v3395
    %v3397 = vpop.f32.mrb[0].mxu0
    %v3398 = vpop.f32.mrb[0].mxu0
    %v3399 = vadd.f32 %v667, %v3398
    %v3400 = vpop.f32.mrb[0].mxu0
    %3401 = vmatprep.mubr.bf16.mxu0 0
    %3402 = vmatmul.mubr.bf16.gmra.mrb[0].mxu0 %v769
    %v3403 = vpop.f32.mrb[0].mxu0
    %v3404 = vadd.f32 %v672, %v3403
    %v3405 = vpop.f32.mrb[0].mxu0
    %v3406 = vpop.f32.mrb[0].mxu0
    %v3407 = vadd.f32 %v677, %v3406
    %v3408 = vpop.f32.mrb[0].mxu0
    %3409 = vmatprep.mubr.bf16.mxu0 0
    %3410 = vmatmul.mubr.bf16.gmra.mrb[0].mxu0 %v772
    %v3411 = vpop.f32.mrb[0].mxu0
    %v3412 = vadd.f32 %v682, %v3411
    %v3413 = vpop.f32.mrb[0].mxu0
    %v3414 = vpop.f32.mrb[0].mxu0
    %v3415 = vadd.f32 %v687, %v3414
    %v3416 = vpop.f32.mrb[0].mxu0
    %3417 = vmatprep.mubr.bf16.mxu0 0
    %3418 = vmatmul.mubr.bf16.gmra.mrb[0].mxu0 %v775
    %v3419 = vpop.f32.mrb[0].mxu0
    %v3420 = vadd.f32 %v692, %v3419
    %v3421 = vpop.f32.mrb[0].mxu0
    %v3422 = vpop.f32.mrb[0].mxu0
    %v3423 = vadd.f32 %v697, %v3422
    %v3424 = vpop.f32.mrb[0].mxu0
    %3425 = vmatprep.mubr.bf16.mxu0 0
    %3426 = vmatmul.mubr.bf16.gmra.mrb[0].mxu0 %v778
    %v3427 = vpop.f32.mrb[0].mxu0
    %v3428 = vadd.f32 %v702, %v3427
    %v3429 = vpop.f32.mrb[0].mxu0
    %v3430 = vpop.f32.mrb[0].mxu0
    %v3431 = vadd.f32 %v707, %v3430
    %v3432 = vpop.f32.mrb[0].mxu0
    %3433 = vmatprep.mubr.bf16.mxu0 0
    %3434 = vmatmul.mubr.bf16.gmra.mrb[0].mxu0 %v781
    %v3435 = vpop.f32.mrb[0].mxu0
    %v3436 = vadd.f32 %v712, %v3435
    %v3437 = vpop.f32.mrb[0].mxu0
    %v3438 = vpop.f32.mrb[0].mxu0
    %v3439 = vadd.f32 %v717, %v3438
    %v3440 = vpop.f32.mrb[0].mxu0
    %3441 = vdwg.mxu0
    %v3442 = vpack.c.bf16 %v3029, %v3028
    %v3443 = vpack.c.bf16 %v3031, %v3030
    %3444 = vmatprep.subr.bf16.mxu0 0
    %3445 = vmatpush1.bf16.msra.mxu0 %v3442
    %3446 = vmatprep.subr.bf16.mxu0 0
    %3447 = vmatpush1.bf16.msra.mxu0 %v3443
    %3448 = vmatprep.subr.bf16.mxu0 0
    %3449 = vmatpush1.bf16.msra.mxu0 0
    %3450 = vmatprep.subr.bf16.mxu0 0
    %3451 = vmatpush1.bf16.msra.mxu0 0
    %3452 = vmatprep.subr.bf16.mxu0 0
    %3453 = vmatpush1.bf16.msra.mxu0 0
    %3454 = vmatprep.subr.bf16.mxu0 0
    %3455 = vmatpush1.bf16.msra.mxu0 0
    %3456 = vmatprep.subr.bf16.mxu0 0
    %3457 = vmatpush1.bf16.msra.mxu0 0
    %3458 = vmatprep.subr.bf16.mxu0 0
    %3459 = vmatpush1.bf16.msra.mxu0 0
    %3460 = vmatprep.subr.bf16.mxu0 0
    %3461 = vmatpush1.bf16.msra.mxu0 0
    %3462 = vmatprep.subr.bf16.mxu0 0
    %3463 = vmatpush1.bf16.msra.mxu0 0
    %3464 = vmatprep.subr.bf16.mxu0 0
    %3465 = vmatpush1.bf16.msra.mxu0 0
    %3466 = vmatprep.subr.bf16.mxu0 0
    %3467 = vmatpush1.bf16.msra.mxu0 0
    %3468 = vmatprep.subr.bf16.mxu0 0
    %3469 = vmatpush1.bf16.msra.mxu0 0
    %3470 = vmatprep.subr.bf16.mxu0 0
    %3471 = vmatpush1.bf16.msra.mxu0 0
    %3472 = vmatprep.subr.bf16.mxu0 0
    %3473 = vmatpush1.bf16.msra.mxu0 0
    %3474 = vmatprep.subr.bf16.mxu0 0
    %3475 = vmatpush1.bf16.msra.mxu0 0
    %3476 = vmatprep.mubr.bf16.mxu0 0
    %3477 = vmatmul.mubr.bf16.gmra.mrb[0].mxu0 %v937
    %v3478 = vpop.f32.mrb[0].mxu0
    %v3479 = vadd.f32 0.0, %v3478
    %v3480 = vpop.f32.mrb[0].mxu0
    %v3481 = vpop.f32.mrb[0].mxu0
    %v3482 = vadd.f32 0.0, %v3481
    %v3483 = vpop.f32.mrb[0].mxu0
    %3484 = vmatprep.mubr.bf16.mxu0 0
    %3485 = vmatmul.mubr.bf16.gmra.mrb[0].mxu0 %v940
    %v3486 = vpop.f32.mrb[0].mxu0
    %v3487 = vadd.f32 0.0, %v3486
    %v3488 = vpop.f32.mrb[0].mxu0
    %v3489 = vpop.f32.mrb[0].mxu0
    %v3490 = vadd.f32 0.0, %v3489
    %v3491 = vpop.f32.mrb[0].mxu0
    %3492 = vmatprep.mubr.bf16.mxu0 0
    %3493 = vmatmul.mubr.bf16.gmra.mrb[0].mxu0 %v943
    %v3494 = vpop.f32.mrb[0].mxu0
    %v3495 = vadd.f32 0.0, %v3494
    %v3496 = vpop.f32.mrb[0].mxu0
    %v3497 = vpop.f32.mrb[0].mxu0
    %v3498 = vadd.f32 0.0, %v3497
    %v3499 = vpop.f32.mrb[0].mxu0
    %3500 = vmatprep.mubr.bf16.mxu0 0
    %3501 = vmatmul.mubr.bf16.gmra.mrb[0].mxu0 %v946
    %v3502 = vpop.f32.mrb[0].mxu0
    %v3503 = vadd.f32 0.0, %v3502
    %v3504 = vpop.f32.mrb[0].mxu0
    %v3505 = vpop.f32.mrb[0].mxu0
    %v3506 = vadd.f32 0.0, %v3505
    %v3507 = vpop.f32.mrb[0].mxu0
    %3508 = vmatprep.mubr.bf16.mxu0 0
    %3509 = vmatmul.mubr.bf16.gmra.mrb[0].mxu0 %v949
    %v3510 = vpop.f32.mrb[0].mxu0
    %v3511 = vadd.f32 0.0, %v3510
    %v3512 = vpop.f32.mrb[0].mxu0
    %v3513 = vpop.f32.mrb[0].mxu0
    %v3514 = vadd.f32 0.0, %v3513
    %v3515 = vpop.f32.mrb[0].mxu0
    %3516 = vmatprep.mubr.bf16.mxu0 0
    %3517 = vmatmul.mubr.bf16.gmra.mrb[0].mxu0 %v952
    %v3518 = vpop.f32.mrb[0].mxu0
    %v3519 = vadd.f32 0.0, %v3518
    %v3520 = vpop.f32.mrb[0].mxu0
    %v3521 = vpop.f32.mrb[0].mxu0
    %v3522 = vadd.f32 0.0, %v3521
    %v3523 = vpop.f32.mrb[0].mxu0
    %3524 = vmatprep.mubr.bf16.mxu0 0
    %3525 = vmatmul.mubr.bf16.gmra.mrb[0].mxu0 %v955
    %v3526 = vpop.f32.mrb[0].mxu0
    %v3527 = vadd.f32 0.0, %v3526
    %v3528 = vpop.f32.mrb[0].mxu0
    %v3529 = vpop.f32.mrb[0].mxu0
    %v3530 = vadd.f32 0.0, %v3529
    %v3531 = vpop.f32.mrb[0].mxu0
    %3532 = vmatprep.mubr.bf16.mxu0 0
    %3533 = vmatmul.mubr.bf16.gmra.mrb[0].mxu0 %v958
    %v3534 = vpop.f32.mrb[0].mxu0
    %v3535 = vadd.f32 0.0, %v3534
    %v3536 = vpop.f32.mrb[0].mxu0
    %v3537 = vpop.f32.mrb[0].mxu0
    %v3538 = vadd.f32 0.0, %v3537
    %v3539 = vpop.f32.mrb[0].mxu0
    %3540 = vdwg.mxu0
    %v3541 = vadd.f32 %v3380, %v3479
    %v3542 = vadd.f32 %v3383, %v3482
    %v3543 = vadd.f32 %v3388, %v3487
    %v3544 = vadd.f32 %v3391, %v3490
    %v3545 = vadd.f32 %v3396, %v3495
    %v3546 = vadd.f32 %v3399, %v3498
    %v3547 = vadd.f32 %v3404, %v3503
    %v3548 = vadd.f32 %v3407, %v3506
    %v3549 = vadd.f32 %v3412, %v3511
    %v3550 = vadd.f32 %v3415, %v3514
    %v3551 = vadd.f32 %v3420, %v3519
    %v3552 = vadd.f32 %v3423, %v3522
    %v3553 = vadd.f32 %v3428, %v3527
    %v3554 = vadd.f32 %v3431, %v3530
    %v3555 = vadd.f32 %v3436, %v3535
    %v3556 = vadd.f32 %v3439, %v3538
    %v3557 = vxor.u32 %v3541, 2147483648
    %v3558 = vxor.u32 %v3542, 2147483648
    %v3559 = vxor.u32 %v3543, 2147483648
    %v3560 = vxor.u32 %v3544, 2147483648
    %v3561 = vmul.f32 %v3557, 1.442695
    %v3562 = vpow.pop %v3561
    %v3563 = vmul.f32 %v3558, 1.442695
    %v3564 = vpow.pop %v3563
    %v3565 = vmul.f32 %v3559, 1.442695
    %v3566 = vpow.pop %v3565
    %v3567 = vmul.f32 %v3560, 1.442695
    %v3568 = vpow.pop %v3567
    %v3569 = vadd.f32 %v3562, 1.0
    %v3570 = vadd.f32 %v3564, 1.0
    %v3571 = vadd.f32 %v3566, 1.0
    %v3572 = vadd.f32 %v3568, 1.0
    %v3573 = vrcp.pop %v3569
    %v3574 = vmul.f32 1.0, %v3573
    %v3575 = vrcp.pop %v3570
    %v3576 = vmul.f32 1.0, %v3575
    %v3577 = vrcp.pop %v3571
    %v3578 = vmul.f32 1.0, %v3577
    %v3579 = vrcp.pop %v3572
    %v3580 = vmul.f32 1.0, %v3579
    %v3581 = vxor.u32 %v3545, 2147483648
    %v3582 = vxor.u32 %v3546, 2147483648
    %v3583 = vxor.u32 %v3547, 2147483648
    %v3584 = vxor.u32 %v3548, 2147483648
    %v3585 = vmul.f32 %v3581, 1.442695
    %v3586 = vpow.pop %v3585
    %v3587 = vmul.f32 %v3582, 1.442695
    %v3588 = vpow.pop %v3587
    %v3589 = vmul.f32 %v3583, 1.442695
    %v3590 = vpow.pop %v3589
    %v3591 = vmul.f32 %v3584, 1.442695
    %v3592 = vpow.pop %v3591
    %v3593 = vadd.f32 %v3586, 1.0
    %v3594 = vadd.f32 %v3588, 1.0
    %v3595 = vadd.f32 %v3590, 1.0
    %v3596 = vadd.f32 %v3592, 1.0
    %v3597 = vrcp.pop %v3593
    %v3598 = vmul.f32 1.0, %v3597
    %v3599 = vrcp.pop %v3594
    %v3600 = vmul.f32 1.0, %v3599
    %v3601 = vrcp.pop %v3595
    %v3602 = vmul.f32 1.0, %v3601
    %v3603 = vrcp.pop %v3596
    %v3604 = vmul.f32 1.0, %v3603
    %v3605 = vtanh.pop %v3549
    %v3606 = vtanh.pop %v3550
    %v3607 = vtanh.pop %v3551
    %v3608 = vtanh.pop %v3552
    %v3609 = vxor.u32 %v3553, 2147483648
    %v3610 = vxor.u32 %v3554, 2147483648
    %v3611 = vxor.u32 %v3555, 2147483648
    %v3612 = vxor.u32 %v3556, 2147483648
    %v3613 = vmul.f32 %v3609, 1.442695
    %v3614 = vpow.pop %v3613
    %v3615 = vmul.f32 %v3610, 1.442695
    %v3616 = vpow.pop %v3615
    %v3617 = vmul.f32 %v3611, 1.442695
    %v3618 = vpow.pop %v3617
    %v3619 = vmul.f32 %v3612, 1.442695
    %v3620 = vpow.pop %v3619
    %v3621 = vadd.f32 %v3614, 1.0
    %v3622 = vadd.f32 %v3616, 1.0
    %v3623 = vadd.f32 %v3618, 1.0
    %v3624 = vadd.f32 %v3620, 1.0
    %v3625 = vrcp.pop %v3621
    %v3626 = vmul.f32 1.0, %v3625
    %v3627 = vrcp.pop %v3622
    %v3628 = vmul.f32 1.0, %v3627
    %v3629 = vrcp.pop %v3623
    %v3630 = vmul.f32 1.0, %v3629
    %v3631 = vrcp.pop %v3624
    %v3632 = vmul.f32 1.0, %v3631
    %v3633 = vmul.f32 %v3598, %v3020
    %v3634 = vmul.f32 %v3600, %v3021
    %v3635 = vmul.f32 %v3602, %v3022
    %v3636 = vmul.f32 %v3604, %v3023
    %v3637 = vmul.f32 %v3574, %v3605
    %v3638 = vmul.f32 %v3576, %v3606
    %v3639 = vmul.f32 %v3578, %v3607
    %v3640 = vmul.f32 %v3580, %v3608
    %v3641 = vadd.f32 %v3633, %v3637
    %v3642 = vadd.f32 %v3634, %v3638
    %v3643 = vadd.f32 %v3635, %v3639
    %v3644 = vadd.f32 %v3636, %v3640
    %v3645 = vtanh.pop %v3641
    %v3646 = vtanh.pop %v3642
    %v3647 = vtanh.pop %v3643
    %v3648 = vtanh.pop %v3644
    %v3649 = vmul.f32 %v3626, %v3645
    %v3650 = vmul.f32 %v3628, %v3646
    %v3651 = vmul.f32 %v3630, %v3647
    %v3652 = vmul.f32 %v3632, %v3648
    %s3653 = scalar_lea.vmem %s0, 10
    %v3654 = vld [vmem:[%s3653] sm:$0x3]
    %v3656 = vsel %vm214, %v3654, 0
    %3658 = vmatprep.subr.bf16.mxu0 0
    %3659 = vmatpush1.bf16.msra.mxu0 %v3656
    %3660 = vmatprep.subr.bf16.mxu0 0
    %3661 = vmatpush1.bf16.msra.mxu0 0
    %3662 = vmatprep.subr.bf16.mxu0 0
    %3663 = vmatpush1.bf16.msra.mxu0 0
    %3664 = vmatprep.subr.bf16.mxu0 0
    %3665 = vmatpush1.bf16.msra.mxu0 0
    %3666 = vmatprep.subr.bf16.mxu0 0
    %3667 = vmatpush1.bf16.msra.mxu0 0
    %3668 = vmatprep.subr.bf16.mxu0 0
    %3669 = vmatpush1.bf16.msra.mxu0 0
    %3670 = vmatprep.subr.bf16.mxu0 0
    %3671 = vmatpush1.bf16.msra.mxu0 0
    %3672 = vmatprep.subr.bf16.mxu0 0
    %3673 = vmatpush1.bf16.msra.mxu0 0
    %3674 = vmatprep.subr.bf16.mxu0 0
    %3675 = vmatpush1.bf16.msra.mxu0 0
    %3676 = vmatprep.subr.bf16.mxu0 0
    %3677 = vmatpush1.bf16.msra.mxu0 0
    %3678 = vmatprep.subr.bf16.mxu0 0
    %3679 = vmatpush1.bf16.msra.mxu0 0
    %3680 = vmatprep.subr.bf16.mxu0 0
    %3681 = vmatpush1.bf16.msra.mxu0 0
    %3682 = vmatprep.subr.bf16.mxu0 0
    %3683 = vmatpush1.bf16.msra.mxu0 0
    %3684 = vmatprep.subr.bf16.mxu0 0
    %3685 = vmatpush1.bf16.msra.mxu0 0
    %3686 = vmatprep.subr.bf16.mxu0 0
    %3687 = vmatpush1.bf16.msra.mxu0 0
    %3688 = vmatprep.subr.bf16.mxu0 0
    %3689 = vmatpush1.bf16.msra.mxu0 0
    %3690 = vmatprep.mubr.bf16.mxu0 0
    %3691 = vmatmul.mubr.bf16.gmra.mrb[0].mxu0 %v191
    %v3692 = vpop.f32.mrb[0].mxu0
    %v3693 = vadd.f32 %v72, %v3692
    %v3694 = vpop.f32.mrb[0].mxu0
    %v3695 = vpop.f32.mrb[0].mxu0
    %v3696 = vadd.f32 %v77, %v3695
    %v3697 = vpop.f32.mrb[0].mxu0
    %3698 = vmatprep.mubr.bf16.mxu0 0
    %3699 = vmatmul.mubr.bf16.gmra.mrb[0].mxu0 %v194
    %v3700 = vpop.f32.mrb[0].mxu0
    %v3701 = vadd.f32 %v82, %v3700
    %v3702 = vpop.f32.mrb[0].mxu0
    %v3703 = vpop.f32.mrb[0].mxu0
    %v3704 = vadd.f32 %v87, %v3703
    %v3705 = vpop.f32.mrb[0].mxu0
    %3706 = vmatprep.mubr.bf16.mxu0 0
    %3707 = vmatmul.mubr.bf16.gmra.mrb[0].mxu0 %v197
    %v3708 = vpop.f32.mrb[0].mxu0
    %v3709 = vadd.f32 %v92, %v3708
    %v3710 = vpop.f32.mrb[0].mxu0
    %v3711 = vpop.f32.mrb[0].mxu0
    %v3712 = vadd.f32 %v97, %v3711
    %v3713 = vpop.f32.mrb[0].mxu0
    %3714 = vmatprep.mubr.bf16.mxu0 0
    %3715 = vmatmul.mubr.bf16.gmra.mrb[0].mxu0 %v200
    %v3716 = vpop.f32.mrb[0].mxu0
    %v3717 = vadd.f32 %v102, %v3716
    %v3718 = vpop.f32.mrb[0].mxu0
    %v3719 = vpop.f32.mrb[0].mxu0
    %v3720 = vadd.f32 %v107, %v3719
    %v3721 = vpop.f32.mrb[0].mxu0
    %3722 = vmatprep.mubr.bf16.mxu0 0
    %3723 = vmatmul.mubr.bf16.gmra.mrb[0].mxu0 %v203
    %v3724 = vpop.f32.mrb[0].mxu0
    %v3725 = vadd.f32 %v112, %v3724
    %v3726 = vpop.f32.mrb[0].mxu0
    %v3727 = vpop.f32.mrb[0].mxu0
    %v3728 = vadd.f32 %v117, %v3727
    %v3729 = vpop.f32.mrb[0].mxu0
    %3730 = vmatprep.mubr.bf16.mxu0 0
    %3731 = vmatmul.mubr.bf16.gmra.mrb[0].mxu0 %v206
    %v3732 = vpop.f32.mrb[0].mxu0
    %v3733 = vadd.f32 %v122, %v3732
    %v3734 = vpop.f32.mrb[0].mxu0
    %v3735 = vpop.f32.mrb[0].mxu0
    %v3736 = vadd.f32 %v127, %v3735
    %v3737 = vpop.f32.mrb[0].mxu0
    %3738 = vmatprep.mubr.bf16.mxu0 0
    %3739 = vmatmul.mubr.bf16.gmra.mrb[0].mxu0 %v209
    %v3740 = vpop.f32.mrb[0].mxu0
    %v3741 = vadd.f32 %v132, %v3740
    %v3742 = vpop.f32.mrb[0].mxu0
    %v3743 = vpop.f32.mrb[0].mxu0
    %v3744 = vadd.f32 %v137, %v3743
    %v3745 = vpop.f32.mrb[0].mxu0
    %3746 = vmatprep.mubr.bf16.mxu0 0
    %3747 = vmatmul.mubr.bf16.gmra.mrb[0].mxu0 %v212
    %v3748 = vpop.f32.mrb[0].mxu0
    %v3749 = vadd.f32 %v142, %v3748
    %v3750 = vpop.f32.mrb[0].mxu0
    %v3751 = vpop.f32.mrb[0].mxu0
    %v3752 = vadd.f32 %v147, %v3751
    %v3753 = vpop.f32.mrb[0].mxu0
    %3754 = vdwg.mxu0
    %3755 = vmatprep.subr.bf16.mxu0 0
    %3756 = vmatpush1.bf16.msra.mxu0 %v3343
    %3757 = vmatprep.subr.bf16.mxu0 0
    %3758 = vmatpush1.bf16.msra.mxu0 %v3344
    %3759 = vmatprep.subr.bf16.mxu0 0
    %3760 = vmatpush1.bf16.msra.mxu0 0
    %3761 = vmatprep.subr.bf16.mxu0 0
    %3762 = vmatpush1.bf16.msra.mxu0 0
    %3763 = vmatprep.subr.bf16.mxu0 0
    %3764 = vmatpush1.bf16.msra.mxu0 0
    %3765 = vmatprep.subr.bf16.mxu0 0
    %3766 = vmatpush1.bf16.msra.mxu0 0
    %3767 = vmatprep.subr.bf16.mxu0 0
    %3768 = vmatpush1.bf16.msra.mxu0 0
    %3769 = vmatprep.subr.bf16.mxu0 0
    %3770 = vmatpush1.bf16.msra.mxu0 0
    %3771 = vmatprep.subr.bf16.mxu0 0
    %3772 = vmatpush1.bf16.msra.mxu0 0
    %3773 = vmatprep.subr.bf16.mxu0 0
    %3774 = vmatpush1.bf16.msra.mxu0 0
    %3775 = vmatprep.subr.bf16.mxu0 0
    %3776 = vmatpush1.bf16.msra.mxu0 0
    %3777 = vmatprep.subr.bf16.mxu0 0
    %3778 = vmatpush1.bf16.msra.mxu0 0
    %3779 = vmatprep.subr.bf16.mxu0 0
    %3780 = vmatpush1.bf16.msra.mxu0 0
    %3781 = vmatprep.subr.bf16.mxu0 0
    %3782 = vmatpush1.bf16.msra.mxu0 0
    %3783 = vmatprep.subr.bf16.mxu0 0
    %3784 = vmatpush1.bf16.msra.mxu0 0
    %3785 = vmatprep.subr.bf16.mxu0 0
    %3786 = vmatpush1.bf16.msra.mxu0 0
    %3787 = vmatprep.mubr.bf16.mxu0 0
    %3788 = vmatmul.mubr.bf16.gmra.mrb[0].mxu0 %v373
    %v3789 = vpop.f32.mrb[0].mxu0
    %v3790 = vadd.f32 0.0, %v3789
    %v3791 = vpop.f32.mrb[0].mxu0
    %v3792 = vpop.f32.mrb[0].mxu0
    %v3793 = vadd.f32 0.0, %v3792
    %v3794 = vpop.f32.mrb[0].mxu0
    %3795 = vmatprep.mubr.bf16.mxu0 0
    %3796 = vmatmul.mubr.bf16.gmra.mrb[0].mxu0 %v376
    %v3797 = vpop.f32.mrb[0].mxu0
    %v3798 = vadd.f32 0.0, %v3797
    %v3799 = vpop.f32.mrb[0].mxu0
    %v3800 = vpop.f32.mrb[0].mxu0
    %v3801 = vadd.f32 0.0, %v3800
    %v3802 = vpop.f32.mrb[0].mxu0
    %3803 = vmatprep.mubr.bf16.mxu0 0
    %3804 = vmatmul.mubr.bf16.gmra.mrb[0].mxu0 %v379
    %v3805 = vpop.f32.mrb[0].mxu0
    %v3806 = vadd.f32 0.0, %v3805
    %v3807 = vpop.f32.mrb[0].mxu0
    %v3808 = vpop.f32.mrb[0].mxu0
    %v3809 = vadd.f32 0.0, %v3808
    %v3810 = vpop.f32.mrb[0].mxu0
    %3811 = vmatprep.mubr.bf16.mxu0 0
    %3812 = vmatmul.mubr.bf16.gmra.mrb[0].mxu0 %v382
    %v3813 = vpop.f32.mrb[0].mxu0
    %v3814 = vadd.f32 0.0, %v3813
    %v3815 = vpop.f32.mrb[0].mxu0
    %v3816 = vpop.f32.mrb[0].mxu0
    %v3817 = vadd.f32 0.0, %v3816
    %v3818 = vpop.f32.mrb[0].mxu0
    %3819 = vmatprep.mubr.bf16.mxu0 0
    %3820 = vmatmul.mubr.bf16.gmra.mrb[0].mxu0 %v385
    %v3821 = vpop.f32.mrb[0].mxu0
    %v3822 = vadd.f32 0.0, %v3821
    %v3823 = vpop.f32.mrb[0].mxu0
    %v3824 = vpop.f32.mrb[0].mxu0
    %v3825 = vadd.f32 0.0, %v3824
    %v3826 = vpop.f32.mrb[0].mxu0
    %3827 = vmatprep.mubr.bf16.mxu0 0
    %3828 = vmatmul.mubr.bf16.gmra.mrb[0].mxu0 %v388
    %v3829 = vpop.f32.mrb[0].mxu0
    %v3830 = vadd.f32 0.0, %v3829
    %v3831 = vpop.f32.mrb[0].mxu0
    %v3832 = vpop.f32.mrb[0].mxu0
    %v3833 = vadd.f32 0.0, %v3832
    %v3834 = vpop.f32.mrb[0].mxu0
    %3835 = vmatprep.mubr.bf16.mxu0 0
    %3836 = vmatmul.mubr.bf16.gmra.mrb[0].mxu0 %v391
    %v3837 = vpop.f32.mrb[0].mxu0
    %v3838 = vadd.f32 0.0, %v3837
    %v3839 = vpop.f32.mrb[0].mxu0
    %v3840 = vpop.f32.mrb[0].mxu0
    %v3841 = vadd.f32 0.0, %v3840
    %v3842 = vpop.f32.mrb[0].mxu0
    %3843 = vmatprep.mubr.bf16.mxu0 0
    %3844 = vmatmul.mubr.bf16.gmra.mrb[0].mxu0 %v394
    %v3845 = vpop.f32.mrb[0].mxu0
    %v3846 = vadd.f32 0.0, %v3845
    %v3847 = vpop.f32.mrb[0].mxu0
    %v3848 = vpop.f32.mrb[0].mxu0
    %v3849 = vadd.f32 0.0, %v3848
    %v3850 = vpop.f32.mrb[0].mxu0
    %3851 = vdwg.mxu0
    %v3852 = vadd.f32 %v3693, %v3790
    %v3853 = vadd.f32 %v3696, %v3793
    %v3854 = vadd.f32 %v3701, %v3798
    %v3855 = vadd.f32 %v3704, %v3801
    %v3856 = vadd.f32 %v3709, %v3806
    %v3857 = vadd.f32 %v3712, %v3809
    %v3858 = vadd.f32 %v3717, %v3814
    %v3859 = vadd.f32 %v3720, %v3817
    %v3860 = vadd.f32 %v3725, %v3822
    %v3861 = vadd.f32 %v3728, %v3825
    %v3862 = vadd.f32 %v3733, %v3830
    %v3863 = vadd.f32 %v3736, %v3833
    %v3864 = vadd.f32 %v3741, %v3838
    %v3865 = vadd.f32 %v3744, %v3841
    %v3866 = vadd.f32 %v3749, %v3846
    %v3867 = vadd.f32 %v3752, %v3849
    %v3868 = vxor.u32 %v3852, 2147483648
    %v3869 = vxor.u32 %v3853, 2147483648
    %v3870 = vxor.u32 %v3854, 2147483648
    %v3871 = vxor.u32 %v3855, 2147483648
    %v3872 = vmul.f32 %v3868, 1.442695
    %v3873 = vpow.pop %v3872
    %v3874 = vmul.f32 %v3869, 1.442695
    %v3875 = vpow.pop %v3874
    %v3876 = vmul.f32 %v3870, 1.442695
    %v3877 = vpow.pop %v3876
    %v3878 = vmul.f32 %v3871, 1.442695
    %v3879 = vpow.pop %v3878
    %v3880 = vadd.f32 %v3873, 1.0
    %v3881 = vadd.f32 %v3875, 1.0
    %v3882 = vadd.f32 %v3877, 1.0
    %v3883 = vadd.f32 %v3879, 1.0
    %v3884 = vrcp.pop %v3880
    %v3885 = vmul.f32 1.0, %v3884
    %v3886 = vrcp.pop %v3881
    %v3887 = vmul.f32 1.0, %v3886
    %v3888 = vrcp.pop %v3882
    %v3889 = vmul.f32 1.0, %v3888
    %v3890 = vrcp.pop %v3883
    %v3891 = vmul.f32 1.0, %v3890
    %v3892 = vxor.u32 %v3856, 2147483648
    %v3893 = vxor.u32 %v3857, 2147483648
    %v3894 = vxor.u32 %v3858, 2147483648
    %v3895 = vxor.u32 %v3859, 2147483648
    %v3896 = vmul.f32 %v3892, 1.442695
    %v3897 = vpow.pop %v3896
    %v3898 = vmul.f32 %v3893, 1.442695
    %v3899 = vpow.pop %v3898
    %v3900 = vmul.f32 %v3894, 1.442695
    %v3901 = vpow.pop %v3900
    %v3902 = vmul.f32 %v3895, 1.442695
    %v3903 = vpow.pop %v3902
    %v3904 = vadd.f32 %v3897, 1.0
    %v3905 = vadd.f32 %v3899, 1.0
    %v3906 = vadd.f32 %v3901, 1.0
    %v3907 = vadd.f32 %v3903, 1.0
    %v3908 = vrcp.pop %v3904
    %v3909 = vmul.f32 1.0, %v3908
    %v3910 = vrcp.pop %v3905
    %v3911 = vmul.f32 1.0, %v3910
    %v3912 = vrcp.pop %v3906
    %v3913 = vmul.f32 1.0, %v3912
    %v3914 = vrcp.pop %v3907
    %v3915 = vmul.f32 1.0, %v3914
    %v3916 = vtanh.pop %v3860
    %v3917 = vtanh.pop %v3861
    %v3918 = vtanh.pop %v3862
    %v3919 = vtanh.pop %v3863
    %v3920 = vxor.u32 %v3864, 2147483648
    %v3921 = vxor.u32 %v3865, 2147483648
    %v3922 = vxor.u32 %v3866, 2147483648
    %v3923 = vxor.u32 %v3867, 2147483648
    %v3924 = vmul.f32 %v3920, 1.442695
    %v3925 = vpow.pop %v3924
    %v3926 = vmul.f32 %v3921, 1.442695
    %v3927 = vpow.pop %v3926
    %v3928 = vmul.f32 %v3922, 1.442695
    %v3929 = vpow.pop %v3928
    %v3930 = vmul.f32 %v3923, 1.442695
    %v3931 = vpow.pop %v3930
    %v3932 = vadd.f32 %v3925, 1.0
    %v3933 = vadd.f32 %v3927, 1.0
    %v3934 = vadd.f32 %v3929, 1.0
    %v3935 = vadd.f32 %v3931, 1.0
    %v3936 = vrcp.pop %v3932
    %v3937 = vmul.f32 1.0, %v3936
    %v3938 = vrcp.pop %v3933
    %v3939 = vmul.f32 1.0, %v3938
    %v3940 = vrcp.pop %v3934
    %v3941 = vmul.f32 1.0, %v3940
    %v3942 = vrcp.pop %v3935
    %v3943 = vmul.f32 1.0, %v3942
    %v3944 = vmul.f32 %v3909, %v3331
    %v3945 = vmul.f32 %v3911, %v3332
    %v3946 = vmul.f32 %v3913, %v3333
    %v3947 = vmul.f32 %v3915, %v3334
    %v3948 = vmul.f32 %v3885, %v3916
    %v3949 = vmul.f32 %v3887, %v3917
    %v3950 = vmul.f32 %v3889, %v3918
    %v3951 = vmul.f32 %v3891, %v3919
    %v3952 = vadd.f32 %v3944, %v3948
    %v3953 = vadd.f32 %v3945, %v3949
    %v3954 = vadd.f32 %v3946, %v3950
    %v3955 = vadd.f32 %v3947, %v3951
    %v3956 = vtanh.pop %v3952
    %v3957 = vtanh.pop %v3953
    %v3958 = vtanh.pop %v3954
    %v3959 = vtanh.pop %v3955
    %v3960 = vmul.f32 %v3937, %v3956
    %v3961 = vmul.f32 %v3939, %v3957
    %v3962 = vmul.f32 %v3941, %v3958
    %v3963 = vmul.f32 %v3943, %v3959
    %v3964 = vpack.c.bf16 %v3961, %v3960
    %v3965 = vpack.c.bf16 %v3963, %v3962
    %3966 = vmatprep.subr.bf16.mxu0 0
    %3967 = vmatpush1.bf16.msra.mxu0 %v3964
    %3968 = vmatprep.subr.bf16.mxu0 0
    %3969 = vmatpush1.bf16.msra.mxu0 %v3965
    %3970 = vmatprep.subr.bf16.mxu0 0
    %3971 = vmatpush1.bf16.msra.mxu0 0
    %3972 = vmatprep.subr.bf16.mxu0 0
    %3973 = vmatpush1.bf16.msra.mxu0 0
    %3974 = vmatprep.subr.bf16.mxu0 0
    %3975 = vmatpush1.bf16.msra.mxu0 0
    %3976 = vmatprep.subr.bf16.mxu0 0
    %3977 = vmatpush1.bf16.msra.mxu0 0
    %3978 = vmatprep.subr.bf16.mxu0 0
    %3979 = vmatpush1.bf16.msra.mxu0 0
    %3980 = vmatprep.subr.bf16.mxu0 0
    %3981 = vmatpush1.bf16.msra.mxu0 0
    %3982 = vmatprep.subr.bf16.mxu0 0
    %3983 = vmatpush1.bf16.msra.mxu0 0
    %3984 = vmatprep.subr.bf16.mxu0 0
    %3985 = vmatpush1.bf16.msra.mxu0 0
    %3986 = vmatprep.subr.bf16.mxu0 0
    %3987 = vmatpush1.bf16.msra.mxu0 0
    %3988 = vmatprep.subr.bf16.mxu0 0
    %3989 = vmatpush1.bf16.msra.mxu0 0
    %3990 = vmatprep.subr.bf16.mxu0 0
    %3991 = vmatpush1.bf16.msra.mxu0 0
    %3992 = vmatprep.subr.bf16.mxu0 0
    %3993 = vmatpush1.bf16.msra.mxu0 0
    %3994 = vmatprep.subr.bf16.mxu0 0
    %3995 = vmatpush1.bf16.msra.mxu0 0
    %3996 = vmatprep.subr.bf16.mxu0 0
    %3997 = vmatpush1.bf16.msra.mxu0 0
    %3998 = vmatprep.mubr.bf16.mxu0 0
    %3999 = vmatmul.mubr.bf16.gmra.mrb[0].mxu0 %v760
    %v4000 = vpop.f32.mrb[0].mxu0
    %v4001 = vadd.f32 %v642, %v4000
    %v4002 = vpop.f32.mrb[0].mxu0
    %v4003 = vpop.f32.mrb[0].mxu0
    %v4004 = vadd.f32 %v647, %v4003
    %v4005 = vpop.f32.mrb[0].mxu0
    %4006 = vmatprep.mubr.bf16.mxu0 0
    %4007 = vmatmul.mubr.bf16.gmra.mrb[0].mxu0 %v763
    %v4008 = vpop.f32.mrb[0].mxu0
    %v4009 = vadd.f32 %v652, %v4008
    %v4010 = vpop.f32.mrb[0].mxu0
    %v4011 = vpop.f32.mrb[0].mxu0
    %v4012 = vadd.f32 %v657, %v4011
    %v4013 = vpop.f32.mrb[0].mxu0
    %4014 = vmatprep.mubr.bf16.mxu0 0
    %4015 = vmatmul.mubr.bf16.gmra.mrb[0].mxu0 %v766
    %v4016 = vpop.f32.mrb[0].mxu0
    %v4017 = vadd.f32 %v662, %v4016
    %v4018 = vpop.f32.mrb[0].mxu0
    %v4019 = vpop.f32.mrb[0].mxu0
    %v4020 = vadd.f32 %v667, %v4019
    %v4021 = vpop.f32.mrb[0].mxu0
    %4022 = vmatprep.mubr.bf16.mxu0 0
    %4023 = vmatmul.mubr.bf16.gmra.mrb[0].mxu0 %v769
    %v4024 = vpop.f32.mrb[0].mxu0
    %v4025 = vadd.f32 %v672, %v4024
    %v4026 = vpop.f32.mrb[0].mxu0
    %v4027 = vpop.f32.mrb[0].mxu0
    %v4028 = vadd.f32 %v677, %v4027
    %v4029 = vpop.f32.mrb[0].mxu0
    %4030 = vmatprep.mubr.bf16.mxu0 0
    %4031 = vmatmul.mubr.bf16.gmra.mrb[0].mxu0 %v772
    %v4032 = vpop.f32.mrb[0].mxu0
    %v4033 = vadd.f32 %v682, %v4032
    %v4034 = vpop.f32.mrb[0].mxu0
    %v4035 = vpop.f32.mrb[0].mxu0
    %v4036 = vadd.f32 %v687, %v4035
    %v4037 = vpop.f32.mrb[0].mxu0
    %4038 = vmatprep.mubr.bf16.mxu0 0
    %4039 = vmatmul.mubr.bf16.gmra.mrb[0].mxu0 %v775
    %v4040 = vpop.f32.mrb[0].mxu0
    %v4041 = vadd.f32 %v692, %v4040
    %v4042 = vpop.f32.mrb[0].mxu0
    %v4043 = vpop.f32.mrb[0].mxu0
    %v4044 = vadd.f32 %v697, %v4043
    %v4045 = vpop.f32.mrb[0].mxu0
    %4046 = vmatprep.mubr.bf16.mxu0 0
    %4047 = vmatmul.mubr.bf16.gmra.mrb[0].mxu0 %v778
    %v4048 = vpop.f32.mrb[0].mxu0
    %v4049 = vadd.f32 %v702, %v4048
    %v4050 = vpop.f32.mrb[0].mxu0
    %v4051 = vpop.f32.mrb[0].mxu0
    %v4052 = vadd.f32 %v707, %v4051
    %v4053 = vpop.f32.mrb[0].mxu0
    %4054 = vmatprep.mubr.bf16.mxu0 0
    %4055 = vmatmul.mubr.bf16.gmra.mrb[0].mxu0 %v781
    %v4056 = vpop.f32.mrb[0].mxu0
    %v4057 = vadd.f32 %v712, %v4056
    %v4058 = vpop.f32.mrb[0].mxu0
    %v4059 = vpop.f32.mrb[0].mxu0
    %v4060 = vadd.f32 %v717, %v4059
    %v4061 = vpop.f32.mrb[0].mxu0
    %4062 = vdwg.mxu0
    %v4063 = vpack.c.bf16 %v3650, %v3649
    %v4064 = vpack.c.bf16 %v3652, %v3651
    %4065 = vmatprep.subr.bf16.mxu0 0
    %4066 = vmatpush1.bf16.msra.mxu0 %v4063
    %4067 = vmatprep.subr.bf16.mxu0 0
    %4068 = vmatpush1.bf16.msra.mxu0 %v4064
    %4069 = vmatprep.subr.bf16.mxu0 0
    %4070 = vmatpush1.bf16.msra.mxu0 0
    %4071 = vmatprep.subr.bf16.mxu0 0
    %4072 = vmatpush1.bf16.msra.mxu0 0
    %4073 = vmatprep.subr.bf16.mxu0 0
    %4074 = vmatpush1.bf16.msra.mxu0 0
    %4075 = vmatprep.subr.bf16.mxu0 0
    %4076 = vmatpush1.bf16.msra.mxu0 0
    %4077 = vmatprep.subr.bf16.mxu0 0
    %4078 = vmatpush1.bf16.msra.mxu0 0
    %4079 = vmatprep.subr.bf16.mxu0 0
    %4080 = vmatpush1.bf16.msra.mxu0 0
    %4081 = vmatprep.subr.bf16.mxu0 0
    %4082 = vmatpush1.bf16.msra.mxu0 0
    %4083 = vmatprep.subr.bf16.mxu0 0
    %4084 = vmatpush1.bf16.msra.mxu0 0
    %4085 = vmatprep.subr.bf16.mxu0 0
    %4086 = vmatpush1.bf16.msra.mxu0 0
    %4087 = vmatprep.subr.bf16.mxu0 0
    %4088 = vmatpush1.bf16.msra.mxu0 0
    %4089 = vmatprep.subr.bf16.mxu0 0
    %4090 = vmatpush1.bf16.msra.mxu0 0
    %4091 = vmatprep.subr.bf16.mxu0 0
    %4092 = vmatpush1.bf16.msra.mxu0 0
    %4093 = vmatprep.subr.bf16.mxu0 0
    %4094 = vmatpush1.bf16.msra.mxu0 0
    %4095 = vmatprep.subr.bf16.mxu0 0
    %4096 = vmatpush1.bf16.msra.mxu0 0
    %4097 = vmatprep.mubr.bf16.mxu0 0
    %4098 = vmatmul.mubr.bf16.gmra.mrb[0].mxu0 %v937
    %v4099 = vpop.f32.mrb[0].mxu0
    %v4100 = vadd.f32 0.0, %v4099
    %v4101 = vpop.f32.mrb[0].mxu0
    %v4102 = vpop.f32.mrb[0].mxu0
    %v4103 = vadd.f32 0.0, %v4102
    %v4104 = vpop.f32.mrb[0].mxu0
    %4105 = vmatprep.mubr.bf16.mxu0 0
    %4106 = vmatmul.mubr.bf16.gmra.mrb[0].mxu0 %v940
    %v4107 = vpop.f32.mrb[0].mxu0
    %v4108 = vadd.f32 0.0, %v4107
    %v4109 = vpop.f32.mrb[0].mxu0
    %v4110 = vpop.f32.mrb[0].mxu0
    %v4111 = vadd.f32 0.0, %v4110
    %v4112 = vpop.f32.mrb[0].mxu0
    %4113 = vmatprep.mubr.bf16.mxu0 0
    %4114 = vmatmul.mubr.bf16.gmra.mrb[0].mxu0 %v943
    %v4115 = vpop.f32.mrb[0].mxu0
    %v4116 = vadd.f32 0.0, %v4115
    %v4117 = vpop.f32.mrb[0].mxu0
    %v4118 = vpop.f32.mrb[0].mxu0
    %v4119 = vadd.f32 0.0, %v4118
    %v4120 = vpop.f32.mrb[0].mxu0
    %4121 = vmatprep.mubr.bf16.mxu0 0
    %4122 = vmatmul.mubr.bf16.gmra.mrb[0].mxu0 %v946
    %v4123 = vpop.f32.mrb[0].mxu0
    %v4124 = vadd.f32 0.0, %v4123
    %v4125 = vpop.f32.mrb[0].mxu0
    %v4126 = vpop.f32.mrb[0].mxu0
    %v4127 = vadd.f32 0.0, %v4126
    %v4128 = vpop.f32.mrb[0].mxu0
    %4129 = vmatprep.mubr.bf16.mxu0 0
    %4130 = vmatmul.mubr.bf16.gmra.mrb[0].mxu0 %v949
    %v4131 = vpop.f32.mrb[0].mxu0
    %v4132 = vadd.f32 0.0, %v4131
    %v4133 = vpop.f32.mrb[0].mxu0
    %v4134 = vpop.f32.mrb[0].mxu0
    %v4135 = vadd.f32 0.0, %v4134
    %v4136 = vpop.f32.mrb[0].mxu0
    %4137 = vmatprep.mubr.bf16.mxu0 0
    %4138 = vmatmul.mubr.bf16.gmra.mrb[0].mxu0 %v952
    %v4139 = vpop.f32.mrb[0].mxu0
    %v4140 = vadd.f32 0.0, %v4139
    %v4141 = vpop.f32.mrb[0].mxu0
    %v4142 = vpop.f32.mrb[0].mxu0
    %v4143 = vadd.f32 0.0, %v4142
    %v4144 = vpop.f32.mrb[0].mxu0
    %4145 = vmatprep.mubr.bf16.mxu0 0
    %4146 = vmatmul.mubr.bf16.gmra.mrb[0].mxu0 %v955
    %v4147 = vpop.f32.mrb[0].mxu0
    %v4148 = vadd.f32 0.0, %v4147
    %v4149 = vpop.f32.mrb[0].mxu0
    %v4150 = vpop.f32.mrb[0].mxu0
    %v4151 = vadd.f32 0.0, %v4150
    %v4152 = vpop.f32.mrb[0].mxu0
    %4153 = vmatprep.mubr.bf16.mxu0 0
    %4154 = vmatmul.mubr.bf16.gmra.mrb[0].mxu0 %v958
    %v4155 = vpop.f32.mrb[0].mxu0
    %v4156 = vadd.f32 0.0, %v4155
    %v4157 = vpop.f32.mrb[0].mxu0
    %v4158 = vpop.f32.mrb[0].mxu0
    %v4159 = vadd.f32 0.0, %v4158
    %v4160 = vpop.f32.mrb[0].mxu0
    %4161 = vdwg.mxu0
    %v4162 = vadd.f32 %v4001, %v4100
    %v4163 = vadd.f32 %v4004, %v4103
    %v4164 = vadd.f32 %v4009, %v4108
    %v4165 = vadd.f32 %v4012, %v4111
    %v4166 = vadd.f32 %v4017, %v4116
    %v4167 = vadd.f32 %v4020, %v4119
    %v4168 = vadd.f32 %v4025, %v4124
    %v4169 = vadd.f32 %v4028, %v4127
    %v4170 = vadd.f32 %v4033, %v4132
    %v4171 = vadd.f32 %v4036, %v4135
    %v4172 = vadd.f32 %v4041, %v4140
    %v4173 = vadd.f32 %v4044, %v4143
    %v4174 = vadd.f32 %v4049, %v4148
    %v4175 = vadd.f32 %v4052, %v4151
    %v4176 = vadd.f32 %v4057, %v4156
    %v4177 = vadd.f32 %v4060, %v4159
    %v4178 = vxor.u32 %v4162, 2147483648
    %v4179 = vxor.u32 %v4163, 2147483648
    %v4180 = vxor.u32 %v4164, 2147483648
    %v4181 = vxor.u32 %v4165, 2147483648
    %v4182 = vmul.f32 %v4178, 1.442695
    %v4183 = vpow.pop %v4182
    %v4184 = vmul.f32 %v4179, 1.442695
    %v4185 = vpow.pop %v4184
    %v4186 = vmul.f32 %v4180, 1.442695
    %v4187 = vpow.pop %v4186
    %v4188 = vmul.f32 %v4181, 1.442695
    %v4189 = vpow.pop %v4188
    %v4190 = vadd.f32 %v4183, 1.0
    %v4191 = vadd.f32 %v4185, 1.0
    %v4192 = vadd.f32 %v4187, 1.0
    %v4193 = vadd.f32 %v4189, 1.0
    %v4194 = vrcp.pop %v4190
    %v4195 = vmul.f32 1.0, %v4194
    %v4196 = vrcp.pop %v4191
    %v4197 = vmul.f32 1.0, %v4196
    %v4198 = vrcp.pop %v4192
    %v4199 = vmul.f32 1.0, %v4198
    %v4200 = vrcp.pop %v4193
    %v4201 = vmul.f32 1.0, %v4200
    %v4202 = vxor.u32 %v4166, 2147483648
    %v4203 = vxor.u32 %v4167, 2147483648
    %v4204 = vxor.u32 %v4168, 2147483648
    %v4205 = vxor.u32 %v4169, 2147483648
    %v4206 = vmul.f32 %v4202, 1.442695
    %v4207 = vpow.pop %v4206
    %v4208 = vmul.f32 %v4203, 1.442695
    %v4209 = vpow.pop %v4208
    %v4210 = vmul.f32 %v4204, 1.442695
    %v4211 = vpow.pop %v4210
    %v4212 = vmul.f32 %v4205, 1.442695
    %v4213 = vpow.pop %v4212
    %v4214 = vadd.f32 %v4207, 1.0
    %v4215 = vadd.f32 %v4209, 1.0
    %v4216 = vadd.f32 %v4211, 1.0
    %v4217 = vadd.f32 %v4213, 1.0
    %v4218 = vrcp.pop %v4214
    %v4219 = vmul.f32 1.0, %v4218
    %v4220 = vrcp.pop %v4215
    %v4221 = vmul.f32 1.0, %v4220
    %v4222 = vrcp.pop %v4216
    %v4223 = vmul.f32 1.0, %v4222
    %v4224 = vrcp.pop %v4217
    %v4225 = vmul.f32 1.0, %v4224
    %v4226 = vtanh.pop %v4170
    %v4227 = vtanh.pop %v4171
    %v4228 = vtanh.pop %v4172
    %v4229 = vtanh.pop %v4173
    %v4230 = vxor.u32 %v4174, 2147483648
    %v4231 = vxor.u32 %v4175, 2147483648
    %v4232 = vxor.u32 %v4176, 2147483648
    %v4233 = vxor.u32 %v4177, 2147483648
    %v4234 = vmul.f32 %v4230, 1.442695
    %v4235 = vpow.pop %v4234
    %v4236 = vmul.f32 %v4231, 1.442695
    %v4237 = vpow.pop %v4236
    %v4238 = vmul.f32 %v4232, 1.442695
    %v4239 = vpow.pop %v4238
    %v4240 = vmul.f32 %v4233, 1.442695
    %v4241 = vpow.pop %v4240
    %v4242 = vadd.f32 %v4235, 1.0
    %v4243 = vadd.f32 %v4237, 1.0
    %v4244 = vadd.f32 %v4239, 1.0
    %v4245 = vadd.f32 %v4241, 1.0
    %v4246 = vrcp.pop %v4242
    %v4247 = vmul.f32 1.0, %v4246
    %v4248 = vrcp.pop %v4243
    %v4249 = vmul.f32 1.0, %v4248
    %v4250 = vrcp.pop %v4244
    %v4251 = vmul.f32 1.0, %v4250
    %v4252 = vrcp.pop %v4245
    %v4253 = vmul.f32 1.0, %v4252
    %v4254 = vmul.f32 %v4219, %v3641
    %v4255 = vmul.f32 %v4221, %v3642
    %v4256 = vmul.f32 %v4223, %v3643
    %v4257 = vmul.f32 %v4225, %v3644
    %v4258 = vmul.f32 %v4195, %v4226
    %v4259 = vmul.f32 %v4197, %v4227
    %v4260 = vmul.f32 %v4199, %v4228
    %v4261 = vmul.f32 %v4201, %v4229
    %v4262 = vadd.f32 %v4254, %v4258
    %v4263 = vadd.f32 %v4255, %v4259
    %v4264 = vadd.f32 %v4256, %v4260
    %v4265 = vadd.f32 %v4257, %v4261
    %v4266 = vtanh.pop %v4262
    %v4267 = vtanh.pop %v4263
    %v4268 = vtanh.pop %v4264
    %v4269 = vtanh.pop %v4265
    %v4270 = vmul.f32 %v4247, %v4266
    %v4271 = vmul.f32 %v4249, %v4267
    %v4272 = vmul.f32 %v4251, %v4268
    %v4273 = vmul.f32 %v4253, %v4269
    %s4274 = scalar_lea.vmem %s0, 12
    %v4275 = vld [vmem:[%s4274] sm:$0x3]
    %v4277 = vsel %vm214, %v4275, 0
    %4279 = vmatprep.subr.bf16.mxu0 0
    %4280 = vmatpush1.bf16.msra.mxu0 %v4277
    %4281 = vmatprep.subr.bf16.mxu0 0
    %4282 = vmatpush1.bf16.msra.mxu0 0
    %4283 = vmatprep.subr.bf16.mxu0 0
    %4284 = vmatpush1.bf16.msra.mxu0 0
    %4285 = vmatprep.subr.bf16.mxu0 0
    %4286 = vmatpush1.bf16.msra.mxu0 0
    %4287 = vmatprep.subr.bf16.mxu0 0
    %4288 = vmatpush1.bf16.msra.mxu0 0
    %4289 = vmatprep.subr.bf16.mxu0 0
    %4290 = vmatpush1.bf16.msra.mxu0 0
    %4291 = vmatprep.subr.bf16.mxu0 0
    %4292 = vmatpush1.bf16.msra.mxu0 0
    %4293 = vmatprep.subr.bf16.mxu0 0
    %4294 = vmatpush1.bf16.msra.mxu0 0
    %4295 = vmatprep.subr.bf16.mxu0 0
    %4296 = vmatpush1.bf16.msra.mxu0 0
    %4297 = vmatprep.subr.bf16.mxu0 0
    %4298 = vmatpush1.bf16.msra.mxu0 0
    %4299 = vmatprep.subr.bf16.mxu0 0
    %4300 = vmatpush1.bf16.msra.mxu0 0
    %4301 = vmatprep.subr.bf16.mxu0 0
    %4302 = vmatpush1.bf16.msra.mxu0 0
    %4303 = vmatprep.subr.bf16.mxu0 0
    %4304 = vmatpush1.bf16.msra.mxu0 0
    %4305 = vmatprep.subr.bf16.mxu0 0
    %4306 = vmatpush1.bf16.msra.mxu0 0
    %4307 = vmatprep.subr.bf16.mxu0 0
    %4308 = vmatpush1.bf16.msra.mxu0 0
    %4309 = vmatprep.subr.bf16.mxu0 0
    %4310 = vmatpush1.bf16.msra.mxu0 0
    %4311 = vmatprep.mubr.bf16.mxu0 0
    %4312 = vmatmul.mubr.bf16.gmra.mrb[0].mxu0 %v191
    %v4313 = vpop.f32.mrb[0].mxu0
    %v4314 = vadd.f32 %v72, %v4313
    %v4315 = vpop.f32.mrb[0].mxu0
    %v4316 = vpop.f32.mrb[0].mxu0
    %v4317 = vadd.f32 %v77, %v4316
    %v4318 = vpop.f32.mrb[0].mxu0
    %4319 = vmatprep.mubr.bf16.mxu0 0
    %4320 = vmatmul.mubr.bf16.gmra.mrb[0].mxu0 %v194
    %v4321 = vpop.f32.mrb[0].mxu0
    %v4322 = vadd.f32 %v82, %v4321
    %v4323 = vpop.f32.mrb[0].mxu0
    %v4324 = vpop.f32.mrb[0].mxu0
    %v4325 = vadd.f32 %v87, %v4324
    %v4326 = vpop.f32.mrb[0].mxu0
    %4327 = vmatprep.mubr.bf16.mxu0 0
    %4328 = vmatmul.mubr.bf16.gmra.mrb[0].mxu0 %v197
    %v4329 = vpop.f32.mrb[0].mxu0
    %v4330 = vadd.f32 %v92, %v4329
    %v4331 = vpop.f32.mrb[0].mxu0
    %v4332 = vpop.f32.mrb[0].mxu0
    %v4333 = vadd.f32 %v97, %v4332
    %v4334 = vpop.f32.mrb[0].mxu0
    %4335 = vmatprep.mubr.bf16.mxu0 0
    %4336 = vmatmul.mubr.bf16.gmra.mrb[0].mxu0 %v200
    %v4337 = vpop.f32.mrb[0].mxu0
    %v4338 = vadd.f32 %v102, %v4337
    %v4339 = vpop.f32.mrb[0].mxu0
    %v4340 = vpop.f32.mrb[0].mxu0
    %v4341 = vadd.f32 %v107, %v4340
    %v4342 = vpop.f32.mrb[0].mxu0
    %4343 = vmatprep.mubr.bf16.mxu0 0
    %4344 = vmatmul.mubr.bf16.gmra.mrb[0].mxu0 %v203
    %v4345 = vpop.f32.mrb[0].mxu0
    %v4346 = vadd.f32 %v112, %v4345
    %v4347 = vpop.f32.mrb[0].mxu0
    %v4348 = vpop.f32.mrb[0].mxu0
    %v4349 = vadd.f32 %v117, %v4348
    %v4350 = vpop.f32.mrb[0].mxu0
    %4351 = vmatprep.mubr.bf16.mxu0 0
    %4352 = vmatmul.mubr.bf16.gmra.mrb[0].mxu0 %v206
    %v4353 = vpop.f32.mrb[0].mxu0
    %v4354 = vadd.f32 %v122, %v4353
    %v4355 = vpop.f32.mrb[0].mxu0
    %v4356 = vpop.f32.mrb[0].mxu0
    %v4357 = vadd.f32 %v127, %v4356
    %v4358 = vpop.f32.mrb[0].mxu0
    %4359 = vmatprep.mubr.bf16.mxu0 0
    %4360 = vmatmul.mubr.bf16.gmra.mrb[0].mxu0 %v209
    %v4361 = vpop.f32.mrb[0].mxu0
    %v4362 = vadd.f32 %v132, %v4361
    %v4363 = vpop.f32.mrb[0].mxu0
    %v4364 = vpop.f32.mrb[0].mxu0
    %v4365 = vadd.f32 %v137, %v4364
    %v4366 = vpop.f32.mrb[0].mxu0
    %4367 = vmatprep.mubr.bf16.mxu0 0
    %4368 = vmatmul.mubr.bf16.gmra.mrb[0].mxu0 %v212
    %v4369 = vpop.f32.mrb[0].mxu0
    %v4370 = vadd.f32 %v142, %v4369
    %v4371 = vpop.f32.mrb[0].mxu0
    %v4372 = vpop.f32.mrb[0].mxu0
    %v4373 = vadd.f32 %v147, %v4372
    %v4374 = vpop.f32.mrb[0].mxu0
    %4375 = vdwg.mxu0
    %4376 = vmatprep.subr.bf16.mxu0 0
    %4377 = vmatpush1.bf16.msra.mxu0 %v3964
    %4378 = vmatprep.subr.bf16.mxu0 0
    %4379 = vmatpush1.bf16.msra.mxu0 %v3965
    %4380 = vmatprep.subr.bf16.mxu0 0
    %4381 = vmatpush1.bf16.msra.mxu0 0
    %4382 = vmatprep.subr.bf16.mxu0 0
    %4383 = vmatpush1.bf16.msra.mxu0 0
    %4384 = vmatprep.subr.bf16.mxu0 0
    %4385 = vmatpush1.bf16.msra.mxu0 0
    %4386 = vmatprep.subr.bf16.mxu0 0
    %4387 = vmatpush1.bf16.msra.mxu0 0
    %4388 = vmatprep.subr.bf16.mxu0 0
    %4389 = vmatpush1.bf16.msra.mxu0 0
    %4390 = vmatprep.subr.bf16.mxu0 0
    %4391 = vmatpush1.bf16.msra.mxu0 0
    %4392 = vmatprep.subr.bf16.mxu0 0
    %4393 = vmatpush1.bf16.msra.mxu0 0
    %4394 = vmatprep.subr.bf16.mxu0 0
    %4395 = vmatpush1.bf16.msra.mxu0 0
    %4396 = vmatprep.subr.bf16.mxu0 0
    %4397 = vmatpush1.bf16.msra.mxu0 0
    %4398 = vmatprep.subr.bf16.mxu0 0
    %4399 = vmatpush1.bf16.msra.mxu0 0
    %4400 = vmatprep.subr.bf16.mxu0 0
    %4401 = vmatpush1.bf16.msra.mxu0 0
    %4402 = vmatprep.subr.bf16.mxu0 0
    %4403 = vmatpush1.bf16.msra.mxu0 0
    %4404 = vmatprep.subr.bf16.mxu0 0
    %4405 = vmatpush1.bf16.msra.mxu0 0
    %4406 = vmatprep.subr.bf16.mxu0 0
    %4407 = vmatpush1.bf16.msra.mxu0 0
    %4408 = vmatprep.mubr.bf16.mxu0 0
    %4409 = vmatmul.mubr.bf16.gmra.mrb[0].mxu0 %v373
    %v4410 = vpop.f32.mrb[0].mxu0
    %v4411 = vadd.f32 0.0, %v4410
    %v4412 = vpop.f32.mrb[0].mxu0
    %v4413 = vpop.f32.mrb[0].mxu0
    %v4414 = vadd.f32 0.0, %v4413
    %v4415 = vpop.f32.mrb[0].mxu0
    %4416 = vmatprep.mubr.bf16.mxu0 0
    %4417 = vmatmul.mubr.bf16.gmra.mrb[0].mxu0 %v376
    %v4418 = vpop.f32.mrb[0].mxu0
    %v4419 = vadd.f32 0.0, %v4418
    %v4420 = vpop.f32.mrb[0].mxu0
    %v4421 = vpop.f32.mrb[0].mxu0
    %v4422 = vadd.f32 0.0, %v4421
    %v4423 = vpop.f32.mrb[0].mxu0
    %4424 = vmatprep.mubr.bf16.mxu0 0
    %4425 = vmatmul.mubr.bf16.gmra.mrb[0].mxu0 %v379
    %v4426 = vpop.f32.mrb[0].mxu0
    %v4427 = vadd.f32 0.0, %v4426
    %v4428 = vpop.f32.mrb[0].mxu0
    %v4429 = vpop.f32.mrb[0].mxu0
    %v4430 = vadd.f32 0.0, %v4429
    %v4431 = vpop.f32.mrb[0].mxu0
    %4432 = vmatprep.mubr.bf16.mxu0 0
    %4433 = vmatmul.mubr.bf16.gmra.mrb[0].mxu0 %v382
    %v4434 = vpop.f32.mrb[0].mxu0
    %v4435 = vadd.f32 0.0, %v4434
    %v4436 = vpop.f32.mrb[0].mxu0
    %v4437 = vpop.f32.mrb[0].mxu0
    %v4438 = vadd.f32 0.0, %v4437
    %v4439 = vpop.f32.mrb[0].mxu0
    %4440 = vmatprep.mubr.bf16.mxu0 0
    %4441 = vmatmul.mubr.bf16.gmra.mrb[0].mxu0 %v385
    %v4442 = vpop.f32.mrb[0].mxu0
    %v4443 = vadd.f32 0.0, %v4442
    %v4444 = vpop.f32.mrb[0].mxu0
    %v4445 = vpop.f32.mrb[0].mxu0
    %v4446 = vadd.f32 0.0, %v4445
    %v4447 = vpop.f32.mrb[0].mxu0
    %4448 = vmatprep.mubr.bf16.mxu0 0
    %4449 = vmatmul.mubr.bf16.gmra.mrb[0].mxu0 %v388
    %v4450 = vpop.f32.mrb[0].mxu0
    %v4451 = vadd.f32 0.0, %v4450
    %v4452 = vpop.f32.mrb[0].mxu0
    %v4453 = vpop.f32.mrb[0].mxu0
    %v4454 = vadd.f32 0.0, %v4453
    %v4455 = vpop.f32.mrb[0].mxu0
    %4456 = vmatprep.mubr.bf16.mxu0 0
    %4457 = vmatmul.mubr.bf16.gmra.mrb[0].mxu0 %v391
    %v4458 = vpop.f32.mrb[0].mxu0
    %v4459 = vadd.f32 0.0, %v4458
    %v4460 = vpop.f32.mrb[0].mxu0
    %v4461 = vpop.f32.mrb[0].mxu0
    %v4462 = vadd.f32 0.0, %v4461
    %v4463 = vpop.f32.mrb[0].mxu0
    %4464 = vmatprep.mubr.bf16.mxu0 0
    %4465 = vmatmul.mubr.bf16.gmra.mrb[0].mxu0 %v394
    %v4466 = vpop.f32.mrb[0].mxu0
    %v4467 = vadd.f32 0.0, %v4466
    %v4468 = vpop.f32.mrb[0].mxu0
    %v4469 = vpop.f32.mrb[0].mxu0
    %v4470 = vadd.f32 0.0, %v4469
    %v4471 = vpop.f32.mrb[0].mxu0
    %4472 = vdwg.mxu0
    %v4473 = vadd.f32 %v4314, %v4411
    %v4474 = vadd.f32 %v4317, %v4414
    %v4475 = vadd.f32 %v4322, %v4419
    %v4476 = vadd.f32 %v4325, %v4422
    %v4477 = vadd.f32 %v4330, %v4427
    %v4478 = vadd.f32 %v4333, %v4430
    %v4479 = vadd.f32 %v4338, %v4435
    %v4480 = vadd.f32 %v4341, %v4438
    %v4481 = vadd.f32 %v4346, %v4443
    %v4482 = vadd.f32 %v4349, %v4446
    %v4483 = vadd.f32 %v4354, %v4451
    %v4484 = vadd.f32 %v4357, %v4454
    %v4485 = vadd.f32 %v4362, %v4459
    %v4486 = vadd.f32 %v4365, %v4462
    %v4487 = vadd.f32 %v4370, %v4467
    %v4488 = vadd.f32 %v4373, %v4470
    %v4489 = vxor.u32 %v4473, 2147483648
    %v4490 = vxor.u32 %v4474, 2147483648
    %v4491 = vxor.u32 %v4475, 2147483648
    %v4492 = vxor.u32 %v4476, 2147483648
    %v4493 = vmul.f32 %v4489, 1.442695
    %v4494 = vpow.pop %v4493
    %v4495 = vmul.f32 %v4490, 1.442695
    %v4496 = vpow.pop %v4495
    %v4497 = vmul.f32 %v4491, 1.442695
    %v4498 = vpow.pop %v4497
    %v4499 = vmul.f32 %v4492, 1.442695
    %v4500 = vpow.pop %v4499
    %v4501 = vadd.f32 %v4494, 1.0
    %v4502 = vadd.f32 %v4496, 1.0
    %v4503 = vadd.f32 %v4498, 1.0
    %v4504 = vadd.f32 %v4500, 1.0
    %v4505 = vrcp.pop %v4501
    %v4506 = vmul.f32 1.0, %v4505
    %v4507 = vrcp.pop %v4502
    %v4508 = vmul.f32 1.0, %v4507
    %v4509 = vrcp.pop %v4503
    %v4510 = vmul.f32 1.0, %v4509
    %v4511 = vrcp.pop %v4504
    %v4512 = vmul.f32 1.0, %v4511
    %v4513 = vxor.u32 %v4477, 2147483648
    %v4514 = vxor.u32 %v4478, 2147483648
    %v4515 = vxor.u32 %v4479, 2147483648
    %v4516 = vxor.u32 %v4480, 2147483648
    %v4517 = vmul.f32 %v4513, 1.442695
    %v4518 = vpow.pop %v4517
    %v4519 = vmul.f32 %v4514, 1.442695
    %v4520 = vpow.pop %v4519
    %v4521 = vmul.f32 %v4515, 1.442695
    %v4522 = vpow.pop %v4521
    %v4523 = vmul.f32 %v4516, 1.442695
    %v4524 = vpow.pop %v4523
    %v4525 = vadd.f32 %v4518, 1.0
    %v4526 = vadd.f32 %v4520, 1.0
    %v4527 = vadd.f32 %v4522, 1.0
    %v4528 = vadd.f32 %v4524, 1.0
    %v4529 = vrcp.pop %v4525
    %v4530 = vmul.f32 1.0, %v4529
    %v4531 = vrcp.pop %v4526
    %v4532 = vmul.f32 1.0, %v4531
    %v4533 = vrcp.pop %v4527
    %v4534 = vmul.f32 1.0, %v4533
    %v4535 = vrcp.pop %v4528
    %v4536 = vmul.f32 1.0, %v4535
    %v4537 = vtanh.pop %v4481
    %v4538 = vtanh.pop %v4482
    %v4539 = vtanh.pop %v4483
    %v4540 = vtanh.pop %v4484
    %v4541 = vxor.u32 %v4485, 2147483648
    %v4542 = vxor.u32 %v4486, 2147483648
    %v4543 = vxor.u32 %v4487, 2147483648
    %v4544 = vxor.u32 %v4488, 2147483648
    %v4545 = vmul.f32 %v4541, 1.442695
    %v4546 = vpow.pop %v4545
    %v4547 = vmul.f32 %v4542, 1.442695
    %v4548 = vpow.pop %v4547
    %v4549 = vmul.f32 %v4543, 1.442695
    %v4550 = vpow.pop %v4549
    %v4551 = vmul.f32 %v4544, 1.442695
    %v4552 = vpow.pop %v4551
    %v4553 = vadd.f32 %v4546, 1.0
    %v4554 = vadd.f32 %v4548, 1.0
    %v4555 = vadd.f32 %v4550, 1.0
    %v4556 = vadd.f32 %v4552, 1.0
    %v4557 = vrcp.pop %v4553
    %v4558 = vmul.f32 1.0, %v4557
    %v4559 = vrcp.pop %v4554
    %v4560 = vmul.f32 1.0, %v4559
    %v4561 = vrcp.pop %v4555
    %v4562 = vmul.f32 1.0, %v4561
    %v4563 = vrcp.pop %v4556
    %v4564 = vmul.f32 1.0, %v4563
    %v4565 = vmul.f32 %v4530, %v3952
    %v4566 = vmul.f32 %v4532, %v3953
    %v4567 = vmul.f32 %v4534, %v3954
    %v4568 = vmul.f32 %v4536, %v3955
    %v4569 = vmul.f32 %v4506, %v4537
    %v4570 = vmul.f32 %v4508, %v4538
    %v4571 = vmul.f32 %v4510, %v4539
    %v4572 = vmul.f32 %v4512, %v4540
    %v4573 = vadd.f32 %v4565, %v4569
    %v4574 = vadd.f32 %v4566, %v4570
    %v4575 = vadd.f32 %v4567, %v4571
    %v4576 = vadd.f32 %v4568, %v4572
    %v4577 = vtanh.pop %v4573
    %v4578 = vtanh.pop %v4574
    %v4579 = vtanh.pop %v4575
    %v4580 = vtanh.pop %v4576
    %v4581 = vmul.f32 %v4558, %v4577
    %v4582 = vmul.f32 %v4560, %v4578
    %v4583 = vmul.f32 %v4562, %v4579
    %v4584 = vmul.f32 %v4564, %v4580
    %v4585 = vpack.c.bf16 %v4582, %v4581
    %v4586 = vpack.c.bf16 %v4584, %v4583
    %4587 = vmatprep.subr.bf16.mxu0 0
    %4588 = vmatpush1.bf16.msra.mxu0 %v4585
    %4589 = vmatprep.subr.bf16.mxu0 0
    %4590 = vmatpush1.bf16.msra.mxu0 %v4586
    %4591 = vmatprep.subr.bf16.mxu0 0
    %4592 = vmatpush1.bf16.msra.mxu0 0
    %4593 = vmatprep.subr.bf16.mxu0 0
    %4594 = vmatpush1.bf16.msra.mxu0 0
    %4595 = vmatprep.subr.bf16.mxu0 0
    %4596 = vmatpush1.bf16.msra.mxu0 0
    %4597 = vmatprep.subr.bf16.mxu0 0
    %4598 = vmatpush1.bf16.msra.mxu0 0
    %4599 = vmatprep.subr.bf16.mxu0 0
    %4600 = vmatpush1.bf16.msra.mxu0 0
    %4601 = vmatprep.subr.bf16.mxu0 0
    %4602 = vmatpush1.bf16.msra.mxu0 0
    %4603 = vmatprep.subr.bf16.mxu0 0
    %4604 = vmatpush1.bf16.msra.mxu0 0
    %4605 = vmatprep.subr.bf16.mxu0 0
    %4606 = vmatpush1.bf16.msra.mxu0 0
    %4607 = vmatprep.subr.bf16.mxu0 0
    %4608 = vmatpush1.bf16.msra.mxu0 0
    %4609 = vmatprep.subr.bf16.mxu0 0
    %4610 = vmatpush1.bf16.msra.mxu0 0
    %4611 = vmatprep.subr.bf16.mxu0 0
    %4612 = vmatpush1.bf16.msra.mxu0 0
    %4613 = vmatprep.subr.bf16.mxu0 0
    %4614 = vmatpush1.bf16.msra.mxu0 0
    %4615 = vmatprep.subr.bf16.mxu0 0
    %4616 = vmatpush1.bf16.msra.mxu0 0
    %4617 = vmatprep.subr.bf16.mxu0 0
    %4618 = vmatpush1.bf16.msra.mxu0 0
    %4619 = vmatprep.mubr.bf16.mxu0 0
    %4620 = vmatmul.mubr.bf16.gmra.mrb[0].mxu0 %v760
    %v4621 = vpop.f32.mrb[0].mxu0
    %v4622 = vadd.f32 %v642, %v4621
    %v4623 = vpop.f32.mrb[0].mxu0
    %v4624 = vpop.f32.mrb[0].mxu0
    %v4625 = vadd.f32 %v647, %v4624
    %v4626 = vpop.f32.mrb[0].mxu0
    %4627 = vmatprep.mubr.bf16.mxu0 0
    %4628 = vmatmul.mubr.bf16.gmra.mrb[0].mxu0 %v763
    %v4629 = vpop.f32.mrb[0].mxu0
    %v4630 = vadd.f32 %v652, %v4629
    %v4631 = vpop.f32.mrb[0].mxu0
    %v4632 = vpop.f32.mrb[0].mxu0
    %v4633 = vadd.f32 %v657, %v4632
    %v4634 = vpop.f32.mrb[0].mxu0
    %4635 = vmatprep.mubr.bf16.mxu0 0
    %4636 = vmatmul.mubr.bf16.gmra.mrb[0].mxu0 %v766
    %v4637 = vpop.f32.mrb[0].mxu0
    %v4638 = vadd.f32 %v662, %v4637
    %v4639 = vpop.f32.mrb[0].mxu0
    %v4640 = vpop.f32.mrb[0].mxu0
    %v4641 = vadd.f32 %v667, %v4640
    %v4642 = vpop.f32.mrb[0].mxu0
    %4643 = vmatprep.mubr.bf16.mxu0 0
    %4644 = vmatmul.mubr.bf16.gmra.mrb[0].mxu0 %v769
    %v4645 = vpop.f32.mrb[0].mxu0
    %v4646 = vadd.f32 %v672, %v4645
    %v4647 = vpop.f32.mrb[0].mxu0
    %v4648 = vpop.f32.mrb[0].mxu0
    %v4649 = vadd.f32 %v677, %v4648
    %v4650 = vpop.f32.mrb[0].mxu0
    %4651 = vmatprep.mubr.bf16.mxu0 0
    %4652 = vmatmul.mubr.bf16.gmra.mrb[0].mxu0 %v772
    %v4653 = vpop.f32.mrb[0].mxu0
    %v4654 = vadd.f32 %v682, %v4653
    %v4655 = vpop.f32.mrb[0].mxu0
    %v4656 = vpop.f32.mrb[0].mxu0
    %v4657 = vadd.f32 %v687, %v4656
    %v4658 = vpop.f32.mrb[0].mxu0
    %4659 = vmatprep.mubr.bf16.mxu0 0
    %4660 = vmatmul.mubr.bf16.gmra.mrb[0].mxu0 %v775
    %v4661 = vpop.f32.mrb[0].mxu0
    %v4662 = vadd.f32 %v692, %v4661
    %v4663 = vpop.f32.mrb[0].mxu0
    %v4664 = vpop.f32.mrb[0].mxu0
    %v4665 = vadd.f32 %v697, %v4664
    %v4666 = vpop.f32.mrb[0].mxu0
    %4667 = vmatprep.mubr.bf16.mxu0 0
    %4668 = vmatmul.mubr.bf16.gmra.mrb[0].mxu0 %v778
    %v4669 = vpop.f32.mrb[0].mxu0
    %v4670 = vadd.f32 %v702, %v4669
    %v4671 = vpop.f32.mrb[0].mxu0
    %v4672 = vpop.f32.mrb[0].mxu0
    %v4673 = vadd.f32 %v707, %v4672
    %v4674 = vpop.f32.mrb[0].mxu0
    %4675 = vmatprep.mubr.bf16.mxu0 0
    %4676 = vmatmul.mubr.bf16.gmra.mrb[0].mxu0 %v781
    %v4677 = vpop.f32.mrb[0].mxu0
    %v4678 = vadd.f32 %v712, %v4677
    %v4679 = vpop.f32.mrb[0].mxu0
    %v4680 = vpop.f32.mrb[0].mxu0
    %v4681 = vadd.f32 %v717, %v4680
    %v4682 = vpop.f32.mrb[0].mxu0
    %4683 = vdwg.mxu0
    %v4684 = vpack.c.bf16 %v4271, %v4270
    %v4685 = vpack.c.bf16 %v4273, %v4272
    %4686 = vmatprep.subr.bf16.mxu0 0
    %4687 = vmatpush1.bf16.msra.mxu0 %v4684
    %4688 = vmatprep.subr.bf16.mxu0 0
    %4689 = vmatpush1.bf16.msra.mxu0 %v4685
    %4690 = vmatprep.subr.bf16.mxu0 0
    %4691 = vmatpush1.bf16.msra.mxu0 0
    %4692 = vmatprep.subr.bf16.mxu0 0
    %4693 = vmatpush1.bf16.msra.mxu0 0
    %4694 = vmatprep.subr.bf16.mxu0 0
    %4695 = vmatpush1.bf16.msra.mxu0 0
    %4696 = vmatprep.subr.bf16.mxu0 0
    %4697 = vmatpush1.bf16.msra.mxu0 0
    %4698 = vmatprep.subr.bf16.mxu0 0
    %4699 = vmatpush1.bf16.msra.mxu0 0
    %4700 = vmatprep.subr.bf16.mxu0 0
    %4701 = vmatpush1.bf16.msra.mxu0 0
    %4702 = vmatprep.subr.bf16.mxu0 0
    %4703 = vmatpush1.bf16.msra.mxu0 0
    %4704 = vmatprep.subr.bf16.mxu0 0
    %4705 = vmatpush1.bf16.msra.mxu0 0
    %4706 = vmatprep.subr.bf16.mxu0 0
    %4707 = vmatpush1.bf16.msra.mxu0 0
    %4708 = vmatprep.subr.bf16.mxu0 0
    %4709 = vmatpush1.bf16.msra.mxu0 0
    %4710 = vmatprep.subr.bf16.mxu0 0
    %4711 = vmatpush1.bf16.msra.mxu0 0
    %4712 = vmatprep.subr.bf16.mxu0 0
    %4713 = vmatpush1.bf16.msra.mxu0 0
    %4714 = vmatprep.subr.bf16.mxu0 0
    %4715 = vmatpush1.bf16.msra.mxu0 0
    %4716 = vmatprep.subr.bf16.mxu0 0
    %4717 = vmatpush1.bf16.msra.mxu0 0
    %4718 = vmatprep.mubr.bf16.mxu0 0
    %4719 = vmatmul.mubr.bf16.gmra.mrb[0].mxu0 %v937
    %v4720 = vpop.f32.mrb[0].mxu0
    %v4721 = vadd.f32 0.0, %v4720
    %v4722 = vpop.f32.mrb[0].mxu0
    %v4723 = vpop.f32.mrb[0].mxu0
    %v4724 = vadd.f32 0.0, %v4723
    %v4725 = vpop.f32.mrb[0].mxu0
    %4726 = vmatprep.mubr.bf16.mxu0 0
    %4727 = vmatmul.mubr.bf16.gmra.mrb[0].mxu0 %v940
    %v4728 = vpop.f32.mrb[0].mxu0
    %v4729 = vadd.f32 0.0, %v4728
    %v4730 = vpop.f32.mrb[0].mxu0
    %v4731 = vpop.f32.mrb[0].mxu0
    %v4732 = vadd.f32 0.0, %v4731
    %v4733 = vpop.f32.mrb[0].mxu0
    %4734 = vmatprep.mubr.bf16.mxu0 0
    %4735 = vmatmul.mubr.bf16.gmra.mrb[0].mxu0 %v943
    %v4736 = vpop.f32.mrb[0].mxu0
    %v4737 = vadd.f32 0.0, %v4736
    %v4738 = vpop.f32.mrb[0].mxu0
    %v4739 = vpop.f32.mrb[0].mxu0
    %v4740 = vadd.f32 0.0, %v4739
    %v4741 = vpop.f32.mrb[0].mxu0
    %4742 = vmatprep.mubr.bf16.mxu0 0
    %4743 = vmatmul.mubr.bf16.gmra.mrb[0].mxu0 %v946
    %v4744 = vpop.f32.mrb[0].mxu0
    %v4745 = vadd.f32 0.0, %v4744
    %v4746 = vpop.f32.mrb[0].mxu0
    %v4747 = vpop.f32.mrb[0].mxu0
    %v4748 = vadd.f32 0.0, %v4747
    %v4749 = vpop.f32.mrb[0].mxu0
    %4750 = vmatprep.mubr.bf16.mxu0 0
    %4751 = vmatmul.mubr.bf16.gmra.mrb[0].mxu0 %v949
    %v4752 = vpop.f32.mrb[0].mxu0
    %v4753 = vadd.f32 0.0, %v4752
    %v4754 = vpop.f32.mrb[0].mxu0
    %v4755 = vpop.f32.mrb[0].mxu0
    %v4756 = vadd.f32 0.0, %v4755
    %v4757 = vpop.f32.mrb[0].mxu0
    %4758 = vmatprep.mubr.bf16.mxu0 0
    %4759 = vmatmul.mubr.bf16.gmra.mrb[0].mxu0 %v952
    %v4760 = vpop.f32.mrb[0].mxu0
    %v4761 = vadd.f32 0.0, %v4760
    %v4762 = vpop.f32.mrb[0].mxu0
    %v4763 = vpop.f32.mrb[0].mxu0
    %v4764 = vadd.f32 0.0, %v4763
    %v4765 = vpop.f32.mrb[0].mxu0
    %4766 = vmatprep.mubr.bf16.mxu0 0
    %4767 = vmatmul.mubr.bf16.gmra.mrb[0].mxu0 %v955
    %v4768 = vpop.f32.mrb[0].mxu0
    %v4769 = vadd.f32 0.0, %v4768
    %v4770 = vpop.f32.mrb[0].mxu0
    %v4771 = vpop.f32.mrb[0].mxu0
    %v4772 = vadd.f32 0.0, %v4771
    %v4773 = vpop.f32.mrb[0].mxu0
    %4774 = vmatprep.mubr.bf16.mxu0 0
    %4775 = vmatmul.mubr.bf16.gmra.mrb[0].mxu0 %v958
    %v4776 = vpop.f32.mrb[0].mxu0
    %v4777 = vadd.f32 0.0, %v4776
    %v4778 = vpop.f32.mrb[0].mxu0
    %v4779 = vpop.f32.mrb[0].mxu0
    %v4780 = vadd.f32 0.0, %v4779
    %v4781 = vpop.f32.mrb[0].mxu0
    %4782 = vdwg.mxu0
    %v4783 = vadd.f32 %v4622, %v4721
    %v4784 = vadd.f32 %v4625, %v4724
    %v4785 = vadd.f32 %v4630, %v4729
    %v4786 = vadd.f32 %v4633, %v4732
    %v4787 = vadd.f32 %v4638, %v4737
    %v4788 = vadd.f32 %v4641, %v4740
    %v4789 = vadd.f32 %v4646, %v4745
    %v4790 = vadd.f32 %v4649, %v4748
    %v4791 = vadd.f32 %v4654, %v4753
    %v4792 = vadd.f32 %v4657, %v4756
    %v4793 = vadd.f32 %v4662, %v4761
    %v4794 = vadd.f32 %v4665, %v4764
    %v4795 = vadd.f32 %v4670, %v4769
    %v4796 = vadd.f32 %v4673, %v4772
    %v4797 = vadd.f32 %v4678, %v4777
    %v4798 = vadd.f32 %v4681, %v4780
    %v4799 = vxor.u32 %v4783, 2147483648
    %v4800 = vxor.u32 %v4784, 2147483648
    %v4801 = vxor.u32 %v4785, 2147483648
    %v4802 = vxor.u32 %v4786, 2147483648
    %v4803 = vmul.f32 %v4799, 1.442695
    %v4804 = vpow.pop %v4803
    %v4805 = vmul.f32 %v4800, 1.442695
    %v4806 = vpow.pop %v4805
    %v4807 = vmul.f32 %v4801, 1.442695
    %v4808 = vpow.pop %v4807
    %v4809 = vmul.f32 %v4802, 1.442695
    %v4810 = vpow.pop %v4809
    %v4811 = vadd.f32 %v4804, 1.0
    %v4812 = vadd.f32 %v4806, 1.0
    %v4813 = vadd.f32 %v4808, 1.0
    %v4814 = vadd.f32 %v4810, 1.0
    %v4815 = vrcp.pop %v4811
    %v4816 = vmul.f32 1.0, %v4815
    %v4817 = vrcp.pop %v4812
    %v4818 = vmul.f32 1.0, %v4817
    %v4819 = vrcp.pop %v4813
    %v4820 = vmul.f32 1.0, %v4819
    %v4821 = vrcp.pop %v4814
    %v4822 = vmul.f32 1.0, %v4821
    %v4823 = vxor.u32 %v4787, 2147483648
    %v4824 = vxor.u32 %v4788, 2147483648
    %v4825 = vxor.u32 %v4789, 2147483648
    %v4826 = vxor.u32 %v4790, 2147483648
    %v4827 = vmul.f32 %v4823, 1.442695
    %v4828 = vpow.pop %v4827
    %v4829 = vmul.f32 %v4824, 1.442695
    %v4830 = vpow.pop %v4829
    %v4831 = vmul.f32 %v4825, 1.442695
    %v4832 = vpow.pop %v4831
    %v4833 = vmul.f32 %v4826, 1.442695
    %v4834 = vpow.pop %v4833
    %v4835 = vadd.f32 %v4828, 1.0
    %v4836 = vadd.f32 %v4830, 1.0
    %v4837 = vadd.f32 %v4832, 1.0
    %v4838 = vadd.f32 %v4834, 1.0
    %v4839 = vrcp.pop %v4835
    %v4840 = vmul.f32 1.0, %v4839
    %v4841 = vrcp.pop %v4836
    %v4842 = vmul.f32 1.0, %v4841
    %v4843 = vrcp.pop %v4837
    %v4844 = vmul.f32 1.0, %v4843
    %v4845 = vrcp.pop %v4838
    %v4846 = vmul.f32 1.0, %v4845
    %v4847 = vtanh.pop %v4791
    %v4848 = vtanh.pop %v4792
    %v4849 = vtanh.pop %v4793
    %v4850 = vtanh.pop %v4794
    %v4851 = vxor.u32 %v4795, 2147483648
    %v4852 = vxor.u32 %v4796, 2147483648
    %v4853 = vxor.u32 %v4797, 2147483648
    %v4854 = vxor.u32 %v4798, 2147483648
    %v4855 = vmul.f32 %v4851, 1.442695
    %v4856 = vpow.pop %v4855
    %v4857 = vmul.f32 %v4852, 1.442695
    %v4858 = vpow.pop %v4857
    %v4859 = vmul.f32 %v4853, 1.442695
    %v4860 = vpow.pop %v4859
    %v4861 = vmul.f32 %v4854, 1.442695
    %v4862 = vpow.pop %v4861
    %v4863 = vadd.f32 %v4856, 1.0
    %v4864 = vadd.f32 %v4858, 1.0
    %v4865 = vadd.f32 %v4860, 1.0
    %v4866 = vadd.f32 %v4862, 1.0
    %v4867 = vrcp.pop %v4863
    %v4868 = vmul.f32 1.0, %v4867
    %v4869 = vrcp.pop %v4864
    %v4870 = vmul.f32 1.0, %v4869
    %v4871 = vrcp.pop %v4865
    %v4872 = vmul.f32 1.0, %v4871
    %v4873 = vrcp.pop %v4866
    %v4874 = vmul.f32 1.0, %v4873
    %v4875 = vmul.f32 %v4840, %v4262
    %v4876 = vmul.f32 %v4842, %v4263
    %v4877 = vmul.f32 %v4844, %v4264
    %v4878 = vmul.f32 %v4846, %v4265
    %v4879 = vmul.f32 %v4816, %v4847
    %v4880 = vmul.f32 %v4818, %v4848
    %v4881 = vmul.f32 %v4820, %v4849
    %v4882 = vmul.f32 %v4822, %v4850
    %v4883 = vadd.f32 %v4875, %v4879
    %v4884 = vadd.f32 %v4876, %v4880
    %v4885 = vadd.f32 %v4877, %v4881
    %v4886 = vadd.f32 %v4878, %v4882
    %v4887 = vtanh.pop %v4883
    %v4888 = vtanh.pop %v4884
    %v4889 = vtanh.pop %v4885
    %v4890 = vtanh.pop %v4886
    %v4891 = vmul.f32 %v4868, %v4887
    %v4892 = vmul.f32 %v4870, %v4888
    %v4893 = vmul.f32 %v4872, %v4889
    %v4894 = vmul.f32 %v4874, %v4890
    %s4895 = scalar_lea.vmem %s0, 14
    %v4896 = vld [vmem:[%s4895] sm:$0x3]
    %v4898 = vsel %vm214, %v4896, 0
    %4900 = vmatprep.subr.bf16.mxu0 0
    %4901 = vmatpush1.bf16.msra.mxu0 %v4898
    %4902 = vmatprep.subr.bf16.mxu0 0
    %4903 = vmatpush1.bf16.msra.mxu0 0
    %4904 = vmatprep.subr.bf16.mxu0 0
    %4905 = vmatpush1.bf16.msra.mxu0 0
    %4906 = vmatprep.subr.bf16.mxu0 0
    %4907 = vmatpush1.bf16.msra.mxu0 0
    %4908 = vmatprep.subr.bf16.mxu0 0
    %4909 = vmatpush1.bf16.msra.mxu0 0
    %4910 = vmatprep.subr.bf16.mxu0 0
    %4911 = vmatpush1.bf16.msra.mxu0 0
    %4912 = vmatprep.subr.bf16.mxu0 0
    %4913 = vmatpush1.bf16.msra.mxu0 0
    %4914 = vmatprep.subr.bf16.mxu0 0
    %4915 = vmatpush1.bf16.msra.mxu0 0
    %4916 = vmatprep.subr.bf16.mxu0 0
    %4917 = vmatpush1.bf16.msra.mxu0 0
    %4918 = vmatprep.subr.bf16.mxu0 0
    %4919 = vmatpush1.bf16.msra.mxu0 0
    %4920 = vmatprep.subr.bf16.mxu0 0
    %4921 = vmatpush1.bf16.msra.mxu0 0
    %4922 = vmatprep.subr.bf16.mxu0 0
    %4923 = vmatpush1.bf16.msra.mxu0 0
    %4924 = vmatprep.subr.bf16.mxu0 0
    %4925 = vmatpush1.bf16.msra.mxu0 0
    %4926 = vmatprep.subr.bf16.mxu0 0
    %4927 = vmatpush1.bf16.msra.mxu0 0
    %4928 = vmatprep.subr.bf16.mxu0 0
    %4929 = vmatpush1.bf16.msra.mxu0 0
    %4930 = vmatprep.subr.bf16.mxu0 0
    %4931 = vmatpush1.bf16.msra.mxu0 0
    %4932 = vmatprep.mubr.bf16.mxu0 0
    %4933 = vmatmul.mubr.bf16.gmra.mrb[0].mxu0 %v191
    %v4934 = vpop.f32.mrb[0].mxu0
    %v4935 = vadd.f32 %v72, %v4934
    %v4936 = vpop.f32.mrb[0].mxu0
    %v4937 = vpop.f32.mrb[0].mxu0
    %v4938 = vadd.f32 %v77, %v4937
    %v4939 = vpop.f32.mrb[0].mxu0
    %4940 = vmatprep.mubr.bf16.mxu0 0
    %4941 = vmatmul.mubr.bf16.gmra.mrb[0].mxu0 %v194
    %v4942 = vpop.f32.mrb[0].mxu0
    %v4943 = vadd.f32 %v82, %v4942
    %v4944 = vpop.f32.mrb[0].mxu0
    %v4945 = vpop.f32.mrb[0].mxu0
    %v4946 = vadd.f32 %v87, %v4945
    %v4947 = vpop.f32.mrb[0].mxu0
    %4948 = vmatprep.mubr.bf16.mxu0 0
    %4949 = vmatmul.mubr.bf16.gmra.mrb[0].mxu0 %v197
    %v4950 = vpop.f32.mrb[0].mxu0
    %v4951 = vadd.f32 %v92, %v4950
    %v4952 = vpop.f32.mrb[0].mxu0
    %v4953 = vpop.f32.mrb[0].mxu0
    %v4954 = vadd.f32 %v97, %v4953
    %v4955 = vpop.f32.mrb[0].mxu0
    %4956 = vmatprep.mubr.bf16.mxu0 0
    %4957 = vmatmul.mubr.bf16.gmra.mrb[0].mxu0 %v200
    %v4958 = vpop.f32.mrb[0].mxu0
    %v4959 = vadd.f32 %v102, %v4958
    %v4960 = vpop.f32.mrb[0].mxu0
    %v4961 = vpop.f32.mrb[0].mxu0
    %v4962 = vadd.f32 %v107, %v4961
    %v4963 = vpop.f32.mrb[0].mxu0
    %4964 = vmatprep.mubr.bf16.mxu0 0
    %4965 = vmatmul.mubr.bf16.gmra.mrb[0].mxu0 %v203
    %v4966 = vpop.f32.mrb[0].mxu0
    %v4967 = vadd.f32 %v112, %v4966
    %v4968 = vpop.f32.mrb[0].mxu0
    %v4969 = vpop.f32.mrb[0].mxu0
    %v4970 = vadd.f32 %v117, %v4969
    %v4971 = vpop.f32.mrb[0].mxu0
    %4972 = vmatprep.mubr.bf16.mxu0 0
    %4973 = vmatmul.mubr.bf16.gmra.mrb[0].mxu0 %v206
    %v4974 = vpop.f32.mrb[0].mxu0
    %v4975 = vadd.f32 %v122, %v4974
    %v4976 = vpop.f32.mrb[0].mxu0
    %v4977 = vpop.f32.mrb[0].mxu0
    %v4978 = vadd.f32 %v127, %v4977
    %v4979 = vpop.f32.mrb[0].mxu0
    %4980 = vmatprep.mubr.bf16.mxu0 0
    %4981 = vmatmul.mubr.bf16.gmra.mrb[0].mxu0 %v209
    %v4982 = vpop.f32.mrb[0].mxu0
    %v4983 = vadd.f32 %v132, %v4982
    %v4984 = vpop.f32.mrb[0].mxu0
    %v4985 = vpop.f32.mrb[0].mxu0
    %v4986 = vadd.f32 %v137, %v4985
    %v4987 = vpop.f32.mrb[0].mxu0
    %4988 = vmatprep.mubr.bf16.mxu0 0
    %4989 = vmatmul.mubr.bf16.gmra.mrb[0].mxu0 %v212
    %v4990 = vpop.f32.mrb[0].mxu0
    %v4991 = vadd.f32 %v142, %v4990
    %v4992 = vpop.f32.mrb[0].mxu0
    %v4993 = vpop.f32.mrb[0].mxu0
    %v4994 = vadd.f32 %v147, %v4993
    %v4995 = vpop.f32.mrb[0].mxu0
    %4996 = vdwg.mxu0
    %4997 = vmatprep.subr.bf16.mxu0 0
    %4998 = vmatpush1.bf16.msra.mxu0 %v4585
    %4999 = vmatprep.subr.bf16.mxu0 0
    %5000 = vmatpush1.bf16.msra.mxu0 %v4586
    %5001 = vmatprep.subr.bf16.mxu0 0
    %5002 = vmatpush1.bf16.msra.mxu0 0
    %5003 = vmatprep.subr.bf16.mxu0 0
    %5004 = vmatpush1.bf16.msra.mxu0 0
    %5005 = vmatprep.subr.bf16.mxu0 0
    %5006 = vmatpush1.bf16.msra.mxu0 0
    %5007 = vmatprep.subr.bf16.mxu0 0
    %5008 = vmatpush1.bf16.msra.mxu0 0
    %5009 = vmatprep.subr.bf16.mxu0 0
    %5010 = vmatpush1.bf16.msra.mxu0 0
    %5011 = vmatprep.subr.bf16.mxu0 0
    %5012 = vmatpush1.bf16.msra.mxu0 0
    %5013 = vmatprep.subr.bf16.mxu0 0
    %5014 = vmatpush1.bf16.msra.mxu0 0
    %5015 = vmatprep.subr.bf16.mxu0 0
    %5016 = vmatpush1.bf16.msra.mxu0 0
    %5017 = vmatprep.subr.bf16.mxu0 0
    %5018 = vmatpush1.bf16.msra.mxu0 0
    %5019 = vmatprep.subr.bf16.mxu0 0
    %5020 = vmatpush1.bf16.msra.mxu0 0
    %5021 = vmatprep.subr.bf16.mxu0 0
    %5022 = vmatpush1.bf16.msra.mxu0 0
    %5023 = vmatprep.subr.bf16.mxu0 0
    %5024 = vmatpush1.bf16.msra.mxu0 0
    %5025 = vmatprep.subr.bf16.mxu0 0
    %5026 = vmatpush1.bf16.msra.mxu0 0
    %5027 = vmatprep.subr.bf16.mxu0 0
    %5028 = vmatpush1.bf16.msra.mxu0 0
    %5029 = vmatprep.mubr.bf16.mxu0 0
    %5030 = vmatmul.mubr.bf16.gmra.mrb[0].mxu0 %v373
    %v5031 = vpop.f32.mrb[0].mxu0
    %v5032 = vadd.f32 0.0, %v5031
    %v5033 = vpop.f32.mrb[0].mxu0
    %v5034 = vpop.f32.mrb[0].mxu0
    %v5035 = vadd.f32 0.0, %v5034
    %v5036 = vpop.f32.mrb[0].mxu0
    %5037 = vmatprep.mubr.bf16.mxu0 0
    %5038 = vmatmul.mubr.bf16.gmra.mrb[0].mxu0 %v376
    %v5039 = vpop.f32.mrb[0].mxu0
    %v5040 = vadd.f32 0.0, %v5039
    %v5041 = vpop.f32.mrb[0].mxu0
    %v5042 = vpop.f32.mrb[0].mxu0
    %v5043 = vadd.f32 0.0, %v5042
    %v5044 = vpop.f32.mrb[0].mxu0
    %5045 = vmatprep.mubr.bf16.mxu0 0
    %5046 = vmatmul.mubr.bf16.gmra.mrb[0].mxu0 %v379
    %v5047 = vpop.f32.mrb[0].mxu0
    %v5048 = vadd.f32 0.0, %v5047
    %v5049 = vpop.f32.mrb[0].mxu0
    %v5050 = vpop.f32.mrb[0].mxu0
    %v5051 = vadd.f32 0.0, %v5050
    %v5052 = vpop.f32.mrb[0].mxu0
    %5053 = vmatprep.mubr.bf16.mxu0 0
    %5054 = vmatmul.mubr.bf16.gmra.mrb[0].mxu0 %v382
    %v5055 = vpop.f32.mrb[0].mxu0
    %v5056 = vadd.f32 0.0, %v5055
    %v5057 = vpop.f32.mrb[0].mxu0
    %v5058 = vpop.f32.mrb[0].mxu0
    %v5059 = vadd.f32 0.0, %v5058
    %v5060 = vpop.f32.mrb[0].mxu0
    %5061 = vmatprep.mubr.bf16.mxu0 0
    %5062 = vmatmul.mubr.bf16.gmra.mrb[0].mxu0 %v385
    %v5063 = vpop.f32.mrb[0].mxu0
    %v5064 = vadd.f32 0.0, %v5063
    %v5065 = vpop.f32.mrb[0].mxu0
    %v5066 = vpop.f32.mrb[0].mxu0
    %v5067 = vadd.f32 0.0, %v5066
    %v5068 = vpop.f32.mrb[0].mxu0
    %5069 = vmatprep.mubr.bf16.mxu0 0
    %5070 = vmatmul.mubr.bf16.gmra.mrb[0].mxu0 %v388
    %v5071 = vpop.f32.mrb[0].mxu0
    %v5072 = vadd.f32 0.0, %v5071
    %v5073 = vpop.f32.mrb[0].mxu0
    %v5074 = vpop.f32.mrb[0].mxu0
    %v5075 = vadd.f32 0.0, %v5074
    %v5076 = vpop.f32.mrb[0].mxu0
    %5077 = vmatprep.mubr.bf16.mxu0 0
    %5078 = vmatmul.mubr.bf16.gmra.mrb[0].mxu0 %v391
    %v5079 = vpop.f32.mrb[0].mxu0
    %v5080 = vadd.f32 0.0, %v5079
    %v5081 = vpop.f32.mrb[0].mxu0
    %v5082 = vpop.f32.mrb[0].mxu0
    %v5083 = vadd.f32 0.0, %v5082
    %v5084 = vpop.f32.mrb[0].mxu0
    %5085 = vmatprep.mubr.bf16.mxu0 0
    %5086 = vmatmul.mubr.bf16.gmra.mrb[0].mxu0 %v394
    %v5087 = vpop.f32.mrb[0].mxu0
    %v5088 = vadd.f32 0.0, %v5087
    %v5089 = vpop.f32.mrb[0].mxu0
    %v5090 = vpop.f32.mrb[0].mxu0
    %v5091 = vadd.f32 0.0, %v5090
    %v5092 = vpop.f32.mrb[0].mxu0
    %5093 = vdwg.mxu0
    %v5094 = vadd.f32 %v4935, %v5032
    %v5095 = vadd.f32 %v4938, %v5035
    %v5096 = vadd.f32 %v4943, %v5040
    %v5097 = vadd.f32 %v4946, %v5043
    %v5098 = vadd.f32 %v4951, %v5048
    %v5099 = vadd.f32 %v4954, %v5051
    %v5100 = vadd.f32 %v4959, %v5056
    %v5101 = vadd.f32 %v4962, %v5059
    %v5102 = vadd.f32 %v4967, %v5064
    %v5103 = vadd.f32 %v4970, %v5067
    %v5104 = vadd.f32 %v4975, %v5072
    %v5105 = vadd.f32 %v4978, %v5075
    %v5106 = vadd.f32 %v4983, %v5080
    %v5107 = vadd.f32 %v4986, %v5083
    %v5108 = vadd.f32 %v4991, %v5088
    %v5109 = vadd.f32 %v4994, %v5091
    %v5110 = vxor.u32 %v5094, 2147483648
    %v5111 = vxor.u32 %v5095, 2147483648
    %v5112 = vxor.u32 %v5096, 2147483648
    %v5113 = vxor.u32 %v5097, 2147483648
    %v5114 = vmul.f32 %v5110, 1.442695
    %v5115 = vpow.pop %v5114
    %v5116 = vmul.f32 %v5111, 1.442695
    %v5117 = vpow.pop %v5116
    %v5118 = vmul.f32 %v5112, 1.442695
    %v5119 = vpow.pop %v5118
    %v5120 = vmul.f32 %v5113, 1.442695
    %v5121 = vpow.pop %v5120
    %v5122 = vadd.f32 %v5115, 1.0
    %v5123 = vadd.f32 %v5117, 1.0
    %v5124 = vadd.f32 %v5119, 1.0
    %v5125 = vadd.f32 %v5121, 1.0
    %v5126 = vrcp.pop %v5122
    %v5127 = vmul.f32 1.0, %v5126
    %v5128 = vrcp.pop %v5123
    %v5129 = vmul.f32 1.0, %v5128
    %v5130 = vrcp.pop %v5124
    %v5131 = vmul.f32 1.0, %v5130
    %v5132 = vrcp.pop %v5125
    %v5133 = vmul.f32 1.0, %v5132
    %v5134 = vxor.u32 %v5098, 2147483648
    %v5135 = vxor.u32 %v5099, 2147483648
    %v5136 = vxor.u32 %v5100, 2147483648
    %v5137 = vxor.u32 %v5101, 2147483648
    %v5138 = vmul.f32 %v5134, 1.442695
    %v5139 = vpow.pop %v5138
    %v5140 = vmul.f32 %v5135, 1.442695
    %v5141 = vpow.pop %v5140
    %v5142 = vmul.f32 %v5136, 1.442695
    %v5143 = vpow.pop %v5142
    %v5144 = vmul.f32 %v5137, 1.442695
    %v5145 = vpow.pop %v5144
    %v5146 = vadd.f32 %v5139, 1.0
    %v5147 = vadd.f32 %v5141, 1.0
    %v5148 = vadd.f32 %v5143, 1.0
    %v5149 = vadd.f32 %v5145, 1.0
    %v5150 = vrcp.pop %v5146
    %v5151 = vmul.f32 1.0, %v5150
    %v5152 = vrcp.pop %v5147
    %v5153 = vmul.f32 1.0, %v5152
    %v5154 = vrcp.pop %v5148
    %v5155 = vmul.f32 1.0, %v5154
    %v5156 = vrcp.pop %v5149
    %v5157 = vmul.f32 1.0, %v5156
    %v5158 = vtanh.pop %v5102
    %v5159 = vtanh.pop %v5103
    %v5160 = vtanh.pop %v5104
    %v5161 = vtanh.pop %v5105
    %v5162 = vxor.u32 %v5106, 2147483648
    %v5163 = vxor.u32 %v5107, 2147483648
    %v5164 = vxor.u32 %v5108, 2147483648
    %v5165 = vxor.u32 %v5109, 2147483648
    %v5166 = vmul.f32 %v5162, 1.442695
    %v5167 = vpow.pop %v5166
    %v5168 = vmul.f32 %v5163, 1.442695
    %v5169 = vpow.pop %v5168
    %v5170 = vmul.f32 %v5164, 1.442695
    %v5171 = vpow.pop %v5170
    %v5172 = vmul.f32 %v5165, 1.442695
    %v5173 = vpow.pop %v5172
    %v5174 = vadd.f32 %v5167, 1.0
    %v5175 = vadd.f32 %v5169, 1.0
    %v5176 = vadd.f32 %v5171, 1.0
    %v5177 = vadd.f32 %v5173, 1.0
    %v5178 = vrcp.pop %v5174
    %v5179 = vmul.f32 1.0, %v5178
    %v5180 = vrcp.pop %v5175
    %v5181 = vmul.f32 1.0, %v5180
    %v5182 = vrcp.pop %v5176
    %v5183 = vmul.f32 1.0, %v5182
    %v5184 = vrcp.pop %v5177
    %v5185 = vmul.f32 1.0, %v5184
    %v5186 = vmul.f32 %v5151, %v4573
    %v5187 = vmul.f32 %v5153, %v4574
    %v5188 = vmul.f32 %v5155, %v4575
    %v5189 = vmul.f32 %v5157, %v4576
    %v5190 = vmul.f32 %v5127, %v5158
    %v5191 = vmul.f32 %v5129, %v5159
    %v5192 = vmul.f32 %v5131, %v5160
    %v5193 = vmul.f32 %v5133, %v5161
    %v5194 = vadd.f32 %v5186, %v5190
    %v5195 = vadd.f32 %v5187, %v5191
    %v5196 = vadd.f32 %v5188, %v5192
    %v5197 = vadd.f32 %v5189, %v5193
    %v5198 = vtanh.pop %v5194
    %v5199 = vtanh.pop %v5195
    %v5200 = vtanh.pop %v5196
    %v5201 = vtanh.pop %v5197
    %v5202 = vmul.f32 %v5179, %v5198
    %v5203 = vmul.f32 %v5181, %v5199
    %v5204 = vmul.f32 %v5183, %v5200
    %v5205 = vmul.f32 %v5185, %v5201
    %v5206 = vpack.c.bf16 %v5203, %v5202
    %v5207 = vpack.c.bf16 %v5205, %v5204
    %5208 = vmatprep.subr.bf16.mxu0 0
    %5209 = vmatpush1.bf16.msra.mxu0 %v5206
    %5210 = vmatprep.subr.bf16.mxu0 0
    %5211 = vmatpush1.bf16.msra.mxu0 %v5207
    %5212 = vmatprep.subr.bf16.mxu0 0
    %5213 = vmatpush1.bf16.msra.mxu0 0
    %5214 = vmatprep.subr.bf16.mxu0 0
    %5215 = vmatpush1.bf16.msra.mxu0 0
    %5216 = vmatprep.subr.bf16.mxu0 0
    %5217 = vmatpush1.bf16.msra.mxu0 0
    %5218 = vmatprep.subr.bf16.mxu0 0
    %5219 = vmatpush1.bf16.msra.mxu0 0
    %5220 = vmatprep.subr.bf16.mxu0 0
    %5221 = vmatpush1.bf16.msra.mxu0 0
    %5222 = vmatprep.subr.bf16.mxu0 0
    %5223 = vmatpush1.bf16.msra.mxu0 0
    %5224 = vmatprep.subr.bf16.mxu0 0
    %5225 = vmatpush1.bf16.msra.mxu0 0
    %5226 = vmatprep.subr.bf16.mxu0 0
    %5227 = vmatpush1.bf16.msra.mxu0 0
    %5228 = vmatprep.subr.bf16.mxu0 0
    %5229 = vmatpush1.bf16.msra.mxu0 0
    %5230 = vmatprep.subr.bf16.mxu0 0
    %5231 = vmatpush1.bf16.msra.mxu0 0
    %5232 = vmatprep.subr.bf16.mxu0 0
    %5233 = vmatpush1.bf16.msra.mxu0 0
    %5234 = vmatprep.subr.bf16.mxu0 0
    %5235 = vmatpush1.bf16.msra.mxu0 0
    %5236 = vmatprep.subr.bf16.mxu0 0
    %5237 = vmatpush1.bf16.msra.mxu0 0
    %5238 = vmatprep.subr.bf16.mxu0 0
    %5239 = vmatpush1.bf16.msra.mxu0 0
    %5240 = vmatprep.mubr.bf16.mxu0 0
    %5241 = vmatmul.mubr.bf16.gmra.mrb[0].mxu0 %v760
    %v5242 = vpop.f32.mrb[0].mxu0
    %v5243 = vadd.f32 %v642, %v5242
    %v5244 = vpop.f32.mrb[0].mxu0
    %v5245 = vpop.f32.mrb[0].mxu0
    %v5246 = vadd.f32 %v647, %v5245
    %v5247 = vpop.f32.mrb[0].mxu0
    %5248 = vmatprep.mubr.bf16.mxu0 0
    %5249 = vmatmul.mubr.bf16.gmra.mrb[0].mxu0 %v763
    %v5250 = vpop.f32.mrb[0].mxu0
    %v5251 = vadd.f32 %v652, %v5250
    %v5252 = vpop.f32.mrb[0].mxu0
    %v5253 = vpop.f32.mrb[0].mxu0
    %v5254 = vadd.f32 %v657, %v5253
    %v5255 = vpop.f32.mrb[0].mxu0
    %5256 = vmatprep.mubr.bf16.mxu0 0
    %5257 = vmatmul.mubr.bf16.gmra.mrb[0].mxu0 %v766
    %v5258 = vpop.f32.mrb[0].mxu0
    %v5259 = vadd.f32 %v662, %v5258
    %v5260 = vpop.f32.mrb[0].mxu0
    %v5261 = vpop.f32.mrb[0].mxu0
    %v5262 = vadd.f32 %v667, %v5261
    %v5263 = vpop.f32.mrb[0].mxu0
    %5264 = vmatprep.mubr.bf16.mxu0 0
    %5265 = vmatmul.mubr.bf16.gmra.mrb[0].mxu0 %v769
    %v5266 = vpop.f32.mrb[0].mxu0
    %v5267 = vadd.f32 %v672, %v5266
    %v5268 = vpop.f32.mrb[0].mxu0
    %v5269 = vpop.f32.mrb[0].mxu0
    %v5270 = vadd.f32 %v677, %v5269
    %v5271 = vpop.f32.mrb[0].mxu0
    %5272 = vmatprep.mubr.bf16.mxu0 0
    %5273 = vmatmul.mubr.bf16.gmra.mrb[0].mxu0 %v772
    %v5274 = vpop.f32.mrb[0].mxu0
    %v5275 = vadd.f32 %v682, %v5274
    %v5276 = vpop.f32.mrb[0].mxu0
    %v5277 = vpop.f32.mrb[0].mxu0
    %v5278 = vadd.f32 %v687, %v5277
    %v5279 = vpop.f32.mrb[0].mxu0
    %5280 = vmatprep.mubr.bf16.mxu0 0
    %5281 = vmatmul.mubr.bf16.gmra.mrb[0].mxu0 %v775
    %v5282 = vpop.f32.mrb[0].mxu0
    %v5283 = vadd.f32 %v692, %v5282
    %v5284 = vpop.f32.mrb[0].mxu0
    %v5285 = vpop.f32.mrb[0].mxu0
    %v5286 = vadd.f32 %v697, %v5285
    %v5287 = vpop.f32.mrb[0].mxu0
    %5288 = vmatprep.mubr.bf16.mxu0 0
    %5289 = vmatmul.mubr.bf16.gmra.mrb[0].mxu0 %v778
    %v5290 = vpop.f32.mrb[0].mxu0
    %v5291 = vadd.f32 %v702, %v5290
    %v5292 = vpop.f32.mrb[0].mxu0
    %v5293 = vpop.f32.mrb[0].mxu0
    %v5294 = vadd.f32 %v707, %v5293
    %v5295 = vpop.f32.mrb[0].mxu0
    %5296 = vmatprep.mubr.bf16.mxu0 0
    %5297 = vmatmul.mubr.bf16.gmra.mrb[0].mxu0 %v781
    %v5298 = vpop.f32.mrb[0].mxu0
    %v5299 = vadd.f32 %v712, %v5298
    %v5300 = vpop.f32.mrb[0].mxu0
    %v5301 = vpop.f32.mrb[0].mxu0
    %v5302 = vadd.f32 %v717, %v5301
    %v5303 = vpop.f32.mrb[0].mxu0
    %5304 = vdwg.mxu0
    %v5305 = vpack.c.bf16 %v4892, %v4891
    %v5306 = vpack.c.bf16 %v4894, %v4893
    %5307 = vmatprep.subr.bf16.mxu0 0
    %5308 = vmatpush1.bf16.msra.mxu0 %v5305
    %5309 = vmatprep.subr.bf16.mxu0 0
    %5310 = vmatpush1.bf16.msra.mxu0 %v5306
    %5311 = vmatprep.subr.bf16.mxu0 0
    %5312 = vmatpush1.bf16.msra.mxu0 0
    %5313 = vmatprep.subr.bf16.mxu0 0
    %5314 = vmatpush1.bf16.msra.mxu0 0
    %5315 = vmatprep.subr.bf16.mxu0 0
    %5316 = vmatpush1.bf16.msra.mxu0 0
    %5317 = vmatprep.subr.bf16.mxu0 0
    %5318 = vmatpush1.bf16.msra.mxu0 0
    %5319 = vmatprep.subr.bf16.mxu0 0
    %5320 = vmatpush1.bf16.msra.mxu0 0
    %5321 = vmatprep.subr.bf16.mxu0 0
    %5322 = vmatpush1.bf16.msra.mxu0 0
    %5323 = vmatprep.subr.bf16.mxu0 0
    %5324 = vmatpush1.bf16.msra.mxu0 0
    %5325 = vmatprep.subr.bf16.mxu0 0
    %5326 = vmatpush1.bf16.msra.mxu0 0
    %5327 = vmatprep.subr.bf16.mxu0 0
    %5328 = vmatpush1.bf16.msra.mxu0 0
    %5329 = vmatprep.subr.bf16.mxu0 0
    %5330 = vmatpush1.bf16.msra.mxu0 0
    %5331 = vmatprep.subr.bf16.mxu0 0
    %5332 = vmatpush1.bf16.msra.mxu0 0
    %5333 = vmatprep.subr.bf16.mxu0 0
    %5334 = vmatpush1.bf16.msra.mxu0 0
    %5335 = vmatprep.subr.bf16.mxu0 0
    %5336 = vmatpush1.bf16.msra.mxu0 0
    %5337 = vmatprep.subr.bf16.mxu0 0
    %5338 = vmatpush1.bf16.msra.mxu0 0
    %5339 = vmatprep.mubr.bf16.mxu0 0
    %5340 = vmatmul.mubr.bf16.gmra.mrb[0].mxu0 %v937
    %v5341 = vpop.f32.mrb[0].mxu0
    %v5342 = vadd.f32 0.0, %v5341
    %v5343 = vpop.f32.mrb[0].mxu0
    %v5344 = vpop.f32.mrb[0].mxu0
    %v5345 = vadd.f32 0.0, %v5344
    %v5346 = vpop.f32.mrb[0].mxu0
    %5347 = vmatprep.mubr.bf16.mxu0 0
    %5348 = vmatmul.mubr.bf16.gmra.mrb[0].mxu0 %v940
    %v5349 = vpop.f32.mrb[0].mxu0
    %v5350 = vadd.f32 0.0, %v5349
    %v5351 = vpop.f32.mrb[0].mxu0
    %v5352 = vpop.f32.mrb[0].mxu0
    %v5353 = vadd.f32 0.0, %v5352
    %v5354 = vpop.f32.mrb[0].mxu0
    %5355 = vmatprep.mubr.bf16.mxu0 0
    %5356 = vmatmul.mubr.bf16.gmra.mrb[0].mxu0 %v943
    %v5357 = vpop.f32.mrb[0].mxu0
    %v5358 = vadd.f32 0.0, %v5357
    %v5359 = vpop.f32.mrb[0].mxu0
    %v5360 = vpop.f32.mrb[0].mxu0
    %v5361 = vadd.f32 0.0, %v5360
    %v5362 = vpop.f32.mrb[0].mxu0
    %5363 = vmatprep.mubr.bf16.mxu0 0
    %5364 = vmatmul.mubr.bf16.gmra.mrb[0].mxu0 %v946
    %v5365 = vpop.f32.mrb[0].mxu0
    %v5366 = vadd.f32 0.0, %v5365
    %v5367 = vpop.f32.mrb[0].mxu0
    %v5368 = vpop.f32.mrb[0].mxu0
    %v5369 = vadd.f32 0.0, %v5368
    %v5370 = vpop.f32.mrb[0].mxu0
    %5371 = vmatprep.mubr.bf16.mxu0 0
    %5372 = vmatmul.mubr.bf16.gmra.mrb[0].mxu0 %v949
    %v5373 = vpop.f32.mrb[0].mxu0
    %v5374 = vadd.f32 0.0, %v5373
    %v5375 = vpop.f32.mrb[0].mxu0
    %v5376 = vpop.f32.mrb[0].mxu0
    %v5377 = vadd.f32 0.0, %v5376
    %v5378 = vpop.f32.mrb[0].mxu0
    %5379 = vmatprep.mubr.bf16.mxu0 0
    %5380 = vmatmul.mubr.bf16.gmra.mrb[0].mxu0 %v952
    %v5381 = vpop.f32.mrb[0].mxu0
    %v5382 = vadd.f32 0.0, %v5381
    %v5383 = vpop.f32.mrb[0].mxu0
    %v5384 = vpop.f32.mrb[0].mxu0
    %v5385 = vadd.f32 0.0, %v5384
    %v5386 = vpop.f32.mrb[0].mxu0
    %5387 = vmatprep.mubr.bf16.mxu0 0
    %5388 = vmatmul.mubr.bf16.gmra.mrb[0].mxu0 %v955
    %v5389 = vpop.f32.mrb[0].mxu0
    %v5390 = vadd.f32 0.0, %v5389
    %v5391 = vpop.f32.mrb[0].mxu0
    %v5392 = vpop.f32.mrb[0].mxu0
    %v5393 = vadd.f32 0.0, %v5392
    %v5394 = vpop.f32.mrb[0].mxu0
    %5395 = vmatprep.mubr.bf16.mxu0 0
    %5396 = vmatmul.mubr.bf16.gmra.mrb[0].mxu0 %v958
    %v5397 = vpop.f32.mrb[0].mxu0
    %v5398 = vadd.f32 0.0, %v5397
    %v5399 = vpop.f32.mrb[0].mxu0
    %v5400 = vpop.f32.mrb[0].mxu0
    %v5401 = vadd.f32 0.0, %v5400
    %v5402 = vpop.f32.mrb[0].mxu0
    %5403 = vdwg.mxu0
    %v5404 = vadd.f32 %v5243, %v5342
    %v5405 = vadd.f32 %v5246, %v5345
    %v5406 = vadd.f32 %v5251, %v5350
    %v5407 = vadd.f32 %v5254, %v5353
    %v5408 = vadd.f32 %v5259, %v5358
    %v5409 = vadd.f32 %v5262, %v5361
    %v5410 = vadd.f32 %v5267, %v5366
    %v5411 = vadd.f32 %v5270, %v5369
    %v5412 = vadd.f32 %v5275, %v5374
    %v5413 = vadd.f32 %v5278, %v5377
    %v5414 = vadd.f32 %v5283, %v5382
    %v5415 = vadd.f32 %v5286, %v5385
    %v5416 = vadd.f32 %v5291, %v5390
    %v5417 = vadd.f32 %v5294, %v5393
    %v5418 = vadd.f32 %v5299, %v5398
    %v5419 = vadd.f32 %v5302, %v5401
    %v5420 = vxor.u32 %v5404, 2147483648
    %v5421 = vxor.u32 %v5405, 2147483648
    %v5422 = vxor.u32 %v5406, 2147483648
    %v5423 = vxor.u32 %v5407, 2147483648
    %v5424 = vmul.f32 %v5420, 1.442695
    %v5425 = vpow.pop %v5424
    %v5426 = vmul.f32 %v5421, 1.442695
    %v5427 = vpow.pop %v5426
    %v5428 = vmul.f32 %v5422, 1.442695
    %v5429 = vpow.pop %v5428
    %v5430 = vmul.f32 %v5423, 1.442695
    %v5431 = vpow.pop %v5430
    %v5432 = vadd.f32 %v5425, 1.0
    %v5433 = vadd.f32 %v5427, 1.0
    %v5434 = vadd.f32 %v5429, 1.0
    %v5435 = vadd.f32 %v5431, 1.0
    %v5436 = vrcp.pop %v5432
    %v5437 = vmul.f32 1.0, %v5436
    %v5438 = vrcp.pop %v5433
    %v5439 = vmul.f32 1.0, %v5438
    %v5440 = vrcp.pop %v5434
    %v5441 = vmul.f32 1.0, %v5440
    %v5442 = vrcp.pop %v5435
    %v5443 = vmul.f32 1.0, %v5442
    %v5444 = vxor.u32 %v5408, 2147483648
    %v5445 = vxor.u32 %v5409, 2147483648
    %v5446 = vxor.u32 %v5410, 2147483648
    %v5447 = vxor.u32 %v5411, 2147483648
    %v5448 = vmul.f32 %v5444, 1.442695
    %v5449 = vpow.pop %v5448
    %v5450 = vmul.f32 %v5445, 1.442695
    %v5451 = vpow.pop %v5450
    %v5452 = vmul.f32 %v5446, 1.442695
    %v5453 = vpow.pop %v5452
    %v5454 = vmul.f32 %v5447, 1.442695
    %v5455 = vpow.pop %v5454
    %v5456 = vadd.f32 %v5449, 1.0
    %v5457 = vadd.f32 %v5451, 1.0
    %v5458 = vadd.f32 %v5453, 1.0
    %v5459 = vadd.f32 %v5455, 1.0
    %v5460 = vrcp.pop %v5456
    %v5461 = vmul.f32 1.0, %v5460
    %v5462 = vrcp.pop %v5457
    %v5463 = vmul.f32 1.0, %v5462
    %v5464 = vrcp.pop %v5458
    %v5465 = vmul.f32 1.0, %v5464
    %v5466 = vrcp.pop %v5459
    %v5467 = vmul.f32 1.0, %v5466
    %v5468 = vtanh.pop %v5412
    %v5469 = vtanh.pop %v5413
    %v5470 = vtanh.pop %v5414
    %v5471 = vtanh.pop %v5415
    %v5472 = vxor.u32 %v5416, 2147483648
    %v5473 = vxor.u32 %v5417, 2147483648
    %v5474 = vxor.u32 %v5418, 2147483648
    %v5475 = vxor.u32 %v5419, 2147483648
    %v5476 = vmul.f32 %v5472, 1.442695
    %v5477 = vpow.pop %v5476
    %v5478 = vmul.f32 %v5473, 1.442695
    %v5479 = vpow.pop %v5478
    %v5480 = vmul.f32 %v5474, 1.442695
    %v5481 = vpow.pop %v5480
    %v5482 = vmul.f32 %v5475, 1.442695
    %v5483 = vpow.pop %v5482
    %v5484 = vadd.f32 %v5477, 1.0
    %v5485 = vadd.f32 %v5479, 1.0
    %v5486 = vadd.f32 %v5481, 1.0
    %v5487 = vadd.f32 %v5483, 1.0
    %v5488 = vrcp.pop %v5484
    %v5489 = vmul.f32 1.0, %v5488
    %v5490 = vrcp.pop %v5485
    %v5491 = vmul.f32 1.0, %v5490
    %v5492 = vrcp.pop %v5486
    %v5493 = vmul.f32 1.0, %v5492
    %v5494 = vrcp.pop %v5487
    %v5495 = vmul.f32 1.0, %v5494
    %v5496 = vmul.f32 %v5461, %v4883
    %v5497 = vmul.f32 %v5463, %v4884
    %v5498 = vmul.f32 %v5465, %v4885
    %v5499 = vmul.f32 %v5467, %v4886
    %v5500 = vmul.f32 %v5437, %v5468
    %v5501 = vmul.f32 %v5439, %v5469
    %v5502 = vmul.f32 %v5441, %v5470
    %v5503 = vmul.f32 %v5443, %v5471
    %v5504 = vadd.f32 %v5496, %v5500
    %v5505 = vadd.f32 %v5497, %v5501
    %v5506 = vadd.f32 %v5498, %v5502
    %v5507 = vadd.f32 %v5499, %v5503
    %v5508 = vtanh.pop %v5504
    %v5509 = vtanh.pop %v5505
    %v5510 = vtanh.pop %v5506
    %v5511 = vtanh.pop %v5507
    %v5512 = vmul.f32 %v5489, %v5508
    %v5513 = vmul.f32 %v5491, %v5509
    %v5514 = vmul.f32 %v5493, %v5510
    %v5515 = vmul.f32 %v5495, %v5511
    %v5516 = vld [vmem:[%s7] sm:$0x1]
    %v5517 = vpack.c.bf16 %v5513, %v5512
    %v5518 = vpack.c.bf16 %v5515, %v5514
    %v5519 = vld [vmem:[#allocation2] sm:$0x1]
    %5521 = vset.pattern.permute.xlu0 0
    %5522 = vperm.xlu0 %5521, %v5519
    %v5523 = vpop.permute.xlu0 %5522
    %v5525 = vlaneseq
    %v5526 = vshrl.u32 %v5525, 7
    %v5527 = vsub.s32 0, %v5526
    %v5528 = vrot.slane %v5523, %v5527
    %v5530 = vsel %vm371, %v5516, 0
    %5532 = vmatprep.subr.bf16.mxu0 0
    %5533 = vmatpush1.bf16.msra.mxu0 %v5517
    %5534 = vmatprep.subr.bf16.mxu0 0
    %5535 = vmatpush1.bf16.msra.mxu0 %v5518
    %5536 = vmatprep.subr.bf16.mxu0 0
    %5537 = vmatpush1.bf16.msra.mxu0 0
    %5538 = vmatprep.subr.bf16.mxu0 0
    %5539 = vmatpush1.bf16.msra.mxu0 0
    %5540 = vmatprep.subr.bf16.mxu0 0
    %5541 = vmatpush1.bf16.msra.mxu0 0
    %5542 = vmatprep.subr.bf16.mxu0 0
    %5543 = vmatpush1.bf16.msra.mxu0 0
    %5544 = vmatprep.subr.bf16.mxu0 0
    %5545 = vmatpush1.bf16.msra.mxu0 0
    %5546 = vmatprep.subr.bf16.mxu0 0
    %5547 = vmatpush1.bf16.msra.mxu0 0
    %5548 = vmatprep.subr.bf16.mxu0 0
    %5549 = vmatpush1.bf16.msra.mxu0 0
    %5550 = vmatprep.subr.bf16.mxu0 0
    %5551 = vmatpush1.bf16.msra.mxu0 0
    %5552 = vmatprep.subr.bf16.mxu0 0
    %5553 = vmatpush1.bf16.msra.mxu0 0
    %5554 = vmatprep.subr.bf16.mxu0 0
    %5555 = vmatpush1.bf16.msra.mxu0 0
    %5556 = vmatprep.subr.bf16.mxu0 0
    %5557 = vmatpush1.bf16.msra.mxu0 0
    %5558 = vmatprep.subr.bf16.mxu0 0
    %5559 = vmatpush1.bf16.msra.mxu0 0
    %5560 = vmatprep.subr.bf16.mxu0 0
    %5561 = vmatpush1.bf16.msra.mxu0 0
    %5562 = vmatprep.subr.bf16.mxu0 0
    %5563 = vmatpush1.bf16.msra.mxu0 0
    %5564 = vmatprep.mubr.bf16.mxu0 0
    %5565 = vmatmul.mubr.bf16.gmra.mrb[0].mxu0 %v5530
    %v5566 = vpop.f32.mrb[0].mxu0
    %v5567 = vadd.f32 %v5528, %v5566
    %v5568 = vpop.f32.mrb[0].mxu0
    %v5569 = vpop.f32.mrb[0].mxu0
    %v5570 = vpop.f32.mrb[0].mxu0
    %5571 = vdwg.mxu0
    %vm5572 = vcmask 57344
    %5573 = vst.msk [vmem:[#allocation3] sm:$0x1] %vm5572, %v5567
    // Predicated region
    $region38: #{modelo_lstm_forward.1} parent=1 // pred_check
      _
    $region39: #{modelo_lstm_forward.1} parent=1 // pred_check_branch
      %5575 = sbr.rel (0) target = $region41
    $region40: #{modelo_lstm_forward.1} parent=1 // pred_region
      %s5577 = ssub.s32 16, 16
      %5578 = vsyncadd [#allocation4], %s5577
      %s5580 = sshll.u32 [#allocation3], 4
      %s5581 = int_to_ptr.vmem [resolvable:$true] %s5580
      %5583 = dma.vmem_to_hbm [thread:$0]  %s5581, 16, %s9, [#allocation4]
    $region41: #{modelo_lstm_forward.1} parent=1 // pred_fallthru
      _
    // Predicated region
    $region42: #{modelo_lstm_forward.1} parent=1 // pred_check
      _
    $region43: #{modelo_lstm_forward.1} parent=1 // pred_check_branch
      %5585 = sbr.rel (0) target = $region45
    $region44: #{modelo_lstm_forward.1} parent=1 // pred_region
      %5586 = dma.done [#allocation4], 16
    $region45: #{modelo_lstm_forward.1} parent=1 // pred_fallthru
      _
    %5587 = vsyncpa [#allocation4], 1

</llo_original>
